<compile_context>
chip_gen: v6e
topology: v6e:2x2x1
jax: 0.10.0
libtpu: 0.0.40
codegen_flags: <defaults>
</compile_context>

<pallas_src>
import jax
import jax.numpy as jnp
from jax.experimental import pallas as pl
from jax.experimental.pallas import tpu as pltpu

# --- MiniGPT defaults (match the PyTorch __init__) ---
D_MODEL = 128
N_HEADS = 4
N_LAYERS = 2
D_FF = 2048          # nn.TransformerEncoderLayer default dim_feedforward
MAX_SEQ_LEN = 32
VOCAB_SIZE = 1000
V_PAD = 1024         # vocab padded to a multiple of 128 for lane-dense stores
EPS = 1e-5           # nn.LayerNorm default eps

PARAMS_PER_LAYER = 12  # in_w, in_b, out_w, out_b, ln1_w, ln1_b, ln2_w, ln2_b,
                       # ff1_w, ff1_b, ff2_w, ff2_b


def _layer_norm(x, w, b):
    # x: (BT, D) f32, w/b: (1, D) f32 -- per-row statistics.
    mu = jnp.mean(x, axis=-1, keepdims=True)
    var = jnp.mean(jnp.square(x - mu), axis=-1, keepdims=True)
    return (x - mu) * jax.lax.rsqrt(var + EPS) * w + b


def make_minigpt_kernel(B, T):
    H = N_HEADS
    Dh = D_MODEL // H
    scale = 1.0 / (Dh ** 0.5)

    def kernel(x_ref, *refs):
        out_ref = refs[-1]
        p = refs[:-1]

        x = x_ref[...]                                   # (B*T, D) f32

        idx = 0
        for _ in range(N_LAYERS):
            (in_w, in_b, out_w, out_b,
             ln1_w, ln1_b, ln2_w, ln2_b,
             ff1_w, ff1_b, ff2_w, ff2_b) = (
                r[...] for r in p[idx:idx + PARAMS_PER_LAYER])
            idx += PARAMS_PER_LAYER

            # ---- self-attention block (post-norm, no mask) ----
            # Fused QKV: one [BT,128] @ [128,384] MXU call.
            qkv = jnp.dot(x.astype(jnp.bfloat16), in_w,
                          preferred_element_type=jnp.float32) + in_b
            q = qkv[:, :D_MODEL]
            k = qkv[:, D_MODEL:2 * D_MODEL]
            v = qkv[:, 2 * D_MODEL:]

            head_outs = []
            for h in range(H):                            # static 4-way unroll
                sl = slice(h * Dh, (h + 1) * Dh)
                qh = q[:, sl].reshape(B, T, Dh).astype(jnp.bfloat16)
                kh = k[:, sl].reshape(B, T, Dh).astype(jnp.bfloat16)
                vh = v[:, sl].reshape(B, T, Dh).astype(jnp.bfloat16)
                s = jnp.einsum('bqd,bkd->bqk', qh, kh,
                               preferred_element_type=jnp.float32) * scale
                s = s - jnp.max(s, axis=-1, keepdims=True)
                e = jnp.exp(s)
                inv = pl.reciprocal(jnp.sum(e, axis=-1, keepdims=True),
                                    approx=True)
                pa = (e * inv).astype(jnp.bfloat16)
                head_outs.append(
                    jnp.einsum('bqk,bkd->bqd', pa, vh,
                               preferred_element_type=jnp.float32))
            attn = jnp.concatenate(head_outs, axis=-1).reshape(B * T, D_MODEL)
            attn = jnp.dot(attn.astype(jnp.bfloat16), out_w,
                           preferred_element_type=jnp.float32) + out_b

            x = _layer_norm(x + attn, ln1_w, ln1_b)

            # ---- feed-forward block (relu) ----
            h1 = jnp.dot(x.astype(jnp.bfloat16), ff1_w,
                         preferred_element_type=jnp.float32) + ff1_b
            h1 = jnp.maximum(h1, 0.0)
            h2 = jnp.dot(h1.astype(jnp.bfloat16), ff2_w,
                         preferred_element_type=jnp.float32) + ff2_b
            x = _layer_norm(x + h2, ln2_w, ln2_b)

        lnf_w, lnf_b, head_w, head_b = (r[...] for r in p[idx:idx + 4])
        x = _layer_norm(x, lnf_w, lnf_b)
        logits = jnp.dot(x.astype(jnp.bfloat16), head_w,
                         preferred_element_type=jnp.float32) + head_b
        out_ref[...] = logits.astype(out_ref.dtype)       # (BT, V_PAD) lane-dense

    return kernel


def init_params(key):
    n_keys = 4 + N_LAYERS * 4
    keys = iter(jax.random.split(key, n_keys))

    def rnd(shape, scale=0.02):
        return (scale * jax.random.normal(next(keys), shape)).astype(jnp.float32)

    params = {
        'token_emb': rnd((VOCAB_SIZE, D_MODEL), 1.0),
        'pos_emb': jnp.zeros((1, MAX_SEQ_LEN, D_MODEL), jnp.float32),  # torch.zeros
        'layers': [],
        'lnf_w': jnp.ones((1, D_MODEL), jnp.float32),
        'lnf_b': jnp.zeros((1, D_MODEL), jnp.float32),
    }
    for _ in range(N_LAYERS):
        params['layers'].append({
            'in_proj_w': rnd((3 * D_MODEL, D_MODEL)),      # PyTorch [out, in]
            'in_proj_b': jnp.zeros((1, 3 * D_MODEL), jnp.float32),
            'out_proj_w': rnd((D_MODEL, D_MODEL)),
            'out_proj_b': jnp.zeros((1, D_MODEL), jnp.float32),
            'ln1_w': jnp.ones((1, D_MODEL), jnp.float32),
            'ln1_b': jnp.zeros((1, D_MODEL), jnp.float32),
            'ln2_w': jnp.ones((1, D_MODEL), jnp.float32),
            'ln2_b': jnp.zeros((1, D_MODEL), jnp.float32),
            'ff1_w': rnd((D_FF, D_MODEL)),
            'ff1_b': jnp.zeros((1, D_FF), jnp.float32),
            'ff2_w': rnd((D_MODEL, D_FF)),
            'ff2_b': jnp.zeros((1, D_MODEL), jnp.float32),
        })
    params['head_w'] = rnd((VOCAB_SIZE, D_MODEL))
    params['head_b'] = jnp.zeros((1, VOCAB_SIZE), jnp.float32)
    return params


def minigpt_forward(idx_tokens, params):
    B, T = idx_tokens.shape
    # --- glue: embedding gather + positional add (plain JAX) ---
    x = params['token_emb'][idx_tokens] + params['pos_emb'][:, :T, :]   # (B, T, D)
    x2 = x.reshape(B * T, D_MODEL).astype(jnp.float32)                  # (BT, D)

    # --- pack params: transpose weights to [in, out], cast matmul weights to bf16 ---
    flat = []
    for layer in params['layers']:
        flat.extend([
            layer['in_proj_w'].T.astype(jnp.bfloat16),    # (128, 384)
            layer['in_proj_b'],
            layer['out_proj_w'].T.astype(jnp.bfloat16),   # (128, 128)
            layer['out_proj_b'],
            layer['ln1_w'], layer['ln1_b'],
            layer['ln2_w'], layer['ln2_b'],
            layer['ff1_w'].T.astype(jnp.bfloat16),        # (128, 2048)
            layer['ff1_b'],
            layer['ff2_w'].T.astype(jnp.bfloat16),        # (2048, 128)
            layer['ff2_b'],
        ])
    head_w_t = (jnp.zeros((D_MODEL, V_PAD), jnp.float32)
                .at[:, :VOCAB_SIZE].set(params['head_w'].T)
                .astype(jnp.bfloat16))                     # (128, 1024), lane-padded
    head_b_p = (jnp.zeros((1, V_PAD), jnp.float32)
                .at[:, :VOCAB_SIZE].set(params['head_b']))
    flat.extend([params['lnf_w'], params['lnf_b'], head_w_t, head_b_p])

    n_inputs = 1 + len(flat)
    vmem_spec = pl.BlockSpec(memory_space=pltpu.MemorySpace.VMEM)
    logits_padded = pl.pallas_call(
        make_minigpt_kernel(B, T),
        out_shape=jax.ShapeDtypeStruct((B * T, V_PAD), jnp.float32),
        in_specs=[vmem_spec] * n_inputs,
        out_specs=vmem_spec,
        compiler_params=pltpu.CompilerParams(vmem_limit_bytes=32 << 20),
    )(x2, *flat)

    return logits_padded.reshape(B, T, V_PAD)[:, :, :VOCAB_SIZE]


if __name__ == "__main__":
    key = jax.random.PRNGKey(0)
    k_params, k_idx = jax.random.split(key)
    params = init_params(k_params)

    # matches: x = torch.randint(0, vocab_size, (2, 10))
    idx_tokens = jax.random.randint(k_idx, (2, 10), 0, VOCAB_SIZE, dtype=jnp.int32)

    logits = jax.block_until_ready(minigpt_forward(idx_tokens, params))
    assert logits.shape == (2, 10, VOCAB_SIZE)
    assert logits.dtype == jnp.float32
    assert bool(jnp.all(jnp.isfinite(logits)))
    print("KERNEL_OK")
</pallas_src>

<mosaic_0001>
module attributes {stable_mosaic.version = 11 : i64} {
  func.func @kernel(%arg0: memref<20x128xf32, #tpu.memory_space<vmem>>, %arg1: memref<128x384xbf16, #tpu.memory_space<vmem>>, %arg2: memref<1x384xf32, #tpu.memory_space<vmem>>, %arg3: memref<128x128xbf16, #tpu.memory_space<vmem>>, %arg4: memref<1x128xf32, #tpu.memory_space<vmem>>, %arg5: memref<1x128xf32, #tpu.memory_space<vmem>>, %arg6: memref<1x128xf32, #tpu.memory_space<vmem>>, %arg7: memref<1x128xf32, #tpu.memory_space<vmem>>, %arg8: memref<1x128xf32, #tpu.memory_space<vmem>>, %arg9: memref<128x2048xbf16, #tpu.memory_space<vmem>>, %arg10: memref<1x2048xf32, #tpu.memory_space<vmem>>, %arg11: memref<2048x128xbf16, #tpu.memory_space<vmem>>, %arg12: memref<1x128xf32, #tpu.memory_space<vmem>>, %arg13: memref<128x384xbf16, #tpu.memory_space<vmem>>, %arg14: memref<1x384xf32, #tpu.memory_space<vmem>>, %arg15: memref<128x128xbf16, #tpu.memory_space<vmem>>, %arg16: memref<1x128xf32, #tpu.memory_space<vmem>>, %arg17: memref<1x128xf32, #tpu.memory_space<vmem>>, %arg18: memref<1x128xf32, #tpu.memory_space<vmem>>, %arg19: memref<1x128xf32, #tpu.memory_space<vmem>>, %arg20: memref<1x128xf32, #tpu.memory_space<vmem>>, %arg21: memref<128x2048xbf16, #tpu.memory_space<vmem>>, %arg22: memref<1x2048xf32, #tpu.memory_space<vmem>>, %arg23: memref<2048x128xbf16, #tpu.memory_space<vmem>>, %arg24: memref<1x128xf32, #tpu.memory_space<vmem>>, %arg25: memref<1x128xf32, #tpu.memory_space<vmem>>, %arg26: memref<1x128xf32, #tpu.memory_space<vmem>>, %arg27: memref<128x1024xbf16, #tpu.memory_space<vmem>>, %arg28: memref<1x1024xf32, #tpu.memory_space<vmem>>, %arg29: memref<20x1024xf32, #tpu.memory_space<vmem>>) attributes {dimension_semantics = [], scalar_prefetch = 0 : i64, scratch_operands = 0 : i64, tpu.core_type = #tpu.core_type<tc>} {
    %c0 = arith.constant 0 : index
    %c0_0 = arith.constant 0 : index
    %0 = vector.load %arg0[%c0, %c0_0] : memref<20x128xf32, #tpu.memory_space<vmem>>, vector<20x128xf32>
    %c0_1 = arith.constant 0 : index
    %c0_2 = arith.constant 0 : index
    %1 = vector.load %arg1[%c0_1, %c0_2] : memref<128x384xbf16, #tpu.memory_space<vmem>>, vector<128x384xbf16>
    %c0_3 = arith.constant 0 : index
    %c0_4 = arith.constant 0 : index
    %2 = vector.load %arg2[%c0_3, %c0_4] : memref<1x384xf32, #tpu.memory_space<vmem>>, vector<1x384xf32>
    %c0_5 = arith.constant 0 : index
    %c0_6 = arith.constant 0 : index
    %3 = vector.load %arg3[%c0_5, %c0_6] : memref<128x128xbf16, #tpu.memory_space<vmem>>, vector<128x128xbf16>
    %c0_7 = arith.constant 0 : index
    %c0_8 = arith.constant 0 : index
    %4 = vector.load %arg4[%c0_7, %c0_8] : memref<1x128xf32, #tpu.memory_space<vmem>>, vector<1x128xf32>
    %c0_9 = arith.constant 0 : index
    %c0_10 = arith.constant 0 : index
    %5 = vector.load %arg5[%c0_9, %c0_10] : memref<1x128xf32, #tpu.memory_space<vmem>>, vector<1x128xf32>
    %c0_11 = arith.constant 0 : index
    %c0_12 = arith.constant 0 : index
    %6 = vector.load %arg6[%c0_11, %c0_12] : memref<1x128xf32, #tpu.memory_space<vmem>>, vector<1x128xf32>
    %c0_13 = arith.constant 0 : index
    %c0_14 = arith.constant 0 : index
    %7 = vector.load %arg7[%c0_13, %c0_14] : memref<1x128xf32, #tpu.memory_space<vmem>>, vector<1x128xf32>
    %c0_15 = arith.constant 0 : index
    %c0_16 = arith.constant 0 : index
    %8 = vector.load %arg8[%c0_15, %c0_16] : memref<1x128xf32, #tpu.memory_space<vmem>>, vector<1x128xf32>
    %c0_17 = arith.constant 0 : index
    %c0_18 = arith.constant 0 : index
    %9 = vector.load %arg9[%c0_17, %c0_18] : memref<128x2048xbf16, #tpu.memory_space<vmem>>, vector<128x2048xbf16>
    %c0_19 = arith.constant 0 : index
    %c0_20 = arith.constant 0 : index
    %10 = vector.load %arg10[%c0_19, %c0_20] : memref<1x2048xf32, #tpu.memory_space<vmem>>, vector<1x2048xf32>
    %c0_21 = arith.constant 0 : index
    %c0_22 = arith.constant 0 : index
    %11 = vector.load %arg11[%c0_21, %c0_22] : memref<2048x128xbf16, #tpu.memory_space<vmem>>, vector<2048x128xbf16>
    %c0_23 = arith.constant 0 : index
    %c0_24 = arith.constant 0 : index
    %12 = vector.load %arg12[%c0_23, %c0_24] : memref<1x128xf32, #tpu.memory_space<vmem>>, vector<1x128xf32>
    %13 = arith.truncf %0 : vector<20x128xf32> to vector<20x128xbf16>
    %cst = arith.constant dense<0.000000e+00> : vector<20x384xf32>
    %14 = tpu.matmul %13, %1, %cst {dimension_numbers = #tpu.dot_dimension_numbers<[1], [0], [0], [1], [0, 0, 1, 1], [], []>} : vector<20x128xbf16>, vector<128x384xbf16>, vector<20x384xf32> -> vector<20x384xf32>
    %15 = vector.broadcast %2 : vector<1x384xf32> to vector<20x384xf32>
    %16 = arith.addf %14, %15 : vector<20x384xf32>
    %17 = vector.extract_strided_slice %16 {offsets = [0, 0], sizes = [20, 128], strides = [1, 1]} : vector<20x384xf32> to vector<20x128xf32>
    %18 = vector.extract_strided_slice %16 {offsets = [0, 128], sizes = [20, 128], strides = [1, 1]} : vector<20x384xf32> to vector<20x128xf32>
    %19 = vector.extract_strided_slice %16 {offsets = [0, 256], sizes = [20, 128], strides = [1, 1]} : vector<20x384xf32> to vector<20x128xf32>
    %20 = vector.extract_strided_slice %17 {offsets = [0, 0], sizes = [20, 32], strides = [1, 1]} : vector<20x128xf32> to vector<20x32xf32>
    %21 = vector.shape_cast %20 : vector<20x32xf32> to vector<2x10x32xf32>
    %22 = arith.truncf %21 : vector<2x10x32xf32> to vector<2x10x32xbf16>
    %23 = vector.extract_strided_slice %18 {offsets = [0, 0], sizes = [20, 32], strides = [1, 1]} : vector<20x128xf32> to vector<20x32xf32>
    %24 = vector.shape_cast %23 : vector<20x32xf32> to vector<2x10x32xf32>
    %25 = arith.truncf %24 : vector<2x10x32xf32> to vector<2x10x32xbf16>
    %26 = vector.extract_strided_slice %19 {offsets = [0, 0], sizes = [20, 32], strides = [1, 1]} : vector<20x128xf32> to vector<20x32xf32>
    %27 = vector.shape_cast %26 : vector<20x32xf32> to vector<2x10x32xf32>
    %28 = arith.truncf %27 : vector<2x10x32xf32> to vector<2x10x32xbf16>
    "tpu.trace_start"() <{level = 10 : i32, message = "bqd,bkd->bqk"}> : () -> ()
    %cst_25 = arith.constant dense<0.000000e+00> : vector<2x10x10xf32>
    %29 = tpu.matmul %22, %25, %cst_25 {dimension_numbers = #tpu.dot_dimension_numbers<[2], [2], [1], [1], [0, 0, 0, 1, 1, 1], [0], [0]>} : vector<2x10x32xbf16>, vector<2x10x32xbf16>, vector<2x10x10xf32> -> vector<2x10x10xf32>
    "tpu.trace_stop"() : () -> ()
    %cst_26 = arith.constant 0.176776692 : f32
    %30 = vector.broadcast %cst_26 : f32 to vector<2x10x10xf32>
    %31 = arith.mulf %29, %30 : vector<2x10x10xf32>
    %cst_27 = arith.constant dense<0xFF800000> : vector<2x10xf32>
    %32 = vector.multi_reduction <maximumf>, %31, %cst_27 [2] : vector<2x10x10xf32> to vector<2x10xf32>
    %33 = vector.shape_cast %32 : vector<2x10xf32> to vector<2x10x1xf32>
    %34 = vector.broadcast %33 : vector<2x10x1xf32> to vector<2x10x10xf32>
    %35 = arith.subf %31, %34 : vector<2x10x10xf32>
    %36 = math.exp %35 : vector<2x10x10xf32>
    %cst_28 = arith.constant dense<0.000000e+00> : vector<2x10xf32>
    %37 = vector.multi_reduction <add>, %36, %cst_28 [2] : vector<2x10x10xf32> to vector<2x10xf32>
    %38 = vector.shape_cast %37 : vector<2x10xf32> to vector<2x10x1xf32>
    %39 = tpu.reciprocal %38 {approx = true} : vector<2x10x1xf32> -> vector<2x10x1xf32>
    %40 = vector.broadcast %39 : vector<2x10x1xf32> to vector<2x10x10xf32>
    %41 = arith.mulf %36, %40 : vector<2x10x10xf32>
    %42 = arith.truncf %41 : vector<2x10x10xf32> to vector<2x10x10xbf16>
    "tpu.trace_start"() <{level = 10 : i32, message = "bqk,bkd->bqd"}> : () -> ()
    %cst_29 = arith.constant dense<0.000000e+00> : vector<2x10x32xf32>
    %43 = tpu.matmul %42, %28, %cst_29 {dimension_numbers = #tpu.dot_dimension_numbers<[2], [1], [1], [2], [0, 0, 0, 1, 1, 2], [0], [0]>} : vector<2x10x10xbf16>, vector<2x10x32xbf16>, vector<2x10x32xf32> -> vector<2x10x32xf32>
    "tpu.trace_stop"() : () -> ()
    %44 = vector.extract_strided_slice %17 {offsets = [0, 32], sizes = [20, 32], strides = [1, 1]} : vector<20x128xf32> to vector<20x32xf32>
    %45 = vector.shape_cast %44 : vector<20x32xf32> to vector<2x10x32xf32>
    %46 = arith.truncf %45 : vector<2x10x32xf32> to vector<2x10x32xbf16>
    %47 = vector.extract_strided_slice %18 {offsets = [0, 32], sizes = [20, 32], strides = [1, 1]} : vector<20x128xf32> to vector<20x32xf32>
    %48 = vector.shape_cast %47 : vector<20x32xf32> to vector<2x10x32xf32>
    %49 = arith.truncf %48 : vector<2x10x32xf32> to vector<2x10x32xbf16>
    %50 = vector.extract_strided_slice %19 {offsets = [0, 32], sizes = [20, 32], strides = [1, 1]} : vector<20x128xf32> to vector<20x32xf32>
    %51 = vector.shape_cast %50 : vector<20x32xf32> to vector<2x10x32xf32>
    %52 = arith.truncf %51 : vector<2x10x32xf32> to vector<2x10x32xbf16>
    "tpu.trace_start"() <{level = 10 : i32, message = "bqd,bkd->bqk"}> : () -> ()
    %cst_30 = arith.constant dense<0.000000e+00> : vector<2x10x10xf32>
    %53 = tpu.matmul %46, %49, %cst_30 {dimension_numbers = #tpu.dot_dimension_numbers<[2], [2], [1], [1], [0, 0, 0, 1, 1, 1], [0], [0]>} : vector<2x10x32xbf16>, vector<2x10x32xbf16>, vector<2x10x10xf32> -> vector<2x10x10xf32>
    "tpu.trace_stop"() : () -> ()
    %cst_31 = arith.constant 0.176776692 : f32
    %54 = vector.broadcast %cst_31 : f32 to vector<2x10x10xf32>
    %55 = arith.mulf %53, %54 : vector<2x10x10xf32>
    %cst_32 = arith.constant dense<0xFF800000> : vector<2x10xf32>
    %56 = vector.multi_reduction <maximumf>, %55, %cst_32 [2] : vector<2x10x10xf32> to vector<2x10xf32>
    %57 = vector.shape_cast %56 : vector<2x10xf32> to vector<2x10x1xf32>
    %58 = vector.broadcast %57 : vector<2x10x1xf32> to vector<2x10x10xf32>
    %59 = arith.subf %55, %58 : vector<2x10x10xf32>
    %60 = math.exp %59 : vector<2x10x10xf32>
    %cst_33 = arith.constant dense<0.000000e+00> : vector<2x10xf32>
    %61 = vector.multi_reduction <add>, %60, %cst_33 [2] : vector<2x10x10xf32> to vector<2x10xf32>
    %62 = vector.shape_cast %61 : vector<2x10xf32> to vector<2x10x1xf32>
    %63 = tpu.reciprocal %62 {approx = true} : vector<2x10x1xf32> -> vector<2x10x1xf32>
    %64 = vector.broadcast %63 : vector<2x10x1xf32> to vector<2x10x10xf32>
    %65 = arith.mulf %60, %64 : vector<2x10x10xf32>
    %66 = arith.truncf %65 : vector<2x10x10xf32> to vector<2x10x10xbf16>
    "tpu.trace_start"() <{level = 10 : i32, message = "bqk,bkd->bqd"}> : () -> ()
    %cst_34 = arith.constant dense<0.000000e+00> : vector<2x10x32xf32>
    %67 = tpu.matmul %66, %52, %cst_34 {dimension_numbers = #tpu.dot_dimension_numbers<[2], [1], [1], [2], [0, 0, 0, 1, 1, 2], [0], [0]>} : vector<2x10x10xbf16>, vector<2x10x32xbf16>, vector<2x10x32xf32> -> vector<2x10x32xf32>
    "tpu.trace_stop"() : () -> ()
    %68 = vector.extract_strided_slice %17 {offsets = [0, 64], sizes = [20, 32], strides = [1, 1]} : vector<20x128xf32> to vector<20x32xf32>
    %69 = vector.shape_cast %68 : vector<20x32xf32> to vector<2x10x32xf32>
    %70 = arith.truncf %69 : vector<2x10x32xf32> to vector<2x10x32xbf16>
    %71 = vector.extract_strided_slice %18 {offsets = [0, 64], sizes = [20, 32], strides = [1, 1]} : vector<20x128xf32> to vector<20x32xf32>
    %72 = vector.shape_cast %71 : vector<20x32xf32> to vector<2x10x32xf32>
    %73 = arith.truncf %72 : vector<2x10x32xf32> to vector<2x10x32xbf16>
    %74 = vector.extract_strided_slice %19 {offsets = [0, 64], sizes = [20, 32], strides = [1, 1]} : vector<20x128xf32> to vector<20x32xf32>
    %75 = vector.shape_cast %74 : vector<20x32xf32> to vector<2x10x32xf32>
    %76 = arith.truncf %75 : vector<2x10x32xf32> to vector<2x10x32xbf16>
    "tpu.trace_start"() <{level = 10 : i32, message = "bqd,bkd->bqk"}> : () -> ()
    %cst_35 = arith.constant dense<0.000000e+00> : vector<2x10x10xf32>
    %77 = tpu.matmul %70, %73, %cst_35 {dimension_numbers = #tpu.dot_dimension_numbers<[2], [2], [1], [1], [0, 0, 0, 1, 1, 1], [0], [0]>} : vector<2x10x32xbf16>, vector<2x10x32xbf16>, vector<2x10x10xf32> -> vector<2x10x10xf32>
    "tpu.trace_stop"() : () -> ()
    %cst_36 = arith.constant 0.176776692 : f32
    %78 = vector.broadcast %cst_36 : f32 to vector<2x10x10xf32>
    %79 = arith.mulf %77, %78 : vector<2x10x10xf32>
    %cst_37 = arith.constant dense<0xFF800000> : vector<2x10xf32>
    %80 = vector.multi_reduction <maximumf>, %79, %cst_37 [2] : vector<2x10x10xf32> to vector<2x10xf32>
    %81 = vector.shape_cast %80 : vector<2x10xf32> to vector<2x10x1xf32>
    %82 = vector.broadcast %81 : vector<2x10x1xf32> to vector<2x10x10xf32>
    %83 = arith.subf %79, %82 : vector<2x10x10xf32>
    %84 = math.exp %83 : vector<2x10x10xf32>
    %cst_38 = arith.constant dense<0.000000e+00> : vector<2x10xf32>
    %85 = vector.multi_reduction <add>, %84, %cst_38 [2] : vector<2x10x10xf32> to vector<2x10xf32>
    %86 = vector.shape_cast %85 : vector<2x10xf32> to vector<2x10x1xf32>
    %87 = tpu.reciprocal %86 {approx = true} : vector<2x10x1xf32> -> vector<2x10x1xf32>
    %88 = vector.broadcast %87 : vector<2x10x1xf32> to vector<2x10x10xf32>
    %89 = arith.mulf %84, %88 : vector<2x10x10xf32>
    %90 = arith.truncf %89 : vector<2x10x10xf32> to vector<2x10x10xbf16>
    "tpu.trace_start"() <{level = 10 : i32, message = "bqk,bkd->bqd"}> : () -> ()
    %cst_39 = arith.constant dense<0.000000e+00> : vector<2x10x32xf32>
    %91 = tpu.matmul %90, %76, %cst_39 {dimension_numbers = #tpu.dot_dimension_numbers<[2], [1], [1], [2], [0, 0, 0, 1, 1, 2], [0], [0]>} : vector<2x10x10xbf16>, vector<2x10x32xbf16>, vector<2x10x32xf32> -> vector<2x10x32xf32>
    "tpu.trace_stop"() : () -> ()
    %92 = vector.extract_strided_slice %17 {offsets = [0, 96], sizes = [20, 32], strides = [1, 1]} : vector<20x128xf32> to vector<20x32xf32>
    %93 = vector.shape_cast %92 : vector<20x32xf32> to vector<2x10x32xf32>
    %94 = arith.truncf %93 : vector<2x10x32xf32> to vector<2x10x32xbf16>
    %95 = vector.extract_strided_slice %18 {offsets = [0, 96], sizes = [20, 32], strides = [1, 1]} : vector<20x128xf32> to vector<20x32xf32>
    %96 = vector.shape_cast %95 : vector<20x32xf32> to vector<2x10x32xf32>
    %97 = arith.truncf %96 : vector<2x10x32xf32> to vector<2x10x32xbf16>
    %98 = vector.extract_strided_slice %19 {offsets = [0, 96], sizes = [20, 32], strides = [1, 1]} : vector<20x128xf32> to vector<20x32xf32>
    %99 = vector.shape_cast %98 : vector<20x32xf32> to vector<2x10x32xf32>
    %100 = arith.truncf %99 : vector<2x10x32xf32> to vector<2x10x32xbf16>
    "tpu.trace_start"() <{level = 10 : i32, message = "bqd,bkd->bqk"}> : () -> ()
    %cst_40 = arith.constant dense<0.000000e+00> : vector<2x10x10xf32>
    %101 = tpu.matmul %94, %97, %cst_40 {dimension_numbers = #tpu.dot_dimension_numbers<[2], [2], [1], [1], [0, 0, 0, 1, 1, 1], [0], [0]>} : vector<2x10x32xbf16>, vector<2x10x32xbf16>, vector<2x10x10xf32> -> vector<2x10x10xf32>
    "tpu.trace_stop"() : () -> ()
    %cst_41 = arith.constant 0.176776692 : f32
    %102 = vector.broadcast %cst_41 : f32 to vector<2x10x10xf32>
    %103 = arith.mulf %101, %102 : vector<2x10x10xf32>
    %cst_42 = arith.constant dense<0xFF800000> : vector<2x10xf32>
    %104 = vector.multi_reduction <maximumf>, %103, %cst_42 [2] : vector<2x10x10xf32> to vector<2x10xf32>
    %105 = vector.shape_cast %104 : vector<2x10xf32> to vector<2x10x1xf32>
    %106 = vector.broadcast %105 : vector<2x10x1xf32> to vector<2x10x10xf32>
    %107 = arith.subf %103, %106 : vector<2x10x10xf32>
    %108 = math.exp %107 : vector<2x10x10xf32>
    %cst_43 = arith.constant dense<0.000000e+00> : vector<2x10xf32>
    %109 = vector.multi_reduction <add>, %108, %cst_43 [2] : vector<2x10x10xf32> to vector<2x10xf32>
    %110 = vector.shape_cast %109 : vector<2x10xf32> to vector<2x10x1xf32>
    %111 = tpu.reciprocal %110 {approx = true} : vector<2x10x1xf32> -> vector<2x10x1xf32>
    %112 = vector.broadcast %111 : vector<2x10x1xf32> to vector<2x10x10xf32>
    %113 = arith.mulf %108, %112 : vector<2x10x10xf32>
    %114 = arith.truncf %113 : vector<2x10x10xf32> to vector<2x10x10xbf16>
    "tpu.trace_start"() <{level = 10 : i32, message = "bqk,bkd->bqd"}> : () -> ()
    %cst_44 = arith.constant dense<0.000000e+00> : vector<2x10x32xf32>
    %115 = tpu.matmul %114, %100, %cst_44 {dimension_numbers = #tpu.dot_dimension_numbers<[2], [1], [1], [2], [0, 0, 0, 1, 1, 2], [0], [0]>} : vector<2x10x10xbf16>, vector<2x10x32xbf16>, vector<2x10x32xf32> -> vector<2x10x32xf32>
    "tpu.trace_stop"() : () -> ()
    %116 = tpu.concatenate %43, %67, %91, %115 in 2 : vector<2x10x32xf32>, vector<2x10x32xf32>, vector<2x10x32xf32>, vector<2x10x32xf32> -> vector<2x10x128xf32>
    %117 = vector.shape_cast %116 : vector<2x10x128xf32> to vector<20x128xf32>
    %118 = arith.truncf %117 : vector<20x128xf32> to vector<20x128xbf16>
    %cst_45 = arith.constant dense<0.000000e+00> : vector<20x128xf32>
    %119 = tpu.matmul %118, %3, %cst_45 {dimension_numbers = #tpu.dot_dimension_numbers<[1], [0], [0], [1], [0, 0, 1, 1], [], []>} : vector<20x128xbf16>, vector<128x128xbf16>, vector<20x128xf32> -> vector<20x128xf32>
    %120 = vector.broadcast %4 : vector<1x128xf32> to vector<20x128xf32>
    %121 = arith.addf %119, %120 : vector<20x128xf32>
    %122 = arith.addf %0, %121 : vector<20x128xf32>
    %cst_46 = arith.constant dense<0.000000e+00> : vector<20xf32>
    %123 = vector.multi_reduction <add>, %122, %cst_46 [1] : vector<20x128xf32> to vector<20xf32>
    %124 = vector.shape_cast %123 : vector<20xf32> to vector<20x1xf32>
    %cst_47 = arith.constant 1.280000e+02 : f32
    %125 = vector.broadcast %cst_47 : f32 to vector<20x1xf32>
    %126 = arith.divf %124, %125 : vector<20x1xf32>
    %127 = vector.broadcast %126 : vector<20x1xf32> to vector<20x128xf32>
    %128 = arith.subf %122, %127 : vector<20x128xf32>
    %129 = arith.mulf %128, %128 : vector<20x128xf32>
    %cst_48 = arith.constant dense<0.000000e+00> : vector<20xf32>
    %130 = vector.multi_reduction <add>, %129, %cst_48 [1] : vector<20x128xf32> to vector<20xf32>
    %131 = vector.shape_cast %130 : vector<20xf32> to vector<20x1xf32>
    %cst_49 = arith.constant 1.280000e+02 : f32
    %132 = vector.broadcast %cst_49 : f32 to vector<20x1xf32>
    %133 = arith.divf %131, %132 : vector<20x1xf32>
    %134 = vector.broadcast %126 : vector<20x1xf32> to vector<20x128xf32>
    %135 = arith.subf %122, %134 : vector<20x128xf32>
    %cst_50 = arith.constant 9.99999974E-6 : f32
    %136 = vector.broadcast %cst_50 : f32 to vector<20x1xf32>
    %137 = arith.addf %133, %136 : vector<20x1xf32>
    %138 = math.rsqrt %137 : vector<20x1xf32>
    %139 = vector.broadcast %138 : vector<20x1xf32> to vector<20x128xf32>
    %140 = arith.mulf %135, %139 : vector<20x128xf32>
    %141 = vector.broadcast %5 : vector<1x128xf32> to vector<20x128xf32>
    %142 = arith.mulf %140, %141 : vector<20x128xf32>
    %143 = vector.broadcast %6 : vector<1x128xf32> to vector<20x128xf32>
    %144 = arith.addf %142, %143 : vector<20x128xf32>
    %145 = arith.truncf %144 : vector<20x128xf32> to vector<20x128xbf16>
    %cst_51 = arith.constant dense<0.000000e+00> : vector<20x2048xf32>
    %146 = tpu.matmul %145, %9, %cst_51 {dimension_numbers = #tpu.dot_dimension_numbers<[1], [0], [0], [1], [0, 0, 1, 1], [], []>} : vector<20x128xbf16>, vector<128x2048xbf16>, vector<20x2048xf32> -> vector<20x2048xf32>
    %147 = vector.broadcast %10 : vector<1x2048xf32> to vector<20x2048xf32>
    %148 = arith.addf %146, %147 : vector<20x2048xf32>
    %cst_52 = arith.constant 0.000000e+00 : f32
    %149 = vector.broadcast %cst_52 : f32 to vector<20x2048xf32>
    %150 = arith.maximumf %148, %149 : vector<20x2048xf32>
    %151 = arith.truncf %150 : vector<20x2048xf32> to vector<20x2048xbf16>
    %cst_53 = arith.constant dense<0.000000e+00> : vector<20x128xf32>
    %152 = tpu.matmul %151, %11, %cst_53 {dimension_numbers = #tpu.dot_dimension_numbers<[1], [0], [0], [1], [0, 0, 1, 1], [], []>} : vector<20x2048xbf16>, vector<2048x128xbf16>, vector<20x128xf32> -> vector<20x128xf32>
    %153 = vector.broadcast %12 : vector<1x128xf32> to vector<20x128xf32>
    %154 = arith.addf %152, %153 : vector<20x128xf32>
    %155 = arith.addf %144, %154 : vector<20x128xf32>
    %cst_54 = arith.constant dense<0.000000e+00> : vector<20xf32>
    %156 = vector.multi_reduction <add>, %155, %cst_54 [1] : vector<20x128xf32> to vector<20xf32>
    %157 = vector.shape_cast %156 : vector<20xf32> to vector<20x1xf32>
    %cst_55 = arith.constant 1.280000e+02 : f32
    %158 = vector.broadcast %cst_55 : f32 to vector<20x1xf32>
    %159 = arith.divf %157, %158 : vector<20x1xf32>
    %160 = vector.broadcast %159 : vector<20x1xf32> to vector<20x128xf32>
    %161 = arith.subf %155, %160 : vector<20x128xf32>
    %162 = arith.mulf %161, %161 : vector<20x128xf32>
    %cst_56 = arith.constant dense<0.000000e+00> : vector<20xf32>
    %163 = vector.multi_reduction <add>, %162, %cst_56 [1] : vector<20x128xf32> to vector<20xf32>
    %164 = vector.shape_cast %163 : vector<20xf32> to vector<20x1xf32>
    %cst_57 = arith.constant 1.280000e+02 : f32
    %165 = vector.broadcast %cst_57 : f32 to vector<20x1xf32>
    %166 = arith.divf %164, %165 : vector<20x1xf32>
    %167 = vector.broadcast %159 : vector<20x1xf32> to vector<20x128xf32>
    %168 = arith.subf %155, %167 : vector<20x128xf32>
    %cst_58 = arith.constant 9.99999974E-6 : f32
    %169 = vector.broadcast %cst_58 : f32 to vector<20x1xf32>
    %170 = arith.addf %166, %169 : vector<20x1xf32>
    %171 = math.rsqrt %170 : vector<20x1xf32>
    %172 = vector.broadcast %171 : vector<20x1xf32> to vector<20x128xf32>
    %173 = arith.mulf %168, %172 : vector<20x128xf32>
    %174 = vector.broadcast %7 : vector<1x128xf32> to vector<20x128xf32>
    %175 = arith.mulf %173, %174 : vector<20x128xf32>
    %176 = vector.broadcast %8 : vector<1x128xf32> to vector<20x128xf32>
    %177 = arith.addf %175, %176 : vector<20x128xf32>
    %c0_59 = arith.constant 0 : index
    %c0_60 = arith.constant 0 : index
    %178 = vector.load %arg13[%c0_59, %c0_60] : memref<128x384xbf16, #tpu.memory_space<vmem>>, vector<128x384xbf16>
    %c0_61 = arith.constant 0 : index
    %c0_62 = arith.constant 0 : index
    %179 = vector.load %arg14[%c0_61, %c0_62] : memref<1x384xf32, #tpu.memory_space<vmem>>, vector<1x384xf32>
    %c0_63 = arith.constant 0 : index
    %c0_64 = arith.constant 0 : index
    %180 = vector.load %arg15[%c0_63, %c0_64] : memref<128x128xbf16, #tpu.memory_space<vmem>>, vector<128x128xbf16>
    %c0_65 = arith.constant 0 : index
    %c0_66 = arith.constant 0 : index
    %181 = vector.load %arg16[%c0_65, %c0_66] : memref<1x128xf32, #tpu.memory_space<vmem>>, vector<1x128xf32>
    %c0_67 = arith.constant 0 : index
    %c0_68 = arith.constant 0 : index
    %182 = vector.load %arg17[%c0_67, %c0_68] : memref<1x128xf32, #tpu.memory_space<vmem>>, vector<1x128xf32>
    %c0_69 = arith.constant 0 : index
    %c0_70 = arith.constant 0 : index
    %183 = vector.load %arg18[%c0_69, %c0_70] : memref<1x128xf32, #tpu.memory_space<vmem>>, vector<1x128xf32>
    %c0_71 = arith.constant 0 : index
    %c0_72 = arith.constant 0 : index
    %184 = vector.load %arg19[%c0_71, %c0_72] : memref<1x128xf32, #tpu.memory_space<vmem>>, vector<1x128xf32>
    %c0_73 = arith.constant 0 : index
    %c0_74 = arith.constant 0 : index
    %185 = vector.load %arg20[%c0_73, %c0_74] : memref<1x128xf32, #tpu.memory_space<vmem>>, vector<1x128xf32>
    %c0_75 = arith.constant 0 : index
    %c0_76 = arith.constant 0 : index
    %186 = vector.load %arg21[%c0_75, %c0_76] : memref<128x2048xbf16, #tpu.memory_space<vmem>>, vector<128x2048xbf16>
    %c0_77 = arith.constant 0 : index
    %c0_78 = arith.constant 0 : index
    %187 = vector.load %arg22[%c0_77, %c0_78] : memref<1x2048xf32, #tpu.memory_space<vmem>>, vector<1x2048xf32>
    %c0_79 = arith.constant 0 : index
    %c0_80 = arith.constant 0 : index
    %188 = vector.load %arg23[%c0_79, %c0_80] : memref<2048x128xbf16, #tpu.memory_space<vmem>>, vector<2048x128xbf16>
    %c0_81 = arith.constant 0 : index
    %c0_82 = arith.constant 0 : index
    %189 = vector.load %arg24[%c0_81, %c0_82] : memref<1x128xf32, #tpu.memory_space<vmem>>, vector<1x128xf32>
    %190 = arith.truncf %177 : vector<20x128xf32> to vector<20x128xbf16>
    %cst_83 = arith.constant dense<0.000000e+00> : vector<20x384xf32>
    %191 = tpu.matmul %190, %178, %cst_83 {dimension_numbers = #tpu.dot_dimension_numbers<[1], [0], [0], [1], [0, 0, 1, 1], [], []>} : vector<20x128xbf16>, vector<128x384xbf16>, vector<20x384xf32> -> vector<20x384xf32>
    %192 = vector.broadcast %179 : vector<1x384xf32> to vector<20x384xf32>
    %193 = arith.addf %191, %192 : vector<20x384xf32>
    %194 = vector.extract_strided_slice %193 {offsets = [0, 0], sizes = [20, 128], strides = [1, 1]} : vector<20x384xf32> to vector<20x128xf32>
    %195 = vector.extract_strided_slice %193 {offsets = [0, 128], sizes = [20, 128], strides = [1, 1]} : vector<20x384xf32> to vector<20x128xf32>
    %196 = vector.extract_strided_slice %193 {offsets = [0, 256], sizes = [20, 128], strides = [1, 1]} : vector<20x384xf32> to vector<20x128xf32>
    %197 = vector.extract_strided_slice %194 {offsets = [0, 0], sizes = [20, 32], strides = [1, 1]} : vector<20x128xf32> to vector<20x32xf32>
    %198 = vector.shape_cast %197 : vector<20x32xf32> to vector<2x10x32xf32>
    %199 = arith.truncf %198 : vector<2x10x32xf32> to vector<2x10x32xbf16>
    %200 = vector.extract_strided_slice %195 {offsets = [0, 0], sizes = [20, 32], strides = [1, 1]} : vector<20x128xf32> to vector<20x32xf32>
    %201 = vector.shape_cast %200 : vector<20x32xf32> to vector<2x10x32xf32>
    %202 = arith.truncf %201 : vector<2x10x32xf32> to vector<2x10x32xbf16>
    %203 = vector.extract_strided_slice %196 {offsets = [0, 0], sizes = [20, 32], strides = [1, 1]} : vector<20x128xf32> to vector<20x32xf32>
    %204 = vector.shape_cast %203 : vector<20x32xf32> to vector<2x10x32xf32>
    %205 = arith.truncf %204 : vector<2x10x32xf32> to vector<2x10x32xbf16>
    "tpu.trace_start"() <{level = 10 : i32, message = "bqd,bkd->bqk"}> : () -> ()
    %cst_84 = arith.constant dense<0.000000e+00> : vector<2x10x10xf32>
    %206 = tpu.matmul %199, %202, %cst_84 {dimension_numbers = #tpu.dot_dimension_numbers<[2], [2], [1], [1], [0, 0, 0, 1, 1, 1], [0], [0]>} : vector<2x10x32xbf16>, vector<2x10x32xbf16>, vector<2x10x10xf32> -> vector<2x10x10xf32>
    "tpu.trace_stop"() : () -> ()
    %cst_85 = arith.constant 0.176776692 : f32
    %207 = vector.broadcast %cst_85 : f32 to vector<2x10x10xf32>
    %208 = arith.mulf %206, %207 : vector<2x10x10xf32>
    %cst_86 = arith.constant dense<0xFF800000> : vector<2x10xf32>
    %209 = vector.multi_reduction <maximumf>, %208, %cst_86 [2] : vector<2x10x10xf32> to vector<2x10xf32>
    %210 = vector.shape_cast %209 : vector<2x10xf32> to vector<2x10x1xf32>
    %211 = vector.broadcast %210 : vector<2x10x1xf32> to vector<2x10x10xf32>
    %212 = arith.subf %208, %211 : vector<2x10x10xf32>
    %213 = math.exp %212 : vector<2x10x10xf32>
    %cst_87 = arith.constant dense<0.000000e+00> : vector<2x10xf32>
    %214 = vector.multi_reduction <add>, %213, %cst_87 [2] : vector<2x10x10xf32> to vector<2x10xf32>
    %215 = vector.shape_cast %214 : vector<2x10xf32> to vector<2x10x1xf32>
    %216 = tpu.reciprocal %215 {approx = true} : vector<2x10x1xf32> -> vector<2x10x1xf32>
    %217 = vector.broadcast %216 : vector<2x10x1xf32> to vector<2x10x10xf32>
    %218 = arith.mulf %213, %217 : vector<2x10x10xf32>
    %219 = arith.truncf %218 : vector<2x10x10xf32> to vector<2x10x10xbf16>
    "tpu.trace_start"() <{level = 10 : i32, message = "bqk,bkd->bqd"}> : () -> ()
    %cst_88 = arith.constant dense<0.000000e+00> : vector<2x10x32xf32>
    %220 = tpu.matmul %219, %205, %cst_88 {dimension_numbers = #tpu.dot_dimension_numbers<[2], [1], [1], [2], [0, 0, 0, 1, 1, 2], [0], [0]>} : vector<2x10x10xbf16>, vector<2x10x32xbf16>, vector<2x10x32xf32> -> vector<2x10x32xf32>
    "tpu.trace_stop"() : () -> ()
    %221 = vector.extract_strided_slice %194 {offsets = [0, 32], sizes = [20, 32], strides = [1, 1]} : vector<20x128xf32> to vector<20x32xf32>
    %222 = vector.shape_cast %221 : vector<20x32xf32> to vector<2x10x32xf32>
    %223 = arith.truncf %222 : vector<2x10x32xf32> to vector<2x10x32xbf16>
    %224 = vector.extract_strided_slice %195 {offsets = [0, 32], sizes = [20, 32], strides = [1, 1]} : vector<20x128xf32> to vector<20x32xf32>
    %225 = vector.shape_cast %224 : vector<20x32xf32> to vector<2x10x32xf32>
    %226 = arith.truncf %225 : vector<2x10x32xf32> to vector<2x10x32xbf16>
    %227 = vector.extract_strided_slice %196 {offsets = [0, 32], sizes = [20, 32], strides = [1, 1]} : vector<20x128xf32> to vector<20x32xf32>
    %228 = vector.shape_cast %227 : vector<20x32xf32> to vector<2x10x32xf32>
    %229 = arith.truncf %228 : vector<2x10x32xf32> to vector<2x10x32xbf16>
    "tpu.trace_start"() <{level = 10 : i32, message = "bqd,bkd->bqk"}> : () -> ()
    %cst_89 = arith.constant dense<0.000000e+00> : vector<2x10x10xf32>
    %230 = tpu.matmul %223, %226, %cst_89 {dimension_numbers = #tpu.dot_dimension_numbers<[2], [2], [1], [1], [0, 0, 0, 1, 1, 1], [0], [0]>} : vector<2x10x32xbf16>, vector<2x10x32xbf16>, vector<2x10x10xf32> -> vector<2x10x10xf32>
    "tpu.trace_stop"() : () -> ()
    %cst_90 = arith.constant 0.176776692 : f32
    %231 = vector.broadcast %cst_90 : f32 to vector<2x10x10xf32>
    %232 = arith.mulf %230, %231 : vector<2x10x10xf32>
    %cst_91 = arith.constant dense<0xFF800000> : vector<2x10xf32>
    %233 = vector.multi_reduction <maximumf>, %232, %cst_91 [2] : vector<2x10x10xf32> to vector<2x10xf32>
    %234 = vector.shape_cast %233 : vector<2x10xf32> to vector<2x10x1xf32>
    %235 = vector.broadcast %234 : vector<2x10x1xf32> to vector<2x10x10xf32>
    %236 = arith.subf %232, %235 : vector<2x10x10xf32>
    %237 = math.exp %236 : vector<2x10x10xf32>
    %cst_92 = arith.constant dense<0.000000e+00> : vector<2x10xf32>
    %238 = vector.multi_reduction <add>, %237, %cst_92 [2] : vector<2x10x10xf32> to vector<2x10xf32>
    %239 = vector.shape_cast %238 : vector<2x10xf32> to vector<2x10x1xf32>
    %240 = tpu.reciprocal %239 {approx = true} : vector<2x10x1xf32> -> vector<2x10x1xf32>
    %241 = vector.broadcast %240 : vector<2x10x1xf32> to vector<2x10x10xf32>
    %242 = arith.mulf %237, %241 : vector<2x10x10xf32>
    %243 = arith.truncf %242 : vector<2x10x10xf32> to vector<2x10x10xbf16>
    "tpu.trace_start"() <{level = 10 : i32, message = "bqk,bkd->bqd"}> : () -> ()
    %cst_93 = arith.constant dense<0.000000e+00> : vector<2x10x32xf32>
    %244 = tpu.matmul %243, %229, %cst_93 {dimension_numbers = #tpu.dot_dimension_numbers<[2], [1], [1], [2], [0, 0, 0, 1, 1, 2], [0], [0]>} : vector<2x10x10xbf16>, vector<2x10x32xbf16>, vector<2x10x32xf32> -> vector<2x10x32xf32>
    "tpu.trace_stop"() : () -> ()
    %245 = vector.extract_strided_slice %194 {offsets = [0, 64], sizes = [20, 32], strides = [1, 1]} : vector<20x128xf32> to vector<20x32xf32>
    %246 = vector.shape_cast %245 : vector<20x32xf32> to vector<2x10x32xf32>
    %247 = arith.truncf %246 : vector<2x10x32xf32> to vector<2x10x32xbf16>
    %248 = vector.extract_strided_slice %195 {offsets = [0, 64], sizes = [20, 32], strides = [1, 1]} : vector<20x128xf32> to vector<20x32xf32>
    %249 = vector.shape_cast %248 : vector<20x32xf32> to vector<2x10x32xf32>
    %250 = arith.truncf %249 : vector<2x10x32xf32> to vector<2x10x32xbf16>
    %251 = vector.extract_strided_slice %196 {offsets = [0, 64], sizes = [20, 32], strides = [1, 1]} : vector<20x128xf32> to vector<20x32xf32>
    %252 = vector.shape_cast %251 : vector<20x32xf32> to vector<2x10x32xf32>
    %253 = arith.truncf %252 : vector<2x10x32xf32> to vector<2x10x32xbf16>
    "tpu.trace_start"() <{level = 10 : i32, message = "bqd,bkd->bqk"}> : () -> ()
    %cst_94 = arith.constant dense<0.000000e+00> : vector<2x10x10xf32>
    %254 = tpu.matmul %247, %250, %cst_94 {dimension_numbers = #tpu.dot_dimension_numbers<[2], [2], [1], [1], [0, 0, 0, 1, 1, 1], [0], [0]>} : vector<2x10x32xbf16>, vector<2x10x32xbf16>, vector<2x10x10xf32> -> vector<2x10x10xf32>
    "tpu.trace_stop"() : () -> ()
    %cst_95 = arith.constant 0.176776692 : f32
    %255 = vector.broadcast %cst_95 : f32 to vector<2x10x10xf32>
    %256 = arith.mulf %254, %255 : vector<2x10x10xf32>
    %cst_96 = arith.constant dense<0xFF800000> : vector<2x10xf32>
    %257 = vector.multi_reduction <maximumf>, %256, %cst_96 [2] : vector<2x10x10xf32> to vector<2x10xf32>
    %258 = vector.shape_cast %257 : vector<2x10xf32> to vector<2x10x1xf32>
    %259 = vector.broadcast %258 : vector<2x10x1xf32> to vector<2x10x10xf32>
    %260 = arith.subf %256, %259 : vector<2x10x10xf32>
    %261 = math.exp %260 : vector<2x10x10xf32>
    %cst_97 = arith.constant dense<0.000000e+00> : vector<2x10xf32>
    %262 = vector.multi_reduction <add>, %261, %cst_97 [2] : vector<2x10x10xf32> to vector<2x10xf32>
    %263 = vector.shape_cast %262 : vector<2x10xf32> to vector<2x10x1xf32>
    %264 = tpu.reciprocal %263 {approx = true} : vector<2x10x1xf32> -> vector<2x10x1xf32>
    %265 = vector.broadcast %264 : vector<2x10x1xf32> to vector<2x10x10xf32>
    %266 = arith.mulf %261, %265 : vector<2x10x10xf32>
    %267 = arith.truncf %266 : vector<2x10x10xf32> to vector<2x10x10xbf16>
    "tpu.trace_start"() <{level = 10 : i32, message = "bqk,bkd->bqd"}> : () -> ()
    %cst_98 = arith.constant dense<0.000000e+00> : vector<2x10x32xf32>
    %268 = tpu.matmul %267, %253, %cst_98 {dimension_numbers = #tpu.dot_dimension_numbers<[2], [1], [1], [2], [0, 0, 0, 1, 1, 2], [0], [0]>} : vector<2x10x10xbf16>, vector<2x10x32xbf16>, vector<2x10x32xf32> -> vector<2x10x32xf32>
    "tpu.trace_stop"() : () -> ()
    %269 = vector.extract_strided_slice %194 {offsets = [0, 96], sizes = [20, 32], strides = [1, 1]} : vector<20x128xf32> to vector<20x32xf32>
    %270 = vector.shape_cast %269 : vector<20x32xf32> to vector<2x10x32xf32>
    %271 = arith.truncf %270 : vector<2x10x32xf32> to vector<2x10x32xbf16>
    %272 = vector.extract_strided_slice %195 {offsets = [0, 96], sizes = [20, 32], strides = [1, 1]} : vector<20x128xf32> to vector<20x32xf32>
    %273 = vector.shape_cast %272 : vector<20x32xf32> to vector<2x10x32xf32>
    %274 = arith.truncf %273 : vector<2x10x32xf32> to vector<2x10x32xbf16>
    %275 = vector.extract_strided_slice %196 {offsets = [0, 96], sizes = [20, 32], strides = [1, 1]} : vector<20x128xf32> to vector<20x32xf32>
    %276 = vector.shape_cast %275 : vector<20x32xf32> to vector<2x10x32xf32>
    %277 = arith.truncf %276 : vector<2x10x32xf32> to vector<2x10x32xbf16>
    "tpu.trace_start"() <{level = 10 : i32, message = "bqd,bkd->bqk"}> : () -> ()
    %cst_99 = arith.constant dense<0.000000e+00> : vector<2x10x10xf32>
    %278 = tpu.matmul %271, %274, %cst_99 {dimension_numbers = #tpu.dot_dimension_numbers<[2], [2], [1], [1], [0, 0, 0, 1, 1, 1], [0], [0]>} : vector<2x10x32xbf16>, vector<2x10x32xbf16>, vector<2x10x10xf32> -> vector<2x10x10xf32>
    "tpu.trace_stop"() : () -> ()
    %cst_100 = arith.constant 0.176776692 : f32
    %279 = vector.broadcast %cst_100 : f32 to vector<2x10x10xf32>
    %280 = arith.mulf %278, %279 : vector<2x10x10xf32>
    %cst_101 = arith.constant dense<0xFF800000> : vector<2x10xf32>
    %281 = vector.multi_reduction <maximumf>, %280, %cst_101 [2] : vector<2x10x10xf32> to vector<2x10xf32>
    %282 = vector.shape_cast %281 : vector<2x10xf32> to vector<2x10x1xf32>
    %283 = vector.broadcast %282 : vector<2x10x1xf32> to vector<2x10x10xf32>
    %284 = arith.subf %280, %283 : vector<2x10x10xf32>
    %285 = math.exp %284 : vector<2x10x10xf32>
    %cst_102 = arith.constant dense<0.000000e+00> : vector<2x10xf32>
    %286 = vector.multi_reduction <add>, %285, %cst_102 [2] : vector<2x10x10xf32> to vector<2x10xf32>
    %287 = vector.shape_cast %286 : vector<2x10xf32> to vector<2x10x1xf32>
    %288 = tpu.reciprocal %287 {approx = true} : vector<2x10x1xf32> -> vector<2x10x1xf32>
    %289 = vector.broadcast %288 : vector<2x10x1xf32> to vector<2x10x10xf32>
    %290 = arith.mulf %285, %289 : vector<2x10x10xf32>
    %291 = arith.truncf %290 : vector<2x10x10xf32> to vector<2x10x10xbf16>
    "tpu.trace_start"() <{level = 10 : i32, message = "bqk,bkd->bqd"}> : () -> ()
    %cst_103 = arith.constant dense<0.000000e+00> : vector<2x10x32xf32>
    %292 = tpu.matmul %291, %277, %cst_103 {dimension_numbers = #tpu.dot_dimension_numbers<[2], [1], [1], [2], [0, 0, 0, 1, 1, 2], [0], [0]>} : vector<2x10x10xbf16>, vector<2x10x32xbf16>, vector<2x10x32xf32> -> vector<2x10x32xf32>
    "tpu.trace_stop"() : () -> ()
    %293 = tpu.concatenate %220, %244, %268, %292 in 2 : vector<2x10x32xf32>, vector<2x10x32xf32>, vector<2x10x32xf32>, vector<2x10x32xf32> -> vector<2x10x128xf32>
    %294 = vector.shape_cast %293 : vector<2x10x128xf32> to vector<20x128xf32>
    %295 = arith.truncf %294 : vector<20x128xf32> to vector<20x128xbf16>
    %cst_104 = arith.constant dense<0.000000e+00> : vector<20x128xf32>
    %296 = tpu.matmul %295, %180, %cst_104 {dimension_numbers = #tpu.dot_dimension_numbers<[1], [0], [0], [1], [0, 0, 1, 1], [], []>} : vector<20x128xbf16>, vector<128x128xbf16>, vector<20x128xf32> -> vector<20x128xf32>
    %297 = vector.broadcast %181 : vector<1x128xf32> to vector<20x128xf32>
    %298 = arith.addf %296, %297 : vector<20x128xf32>
    %299 = arith.addf %177, %298 : vector<20x128xf32>
    %cst_105 = arith.constant dense<0.000000e+00> : vector<20xf32>
    %300 = vector.multi_reduction <add>, %299, %cst_105 [1] : vector<20x128xf32> to vector<20xf32>
    %301 = vector.shape_cast %300 : vector<20xf32> to vector<20x1xf32>
    %cst_106 = arith.constant 1.280000e+02 : f32
    %302 = vector.broadcast %cst_106 : f32 to vector<20x1xf32>
    %303 = arith.divf %301, %302 : vector<20x1xf32>
    %304 = vector.broadcast %303 : vector<20x1xf32> to vector<20x128xf32>
    %305 = arith.subf %299, %304 : vector<20x128xf32>
    %306 = arith.mulf %305, %305 : vector<20x128xf32>
    %cst_107 = arith.constant dense<0.000000e+00> : vector<20xf32>
    %307 = vector.multi_reduction <add>, %306, %cst_107 [1] : vector<20x128xf32> to vector<20xf32>
    %308 = vector.shape_cast %307 : vector<20xf32> to vector<20x1xf32>
    %cst_108 = arith.constant 1.280000e+02 : f32
    %309 = vector.broadcast %cst_108 : f32 to vector<20x1xf32>
    %310 = arith.divf %308, %309 : vector<20x1xf32>
    %311 = vector.broadcast %303 : vector<20x1xf32> to vector<20x128xf32>
    %312 = arith.subf %299, %311 : vector<20x128xf32>
    %cst_109 = arith.constant 9.99999974E-6 : f32
    %313 = vector.broadcast %cst_109 : f32 to vector<20x1xf32>
    %314 = arith.addf %310, %313 : vector<20x1xf32>
    %315 = math.rsqrt %314 : vector<20x1xf32>
    %316 = vector.broadcast %315 : vector<20x1xf32> to vector<20x128xf32>
    %317 = arith.mulf %312, %316 : vector<20x128xf32>
    %318 = vector.broadcast %182 : vector<1x128xf32> to vector<20x128xf32>
    %319 = arith.mulf %317, %318 : vector<20x128xf32>
    %320 = vector.broadcast %183 : vector<1x128xf32> to vector<20x128xf32>
    %321 = arith.addf %319, %320 : vector<20x128xf32>
    %322 = arith.truncf %321 : vector<20x128xf32> to vector<20x128xbf16>
    %cst_110 = arith.constant dense<0.000000e+00> : vector<20x2048xf32>
    %323 = tpu.matmul %322, %186, %cst_110 {dimension_numbers = #tpu.dot_dimension_numbers<[1], [0], [0], [1], [0, 0, 1, 1], [], []>} : vector<20x128xbf16>, vector<128x2048xbf16>, vector<20x2048xf32> -> vector<20x2048xf32>
    %324 = vector.broadcast %187 : vector<1x2048xf32> to vector<20x2048xf32>
    %325 = arith.addf %323, %324 : vector<20x2048xf32>
    %cst_111 = arith.constant 0.000000e+00 : f32
    %326 = vector.broadcast %cst_111 : f32 to vector<20x2048xf32>
    %327 = arith.maximumf %325, %326 : vector<20x2048xf32>
    %328 = arith.truncf %327 : vector<20x2048xf32> to vector<20x2048xbf16>
    %cst_112 = arith.constant dense<0.000000e+00> : vector<20x128xf32>
    %329 = tpu.matmul %328, %188, %cst_112 {dimension_numbers = #tpu.dot_dimension_numbers<[1], [0], [0], [1], [0, 0, 1, 1], [], []>} : vector<20x2048xbf16>, vector<2048x128xbf16>, vector<20x128xf32> -> vector<20x128xf32>
    %330 = vector.broadcast %189 : vector<1x128xf32> to vector<20x128xf32>
    %331 = arith.addf %329, %330 : vector<20x128xf32>
    %332 = arith.addf %321, %331 : vector<20x128xf32>
    %cst_113 = arith.constant dense<0.000000e+00> : vector<20xf32>
    %333 = vector.multi_reduction <add>, %332, %cst_113 [1] : vector<20x128xf32> to vector<20xf32>
    %334 = vector.shape_cast %333 : vector<20xf32> to vector<20x1xf32>
    %cst_114 = arith.constant 1.280000e+02 : f32
    %335 = vector.broadcast %cst_114 : f32 to vector<20x1xf32>
    %336 = arith.divf %334, %335 : vector<20x1xf32>
    %337 = vector.broadcast %336 : vector<20x1xf32> to vector<20x128xf32>
    %338 = arith.subf %332, %337 : vector<20x128xf32>
    %339 = arith.mulf %338, %338 : vector<20x128xf32>
    %cst_115 = arith.constant dense<0.000000e+00> : vector<20xf32>
    %340 = vector.multi_reduction <add>, %339, %cst_115 [1] : vector<20x128xf32> to vector<20xf32>
    %341 = vector.shape_cast %340 : vector<20xf32> to vector<20x1xf32>
    %cst_116 = arith.constant 1.280000e+02 : f32
    %342 = vector.broadcast %cst_116 : f32 to vector<20x1xf32>
    %343 = arith.divf %341, %342 : vector<20x1xf32>
    %344 = vector.broadcast %336 : vector<20x1xf32> to vector<20x128xf32>
    %345 = arith.subf %332, %344 : vector<20x128xf32>
    %cst_117 = arith.constant 9.99999974E-6 : f32
    %346 = vector.broadcast %cst_117 : f32 to vector<20x1xf32>
    %347 = arith.addf %343, %346 : vector<20x1xf32>
    %348 = math.rsqrt %347 : vector<20x1xf32>
    %349 = vector.broadcast %348 : vector<20x1xf32> to vector<20x128xf32>
    %350 = arith.mulf %345, %349 : vector<20x128xf32>
    %351 = vector.broadcast %184 : vector<1x128xf32> to vector<20x128xf32>
    %352 = arith.mulf %350, %351 : vector<20x128xf32>
    %353 = vector.broadcast %185 : vector<1x128xf32> to vector<20x128xf32>
    %354 = arith.addf %352, %353 : vector<20x128xf32>
    %c0_118 = arith.constant 0 : index
    %c0_119 = arith.constant 0 : index
    %355 = vector.load %arg25[%c0_118, %c0_119] : memref<1x128xf32, #tpu.memory_space<vmem>>, vector<1x128xf32>
    %c0_120 = arith.constant 0 : index
    %c0_121 = arith.constant 0 : index
    %356 = vector.load %arg26[%c0_120, %c0_121] : memref<1x128xf32, #tpu.memory_space<vmem>>, vector<1x128xf32>
    %c0_122 = arith.constant 0 : index
    %c0_123 = arith.constant 0 : index
    %357 = vector.load %arg27[%c0_122, %c0_123] : memref<128x1024xbf16, #tpu.memory_space<vmem>>, vector<128x1024xbf16>
    %c0_124 = arith.constant 0 : index
    %c0_125 = arith.constant 0 : index
    %358 = vector.load %arg28[%c0_124, %c0_125] : memref<1x1024xf32, #tpu.memory_space<vmem>>, vector<1x1024xf32>
    %cst_126 = arith.constant dense<0.000000e+00> : vector<20xf32>
    %359 = vector.multi_reduction <add>, %354, %cst_126 [1] : vector<20x128xf32> to vector<20xf32>
    %360 = vector.shape_cast %359 : vector<20xf32> to vector<20x1xf32>
    %cst_127 = arith.constant 1.280000e+02 : f32
    %361 = vector.broadcast %cst_127 : f32 to vector<20x1xf32>
    %362 = arith.divf %360, %361 : vector<20x1xf32>
    %363 = vector.broadcast %362 : vector<20x1xf32> to vector<20x128xf32>
    %364 = arith.subf %354, %363 : vector<20x128xf32>
    %365 = arith.mulf %364, %364 : vector<20x128xf32>
    %cst_128 = arith.constant dense<0.000000e+00> : vector<20xf32>
    %366 = vector.multi_reduction <add>, %365, %cst_128 [1] : vector<20x128xf32> to vector<20xf32>
    %367 = vector.shape_cast %366 : vector<20xf32> to vector<20x1xf32>
    %cst_129 = arith.constant 1.280000e+02 : f32
    %368 = vector.broadcast %cst_129 : f32 to vector<20x1xf32>
    %369 = arith.divf %367, %368 : vector<20x1xf32>
    %370 = vector.broadcast %362 : vector<20x1xf32> to vector<20x128xf32>
    %371 = arith.subf %354, %370 : vector<20x128xf32>
    %cst_130 = arith.constant 9.99999974E-6 : f32
    %372 = vector.broadcast %cst_130 : f32 to vector<20x1xf32>
    %373 = arith.addf %369, %372 : vector<20x1xf32>
    %374 = math.rsqrt %373 : vector<20x1xf32>
    %375 = vector.broadcast %374 : vector<20x1xf32> to vector<20x128xf32>
    %376 = arith.mulf %371, %375 : vector<20x128xf32>
    %377 = vector.broadcast %355 : vector<1x128xf32> to vector<20x128xf32>
    %378 = arith.mulf %376, %377 : vector<20x128xf32>
    %379 = vector.broadcast %356 : vector<1x128xf32> to vector<20x128xf32>
    %380 = arith.addf %378, %379 : vector<20x128xf32>
    %381 = arith.truncf %380 : vector<20x128xf32> to vector<20x128xbf16>
    %cst_131 = arith.constant dense<0.000000e+00> : vector<20x1024xf32>
    %382 = tpu.matmul %381, %357, %cst_131 {dimension_numbers = #tpu.dot_dimension_numbers<[1], [0], [0], [1], [0, 0, 1, 1], [], []>} : vector<20x128xbf16>, vector<128x1024xbf16>, vector<20x1024xf32> -> vector<20x1024xf32>
    %383 = vector.broadcast %358 : vector<1x1024xf32> to vector<20x1024xf32>
    %384 = arith.addf %382, %383 : vector<20x1024xf32>
    %c0_132 = arith.constant 0 : index
    %c0_133 = arith.constant 0 : index
    %385 = vector.load %arg29[%c0_132, %c0_133] : memref<20x1024xf32, #tpu.memory_space<vmem>>, vector<20x1024xf32>
    tpu.vector_store %arg29[%c0_132, %c0_133], %384 {strides = array<i32>} : memref<20x1024xf32, #tpu.memory_space<vmem>>, vector<20x1024xf32>,
    return
  }
}

</mosaic_0001>

<llo_original>
// kernel: tpu_custom_call.1
$region0: #{tpu_custom_call.1}
  #allocation0 [shape = 'u32[]', space=smem, size = 0x4, offset = 0x4, fixed_abs, tag = 'smem constant byte address 0x4 - core index']
  #allocation1 [shape = 'u32[144,128]{1,0:T(1,128)}', space=vmem, size = 0x12000, scoped, tag = 'internal scratch']
  %s0 = inlined_call_operand.smem [shape: u32[30], index: -1, kind: input, shape index: {}]
  %s1 = sld [smem:[%s0]]
  %s2 = scalar_lea.smem %s0, 1
  %s3 = sld [smem:[%s2]]
  %s4 = scalar_lea.smem %s0, 2
  %s5 = sld [smem:[%s4]]
  %s6 = scalar_lea.smem %s0, 3
  %s7 = sld [smem:[%s6]]
  %s8 = scalar_lea.smem %s0, 4
  %s9 = sld [smem:[%s8]]
  %s10 = scalar_lea.smem %s0, 5
  %s11 = sld [smem:[%s10]]
  %s12 = scalar_lea.smem %s0, 6
  %s13 = sld [smem:[%s12]]
  %s14 = scalar_lea.smem %s0, 7
  %s15 = sld [smem:[%s14]]
  %s16 = scalar_lea.smem %s0, 8
  %s17 = sld [smem:[%s16]]
  %s18 = scalar_lea.smem %s0, 9
  %s19 = sld [smem:[%s18]]
  %s20 = scalar_lea.smem %s0, 10
  %s21 = sld [smem:[%s20]]
  %s22 = scalar_lea.smem %s0, 11
  %s23 = sld [smem:[%s22]]
  %s24 = scalar_lea.smem %s0, 12
  %s25 = sld [smem:[%s24]]
  %s26 = scalar_lea.smem %s0, 13
  %s27 = sld [smem:[%s26]]
  %s28 = scalar_lea.smem %s0, 14
  %s29 = sld [smem:[%s28]]
  %s30 = scalar_lea.smem %s0, 15
  %s31 = sld [smem:[%s30]]
  %s32 = scalar_lea.smem %s0, 16
  %s33 = sld [smem:[%s32]]
  %s34 = scalar_lea.smem %s0, 17
  %s35 = sld [smem:[%s34]]
  %s36 = scalar_lea.smem %s0, 18
  %s37 = sld [smem:[%s36]]
  %s38 = scalar_lea.smem %s0, 19
  %s39 = sld [smem:[%s38]]
  %s40 = scalar_lea.smem %s0, 20
  %s41 = sld [smem:[%s40]]
  %s42 = scalar_lea.smem %s0, 21
  %s43 = sld [smem:[%s42]]
  %s44 = scalar_lea.smem %s0, 22
  %s45 = sld [smem:[%s44]]
  %s46 = scalar_lea.smem %s0, 23
  %s47 = sld [smem:[%s46]]
  %s48 = scalar_lea.smem %s0, 24
  %s49 = sld [smem:[%s48]]
  %s50 = scalar_lea.smem %s0, 25
  %s51 = sld [smem:[%s50]]
  %s52 = scalar_lea.smem %s0, 26
  %s53 = sld [smem:[%s52]]
  %s54 = scalar_lea.smem %s0, 27
  %s55 = sld [smem:[%s54]]
  %s56 = scalar_lea.smem %s0, 28
  %s57 = sld [smem:[%s56]]
  %s58 = scalar_lea.smem %s0, 29
  %s59 = sld [smem:[%s58]]
  %s60 = sld [smem:[#allocation0]]
  $region218: #{tpu_custom_call.1} parent=0
    _
  %s62 = ssub.s32 1, %s60
  %s63 = scalar_select 0, %s62, %s60
  $region1: #{tpu_custom_call.1} parent=0
    #allocation2 [shape = 'u8[12288]{0}', space=vmem, size = 0x3000, scoped, tag = 'input window, operand 0, single buffered']
    #allocation3 [shape = 's32[1]{0}', space=sflag, size = 0x4, scoped, tag = 'scoped memory for tpu_custom_call.1']
    #allocation4 [shape = 's32[1]{0}', space=sflag, size = 0x4, scoped, tag = 'scoped memory for tpu_custom_call.1']
    #allocation5 [shape = 'u8[98304]{0}', space=vmem, size = 0x18000, scoped, tag = 'input window, operand 1, single buffered']
    #allocation6 [shape = 's32[1]{0}', space=sflag, size = 0x4, scoped, tag = 'scoped memory for tpu_custom_call.1']
    #allocation7 [shape = 'u8[1536]{0}', space=vmem, size = 0x800, scoped, tag = 'input window, operand 2, single buffered']
    #allocation8 [shape = 'u8[32768]{0}', space=vmem, size = 0x8000, scoped, tag = 'input window, operand 3, single buffered']
    #allocation9 [shape = 's32[1]{0}', space=sflag, size = 0x4, scoped, tag = 'scoped memory for tpu_custom_call.1']
    #allocation10 [shape = 'u8[512]{0}', space=vmem, size = 0x400, scoped, tag = 'input window, operand 4, single buffered']
    #allocation11 [shape = 'u8[512]{0}', space=vmem, size = 0x400, scoped, tag = 'input window, operand 5, single buffered']
    #allocation12 [shape = 's32[1]{0}', space=sflag, size = 0x4, scoped, tag = 'scoped memory for tpu_custom_call.1']
    #allocation13 [shape = 'u8[512]{0}', space=vmem, size = 0x400, scoped, tag = 'input window, operand 6, single buffered']
    #allocation14 [shape = 'u8[512]{0}', space=vmem, size = 0x400, scoped, tag = 'input window, operand 7, single buffered']
    #allocation15 [shape = 's32[1]{0}', space=sflag, size = 0x4, scoped, tag = 'scoped memory for tpu_custom_call.1']
    #allocation16 [shape = 'u8[512]{0}', space=vmem, size = 0x400, scoped, tag = 'input window, operand 8, single buffered']
    #allocation17 [shape = 'u8[524288]{0}', space=vmem, size = 0x80000, scoped, tag = 'input window, operand 9, single buffered']
    #allocation18 [shape = 's32[1]{0}', space=sflag, size = 0x4, scoped, tag = 'scoped memory for tpu_custom_call.1']
    #allocation19 [shape = 'u8[524288]{0}', space=vmem, size = 0x80000, scoped, tag = 'input window, operand 11, single buffered']
    #allocation20 [shape = 'u8[512]{0}', space=vmem, size = 0x400, scoped, tag = 'input window, operand 12, single buffered']
    #allocation21 [shape = 's32[1]{0}', space=sflag, size = 0x4, scoped, tag = 'scoped memory for tpu_custom_call.1']
    #allocation22 [shape = 'u8[98304]{0}', space=vmem, size = 0x18000, scoped, tag = 'input window, operand 13, single buffered']
    #allocation23 [shape = 'u8[1536]{0}', space=vmem, size = 0x800, scoped, tag = 'input window, operand 14, single buffered']
    #allocation24 [shape = 's32[1]{0}', space=sflag, size = 0x4, scoped, tag = 'scoped memory for tpu_custom_call.1']
    #allocation25 [shape = 'u8[32768]{0}', space=vmem, size = 0x8000, scoped, tag = 'input window, operand 15, single buffered']
    #allocation26 [shape = 'u8[512]{0}', space=vmem, size = 0x400, scoped, tag = 'input window, operand 16, single buffered']
    #allocation27 [shape = 's32[1]{0}', space=sflag, size = 0x4, scoped, tag = 'scoped memory for tpu_custom_call.1']
    #allocation28 [shape = 'u8[512]{0}', space=vmem, size = 0x400, scoped, tag = 'input window, operand 17, single buffered']
    #allocation29 [shape = 'u8[512]{0}', space=vmem, size = 0x400, scoped, tag = 'input window, operand 18, single buffered']
    #allocation30 [shape = 's32[1]{0}', space=sflag, size = 0x4, scoped, tag = 'scoped memory for tpu_custom_call.1']
    #allocation31 [shape = 'u8[512]{0}', space=vmem, size = 0x400, scoped, tag = 'input window, operand 19, single buffered']
    #allocation32 [shape = 'u8[512]{0}', space=vmem, size = 0x400, scoped, tag = 'input window, operand 20, single buffered']
    #allocation33 [shape = 's32[1]{0}', space=sflag, size = 0x4, scoped, tag = 'scoped memory for tpu_custom_call.1']
    #allocation34 [shape = 'u8[524288]{0}', space=vmem, size = 0x80000, scoped, tag = 'input window, operand 21, single buffered']
    #allocation35 [shape = 'u8[524288]{0}', space=vmem, size = 0x80000, scoped, tag = 'input window, operand 23, single buffered']
    #allocation36 [shape = 's32[1]{0}', space=sflag, size = 0x4, scoped, tag = 'scoped memory for tpu_custom_call.1']
    #allocation37 [shape = 'u8[262144]{0}', space=vmem, size = 0x40000, scoped, tag = 'input window, operand 27, single buffered']
    #allocation38 [shape = 'u8[98304]{0}', space=vmem, size = 0x18000, scoped, tag = 'output window, operand 0, single buffered']
    %64 = vsyncpa [#allocation3], 0
    %65 = vsyncpa [#allocation6], 0
    %66 = vsyncpa [#allocation9], 0
    %67 = vsyncpa [#allocation12], 0
    %68 = vsyncpa [#allocation15], 0
    %69 = vsyncpa [#allocation18], 0
    %70 = vsyncpa [#allocation21], 0
    %71 = vsyncpa [#allocation24], 0
    %72 = vsyncpa [#allocation27], 0
    %73 = vsyncpa [#allocation30], 0
    %74 = vsyncpa [#allocation33], 0
    %75 = vsyncpa [#allocation36], 0
    %76 = vsyncpa [#allocation4], 0
    // Predicated region
    $region2: #{tpu_custom_call.1} parent=1 // pred_check
      _
    $region3: #{tpu_custom_call.1} parent=1 // pred_check_branch
      %78 = sbr.rel (0) target = $region5
    $region4: #{tpu_custom_call.1} parent=1 // pred_region
      %s80 = ssub.s32 384, 384
      %81 = vsyncadd [#allocation3], %s80
      %s82 = sshll.u32 [#allocation2], 4
      %s83 = int_to_ptr.vmem [resolvable:$true] %s82
      %88 = dma.hbm_to_vmem [thread:$0]  %s1, 384, %s83, [#allocation3], 128, 128, 8
    $region5: #{tpu_custom_call.1} parent=1 // pred_fallthru
      _
    // Predicated region
    $region6: #{tpu_custom_call.1} parent=1 // pred_check
      _
    $region7: #{tpu_custom_call.1} parent=1 // pred_check_branch
      %90 = sbr.rel (0) target = $region9
    $region8: #{tpu_custom_call.1} parent=1 // pred_region
      %s92 = ssub.s32 3072, 3072
      %93 = vsyncadd [#allocation6], %s92
      %s94 = sshll.u32 [#allocation5], 4
      %s95 = int_to_ptr.vmem [resolvable:$true] %s94
      %100 = dma.hbm_to_vmem [thread:$0]  %s3, 3072, %s95, [#allocation6], 192, 192, 12
    $region9: #{tpu_custom_call.1} parent=1 // pred_fallthru
      _
    // Predicated region
    $region10: #{tpu_custom_call.1} parent=1 // pred_check
      _
    $region11: #{tpu_custom_call.1} parent=1 // pred_check_branch
      %102 = sbr.rel (0) target = $region13
    $region12: #{tpu_custom_call.1} parent=1 // pred_region
      %s104 = ssub.s32 48, 48
      %105 = vsyncadd [#allocation6], %s104
      %s107 = sshll.u32 [#allocation7], 4
      %s108 = int_to_ptr.vmem [resolvable:$true] %s107
      %110 = dma.hbm_to_vmem [thread:$0]  %s5, 48, %s108, [#allocation6]
    $region13: #{tpu_custom_call.1} parent=1 // pred_fallthru
      _
    // Predicated region
    $region14: #{tpu_custom_call.1} parent=1 // pred_check
      _
    $region15: #{tpu_custom_call.1} parent=1 // pred_check_branch
      %112 = sbr.rel (0) target = $region17
    $region16: #{tpu_custom_call.1} parent=1 // pred_region
      %s114 = ssub.s32 1024, 1024
      %115 = vsyncadd [#allocation9], %s114
      %s116 = sshll.u32 [#allocation8], 4
      %s117 = int_to_ptr.vmem [resolvable:$true] %s116
      %122 = dma.hbm_to_vmem [thread:$0]  %s7, 1024, %s117, [#allocation9], 64, 64, 4
    $region17: #{tpu_custom_call.1} parent=1 // pred_fallthru
      _
    // Predicated region
    $region18: #{tpu_custom_call.1} parent=1 // pred_check
      _
    $region19: #{tpu_custom_call.1} parent=1 // pred_check_branch
      %124 = sbr.rel (0) target = $region21
    $region20: #{tpu_custom_call.1} parent=1 // pred_region
      %s126 = ssub.s32 16, 16
      %127 = vsyncadd [#allocation9], %s126
      %s129 = sshll.u32 [#allocation10], 4
      %s130 = int_to_ptr.vmem [resolvable:$true] %s129
      %132 = dma.hbm_to_vmem [thread:$0]  %s9, 16, %s130, [#allocation9]
    $region21: #{tpu_custom_call.1} parent=1 // pred_fallthru
      _
    // Predicated region
    $region22: #{tpu_custom_call.1} parent=1 // pred_check
      _
    $region23: #{tpu_custom_call.1} parent=1 // pred_check_branch
      %134 = sbr.rel (0) target = $region25
    $region24: #{tpu_custom_call.1} parent=1 // pred_region
      %s136 = ssub.s32 16, 16
      %137 = vsyncadd [#allocation12], %s136
      %s139 = sshll.u32 [#allocation11], 4
      %s140 = int_to_ptr.vmem [resolvable:$true] %s139
      %142 = dma.hbm_to_vmem [thread:$0]  %s11, 16, %s140, [#allocation12]
    $region25: #{tpu_custom_call.1} parent=1 // pred_fallthru
      _
    // Predicated region
    $region26: #{tpu_custom_call.1} parent=1 // pred_check
      _
    $region27: #{tpu_custom_call.1} parent=1 // pred_check_branch
      %144 = sbr.rel (0) target = $region29
    $region28: #{tpu_custom_call.1} parent=1 // pred_region
      %s146 = ssub.s32 16, 16
      %147 = vsyncadd [#allocation12], %s146
      %s149 = sshll.u32 [#allocation13], 4
      %s150 = int_to_ptr.vmem [resolvable:$true] %s149
      %152 = dma.hbm_to_vmem [thread:$0]  %s13, 16, %s150, [#allocation12]
    $region29: #{tpu_custom_call.1} parent=1 // pred_fallthru
      _
    // Predicated region
    $region30: #{tpu_custom_call.1} parent=1 // pred_check
      _
    $region31: #{tpu_custom_call.1} parent=1 // pred_check_branch
      %154 = sbr.rel (0) target = $region33
    $region32: #{tpu_custom_call.1} parent=1 // pred_region
      %s156 = ssub.s32 16, 16
      %157 = vsyncadd [#allocation15], %s156
      %s159 = sshll.u32 [#allocation14], 4
      %s160 = int_to_ptr.vmem [resolvable:$true] %s159
      %162 = dma.hbm_to_vmem [thread:$0]  %s15, 16, %s160, [#allocation15]
    $region33: #{tpu_custom_call.1} parent=1 // pred_fallthru
      _
    // Predicated region
    $region34: #{tpu_custom_call.1} parent=1 // pred_check
      _
    $region35: #{tpu_custom_call.1} parent=1 // pred_check_branch
      %164 = sbr.rel (0) target = $region37
    $region36: #{tpu_custom_call.1} parent=1 // pred_region
      %s166 = ssub.s32 16, 16
      %167 = vsyncadd [#allocation15], %s166
      %s169 = sshll.u32 [#allocation16], 4
      %s170 = int_to_ptr.vmem [resolvable:$true] %s169
      %172 = dma.hbm_to_vmem [thread:$0]  %s17, 16, %s170, [#allocation15]
    $region37: #{tpu_custom_call.1} parent=1 // pred_fallthru
      _
    // Predicated region
    $region38: #{tpu_custom_call.1} parent=1 // pred_check
      _
    $region39: #{tpu_custom_call.1} parent=1 // pred_check_branch
      %174 = sbr.rel (0) target = $region41
    $region40: #{tpu_custom_call.1} parent=1 // pred_region
      %s176 = ssub.s32 16384, 16384
      %177 = vsyncadd [#allocation18], %s176
      %s178 = sshll.u32 [#allocation17], 4
      %s179 = int_to_ptr.vmem [resolvable:$true] %s178
      %184 = dma.hbm_to_vmem [thread:$0]  %s19, 16384, %s179, [#allocation18], 1024, 1024, 64
    $region41: #{tpu_custom_call.1} parent=1 // pred_fallthru
      _
    // Predicated region
    $region42: #{tpu_custom_call.1} parent=1 // pred_check
      _
    $region43: #{tpu_custom_call.1} parent=1 // pred_check_branch
      %186 = sbr.rel (0) target = $region45
    $region44: #{tpu_custom_call.1} parent=1 // pred_region
      _
    $region45: #{tpu_custom_call.1} parent=1 // pred_fallthru
      _
    // Predicated region
    $region46: #{tpu_custom_call.1} parent=1 // pred_check
      _
    $region47: #{tpu_custom_call.1} parent=1 // pred_check_branch
      %188 = sbr.rel (0) target = $region49
    $region48: #{tpu_custom_call.1} parent=1 // pred_region
      %s190 = ssub.s32 16384, 16384
      %191 = vsyncadd [#allocation18], %s190
      %s192 = sshll.u32 [#allocation19], 4
      %s193 = int_to_ptr.vmem [resolvable:$true] %s192
      %198 = dma.hbm_to_vmem [thread:$0]  %s23, 16384, %s193, [#allocation18], 64, 64, 4
    $region49: #{tpu_custom_call.1} parent=1 // pred_fallthru
      _
    // Predicated region
    $region50: #{tpu_custom_call.1} parent=1 // pred_check
      _
    $region51: #{tpu_custom_call.1} parent=1 // pred_check_branch
      %200 = sbr.rel (0) target = $region53
    $region52: #{tpu_custom_call.1} parent=1 // pred_region
      %s202 = ssub.s32 16, 16
      %203 = vsyncadd [#allocation21], %s202
      %s205 = sshll.u32 [#allocation20], 4
      %s206 = int_to_ptr.vmem [resolvable:$true] %s205
      %208 = dma.hbm_to_vmem [thread:$0]  %s25, 16, %s206, [#allocation21]
    $region53: #{tpu_custom_call.1} parent=1 // pred_fallthru
      _
    // Predicated region
    $region54: #{tpu_custom_call.1} parent=1 // pred_check
      _
    $region55: #{tpu_custom_call.1} parent=1 // pred_check_branch
      %210 = sbr.rel (0) target = $region57
    $region56: #{tpu_custom_call.1} parent=1 // pred_region
      %s212 = ssub.s32 3072, 3072
      %213 = vsyncadd [#allocation21], %s212
      %s214 = sshll.u32 [#allocation22], 4
      %s215 = int_to_ptr.vmem [resolvable:$true] %s214
      %220 = dma.hbm_to_vmem [thread:$0]  %s27, 3072, %s215, [#allocation21], 192, 192, 12
    $region57: #{tpu_custom_call.1} parent=1 // pred_fallthru
      _
    // Predicated region
    $region58: #{tpu_custom_call.1} parent=1 // pred_check
      _
    $region59: #{tpu_custom_call.1} parent=1 // pred_check_branch
      %222 = sbr.rel (0) target = $region61
    $region60: #{tpu_custom_call.1} parent=1 // pred_region
      %s224 = ssub.s32 48, 48
      %225 = vsyncadd [#allocation24], %s224
      %s227 = sshll.u32 [#allocation23], 4
      %s228 = int_to_ptr.vmem [resolvable:$true] %s227
      %230 = dma.hbm_to_vmem [thread:$0]  %s29, 48, %s228, [#allocation24]
    $region61: #{tpu_custom_call.1} parent=1 // pred_fallthru
      _
    // Predicated region
    $region62: #{tpu_custom_call.1} parent=1 // pred_check
      _
    $region63: #{tpu_custom_call.1} parent=1 // pred_check_branch
      %232 = sbr.rel (0) target = $region65
    $region64: #{tpu_custom_call.1} parent=1 // pred_region
      %s234 = ssub.s32 1024, 1024
      %235 = vsyncadd [#allocation24], %s234
      %s236 = sshll.u32 [#allocation25], 4
      %s237 = int_to_ptr.vmem [resolvable:$true] %s236
      %242 = dma.hbm_to_vmem [thread:$0]  %s31, 1024, %s237, [#allocation24], 64, 64, 4
    $region65: #{tpu_custom_call.1} parent=1 // pred_fallthru
      _
    // Predicated region
    $region66: #{tpu_custom_call.1} parent=1 // pred_check
      _
    $region67: #{tpu_custom_call.1} parent=1 // pred_check_branch
      %244 = sbr.rel (0) target = $region69
    $region68: #{tpu_custom_call.1} parent=1 // pred_region
      %s246 = ssub.s32 16, 16
      %247 = vsyncadd [#allocation27], %s246
      %s249 = sshll.u32 [#allocation26], 4
      %s250 = int_to_ptr.vmem [resolvable:$true] %s249
      %252 = dma.hbm_to_vmem [thread:$0]  %s33, 16, %s250, [#allocation27]
    $region69: #{tpu_custom_call.1} parent=1 // pred_fallthru
      _
    // Predicated region
    $region70: #{tpu_custom_call.1} parent=1 // pred_check
      _
    $region71: #{tpu_custom_call.1} parent=1 // pred_check_branch
      %254 = sbr.rel (0) target = $region73
    $region72: #{tpu_custom_call.1} parent=1 // pred_region
      %s256 = ssub.s32 16, 16
      %257 = vsyncadd [#allocation27], %s256
      %s259 = sshll.u32 [#allocation28], 4
      %s260 = int_to_ptr.vmem [resolvable:$true] %s259
      %262 = dma.hbm_to_vmem [thread:$0]  %s35, 16, %s260, [#allocation27]
    $region73: #{tpu_custom_call.1} parent=1 // pred_fallthru
      _
    // Predicated region
    $region74: #{tpu_custom_call.1} parent=1 // pred_check
      _
    $region75: #{tpu_custom_call.1} parent=1 // pred_check_branch
      %264 = sbr.rel (0) target = $region77
    $region76: #{tpu_custom_call.1} parent=1 // pred_region
      %s266 = ssub.s32 16, 16
      %267 = vsyncadd [#allocation30], %s266
      %s269 = sshll.u32 [#allocation29], 4
      %s270 = int_to_ptr.vmem [resolvable:$true] %s269
      %272 = dma.hbm_to_vmem [thread:$0]  %s37, 16, %s270, [#allocation30]
    $region77: #{tpu_custom_call.1} parent=1 // pred_fallthru
      _
    // Predicated region
    $region78: #{tpu_custom_call.1} parent=1 // pred_check
      _
    $region79: #{tpu_custom_call.1} parent=1 // pred_check_branch
      %274 = sbr.rel (0) target = $region81
    $region80: #{tpu_custom_call.1} parent=1 // pred_region
      %s276 = ssub.s32 16, 16
      %277 = vsyncadd [#allocation30], %s276
      %s279 = sshll.u32 [#allocation31], 4
      %s280 = int_to_ptr.vmem [resolvable:$true] %s279
      %282 = dma.hbm_to_vmem [thread:$0]  %s39, 16, %s280, [#allocation30]
    $region81: #{tpu_custom_call.1} parent=1 // pred_fallthru
      _
    // Predicated region
    $region82: #{tpu_custom_call.1} parent=1 // pred_check
      _
    $region83: #{tpu_custom_call.1} parent=1 // pred_check_branch
      %284 = sbr.rel (0) target = $region85
    $region84: #{tpu_custom_call.1} parent=1 // pred_region
      %s286 = ssub.s32 16, 16
      %287 = vsyncadd [#allocation33], %s286
      %s289 = sshll.u32 [#allocation32], 4
      %s290 = int_to_ptr.vmem [resolvable:$true] %s289
      %292 = dma.hbm_to_vmem [thread:$0]  %s41, 16, %s290, [#allocation33]
    $region85: #{tpu_custom_call.1} parent=1 // pred_fallthru
      _
    // Predicated region
    $region86: #{tpu_custom_call.1} parent=1 // pred_check
      _
    $region87: #{tpu_custom_call.1} parent=1 // pred_check_branch
      %294 = sbr.rel (0) target = $region89
    $region88: #{tpu_custom_call.1} parent=1 // pred_region
      %s296 = ssub.s32 16384, 16384
      %297 = vsyncadd [#allocation33], %s296
      %s298 = sshll.u32 [#allocation34], 4
      %s299 = int_to_ptr.vmem [resolvable:$true] %s298
      %304 = dma.hbm_to_vmem [thread:$0]  %s43, 16384, %s299, [#allocation33], 1024, 1024, 64
    $region89: #{tpu_custom_call.1} parent=1 // pred_fallthru
      _
    // Predicated region
    $region90: #{tpu_custom_call.1} parent=1 // pred_check
      _
    $region91: #{tpu_custom_call.1} parent=1 // pred_check_branch
      %306 = sbr.rel (0) target = $region93
    $region92: #{tpu_custom_call.1} parent=1 // pred_region
      _
    $region93: #{tpu_custom_call.1} parent=1 // pred_fallthru
      _
    // Predicated region
    $region94: #{tpu_custom_call.1} parent=1 // pred_check
      _
    $region95: #{tpu_custom_call.1} parent=1 // pred_check_branch
      %308 = sbr.rel (0) target = $region97
    $region96: #{tpu_custom_call.1} parent=1 // pred_region
      %s310 = ssub.s32 16384, 16384
      %311 = vsyncadd [#allocation36], %s310
      %s312 = sshll.u32 [#allocation35], 4
      %s313 = int_to_ptr.vmem [resolvable:$true] %s312
      %318 = dma.hbm_to_vmem [thread:$0]  %s47, 16384, %s313, [#allocation36], 64, 64, 4
    $region97: #{tpu_custom_call.1} parent=1 // pred_fallthru
      _
    // Predicated region
    $region98: #{tpu_custom_call.1} parent=1 // pred_check
      _
    $region99: #{tpu_custom_call.1} parent=1 // pred_check_branch
      %320 = sbr.rel (0) target = $region101
    $region100: #{tpu_custom_call.1} parent=1 // pred_region
      _
    $region101: #{tpu_custom_call.1} parent=1 // pred_fallthru
      _
    // Predicated region
    $region102: #{tpu_custom_call.1} parent=1 // pred_check
      _
    $region103: #{tpu_custom_call.1} parent=1 // pred_check_branch
      %322 = sbr.rel (0) target = $region105
    $region104: #{tpu_custom_call.1} parent=1 // pred_region
      _
    $region105: #{tpu_custom_call.1} parent=1 // pred_fallthru
      _
    // Predicated region
    $region106: #{tpu_custom_call.1} parent=1 // pred_check
      _
    $region107: #{tpu_custom_call.1} parent=1 // pred_check_branch
      %324 = sbr.rel (0) target = $region109
    $region108: #{tpu_custom_call.1} parent=1 // pred_region
      _
    $region109: #{tpu_custom_call.1} parent=1 // pred_fallthru
      _
    // Predicated region
    $region110: #{tpu_custom_call.1} parent=1 // pred_check
      _
    $region111: #{tpu_custom_call.1} parent=1 // pred_check_branch
      %326 = sbr.rel (0) target = $region113
    $region112: #{tpu_custom_call.1} parent=1 // pred_region
      %s328 = ssub.s32 8192, 8192
      %329 = vsyncadd [#allocation36], %s328
      %s330 = sshll.u32 [#allocation37], 4
      %s331 = int_to_ptr.vmem [resolvable:$true] %s330
      %336 = dma.hbm_to_vmem [thread:$0]  %s55, 8192, %s331, [#allocation36], 512, 512, 32
    $region113: #{tpu_custom_call.1} parent=1 // pred_fallthru
      _
    // Predicated region
    $region114: #{tpu_custom_call.1} parent=1 // pred_check
      _
    $region115: #{tpu_custom_call.1} parent=1 // pred_check_branch
      %338 = sbr.rel (0) target = $region117
    $region116: #{tpu_custom_call.1} parent=1 // pred_region
      _
    $region117: #{tpu_custom_call.1} parent=1 // pred_fallthru
      _
    // Predicated region
    $region118: #{tpu_custom_call.1} parent=1 // pred_check
      _
    $region119: #{tpu_custom_call.1} parent=1 // pred_check_branch
      %340 = sbr.rel (0) target = $region121
    $region120: #{tpu_custom_call.1} parent=1 // pred_region
      %341 = dma.done [#allocation3], 384
    $region121: #{tpu_custom_call.1} parent=1 // pred_fallthru
      _
    // Predicated region
    $region122: #{tpu_custom_call.1} parent=1 // pred_check
      _
    $region123: #{tpu_custom_call.1} parent=1 // pred_check_branch
      %343 = sbr.rel (0) target = $region125
    $region124: #{tpu_custom_call.1} parent=1 // pred_region
      %344 = dma.done [#allocation6], 3072
    $region125: #{tpu_custom_call.1} parent=1 // pred_fallthru
      _
    // Predicated region
    $region126: #{tpu_custom_call.1} parent=1 // pred_check
      _
    $region127: #{tpu_custom_call.1} parent=1 // pred_check_branch
      %346 = sbr.rel (0) target = $region129
    $region128: #{tpu_custom_call.1} parent=1 // pred_region
      %347 = dma.done [#allocation6], 48
    $region129: #{tpu_custom_call.1} parent=1 // pred_fallthru
      _
    // Predicated region
    $region130: #{tpu_custom_call.1} parent=1 // pred_check
      _
    $region131: #{tpu_custom_call.1} parent=1 // pred_check_branch
      %349 = sbr.rel (0) target = $region133
    $region132: #{tpu_custom_call.1} parent=1 // pred_region
      %350 = dma.done [#allocation9], 1024
    $region133: #{tpu_custom_call.1} parent=1 // pred_fallthru
      _
    // Predicated region
    $region134: #{tpu_custom_call.1} parent=1 // pred_check
      _
    $region135: #{tpu_custom_call.1} parent=1 // pred_check_branch
      %352 = sbr.rel (0) target = $region137
    $region136: #{tpu_custom_call.1} parent=1 // pred_region
      %353 = dma.done [#allocation9], 16
    $region137: #{tpu_custom_call.1} parent=1 // pred_fallthru
      _
    // Predicated region
    $region138: #{tpu_custom_call.1} parent=1 // pred_check
      _
    $region139: #{tpu_custom_call.1} parent=1 // pred_check_branch
      %355 = sbr.rel (0) target = $region141
    $region140: #{tpu_custom_call.1} parent=1 // pred_region
      %356 = dma.done [#allocation12], 16
    $region141: #{tpu_custom_call.1} parent=1 // pred_fallthru
      _
    // Predicated region
    $region142: #{tpu_custom_call.1} parent=1 // pred_check
      _
    $region143: #{tpu_custom_call.1} parent=1 // pred_check_branch
      %358 = sbr.rel (0) target = $region145
    $region144: #{tpu_custom_call.1} parent=1 // pred_region
      %359 = dma.done [#allocation12], 16
    $region145: #{tpu_custom_call.1} parent=1 // pred_fallthru
      _
    // Predicated region
    $region146: #{tpu_custom_call.1} parent=1 // pred_check
      _
    $region147: #{tpu_custom_call.1} parent=1 // pred_check_branch
      %361 = sbr.rel (0) target = $region149
    $region148: #{tpu_custom_call.1} parent=1 // pred_region
      %362 = dma.done [#allocation15], 16
    $region149: #{tpu_custom_call.1} parent=1 // pred_fallthru
      _
    // Predicated region
    $region150: #{tpu_custom_call.1} parent=1 // pred_check
      _
    $region151: #{tpu_custom_call.1} parent=1 // pred_check_branch
      %364 = sbr.rel (0) target = $region153
    $region152: #{tpu_custom_call.1} parent=1 // pred_region
      %365 = dma.done [#allocation15], 16
    $region153: #{tpu_custom_call.1} parent=1 // pred_fallthru
      _
    // Predicated region
    $region154: #{tpu_custom_call.1} parent=1 // pred_check
      _
    $region155: #{tpu_custom_call.1} parent=1 // pred_check_branch
      %367 = sbr.rel (0) target = $region157
    $region156: #{tpu_custom_call.1} parent=1 // pred_region
      %368 = dma.done [#allocation18], 16384
    $region157: #{tpu_custom_call.1} parent=1 // pred_fallthru
      _
    // Predicated region
    $region158: #{tpu_custom_call.1} parent=1 // pred_check
      _
    $region159: #{tpu_custom_call.1} parent=1 // pred_check_branch
      %370 = sbr.rel (0) target = $region161
    $region160: #{tpu_custom_call.1} parent=1 // pred_region
      %371 = dma.done [#allocation18], 16384
    $region161: #{tpu_custom_call.1} parent=1 // pred_fallthru
      _
    // Predicated region
    $region162: #{tpu_custom_call.1} parent=1 // pred_check
      _
    $region163: #{tpu_custom_call.1} parent=1 // pred_check_branch
      %373 = sbr.rel (0) target = $region165
    $region164: #{tpu_custom_call.1} parent=1 // pred_region
      %374 = dma.done [#allocation21], 16
    $region165: #{tpu_custom_call.1} parent=1 // pred_fallthru
      _
    // Predicated region
    $region166: #{tpu_custom_call.1} parent=1 // pred_check
      _
    $region167: #{tpu_custom_call.1} parent=1 // pred_check_branch
      %376 = sbr.rel (0) target = $region169
    $region168: #{tpu_custom_call.1} parent=1 // pred_region
      %377 = dma.done [#allocation21], 3072
    $region169: #{tpu_custom_call.1} parent=1 // pred_fallthru
      _
    // Predicated region
    $region170: #{tpu_custom_call.1} parent=1 // pred_check
      _
    $region171: #{tpu_custom_call.1} parent=1 // pred_check_branch
      %379 = sbr.rel (0) target = $region173
    $region172: #{tpu_custom_call.1} parent=1 // pred_region
      %380 = dma.done [#allocation24], 48
    $region173: #{tpu_custom_call.1} parent=1 // pred_fallthru
      _
    // Predicated region
    $region174: #{tpu_custom_call.1} parent=1 // pred_check
      _
    $region175: #{tpu_custom_call.1} parent=1 // pred_check_branch
      %382 = sbr.rel (0) target = $region177
    $region176: #{tpu_custom_call.1} parent=1 // pred_region
      %383 = dma.done [#allocation24], 1024
    $region177: #{tpu_custom_call.1} parent=1 // pred_fallthru
      _
    // Predicated region
    $region178: #{tpu_custom_call.1} parent=1 // pred_check
      _
    $region179: #{tpu_custom_call.1} parent=1 // pred_check_branch
      %385 = sbr.rel (0) target = $region181
    $region180: #{tpu_custom_call.1} parent=1 // pred_region
      %386 = dma.done [#allocation27], 16
    $region181: #{tpu_custom_call.1} parent=1 // pred_fallthru
      _
    // Predicated region
    $region182: #{tpu_custom_call.1} parent=1 // pred_check
      _
    $region183: #{tpu_custom_call.1} parent=1 // pred_check_branch
      %388 = sbr.rel (0) target = $region185
    $region184: #{tpu_custom_call.1} parent=1 // pred_region
      %389 = dma.done [#allocation27], 16
    $region185: #{tpu_custom_call.1} parent=1 // pred_fallthru
      _
    // Predicated region
    $region186: #{tpu_custom_call.1} parent=1 // pred_check
      _
    $region187: #{tpu_custom_call.1} parent=1 // pred_check_branch
      %391 = sbr.rel (0) target = $region189
    $region188: #{tpu_custom_call.1} parent=1 // pred_region
      %392 = dma.done [#allocation30], 16
    $region189: #{tpu_custom_call.1} parent=1 // pred_fallthru
      _
    // Predicated region
    $region190: #{tpu_custom_call.1} parent=1 // pred_check
      _
    $region191: #{tpu_custom_call.1} parent=1 // pred_check_branch
      %394 = sbr.rel (0) target = $region193
    $region192: #{tpu_custom_call.1} parent=1 // pred_region
      %395 = dma.done [#allocation30], 16
    $region193: #{tpu_custom_call.1} parent=1 // pred_fallthru
      _
    // Predicated region
    $region194: #{tpu_custom_call.1} parent=1 // pred_check
      _
    $region195: #{tpu_custom_call.1} parent=1 // pred_check_branch
      %397 = sbr.rel (0) target = $region197
    $region196: #{tpu_custom_call.1} parent=1 // pred_region
      %398 = dma.done [#allocation33], 16
    $region197: #{tpu_custom_call.1} parent=1 // pred_fallthru
      _
    // Predicated region
    $region198: #{tpu_custom_call.1} parent=1 // pred_check
      _
    $region199: #{tpu_custom_call.1} parent=1 // pred_check_branch
      %400 = sbr.rel (0) target = $region201
    $region200: #{tpu_custom_call.1} parent=1 // pred_region
      %401 = dma.done [#allocation33], 16384
    $region201: #{tpu_custom_call.1} parent=1 // pred_fallthru
      _
    // Predicated region
    $region202: #{tpu_custom_call.1} parent=1 // pred_check
      _
    $region203: #{tpu_custom_call.1} parent=1 // pred_check_branch
      %403 = sbr.rel (0) target = $region205
    $region204: #{tpu_custom_call.1} parent=1 // pred_region
      %404 = dma.done [#allocation36], 16384
    $region205: #{tpu_custom_call.1} parent=1 // pred_fallthru
      _
    // Predicated region
    $region206: #{tpu_custom_call.1} parent=1 // pred_check
      _
    $region207: #{tpu_custom_call.1} parent=1 // pred_check_branch
      %406 = sbr.rel (0) target = $region209
    $region208: #{tpu_custom_call.1} parent=1 // pred_region
      %407 = dma.done [#allocation36], 8192
    $region209: #{tpu_custom_call.1} parent=1 // pred_fallthru
      _
    %v409 = vld [vmem:[#allocation2] sm:$0xff]
    %v410 = vld [vmem:[#allocation2 + $0x8] sm:$0xff]
    %v411 = vld [vmem:[#allocation2 + $0x10] sm:$0xf]
    %v412 = vld [vmem:[#allocation5] sm:$0xff]
    %v413 = vld [vmem:[#allocation5 + $0x8] sm:$0xf]
    %v414 = vld [vmem:[#allocation5 + $0xc] sm:$0xff]
    %v415 = vld [vmem:[#allocation5 + $0x14] sm:$0xf]
    %v416 = vld [vmem:[#allocation5 + $0x18] sm:$0xff]
    %v417 = vld [vmem:[#allocation5 + $0x20] sm:$0xf]
    %v418 = vld [vmem:[#allocation5 + $0x24] sm:$0xff]
    %v419 = vld [vmem:[#allocation5 + $0x2c] sm:$0xf]
    %v420 = vld [vmem:[#allocation5 + $0x30] sm:$0xff]
    %v421 = vld [vmem:[#allocation5 + $0x38] sm:$0xf]
    %v422 = vld [vmem:[#allocation5 + $0x3c] sm:$0xff]
    %v423 = vld [vmem:[#allocation5 + $0x44] sm:$0xf]
    %v424 = vld [vmem:[#allocation5 + $0x48] sm:$0xff]
    %v425 = vld [vmem:[#allocation5 + $0x50] sm:$0xf]
    %v426 = vld [vmem:[#allocation5 + $0x54] sm:$0xff]
    %v427 = vld [vmem:[#allocation5 + $0x5c] sm:$0xf]
    %v428 = vld [vmem:[#allocation5 + $0x60] sm:$0xff]
    %v429 = vld [vmem:[#allocation5 + $0x68] sm:$0xf]
    %v430 = vld [vmem:[#allocation5 + $0x6c] sm:$0xff]
    %v431 = vld [vmem:[#allocation5 + $0x74] sm:$0xf]
    %v432 = vld [vmem:[#allocation5 + $0x78] sm:$0xff]
    %v433 = vld [vmem:[#allocation5 + $0x80] sm:$0xf]
    %v434 = vld [vmem:[#allocation5 + $0x84] sm:$0xff]
    %v435 = vld [vmem:[#allocation5 + $0x8c] sm:$0xf]
    %v436 = vld [vmem:[#allocation5 + $0x90] sm:$0xff]
    %v437 = vld [vmem:[#allocation5 + $0x98] sm:$0xf]
    %v438 = vld [vmem:[#allocation5 + $0x9c] sm:$0xff]
    %v439 = vld [vmem:[#allocation5 + $0xa4] sm:$0xf]
    %v440 = vld [vmem:[#allocation5 + $0xa8] sm:$0xff]
    %v441 = vld [vmem:[#allocation5 + $0xb0] sm:$0xf]
    %v442 = vld [vmem:[#allocation5 + $0xb4] sm:$0xff]
    %v443 = vld [vmem:[#allocation5 + $0xbc] sm:$0xf]
    %v444 = vld [vmem:[#allocation7] sm:$0x7]
    %v445 = vld [vmem:[#allocation8] sm:$0xf]
    %v446 = vld [vmem:[#allocation8 + $0x4] sm:$0xf]
    %v447 = vld [vmem:[#allocation8 + $0x8] sm:$0xf]
    %v448 = vld [vmem:[#allocation8 + $0xc] sm:$0xf]
    %v449 = vld [vmem:[#allocation8 + $0x10] sm:$0xf]
    %v450 = vld [vmem:[#allocation8 + $0x14] sm:$0xf]
    %v451 = vld [vmem:[#allocation8 + $0x18] sm:$0xf]
    %v452 = vld [vmem:[#allocation8 + $0x1c] sm:$0xf]
    %v453 = vld [vmem:[#allocation8 + $0x20] sm:$0xf]
    %v454 = vld [vmem:[#allocation8 + $0x24] sm:$0xf]
    %v455 = vld [vmem:[#allocation8 + $0x28] sm:$0xf]
    %v456 = vld [vmem:[#allocation8 + $0x2c] sm:$0xf]
    %v457 = vld [vmem:[#allocation8 + $0x30] sm:$0xf]
    %v458 = vld [vmem:[#allocation8 + $0x34] sm:$0xf]
    %v459 = vld [vmem:[#allocation8 + $0x38] sm:$0xf]
    %v460 = vld [vmem:[#allocation8 + $0x3c] sm:$0xf]
    %v461 = vld [vmem:[#allocation10] sm:$0x1]
    %v462 = vld [vmem:[#allocation11] sm:$0x1]
    %v463 = vld [vmem:[#allocation13] sm:$0x1]
    %v464 = vld [vmem:[#allocation14] sm:$0x1]
    %v465 = vld [vmem:[#allocation16] sm:$0x1]
    %v466 = vld [vmem:[#allocation17] sm:$0xff]
    %v467 = vld [vmem:[#allocation17 + $0x8] sm:$0xff]
    %v468 = vld [vmem:[#allocation17 + $0x10] sm:$0xff]
    %v469 = vld [vmem:[#allocation17 + $0x18] sm:$0xff]
    %v470 = vld [vmem:[#allocation17 + $0x20] sm:$0xff]
    %v471 = vld [vmem:[#allocation17 + $0x28] sm:$0xff]
    %v472 = vld [vmem:[#allocation17 + $0x30] sm:$0xff]
    %v473 = vld [vmem:[#allocation17 + $0x38] sm:$0xff]
    %v474 = vld [vmem:[#allocation17 + $0x40] sm:$0xff]
    %v475 = vld [vmem:[#allocation17 + $0x48] sm:$0xff]
    %v476 = vld [vmem:[#allocation17 + $0x50] sm:$0xff]
    %v477 = vld [vmem:[#allocation17 + $0x58] sm:$0xff]
    %v478 = vld [vmem:[#allocation17 + $0x60] sm:$0xff]
    %v479 = vld [vmem:[#allocation17 + $0x68] sm:$0xff]
    %v480 = vld [vmem:[#allocation17 + $0x70] sm:$0xff]
    %v481 = vld [vmem:[#allocation17 + $0x78] sm:$0xff]
    %v482 = vld [vmem:[#allocation17 + $0x80] sm:$0xff]
    %v483 = vld [vmem:[#allocation17 + $0x88] sm:$0xff]
    %v484 = vld [vmem:[#allocation17 + $0x90] sm:$0xff]
    %v485 = vld [vmem:[#allocation17 + $0x98] sm:$0xff]
    %v486 = vld [vmem:[#allocation17 + $0xa0] sm:$0xff]
    %v487 = vld [vmem:[#allocation17 + $0xa8] sm:$0xff]
    %v488 = vld [vmem:[#allocation17 + $0xb0] sm:$0xff]
    %v489 = vld [vmem:[#allocation17 + $0xb8] sm:$0xff]
    %v490 = vld [vmem:[#allocation17 + $0xc0] sm:$0xff]
    %v491 = vld [vmem:[#allocation17 + $0xc8] sm:$0xff]
    %v492 = vld [vmem:[#allocation17 + $0xd0] sm:$0xff]
    %v493 = vld [vmem:[#allocation17 + $0xd8] sm:$0xff]
    %v494 = vld [vmem:[#allocation17 + $0xe0] sm:$0xff]
    %v495 = vld [vmem:[#allocation17 + $0xe8] sm:$0xff]
    %v496 = vld [vmem:[#allocation17 + $0xf0] sm:$0xff]
    %v497 = vld [vmem:[#allocation17 + $0xf8] sm:$0xff]
    %v498 = vld [vmem:[#allocation17 + $0x100] sm:$0xff]
    %v499 = vld [vmem:[#allocation17 + $0x108] sm:$0xff]
    %v500 = vld [vmem:[#allocation17 + $0x110] sm:$0xff]
    %v501 = vld [vmem:[#allocation17 + $0x118] sm:$0xff]
    %v502 = vld [vmem:[#allocation17 + $0x120] sm:$0xff]
    %v503 = vld [vmem:[#allocation17 + $0x128] sm:$0xff]
    %v504 = vld [vmem:[#allocation17 + $0x130] sm:$0xff]
    %v505 = vld [vmem:[#allocation17 + $0x138] sm:$0xff]
    %v506 = vld [vmem:[#allocation17 + $0x140] sm:$0xff]
    %v507 = vld [vmem:[#allocation17 + $0x148] sm:$0xff]
    %v508 = vld [vmem:[#allocation17 + $0x150] sm:$0xff]
    %v509 = vld [vmem:[#allocation17 + $0x158] sm:$0xff]
    %v510 = vld [vmem:[#allocation17 + $0x160] sm:$0xff]
    %v511 = vld [vmem:[#allocation17 + $0x168] sm:$0xff]
    %v512 = vld [vmem:[#allocation17 + $0x170] sm:$0xff]
    %v513 = vld [vmem:[#allocation17 + $0x178] sm:$0xff]
    %v514 = vld [vmem:[#allocation17 + $0x180] sm:$0xff]
    %v515 = vld [vmem:[#allocation17 + $0x188] sm:$0xff]
    %v516 = vld [vmem:[#allocation17 + $0x190] sm:$0xff]
    %v517 = vld [vmem:[#allocation17 + $0x198] sm:$0xff]
    %v518 = vld [vmem:[#allocation17 + $0x1a0] sm:$0xff]
    %v519 = vld [vmem:[#allocation17 + $0x1a8] sm:$0xff]
    %v520 = vld [vmem:[#allocation17 + $0x1b0] sm:$0xff]
    %v521 = vld [vmem:[#allocation17 + $0x1b8] sm:$0xff]
    %v522 = vld [vmem:[#allocation17 + $0x1c0] sm:$0xff]
    %v523 = vld [vmem:[#allocation17 + $0x1c8] sm:$0xff]
    %v524 = vld [vmem:[#allocation17 + $0x1d0] sm:$0xff]
    %v525 = vld [vmem:[#allocation17 + $0x1d8] sm:$0xff]
    %v526 = vld [vmem:[#allocation17 + $0x1e0] sm:$0xff]
    %v527 = vld [vmem:[#allocation17 + $0x1e8] sm:$0xff]
    %v528 = vld [vmem:[#allocation17 + $0x1f0] sm:$0xff]
    %v529 = vld [vmem:[#allocation17 + $0x1f8] sm:$0xff]
    %v530 = vld [vmem:[#allocation17 + $0x200] sm:$0xff]
    %v531 = vld [vmem:[#allocation17 + $0x208] sm:$0xff]
    %v532 = vld [vmem:[#allocation17 + $0x210] sm:$0xff]
    %v533 = vld [vmem:[#allocation17 + $0x218] sm:$0xff]
    %v534 = vld [vmem:[#allocation17 + $0x220] sm:$0xff]
    %v535 = vld [vmem:[#allocation17 + $0x228] sm:$0xff]
    %v536 = vld [vmem:[#allocation17 + $0x230] sm:$0xff]
    %v537 = vld [vmem:[#allocation17 + $0x238] sm:$0xff]
    %v538 = vld [vmem:[#allocation17 + $0x240] sm:$0xff]
    %v539 = vld [vmem:[#allocation17 + $0x248] sm:$0xff]
    %v540 = vld [vmem:[#allocation17 + $0x250] sm:$0xff]
    %v541 = vld [vmem:[#allocation17 + $0x258] sm:$0xff]
    %v542 = vld [vmem:[#allocation17 + $0x260] sm:$0xff]
    %v543 = vld [vmem:[#allocation17 + $0x268] sm:$0xff]
    %v544 = vld [vmem:[#allocation17 + $0x270] sm:$0xff]
    %v545 = vld [vmem:[#allocation17 + $0x278] sm:$0xff]
    %v546 = vld [vmem:[#allocation17 + $0x280] sm:$0xff]
    %v547 = vld [vmem:[#allocation17 + $0x288] sm:$0xff]
    %v548 = vld [vmem:[#allocation17 + $0x290] sm:$0xff]
    %v549 = vld [vmem:[#allocation17 + $0x298] sm:$0xff]
    %v550 = vld [vmem:[#allocation17 + $0x2a0] sm:$0xff]
    %v551 = vld [vmem:[#allocation17 + $0x2a8] sm:$0xff]
    %v552 = vld [vmem:[#allocation17 + $0x2b0] sm:$0xff]
    %v553 = vld [vmem:[#allocation17 + $0x2b8] sm:$0xff]
    %v554 = vld [vmem:[#allocation17 + $0x2c0] sm:$0xff]
    %v555 = vld [vmem:[#allocation17 + $0x2c8] sm:$0xff]
    %v556 = vld [vmem:[#allocation17 + $0x2d0] sm:$0xff]
    %v557 = vld [vmem:[#allocation17 + $0x2d8] sm:$0xff]
    %v558 = vld [vmem:[#allocation17 + $0x2e0] sm:$0xff]
    %v559 = vld [vmem:[#allocation17 + $0x2e8] sm:$0xff]
    %v560 = vld [vmem:[#allocation17 + $0x2f0] sm:$0xff]
    %v561 = vld [vmem:[#allocation17 + $0x2f8] sm:$0xff]
    %v562 = vld [vmem:[#allocation17 + $0x300] sm:$0xff]
    %v563 = vld [vmem:[#allocation17 + $0x308] sm:$0xff]
    %v564 = vld [vmem:[#allocation17 + $0x310] sm:$0xff]
    %v565 = vld [vmem:[#allocation17 + $0x318] sm:$0xff]
    %v566 = vld [vmem:[#allocation17 + $0x320] sm:$0xff]
    %v567 = vld [vmem:[#allocation17 + $0x328] sm:$0xff]
    %v568 = vld [vmem:[#allocation17 + $0x330] sm:$0xff]
    %v569 = vld [vmem:[#allocation17 + $0x338] sm:$0xff]
    %v570 = vld [vmem:[#allocation17 + $0x340] sm:$0xff]
    %v571 = vld [vmem:[#allocation17 + $0x348] sm:$0xff]
    %v572 = vld [vmem:[#allocation17 + $0x350] sm:$0xff]
    %v573 = vld [vmem:[#allocation17 + $0x358] sm:$0xff]
    %v574 = vld [vmem:[#allocation17 + $0x360] sm:$0xff]
    %v575 = vld [vmem:[#allocation17 + $0x368] sm:$0xff]
    %v576 = vld [vmem:[#allocation17 + $0x370] sm:$0xff]
    %v577 = vld [vmem:[#allocation17 + $0x378] sm:$0xff]
    %v578 = vld [vmem:[#allocation17 + $0x380] sm:$0xff]
    %v579 = vld [vmem:[#allocation17 + $0x388] sm:$0xff]
    %v580 = vld [vmem:[#allocation17 + $0x390] sm:$0xff]
    %v581 = vld [vmem:[#allocation17 + $0x398] sm:$0xff]
    %v582 = vld [vmem:[#allocation17 + $0x3a0] sm:$0xff]
    %v583 = vld [vmem:[#allocation17 + $0x3a8] sm:$0xff]
    %v584 = vld [vmem:[#allocation17 + $0x3b0] sm:$0xff]
    %v585 = vld [vmem:[#allocation17 + $0x3b8] sm:$0xff]
    %v586 = vld [vmem:[#allocation17 + $0x3c0] sm:$0xff]
    %v587 = vld [vmem:[#allocation17 + $0x3c8] sm:$0xff]
    %v588 = vld [vmem:[#allocation17 + $0x3d0] sm:$0xff]
    %v589 = vld [vmem:[#allocation17 + $0x3d8] sm:$0xff]
    %v590 = vld [vmem:[#allocation17 + $0x3e0] sm:$0xff]
    %v591 = vld [vmem:[#allocation17 + $0x3e8] sm:$0xff]
    %v592 = vld [vmem:[#allocation17 + $0x3f0] sm:$0xff]
    %v593 = vld [vmem:[#allocation17 + $0x3f8] sm:$0xff]
    %v594 = vld [vmem:[%s21] sm:$0xff]
    %v595 = vld [vmem:[%s21 + $0x8] sm:$0xff]
    %v596 = vld [vmem:[#allocation19] sm:$0xf]
    %v597 = vld [vmem:[#allocation19 + $0x4] sm:$0xf]
    %v598 = vld [vmem:[#allocation19 + $0x8] sm:$0xf]
    %v599 = vld [vmem:[#allocation19 + $0xc] sm:$0xf]
    %v600 = vld [vmem:[#allocation19 + $0x10] sm:$0xf]
    %v601 = vld [vmem:[#allocation19 + $0x14] sm:$0xf]
    %v602 = vld [vmem:[#allocation19 + $0x18] sm:$0xf]
    %v603 = vld [vmem:[#allocation19 + $0x1c] sm:$0xf]
    %v604 = vld [vmem:[#allocation19 + $0x20] sm:$0xf]
    %v605 = vld [vmem:[#allocation19 + $0x24] sm:$0xf]
    %v606 = vld [vmem:[#allocation19 + $0x28] sm:$0xf]
    %v607 = vld [vmem:[#allocation19 + $0x2c] sm:$0xf]
    %v608 = vld [vmem:[#allocation19 + $0x30] sm:$0xf]
    %v609 = vld [vmem:[#allocation19 + $0x34] sm:$0xf]
    %v610 = vld [vmem:[#allocation19 + $0x38] sm:$0xf]
    %v611 = vld [vmem:[#allocation19 + $0x3c] sm:$0xf]
    %v612 = vld [vmem:[#allocation19 + $0x40] sm:$0xf]
    %v613 = vld [vmem:[#allocation19 + $0x44] sm:$0xf]
    %v614 = vld [vmem:[#allocation19 + $0x48] sm:$0xf]
    %v615 = vld [vmem:[#allocation19 + $0x4c] sm:$0xf]
    %v616 = vld [vmem:[#allocation19 + $0x50] sm:$0xf]
    %v617 = vld [vmem:[#allocation19 + $0x54] sm:$0xf]
    %v618 = vld [vmem:[#allocation19 + $0x58] sm:$0xf]
    %v619 = vld [vmem:[#allocation19 + $0x5c] sm:$0xf]
    %v620 = vld [vmem:[#allocation19 + $0x60] sm:$0xf]
    %v621 = vld [vmem:[#allocation19 + $0x64] sm:$0xf]
    %v622 = vld [vmem:[#allocation19 + $0x68] sm:$0xf]
    %v623 = vld [vmem:[#allocation19 + $0x6c] sm:$0xf]
    %v624 = vld [vmem:[#allocation19 + $0x70] sm:$0xf]
    %v625 = vld [vmem:[#allocation19 + $0x74] sm:$0xf]
    %v626 = vld [vmem:[#allocation19 + $0x78] sm:$0xf]
    %v627 = vld [vmem:[#allocation19 + $0x7c] sm:$0xf]
    %v628 = vld [vmem:[#allocation19 + $0x80] sm:$0xf]
    %v629 = vld [vmem:[#allocation19 + $0x84] sm:$0xf]
    %v630 = vld [vmem:[#allocation19 + $0x88] sm:$0xf]
    %v631 = vld [vmem:[#allocation19 + $0x8c] sm:$0xf]
    %v632 = vld [vmem:[#allocation19 + $0x90] sm:$0xf]
    %v633 = vld [vmem:[#allocation19 + $0x94] sm:$0xf]
    %v634 = vld [vmem:[#allocation19 + $0x98] sm:$0xf]
    %v635 = vld [vmem:[#allocation19 + $0x9c] sm:$0xf]
    %v636 = vld [vmem:[#allocation19 + $0xa0] sm:$0xf]
    %v637 = vld [vmem:[#allocation19 + $0xa4] sm:$0xf]
    %v638 = vld [vmem:[#allocation19 + $0xa8] sm:$0xf]
    %v639 = vld [vmem:[#allocation19 + $0xac] sm:$0xf]
    %v640 = vld [vmem:[#allocation19 + $0xb0] sm:$0xf]
    %v641 = vld [vmem:[#allocation19 + $0xb4] sm:$0xf]
    %v642 = vld [vmem:[#allocation19 + $0xb8] sm:$0xf]
    %v643 = vld [vmem:[#allocation19 + $0xbc] sm:$0xf]
    %v644 = vld [vmem:[#allocation19 + $0xc0] sm:$0xf]
    %v645 = vld [vmem:[#allocation19 + $0xc4] sm:$0xf]
    %v646 = vld [vmem:[#allocation19 + $0xc8] sm:$0xf]
    %v647 = vld [vmem:[#allocation19 + $0xcc] sm:$0xf]
    %v648 = vld [vmem:[#allocation19 + $0xd0] sm:$0xf]
    %v649 = vld [vmem:[#allocation19 + $0xd4] sm:$0xf]
    %v650 = vld [vmem:[#allocation19 + $0xd8] sm:$0xf]
    %v651 = vld [vmem:[#allocation19 + $0xdc] sm:$0xf]
    %v652 = vld [vmem:[#allocation19 + $0xe0] sm:$0xf]
    %v653 = vld [vmem:[#allocation19 + $0xe4] sm:$0xf]
    %v654 = vld [vmem:[#allocation19 + $0xe8] sm:$0xf]
    %v655 = vld [vmem:[#allocation19 + $0xec] sm:$0xf]
    %v656 = vld [vmem:[#allocation19 + $0xf0] sm:$0xf]
    %v657 = vld [vmem:[#allocation19 + $0xf4] sm:$0xf]
    %v658 = vld [vmem:[#allocation19 + $0xf8] sm:$0xf]
    %v659 = vld [vmem:[#allocation19 + $0xfc] sm:$0xf]
    %v660 = vld [vmem:[#allocation19 + $0x100] sm:$0xf]
    %v661 = vld [vmem:[#allocation19 + $0x104] sm:$0xf]
    %v662 = vld [vmem:[#allocation19 + $0x108] sm:$0xf]
    %v663 = vld [vmem:[#allocation19 + $0x10c] sm:$0xf]
    %v664 = vld [vmem:[#allocation19 + $0x110] sm:$0xf]
    %v665 = vld [vmem:[#allocation19 + $0x114] sm:$0xf]
    %v666 = vld [vmem:[#allocation19 + $0x118] sm:$0xf]
    %v667 = vld [vmem:[#allocation19 + $0x11c] sm:$0xf]
    %v668 = vld [vmem:[#allocation19 + $0x120] sm:$0xf]
    %v669 = vld [vmem:[#allocation19 + $0x124] sm:$0xf]
    %v670 = vld [vmem:[#allocation19 + $0x128] sm:$0xf]
    %v671 = vld [vmem:[#allocation19 + $0x12c] sm:$0xf]
    %v672 = vld [vmem:[#allocation19 + $0x130] sm:$0xf]
    %v673 = vld [vmem:[#allocation19 + $0x134] sm:$0xf]
    %v674 = vld [vmem:[#allocation19 + $0x138] sm:$0xf]
    %v675 = vld [vmem:[#allocation19 + $0x13c] sm:$0xf]
    %v676 = vld [vmem:[#allocation19 + $0x140] sm:$0xf]
    %v677 = vld [vmem:[#allocation19 + $0x144] sm:$0xf]
    %v678 = vld [vmem:[#allocation19 + $0x148] sm:$0xf]
    %v679 = vld [vmem:[#allocation19 + $0x14c] sm:$0xf]
    %v680 = vld [vmem:[#allocation19 + $0x150] sm:$0xf]
    %v681 = vld [vmem:[#allocation19 + $0x154] sm:$0xf]
    %v682 = vld [vmem:[#allocation19 + $0x158] sm:$0xf]
    %v683 = vld [vmem:[#allocation19 + $0x15c] sm:$0xf]
    %v684 = vld [vmem:[#allocation19 + $0x160] sm:$0xf]
    %v685 = vld [vmem:[#allocation19 + $0x164] sm:$0xf]
    %v686 = vld [vmem:[#allocation19 + $0x168] sm:$0xf]
    %v687 = vld [vmem:[#allocation19 + $0x16c] sm:$0xf]
    %v688 = vld [vmem:[#allocation19 + $0x170] sm:$0xf]
    %v689 = vld [vmem:[#allocation19 + $0x174] sm:$0xf]
    %v690 = vld [vmem:[#allocation19 + $0x178] sm:$0xf]
    %v691 = vld [vmem:[#allocation19 + $0x17c] sm:$0xf]
    %v692 = vld [vmem:[#allocation19 + $0x180] sm:$0xf]
    %v693 = vld [vmem:[#allocation19 + $0x184] sm:$0xf]
    %v694 = vld [vmem:[#allocation19 + $0x188] sm:$0xf]
    %v695 = vld [vmem:[#allocation19 + $0x18c] sm:$0xf]
    %v696 = vld [vmem:[#allocation19 + $0x190] sm:$0xf]
    %v697 = vld [vmem:[#allocation19 + $0x194] sm:$0xf]
    %v698 = vld [vmem:[#allocation19 + $0x198] sm:$0xf]
    %v699 = vld [vmem:[#allocation19 + $0x19c] sm:$0xf]
    %v700 = vld [vmem:[#allocation19 + $0x1a0] sm:$0xf]
    %v701 = vld [vmem:[#allocation19 + $0x1a4] sm:$0xf]
    %v702 = vld [vmem:[#allocation19 + $0x1a8] sm:$0xf]
    %v703 = vld [vmem:[#allocation19 + $0x1ac] sm:$0xf]
    %v704 = vld [vmem:[#allocation19 + $0x1b0] sm:$0xf]
    %v705 = vld [vmem:[#allocation19 + $0x1b4] sm:$0xf]
    %v706 = vld [vmem:[#allocation19 + $0x1b8] sm:$0xf]
    %v707 = vld [vmem:[#allocation19 + $0x1bc] sm:$0xf]
    %v708 = vld [vmem:[#allocation19 + $0x1c0] sm:$0xf]
    %v709 = vld [vmem:[#allocation19 + $0x1c4] sm:$0xf]
    %v710 = vld [vmem:[#allocation19 + $0x1c8] sm:$0xf]
    %v711 = vld [vmem:[#allocation19 + $0x1cc] sm:$0xf]
    %v712 = vld [vmem:[#allocation19 + $0x1d0] sm:$0xf]
    %v713 = vld [vmem:[#allocation19 + $0x1d4] sm:$0xf]
    %v714 = vld [vmem:[#allocation19 + $0x1d8] sm:$0xf]
    %v715 = vld [vmem:[#allocation19 + $0x1dc] sm:$0xf]
    %v716 = vld [vmem:[#allocation19 + $0x1e0] sm:$0xf]
    %v717 = vld [vmem:[#allocation19 + $0x1e4] sm:$0xf]
    %v718 = vld [vmem:[#allocation19 + $0x1e8] sm:$0xf]
    %v719 = vld [vmem:[#allocation19 + $0x1ec] sm:$0xf]
    %v720 = vld [vmem:[#allocation19 + $0x1f0] sm:$0xf]
    %v721 = vld [vmem:[#allocation19 + $0x1f4] sm:$0xf]
    %v722 = vld [vmem:[#allocation19 + $0x1f8] sm:$0xf]
    %v723 = vld [vmem:[#allocation19 + $0x1fc] sm:$0xf]
    %v724 = vld [vmem:[#allocation19 + $0x200] sm:$0xf]
    %v725 = vld [vmem:[#allocation19 + $0x204] sm:$0xf]
    %v726 = vld [vmem:[#allocation19 + $0x208] sm:$0xf]
    %v727 = vld [vmem:[#allocation19 + $0x20c] sm:$0xf]
    %v728 = vld [vmem:[#allocation19 + $0x210] sm:$0xf]
    %v729 = vld [vmem:[#allocation19 + $0x214] sm:$0xf]
    %v730 = vld [vmem:[#allocation19 + $0x218] sm:$0xf]
    %v731 = vld [vmem:[#allocation19 + $0x21c] sm:$0xf]
    %v732 = vld [vmem:[#allocation19 + $0x220] sm:$0xf]
    %v733 = vld [vmem:[#allocation19 + $0x224] sm:$0xf]
    %v734 = vld [vmem:[#allocation19 + $0x228] sm:$0xf]
    %v735 = vld [vmem:[#allocation19 + $0x22c] sm:$0xf]
    %v736 = vld [vmem:[#allocation19 + $0x230] sm:$0xf]
    %v737 = vld [vmem:[#allocation19 + $0x234] sm:$0xf]
    %v738 = vld [vmem:[#allocation19 + $0x238] sm:$0xf]
    %v739 = vld [vmem:[#allocation19 + $0x23c] sm:$0xf]
    %v740 = vld [vmem:[#allocation19 + $0x240] sm:$0xf]
    %v741 = vld [vmem:[#allocation19 + $0x244] sm:$0xf]
    %v742 = vld [vmem:[#allocation19 + $0x248] sm:$0xf]
    %v743 = vld [vmem:[#allocation19 + $0x24c] sm:$0xf]
    %v744 = vld [vmem:[#allocation19 + $0x250] sm:$0xf]
    %v745 = vld [vmem:[#allocation19 + $0x254] sm:$0xf]
    %v746 = vld [vmem:[#allocation19 + $0x258] sm:$0xf]
    %v747 = vld [vmem:[#allocation19 + $0x25c] sm:$0xf]
    %v748 = vld [vmem:[#allocation19 + $0x260] sm:$0xf]
    %v749 = vld [vmem:[#allocation19 + $0x264] sm:$0xf]
    %v750 = vld [vmem:[#allocation19 + $0x268] sm:$0xf]
    %v751 = vld [vmem:[#allocation19 + $0x26c] sm:$0xf]
    %v752 = vld [vmem:[#allocation19 + $0x270] sm:$0xf]
    %v753 = vld [vmem:[#allocation19 + $0x274] sm:$0xf]
    %v754 = vld [vmem:[#allocation19 + $0x278] sm:$0xf]
    %v755 = vld [vmem:[#allocation19 + $0x27c] sm:$0xf]
    %v756 = vld [vmem:[#allocation19 + $0x280] sm:$0xf]
    %v757 = vld [vmem:[#allocation19 + $0x284] sm:$0xf]
    %v758 = vld [vmem:[#allocation19 + $0x288] sm:$0xf]
    %v759 = vld [vmem:[#allocation19 + $0x28c] sm:$0xf]
    %v760 = vld [vmem:[#allocation19 + $0x290] sm:$0xf]
    %v761 = vld [vmem:[#allocation19 + $0x294] sm:$0xf]
    %v762 = vld [vmem:[#allocation19 + $0x298] sm:$0xf]
    %v763 = vld [vmem:[#allocation19 + $0x29c] sm:$0xf]
    %v764 = vld [vmem:[#allocation19 + $0x2a0] sm:$0xf]
    %v765 = vld [vmem:[#allocation19 + $0x2a4] sm:$0xf]
    %v766 = vld [vmem:[#allocation19 + $0x2a8] sm:$0xf]
    %v767 = vld [vmem:[#allocation19 + $0x2ac] sm:$0xf]
    %v768 = vld [vmem:[#allocation19 + $0x2b0] sm:$0xf]
    %v769 = vld [vmem:[#allocation19 + $0x2b4] sm:$0xf]
    %v770 = vld [vmem:[#allocation19 + $0x2b8] sm:$0xf]
    %v771 = vld [vmem:[#allocation19 + $0x2bc] sm:$0xf]
    %v772 = vld [vmem:[#allocation19 + $0x2c0] sm:$0xf]
    %v773 = vld [vmem:[#allocation19 + $0x2c4] sm:$0xf]
    %v774 = vld [vmem:[#allocation19 + $0x2c8] sm:$0xf]
    %v775 = vld [vmem:[#allocation19 + $0x2cc] sm:$0xf]
    %v776 = vld [vmem:[#allocation19 + $0x2d0] sm:$0xf]
    %v777 = vld [vmem:[#allocation19 + $0x2d4] sm:$0xf]
    %v778 = vld [vmem:[#allocation19 + $0x2d8] sm:$0xf]
    %v779 = vld [vmem:[#allocation19 + $0x2dc] sm:$0xf]
    %v780 = vld [vmem:[#allocation19 + $0x2e0] sm:$0xf]
    %v781 = vld [vmem:[#allocation19 + $0x2e4] sm:$0xf]
    %v782 = vld [vmem:[#allocation19 + $0x2e8] sm:$0xf]
    %v783 = vld [vmem:[#allocation19 + $0x2ec] sm:$0xf]
    %v784 = vld [vmem:[#allocation19 + $0x2f0] sm:$0xf]
    %v785 = vld [vmem:[#allocation19 + $0x2f4] sm:$0xf]
    %v786 = vld [vmem:[#allocation19 + $0x2f8] sm:$0xf]
    %v787 = vld [vmem:[#allocation19 + $0x2fc] sm:$0xf]
    %v788 = vld [vmem:[#allocation19 + $0x300] sm:$0xf]
    %v789 = vld [vmem:[#allocation19 + $0x304] sm:$0xf]
    %v790 = vld [vmem:[#allocation19 + $0x308] sm:$0xf]
    %v791 = vld [vmem:[#allocation19 + $0x30c] sm:$0xf]
    %v792 = vld [vmem:[#allocation19 + $0x310] sm:$0xf]
    %v793 = vld [vmem:[#allocation19 + $0x314] sm:$0xf]
    %v794 = vld [vmem:[#allocation19 + $0x318] sm:$0xf]
    %v795 = vld [vmem:[#allocation19 + $0x31c] sm:$0xf]
    %v796 = vld [vmem:[#allocation19 + $0x320] sm:$0xf]
    %v797 = vld [vmem:[#allocation19 + $0x324] sm:$0xf]
    %v798 = vld [vmem:[#allocation19 + $0x328] sm:$0xf]
    %v799 = vld [vmem:[#allocation19 + $0x32c] sm:$0xf]
    %v800 = vld [vmem:[#allocation19 + $0x330] sm:$0xf]
    %v801 = vld [vmem:[#allocation19 + $0x334] sm:$0xf]
    %v802 = vld [vmem:[#allocation19 + $0x338] sm:$0xf]
    %v803 = vld [vmem:[#allocation19 + $0x33c] sm:$0xf]
    %v804 = vld [vmem:[#allocation19 + $0x340] sm:$0xf]
    %v805 = vld [vmem:[#allocation19 + $0x344] sm:$0xf]
    %v806 = vld [vmem:[#allocation19 + $0x348] sm:$0xf]
    %v807 = vld [vmem:[#allocation19 + $0x34c] sm:$0xf]
    %v808 = vld [vmem:[#allocation19 + $0x350] sm:$0xf]
    %v809 = vld [vmem:[#allocation19 + $0x354] sm:$0xf]
    %v810 = vld [vmem:[#allocation19 + $0x358] sm:$0xf]
    %v811 = vld [vmem:[#allocation19 + $0x35c] sm:$0xf]
    %v812 = vld [vmem:[#allocation19 + $0x360] sm:$0xf]
    %v813 = vld [vmem:[#allocation19 + $0x364] sm:$0xf]
    %v814 = vld [vmem:[#allocation19 + $0x368] sm:$0xf]
    %v815 = vld [vmem:[#allocation19 + $0x36c] sm:$0xf]
    %v816 = vld [vmem:[#allocation19 + $0x370] sm:$0xf]
    %v817 = vld [vmem:[#allocation19 + $0x374] sm:$0xf]
    %v818 = vld [vmem:[#allocation19 + $0x378] sm:$0xf]
    %v819 = vld [vmem:[#allocation19 + $0x37c] sm:$0xf]
    %v820 = vld [vmem:[#allocation19 + $0x380] sm:$0xf]
    %v821 = vld [vmem:[#allocation19 + $0x384] sm:$0xf]
    %v822 = vld [vmem:[#allocation19 + $0x388] sm:$0xf]
    %v823 = vld [vmem:[#allocation19 + $0x38c] sm:$0xf]
    %v824 = vld [vmem:[#allocation19 + $0x390] sm:$0xf]
    %v825 = vld [vmem:[#allocation19 + $0x394] sm:$0xf]
    %v826 = vld [vmem:[#allocation19 + $0x398] sm:$0xf]
    %v827 = vld [vmem:[#allocation19 + $0x39c] sm:$0xf]
    %v828 = vld [vmem:[#allocation19 + $0x3a0] sm:$0xf]
    %v829 = vld [vmem:[#allocation19 + $0x3a4] sm:$0xf]
    %v830 = vld [vmem:[#allocation19 + $0x3a8] sm:$0xf]
    %v831 = vld [vmem:[#allocation19 + $0x3ac] sm:$0xf]
    %v832 = vld [vmem:[#allocation19 + $0x3b0] sm:$0xf]
    %v833 = vld [vmem:[#allocation19 + $0x3b4] sm:$0xf]
    %v834 = vld [vmem:[#allocation19 + $0x3b8] sm:$0xf]
    %v835 = vld [vmem:[#allocation19 + $0x3bc] sm:$0xf]
    %v836 = vld [vmem:[#allocation19 + $0x3c0] sm:$0xf]
    %v837 = vld [vmem:[#allocation19 + $0x3c4] sm:$0xf]
    %v838 = vld [vmem:[#allocation19 + $0x3c8] sm:$0xf]
    %v839 = vld [vmem:[#allocation19 + $0x3cc] sm:$0xf]
    %v840 = vld [vmem:[#allocation19 + $0x3d0] sm:$0xf]
    %v841 = vld [vmem:[#allocation19 + $0x3d4] sm:$0xf]
    %v842 = vld [vmem:[#allocation19 + $0x3d8] sm:$0xf]
    %v843 = vld [vmem:[#allocation19 + $0x3dc] sm:$0xf]
    %v844 = vld [vmem:[#allocation19 + $0x3e0] sm:$0xf]
    %v845 = vld [vmem:[#allocation19 + $0x3e4] sm:$0xf]
    %v846 = vld [vmem:[#allocation19 + $0x3e8] sm:$0xf]
    %v847 = vld [vmem:[#allocation19 + $0x3ec] sm:$0xf]
    %v848 = vld [vmem:[#allocation19 + $0x3f0] sm:$0xf]
    %v849 = vld [vmem:[#allocation19 + $0x3f4] sm:$0xf]
    %v850 = vld [vmem:[#allocation19 + $0x3f8] sm:$0xf]
    %v851 = vld [vmem:[#allocation19 + $0x3fc] sm:$0xf]
    %v852 = vld [vmem:[#allocation20] sm:$0x1]
    %v853 = vpack.c.bf16 %v410, %v409
    %v854 = vpack.c.bf16 %v411, %v411
    %v856 = vlaneseq
    %v857 = vshrl.u32 %v856, 7
    %v858 = vsub.s32 0, %v857
    %v859 = vrot.slane %v444, %v858
    %v860 = vlaneseq
    %v861 = vshrl.u32 %v860, 7
    %v862 = vsub.s32 1, %v861
    %v863 = vrot.slane %v444, %v862
    %v864 = vlaneseq
    %v865 = vshrl.u32 %v864, 7
    %v866 = vsub.s32 2, %v865
    %v867 = vrot.slane %v444, %v866
    %v903 = vunpack.c.l.b16 %v412
    %v904 = vunpack.c.h.b16 %v412
    %v905 = vunpack.c.l.b16 %v413
    %v906 = vunpack.c.l.b16 %v414
    %v907 = vunpack.c.h.b16 %v414
    %v908 = vunpack.c.l.b16 %v415
    %v909 = vunpack.c.l.b16 %v416
    %v910 = vunpack.c.h.b16 %v416
    %v911 = vunpack.c.l.b16 %v417
    %v912 = vunpack.c.l.b16 %v418
    %v913 = vunpack.c.h.b16 %v418
    %v914 = vunpack.c.l.b16 %v419
    %v915 = vunpack.c.l.b16 %v420
    %v916 = vunpack.c.h.b16 %v420
    %v917 = vunpack.c.l.b16 %v421
    %v918 = vunpack.c.l.b16 %v422
    %v919 = vunpack.c.h.b16 %v422
    %v920 = vunpack.c.l.b16 %v423
    %v921 = vunpack.c.l.b16 %v424
    %v922 = vunpack.c.h.b16 %v424
    %v923 = vunpack.c.l.b16 %v425
    %v924 = vunpack.c.l.b16 %v426
    %v925 = vunpack.c.h.b16 %v426
    %v926 = vunpack.c.l.b16 %v427
    %v927 = vunpack.c.l.b16 %v428
    %v928 = vunpack.c.h.b16 %v428
    %v929 = vunpack.c.l.b16 %v429
    %v930 = vunpack.c.l.b16 %v430
    %v931 = vunpack.c.h.b16 %v430
    %v932 = vunpack.c.l.b16 %v431
    %v933 = vunpack.c.l.b16 %v432
    %v934 = vunpack.c.h.b16 %v432
    %v935 = vunpack.c.l.b16 %v433
    %v936 = vunpack.c.l.b16 %v434
    %v937 = vunpack.c.h.b16 %v434
    %v938 = vunpack.c.l.b16 %v435
    %v939 = vunpack.c.l.b16 %v436
    %v940 = vunpack.c.h.b16 %v436
    %v941 = vunpack.c.l.b16 %v437
    %v942 = vunpack.c.l.b16 %v438
    %v943 = vunpack.c.h.b16 %v438
    %v944 = vunpack.c.l.b16 %v439
    %v945 = vunpack.c.l.b16 %v440
    %v946 = vunpack.c.h.b16 %v440
    %v947 = vunpack.c.l.b16 %v441
    %v948 = vunpack.c.l.b16 %v442
    %v949 = vunpack.c.h.b16 %v442
    %v950 = vunpack.c.l.b16 %v443
    %v951 = vpack.c.b16 %v906, %v903
    %v952 = vpack.c.b16 %v907, %v904
    %v953 = vpack.c.b16 %v908, %v905
    %v954 = vpack.c.b16 %v912, %v909
    %v955 = vpack.c.b16 %v913, %v910
    %v956 = vpack.c.b16 %v914, %v911
    %v957 = vpack.c.b16 %v918, %v915
    %v958 = vpack.c.b16 %v919, %v916
    %v959 = vpack.c.b16 %v920, %v917
    %v960 = vpack.c.b16 %v924, %v921
    %v961 = vpack.c.b16 %v925, %v922
    %v962 = vpack.c.b16 %v926, %v923
    %v963 = vpack.c.b16 %v930, %v927
    %v964 = vpack.c.b16 %v931, %v928
    %v965 = vpack.c.b16 %v932, %v929
    %v966 = vpack.c.b16 %v936, %v933
    %v967 = vpack.c.b16 %v937, %v934
    %v968 = vpack.c.b16 %v938, %v935
    %v969 = vpack.c.b16 %v942, %v939
    %v970 = vpack.c.b16 %v943, %v940
    %v971 = vpack.c.b16 %v944, %v941
    %v972 = vpack.c.b16 %v948, %v945
    %v973 = vpack.c.b16 %v949, %v946
    %v974 = vpack.c.b16 %v950, %v947
    %999 = vmatprep.subr.bf16.mxu0 %v973
    %1000 = vmatpush1.bf16.msra.mxu0 %v972
    %1001 = vmatprep.subr.bf16.mxu0 %v970
    %1002 = vmatpush1.bf16.msra.mxu0 %v969
    %1003 = vmatprep.subr.bf16.mxu0 %v967
    %1004 = vmatpush1.bf16.msra.mxu0 %v966
    %1005 = vmatprep.subr.bf16.mxu0 %v964
    %1006 = vmatpush1.bf16.msra.mxu0 %v963
    %1007 = vmatprep.subr.bf16.mxu0 %v961
    %1008 = vmatpush1.bf16.msra.mxu0 %v960
    %1009 = vmatprep.subr.bf16.mxu0 %v958
    %1010 = vmatpush1.bf16.msra.mxu0 %v957
    %1011 = vmatprep.subr.bf16.mxu0 %v955
    %1012 = vmatpush1.bf16.msra.mxu0 %v954
    %1013 = vmatprep.subr.bf16.mxu0 %v952
    %1014 = vmatpush1.bf16.msra.mxu0 %v951
    %1015 = vmatprep.subr.bf16.mxu0 0
    %1016 = vmatpush2.bf16.msra.mxu0 0
    %1017 = vmatprep.subr.bf16.mxu0 0
    %1018 = vmatpush2.bf16.msra.mxu0 0
    %1019 = vmatprep.subr.bf16.mxu0 0
    %1020 = vmatpush2.bf16.msra.mxu0 0
    %1021 = vmatprep.subr.bf16.mxu0 0
    %1022 = vmatpush2.bf16.msra.mxu0 0
    %1023 = vmatprep.subr.bf16.mxu0 0
    %1024 = vmatpush2.bf16.msra.mxu0 0
    %1025 = vmatprep.subr.bf16.mxu0 0
    %1026 = vmatpush2.bf16.msra.mxu0 0
    %1027 = vmatprep.subr.bf16.mxu0 0
    %1028 = vmatpush2.bf16.msra.mxu0 0
    %1029 = vmatprep.subr.bf16.mxu0 0
    %1030 = vmatpush2.bf16.msra.mxu0 0
    %1031 = vmatprep.mubr.bf16.mxu0 0
    %1032 = vmatmul.mubr.bf16.gmra.mxu0 %v853
    %v1033 = vpop.f32.mrf.mxu0
    %v1034 = vadd.f32 %v859, %v1033
    %v1035 = vpop.f32.mrf.mxu0
    %v1036 = vadd.f32 %v863, %v1035
    %v1037 = vpop.f32.mrf.mxu0
    %v1038 = vadd.f32 %v859, %v1037
    %v1039 = vpop.f32.mrf.mxu0
    %v1040 = vadd.f32 %v863, %v1039
    %1041 = vmatprep.mubr.bf16.mxu0 0
    %1042 = vmatmul.mubr.bf16.gmra.mxu0 %v854
    %v1043 = vpop.f32.mrf.mxu0
    %v1044 = vadd.f32 %v859, %v1043
    %v1045 = vpop.f32.mrf.mxu0
    %v1046 = vadd.f32 %v863, %v1045
    %v1047 = vpop.f32.mrf.mxu0
    %v1048 = vpop.f32.mrf.mxu0
    %1049 = vdwg.mxu0
    %1050 = vmatprep.subr.bf16.mxu0 0
    %1051 = vmatpush1.bf16.msra.mxu0 %v974
    %1052 = vmatprep.subr.bf16.mxu0 0
    %1053 = vmatpush1.bf16.msra.mxu0 %v971
    %1054 = vmatprep.subr.bf16.mxu0 0
    %1055 = vmatpush1.bf16.msra.mxu0 %v968
    %1056 = vmatprep.subr.bf16.mxu0 0
    %1057 = vmatpush1.bf16.msra.mxu0 %v965
    %1058 = vmatprep.subr.bf16.mxu0 0
    %1059 = vmatpush1.bf16.msra.mxu0 %v962
    %1060 = vmatprep.subr.bf16.mxu0 0
    %1061 = vmatpush1.bf16.msra.mxu0 %v959
    %1062 = vmatprep.subr.bf16.mxu0 0
    %1063 = vmatpush1.bf16.msra.mxu0 %v956
    %1064 = vmatprep.subr.bf16.mxu0 0
    %1065 = vmatpush1.bf16.msra.mxu0 %v953
    %1066 = vmatprep.subr.bf16.mxu0 0
    %1067 = vmatpush2.bf16.msra.mxu0 0
    %1068 = vmatprep.subr.bf16.mxu0 0
    %1069 = vmatpush2.bf16.msra.mxu0 0
    %1070 = vmatprep.subr.bf16.mxu0 0
    %1071 = vmatpush2.bf16.msra.mxu0 0
    %1072 = vmatprep.subr.bf16.mxu0 0
    %1073 = vmatpush2.bf16.msra.mxu0 0
    %1074 = vmatprep.subr.bf16.mxu0 0
    %1075 = vmatpush2.bf16.msra.mxu0 0
    %1076 = vmatprep.subr.bf16.mxu0 0
    %1077 = vmatpush2.bf16.msra.mxu0 0
    %1078 = vmatprep.subr.bf16.mxu0 0
    %1079 = vmatpush2.bf16.msra.mxu0 0
    %1080 = vmatprep.subr.bf16.mxu0 0
    %1081 = vmatpush2.bf16.msra.mxu0 0
    %1082 = vmatprep.mubr.bf16.mxu0 0
    %1083 = vmatmul.mubr.bf16.gmra.mxu0 %v853
    %v1084 = vpop.f32.mrf.mxu0
    %v1085 = vadd.f32 %v867, %v1084
    %v1086 = vpop.f32.mrf.mxu0
    %v1087 = vpop.f32.mrf.mxu0
    %v1088 = vadd.f32 %v867, %v1087
    %v1089 = vpop.f32.mrf.mxu0
    %1090 = vmatprep.mubr.bf16.mxu0 0
    %1091 = vmatmul.mubr.bf16.gmra.mxu0 %v854
    %v1092 = vpop.f32.mrf.mxu0
    %v1093 = vadd.f32 %v867, %v1092
    %v1094 = vpop.f32.mrf.mxu0
    %v1095 = vpop.f32.mrf.mxu0
    %v1096 = vpop.f32.mrf.mxu0
    %1097 = vdwg.mxu0
    %v1101 = vcombine.high %v1034, %v1034
    %v1103 = vunpack.c.l.s4 1983009808
    %v1104 = vunpack.c.0.s8 %v1103
    %v1105 = vlaneseq
    %v1106 = vshrl.u32 %v1105, 7
    %v1107 = vsub.s32 %v1104, %v1106
    %v1108 = vrot.slane %v1034, %v1107
    %v1110 = vunpack.c.l.s4 1983009808
    %v1111 = vunpack.c.0.s8 %v1110
    %v1112 = vlaneseq
    %v1113 = vshrl.u32 %v1112, 7
    %v1114 = vsub.s32 %v1111, %v1113
    %v1115 = vrot.slane %v1101, %v1114
    %v1116 = vcombine.high %v1108, %v1108
    %v1117 = vcombine.high %v1115, %v1115
    %v1118 = vcombine.high %v1038, %v1038
    %v1120 = vunpack.c.l.s4 1983009808
    %v1121 = vunpack.c.0.s8 %v1120
    %v1122 = vlaneseq
    %v1123 = vshrl.u32 %v1122, 7
    %v1124 = vsub.s32 %v1121, %v1123
    %v1125 = vrot.slane %v1038, %v1124
    %v1127 = vunpack.c.l.s4 1983009808
    %v1128 = vunpack.c.0.s8 %v1127
    %v1129 = vlaneseq
    %v1130 = vshrl.u32 %v1129, 7
    %v1131 = vsub.s32 %v1128, %v1130
    %v1132 = vrot.slane %v1118, %v1131
    %v1133 = vcombine.high %v1125, %v1125
    %v1134 = vcombine.high %v1132, %v1132
    %v1136 = vunpack.c.l.s4 1983009808
    %v1137 = vunpack.c.0.s8 %v1136
    %v1138 = vlaneseq
    %v1139 = vshrl.u32 %v1138, 7
    %v1140 = vsub.s32 %v1137, %v1139
    %v1141 = vrot.slane %v1044, %v1140
    %v1142 = vcombine.high %v1141, %v1141
    %v1143 = vcombine.low %v1108, %v1116
    %v1144 = vcombine.low %v1115, %v1117
    %v1146 = vunpack.c.l.s4 1983009808
    %v1147 = vunpack.c.0.s8 %v1146
    %v1148 = vlaneseq
    %v1149 = vshrl.u32 %v1148, 7
    %v1150 = vsub.s32 %v1147, %v1149
    %v1151 = vrot.slane %v1143, %v1150
    %v1153 = vunpack.c.l.s4 1983009808
    %v1154 = vunpack.c.0.s8 %v1153
    %v1155 = vlaneseq
    %v1156 = vshrl.u32 %v1155, 7
    %v1157 = vsub.s32 %v1154, %v1156
    %v1158 = vrot.slane %v1144, %v1157
    %v1159 = vcombine.low %v1151, %v1158
    %v1161 = vunpack.c.l.s4 1983009808
    %v1162 = vunpack.c.0.s8 %v1161
    %v1163 = vlaneseq
    %v1164 = vshrl.u32 %v1163, 7
    %v1165 = vsub.s32 %v1162, %v1164
    %v1166 = vrot.slane %v1125, %v1165
    %v1167 = vcombine.low %v1133, %v1132
    %v1168 = vcombine.low %v1134, %v1141
    %v1170 = vunpack.c.l.s4 1983009808
    %v1171 = vunpack.c.0.s8 %v1170
    %v1172 = vlaneseq
    %v1173 = vshrl.u32 %v1172, 7
    %v1174 = vsub.s32 %v1171, %v1173
    %v1175 = vrot.slane %v1167, %v1174
    %v1177 = vunpack.c.l.s4 1983009808
    %v1178 = vunpack.c.0.s8 %v1177
    %v1179 = vlaneseq
    %v1180 = vshrl.u32 %v1179, 7
    %v1181 = vsub.s32 %v1178, %v1180
    %v1182 = vrot.slane %v1168, %v1181
    %v1183 = vcombine.low %v1175, %v1182
    %v1185 = vunpack.c.l.s4 1983009808
    %v1186 = vunpack.c.0.s8 %v1185
    %v1187 = vlaneseq
    %v1188 = vshrl.u32 %v1187, 7
    %v1189 = vsub.s32 %v1186, %v1188
    %v1190 = vrot.slane %v1142, %v1189
    %v1195 = vpack.c.bf16 %v1166, %v1159
    %v1196 = vpack.c.bf16 %v1190, %v1183
    %v1200 = vcombine.high %v1036, %v1036
    %v1202 = vunpack.c.l.s4 1983009808
    %v1203 = vunpack.c.0.s8 %v1202
    %v1204 = vlaneseq
    %v1205 = vshrl.u32 %v1204, 7
    %v1206 = vsub.s32 %v1203, %v1205
    %v1207 = vrot.slane %v1036, %v1206
    %v1209 = vunpack.c.l.s4 1983009808
    %v1210 = vunpack.c.0.s8 %v1209
    %v1211 = vlaneseq
    %v1212 = vshrl.u32 %v1211, 7
    %v1213 = vsub.s32 %v1210, %v1212
    %v1214 = vrot.slane %v1200, %v1213
    %v1215 = vcombine.high %v1207, %v1207
    %v1216 = vcombine.high %v1214, %v1214
    %v1217 = vcombine.high %v1040, %v1040
    %v1219 = vunpack.c.l.s4 1983009808
    %v1220 = vunpack.c.0.s8 %v1219
    %v1221 = vlaneseq
    %v1222 = vshrl.u32 %v1221, 7
    %v1223 = vsub.s32 %v1220, %v1222
    %v1224 = vrot.slane %v1040, %v1223
    %v1226 = vunpack.c.l.s4 1983009808
    %v1227 = vunpack.c.0.s8 %v1226
    %v1228 = vlaneseq
    %v1229 = vshrl.u32 %v1228, 7
    %v1230 = vsub.s32 %v1227, %v1229
    %v1231 = vrot.slane %v1217, %v1230
    %v1232 = vcombine.high %v1224, %v1224
    %v1233 = vcombine.high %v1231, %v1231
    %v1235 = vunpack.c.l.s4 1983009808
    %v1236 = vunpack.c.0.s8 %v1235
    %v1237 = vlaneseq
    %v1238 = vshrl.u32 %v1237, 7
    %v1239 = vsub.s32 %v1236, %v1238
    %v1240 = vrot.slane %v1046, %v1239
    %v1241 = vcombine.high %v1240, %v1240
    %v1242 = vcombine.low %v1207, %v1215
    %v1243 = vcombine.low %v1214, %v1216
    %v1245 = vunpack.c.l.s4 1983009808
    %v1246 = vunpack.c.0.s8 %v1245
    %v1247 = vlaneseq
    %v1248 = vshrl.u32 %v1247, 7
    %v1249 = vsub.s32 %v1246, %v1248
    %v1250 = vrot.slane %v1242, %v1249
    %v1252 = vunpack.c.l.s4 1983009808
    %v1253 = vunpack.c.0.s8 %v1252
    %v1254 = vlaneseq
    %v1255 = vshrl.u32 %v1254, 7
    %v1256 = vsub.s32 %v1253, %v1255
    %v1257 = vrot.slane %v1243, %v1256
    %v1258 = vcombine.low %v1250, %v1257
    %v1260 = vunpack.c.l.s4 1983009808
    %v1261 = vunpack.c.0.s8 %v1260
    %v1262 = vlaneseq
    %v1263 = vshrl.u32 %v1262, 7
    %v1264 = vsub.s32 %v1261, %v1263
    %v1265 = vrot.slane %v1224, %v1264
    %v1266 = vcombine.low %v1232, %v1231
    %v1267 = vcombine.low %v1233, %v1240
    %v1269 = vunpack.c.l.s4 1983009808
    %v1270 = vunpack.c.0.s8 %v1269
    %v1271 = vlaneseq
    %v1272 = vshrl.u32 %v1271, 7
    %v1273 = vsub.s32 %v1270, %v1272
    %v1274 = vrot.slane %v1266, %v1273
    %v1276 = vunpack.c.l.s4 1983009808
    %v1277 = vunpack.c.0.s8 %v1276
    %v1278 = vlaneseq
    %v1279 = vshrl.u32 %v1278, 7
    %v1280 = vsub.s32 %v1277, %v1279
    %v1281 = vrot.slane %v1267, %v1280
    %v1282 = vcombine.low %v1274, %v1281
    %v1284 = vunpack.c.l.s4 1983009808
    %v1285 = vunpack.c.0.s8 %v1284
    %v1286 = vlaneseq
    %v1287 = vshrl.u32 %v1286, 7
    %v1288 = vsub.s32 %v1285, %v1287
    %v1289 = vrot.slane %v1241, %v1288
    %v1294 = vpack.c.bf16 %v1265, %v1258
    %v1295 = vpack.c.bf16 %v1289, %v1282
    %v1299 = vcombine.high %v1085, %v1085
    %v1301 = vunpack.c.l.s4 1983009808
    %v1302 = vunpack.c.0.s8 %v1301
    %v1303 = vlaneseq
    %v1304 = vshrl.u32 %v1303, 7
    %v1305 = vsub.s32 %v1302, %v1304
    %v1306 = vrot.slane %v1085, %v1305
    %v1308 = vunpack.c.l.s4 1983009808
    %v1309 = vunpack.c.0.s8 %v1308
    %v1310 = vlaneseq
    %v1311 = vshrl.u32 %v1310, 7
    %v1312 = vsub.s32 %v1309, %v1311
    %v1313 = vrot.slane %v1299, %v1312
    %v1314 = vcombine.high %v1306, %v1306
    %v1315 = vcombine.high %v1313, %v1313
    %v1316 = vcombine.high %v1088, %v1088
    %v1318 = vunpack.c.l.s4 1983009808
    %v1319 = vunpack.c.0.s8 %v1318
    %v1320 = vlaneseq
    %v1321 = vshrl.u32 %v1320, 7
    %v1322 = vsub.s32 %v1319, %v1321
    %v1323 = vrot.slane %v1088, %v1322
    %v1325 = vunpack.c.l.s4 1983009808
    %v1326 = vunpack.c.0.s8 %v1325
    %v1327 = vlaneseq
    %v1328 = vshrl.u32 %v1327, 7
    %v1329 = vsub.s32 %v1326, %v1328
    %v1330 = vrot.slane %v1316, %v1329
    %v1331 = vcombine.high %v1323, %v1323
    %v1332 = vcombine.high %v1330, %v1330
    %v1334 = vunpack.c.l.s4 1983009808
    %v1335 = vunpack.c.0.s8 %v1334
    %v1336 = vlaneseq
    %v1337 = vshrl.u32 %v1336, 7
    %v1338 = vsub.s32 %v1335, %v1337
    %v1339 = vrot.slane %v1093, %v1338
    %v1340 = vcombine.high %v1339, %v1339
    %v1341 = vcombine.low %v1306, %v1314
    %v1342 = vcombine.low %v1313, %v1315
    %v1344 = vunpack.c.l.s4 1983009808
    %v1345 = vunpack.c.0.s8 %v1344
    %v1346 = vlaneseq
    %v1347 = vshrl.u32 %v1346, 7
    %v1348 = vsub.s32 %v1345, %v1347
    %v1349 = vrot.slane %v1341, %v1348
    %v1351 = vunpack.c.l.s4 1983009808
    %v1352 = vunpack.c.0.s8 %v1351
    %v1353 = vlaneseq
    %v1354 = vshrl.u32 %v1353, 7
    %v1355 = vsub.s32 %v1352, %v1354
    %v1356 = vrot.slane %v1342, %v1355
    %v1357 = vcombine.low %v1349, %v1356
    %v1359 = vunpack.c.l.s4 1983009808
    %v1360 = vunpack.c.0.s8 %v1359
    %v1361 = vlaneseq
    %v1362 = vshrl.u32 %v1361, 7
    %v1363 = vsub.s32 %v1360, %v1362
    %v1364 = vrot.slane %v1323, %v1363
    %v1365 = vcombine.low %v1331, %v1330
    %v1366 = vcombine.low %v1332, %v1339
    %v1368 = vunpack.c.l.s4 1983009808
    %v1369 = vunpack.c.0.s8 %v1368
    %v1370 = vlaneseq
    %v1371 = vshrl.u32 %v1370, 7
    %v1372 = vsub.s32 %v1369, %v1371
    %v1373 = vrot.slane %v1365, %v1372
    %v1375 = vunpack.c.l.s4 1983009808
    %v1376 = vunpack.c.0.s8 %v1375
    %v1377 = vlaneseq
    %v1378 = vshrl.u32 %v1377, 7
    %v1379 = vsub.s32 %v1376, %v1378
    %v1380 = vrot.slane %v1366, %v1379
    %v1381 = vcombine.low %v1373, %v1380
    %v1383 = vunpack.c.l.s4 1983009808
    %v1384 = vunpack.c.0.s8 %v1383
    %v1385 = vlaneseq
    %v1386 = vshrl.u32 %v1385, 7
    %v1387 = vsub.s32 %v1384, %v1386
    %v1388 = vrot.slane %v1340, %v1387
    %v1393 = vpack.c.bf16 %v1364, %v1357
    %v1394 = vpack.c.bf16 %v1388, %v1381
    %vm1395 = vcmask 261120
    %v1397 = vsel %vm1395, %v1195, 0
    %v1400 = vsel %vm1395, %v1294, 0
    %1402 = vmatprep.subr.bf16.mxu0 0
    %1403 = vmatpush1.bf16.xpose.msra.mxu0 0
    %1404 = vmatprep.subr.bf16.mxu0 0
    %1405 = vmatpush1.bf16.xpose.msra.mxu0 0
    %1406 = vmatprep.subr.bf16.mxu0 0
    %1407 = vmatpush1.bf16.xpose.msra.mxu0 0
    %1408 = vmatprep.subr.bf16.mxu0 0
    %1409 = vmatpush1.bf16.xpose.msra.mxu0 0
    %1410 = vmatprep.subr.bf16.mxu0 0
    %1411 = vmatpush1.bf16.xpose.msra.mxu0 0
    %1412 = vmatprep.subr.bf16.mxu0 0
    %1413 = vmatpush1.bf16.xpose.msra.mxu0 0
    %1414 = vmatprep.subr.bf16.mxu0 0
    %1415 = vmatpush1.bf16.xpose.msra.mxu0 0
    %1416 = vmatprep.subr.bf16.mxu0 0
    %1417 = vmatpush1.bf16.xpose.msra.mxu0 %v1400
    %1418 = vmatprep.subr.bf16.mxu0 0
    %1419 = vmatpush2.bf16.xpose.msra.mxu0 0
    %1420 = vmatprep.subr.bf16.mxu0 0
    %1421 = vmatpush2.bf16.xpose.msra.mxu0 0
    %1422 = vmatprep.subr.bf16.mxu0 0
    %1423 = vmatpush2.bf16.xpose.msra.mxu0 0
    %1424 = vmatprep.subr.bf16.mxu0 0
    %1425 = vmatpush2.bf16.xpose.msra.mxu0 0
    %1426 = vmatprep.subr.bf16.mxu0 0
    %1427 = vmatpush2.bf16.xpose.msra.mxu0 0
    %1428 = vmatprep.subr.bf16.mxu0 0
    %1429 = vmatpush2.bf16.xpose.msra.mxu0 0
    %1430 = vmatprep.subr.bf16.mxu0 0
    %1431 = vmatpush2.bf16.xpose.msra.mxu0 0
    %1432 = vmatprep.subr.bf16.mxu0 0
    %1433 = vmatpush2.bf16.xpose.msra.mxu0 0
    %1434 = vmatprep.mubr.bf16.mxu0 0
    %1435 = vmatmul.mubr.bf16.gmra.mxu0 %v1397
    %v1436 = vpop.f32.mrf.mxu0
    %v1437 = vadd.f32 0.0, %v1436
    %v1438 = vpop.f32.mrf.mxu0
    %v1439 = vpop.f32.mrf.mxu0
    %v1440 = vadd.f32 0.0, %v1439
    %v1441 = vpop.f32.mrf.mxu0
    %1442 = vdwg.mxu0
    %v1444 = vsel %vm1395, %v1196, 0
    %v1447 = vsel %vm1395, %v1295, 0
    %1449 = vmatprep.subr.bf16.mxu0 0
    %1450 = vmatpush1.bf16.xpose.msra.mxu0 0
    %1451 = vmatprep.subr.bf16.mxu0 0
    %1452 = vmatpush1.bf16.xpose.msra.mxu0 0
    %1453 = vmatprep.subr.bf16.mxu0 0
    %1454 = vmatpush1.bf16.xpose.msra.mxu0 0
    %1455 = vmatprep.subr.bf16.mxu0 0
    %1456 = vmatpush1.bf16.xpose.msra.mxu0 0
    %1457 = vmatprep.subr.bf16.mxu0 0
    %1458 = vmatpush1.bf16.xpose.msra.mxu0 0
    %1459 = vmatprep.subr.bf16.mxu0 0
    %1460 = vmatpush1.bf16.xpose.msra.mxu0 0
    %1461 = vmatprep.subr.bf16.mxu0 0
    %1462 = vmatpush1.bf16.xpose.msra.mxu0 0
    %1463 = vmatprep.subr.bf16.mxu0 0
    %1464 = vmatpush1.bf16.xpose.msra.mxu0 %v1447
    %1465 = vmatprep.subr.bf16.mxu0 0
    %1466 = vmatpush2.bf16.xpose.msra.mxu0 0
    %1467 = vmatprep.subr.bf16.mxu0 0
    %1468 = vmatpush2.bf16.xpose.msra.mxu0 0
    %1469 = vmatprep.subr.bf16.mxu0 0
    %1470 = vmatpush2.bf16.xpose.msra.mxu0 0
    %1471 = vmatprep.subr.bf16.mxu0 0
    %1472 = vmatpush2.bf16.xpose.msra.mxu0 0
    %1473 = vmatprep.subr.bf16.mxu0 0
    %1474 = vmatpush2.bf16.xpose.msra.mxu0 0
    %1475 = vmatprep.subr.bf16.mxu0 0
    %1476 = vmatpush2.bf16.xpose.msra.mxu0 0
    %1477 = vmatprep.subr.bf16.mxu0 0
    %1478 = vmatpush2.bf16.xpose.msra.mxu0 0
    %1479 = vmatprep.subr.bf16.mxu0 0
    %1480 = vmatpush2.bf16.xpose.msra.mxu0 0
    %1481 = vmatprep.mubr.bf16.mxu0 0
    %1482 = vmatmul.mubr.bf16.gmra.mxu0 %v1444
    %v1483 = vpop.f32.mrf.mxu0
    %v1484 = vadd.f32 0.0, %v1483
    %v1485 = vpop.f32.mrf.mxu0
    %v1486 = vpop.f32.mrf.mxu0
    %v1487 = vadd.f32 0.0, %v1486
    %v1488 = vpop.f32.mrf.mxu0
    %1489 = vdwg.mxu0
    %v1490 = vmul.f32 %v1437, 0.17677669
    %v1491 = vmul.f32 %v1440, 0.17677669
    %v1492 = vmul.f32 %v1484, 0.17677669
    %v1493 = vmul.f32 %v1487, 0.17677669
    %vm1494 = vcmask 80896
    %v1495 = vsel %vm1494, %v1490, -inf
    %1496 = vmax.xlane.f32.xlu0 %v1495
    %v1497 = vpop.xlane.xlu0 %1496
    %vm1498 = vcmask 74752
    %v1499 = vsel %vm1498, %v1491, -inf
    %1500 = vmax.xlane.f32.xlu0 %v1499
    %v1501 = vpop.xlane.xlu0 %1500
    %v1502 = vsel %vm1494, %v1492, -inf
    %1503 = vmax.xlane.f32.xlu0 %v1502
    %v1504 = vpop.xlane.xlu0 %1503
    %v1505 = vsel %vm1498, %v1493, -inf
    %1506 = vmax.xlane.f32.xlu0 %v1505
    %v1507 = vpop.xlane.xlu0 %1506
    %v1508 = vsub.f32 %v1490, %v1497
    %v1509 = vsub.f32 %v1491, %v1501
    %v1510 = vsub.f32 %v1492, %v1504
    %v1511 = vsub.f32 %v1493, %v1507
    %v1512 = vmul.f32 %v1508, 1.442695
    %v1513 = vpow.pop %v1512
    %v1514 = vmul.f32 %v1509, 1.442695
    %v1515 = vpow.pop %v1514
    %v1516 = vmul.f32 %v1510, 1.442695
    %v1517 = vpow.pop %v1516
    %v1518 = vmul.f32 %v1511, 1.442695
    %v1519 = vpow.pop %v1518
    %v1520 = vsel %vm1494, %v1513, 0.0
    %1521 = vadd.xlane.f32.xlu0 %v1520
    %v1522 = vpop.xlane.xlu0 %1521
    %v1523 = vsel %vm1498, %v1515, 0.0
    %1524 = vadd.xlane.f32.xlu0 %v1523
    %v1525 = vpop.xlane.xlu0 %1524
    %v1526 = vsel %vm1494, %v1517, 0.0
    %1527 = vadd.xlane.f32.xlu0 %v1526
    %v1528 = vpop.xlane.xlu0 %1527
    %v1529 = vsel %vm1498, %v1519, 0.0
    %1530 = vadd.xlane.f32.xlu0 %v1529
    %v1531 = vpop.xlane.xlu0 %1530
    %v1532 = vrcp.pop %v1522
    %v1533 = vrcp.pop %v1525
    %v1534 = vrcp.pop %v1528
    %v1535 = vrcp.pop %v1531
    %v1536 = vmul.f32 %v1513, %v1532
    %v1537 = vmul.f32 %v1515, %v1533
    %v1538 = vmul.f32 %v1517, %v1534
    %v1539 = vmul.f32 %v1519, %v1535
    %v1540 = vpack.c.bf16 %v1537, %v1536
    %v1541 = vpack.c.bf16 %v1539, %v1538
    %v1543 = vsel %vm1494, %v1540, 0
    %vm1545 = vcmask 1044480
    %v1547 = vsel %vm1545, %v1393, 0
    %1549 = vmatprep.subr.bf16.mxu0 0
    %1550 = vmatpush1.bf16.msra.mxu0 0
    %1551 = vmatprep.subr.bf16.mxu0 0
    %1552 = vmatpush1.bf16.msra.mxu0 0
    %1553 = vmatprep.subr.bf16.mxu0 0
    %1554 = vmatpush1.bf16.msra.mxu0 0
    %1555 = vmatprep.subr.bf16.mxu0 0
    %1556 = vmatpush1.bf16.msra.mxu0 0
    %1557 = vmatprep.subr.bf16.mxu0 0
    %1558 = vmatpush1.bf16.msra.mxu0 0
    %1559 = vmatprep.subr.bf16.mxu0 0
    %1560 = vmatpush1.bf16.msra.mxu0 0
    %1561 = vmatprep.subr.bf16.mxu0 0
    %1562 = vmatpush1.bf16.msra.mxu0 0
    %1563 = vmatprep.subr.bf16.mxu0 0
    %1564 = vmatpush1.bf16.msra.mxu0 %v1547
    %1565 = vmatprep.subr.bf16.mxu0 0
    %1566 = vmatpush2.bf16.msra.mxu0 0
    %1567 = vmatprep.subr.bf16.mxu0 0
    %1568 = vmatpush2.bf16.msra.mxu0 0
    %1569 = vmatprep.subr.bf16.mxu0 0
    %1570 = vmatpush2.bf16.msra.mxu0 0
    %1571 = vmatprep.subr.bf16.mxu0 0
    %1572 = vmatpush2.bf16.msra.mxu0 0
    %1573 = vmatprep.subr.bf16.mxu0 0
    %1574 = vmatpush2.bf16.msra.mxu0 0
    %1575 = vmatprep.subr.bf16.mxu0 0
    %1576 = vmatpush2.bf16.msra.mxu0 0
    %1577 = vmatprep.subr.bf16.mxu0 0
    %1578 = vmatpush2.bf16.msra.mxu0 0
    %1579 = vmatprep.subr.bf16.mxu0 0
    %1580 = vmatpush2.bf16.msra.mxu0 0
    %1581 = vmatprep.mubr.bf16.mxu0 0
    %1582 = vmatmul.mubr.bf16.gmra.mxu0 %v1543
    %v1583 = vpop.f32.mrf.mxu0
    %v1584 = vadd.f32 0.0, %v1583
    %v1585 = vpop.f32.mrf.mxu0
    %v1586 = vpop.f32.mrf.mxu0
    %v1587 = vadd.f32 0.0, %v1586
    %v1588 = vpop.f32.mrf.mxu0
    %1589 = vdwg.mxu0
    %v1591 = vsel %vm1494, %v1541, 0
    %v1594 = vsel %vm1545, %v1394, 0
    %1596 = vmatprep.subr.bf16.mxu0 0
    %1597 = vmatpush1.bf16.msra.mxu0 0
    %1598 = vmatprep.subr.bf16.mxu0 0
    %1599 = vmatpush1.bf16.msra.mxu0 0
    %1600 = vmatprep.subr.bf16.mxu0 0
    %1601 = vmatpush1.bf16.msra.mxu0 0
    %1602 = vmatprep.subr.bf16.mxu0 0
    %1603 = vmatpush1.bf16.msra.mxu0 0
    %1604 = vmatprep.subr.bf16.mxu0 0
    %1605 = vmatpush1.bf16.msra.mxu0 0
    %1606 = vmatprep.subr.bf16.mxu0 0
    %1607 = vmatpush1.bf16.msra.mxu0 0
    %1608 = vmatprep.subr.bf16.mxu0 0
    %1609 = vmatpush1.bf16.msra.mxu0 0
    %1610 = vmatprep.subr.bf16.mxu0 0
    %1611 = vmatpush1.bf16.msra.mxu0 %v1594
    %1612 = vmatprep.subr.bf16.mxu0 0
    %1613 = vmatpush2.bf16.msra.mxu0 0
    %1614 = vmatprep.subr.bf16.mxu0 0
    %1615 = vmatpush2.bf16.msra.mxu0 0
    %1616 = vmatprep.subr.bf16.mxu0 0
    %1617 = vmatpush2.bf16.msra.mxu0 0
    %1618 = vmatprep.subr.bf16.mxu0 0
    %1619 = vmatpush2.bf16.msra.mxu0 0
    %1620 = vmatprep.subr.bf16.mxu0 0
    %1621 = vmatpush2.bf16.msra.mxu0 0
    %1622 = vmatprep.subr.bf16.mxu0 0
    %1623 = vmatpush2.bf16.msra.mxu0 0
    %1624 = vmatprep.subr.bf16.mxu0 0
    %1625 = vmatpush2.bf16.msra.mxu0 0
    %1626 = vmatprep.subr.bf16.mxu0 0
    %1627 = vmatpush2.bf16.msra.mxu0 0
    %1628 = vmatprep.mubr.bf16.mxu0 0
    %1629 = vmatmul.mubr.bf16.gmra.mxu0 %v1591
    %v1630 = vpop.f32.mrf.mxu0
    %v1631 = vadd.f32 0.0, %v1630
    %v1632 = vpop.f32.mrf.mxu0
    %v1633 = vpop.f32.mrf.mxu0
    %v1634 = vadd.f32 0.0, %v1633
    %v1635 = vpop.f32.mrf.mxu0
    %1636 = vdwg.mxu0
    %1638 = vrot.lane.b32.xlu0 %v1195, 96
    %v1639 = vpop.permute.xlu0 %1638
    %1641 = vrot.lane.b32.xlu0 %v1294, 96
    %v1642 = vpop.permute.xlu0 %1641
    %v1644 = vsel %vm1395, %v1639, 0
    %v1647 = vsel %vm1395, %v1642, 0
    %1649 = vmatprep.subr.bf16.mxu0 0
    %1650 = vmatpush1.bf16.xpose.msra.mxu0 0
    %1651 = vmatprep.subr.bf16.mxu0 0
    %1652 = vmatpush1.bf16.xpose.msra.mxu0 0
    %1653 = vmatprep.subr.bf16.mxu0 0
    %1654 = vmatpush1.bf16.xpose.msra.mxu0 0
    %1655 = vmatprep.subr.bf16.mxu0 0
    %1656 = vmatpush1.bf16.xpose.msra.mxu0 0
    %1657 = vmatprep.subr.bf16.mxu0 0
    %1658 = vmatpush1.bf16.xpose.msra.mxu0 0
    %1659 = vmatprep.subr.bf16.mxu0 0
    %1660 = vmatpush1.bf16.xpose.msra.mxu0 0
    %1661 = vmatprep.subr.bf16.mxu0 0
    %1662 = vmatpush1.bf16.xpose.msra.mxu0 0
    %1663 = vmatprep.subr.bf16.mxu0 0
    %1664 = vmatpush1.bf16.xpose.msra.mxu0 %v1647
    %1665 = vmatprep.subr.bf16.mxu0 0
    %1666 = vmatpush2.bf16.xpose.msra.mxu0 0
    %1667 = vmatprep.subr.bf16.mxu0 0
    %1668 = vmatpush2.bf16.xpose.msra.mxu0 0
    %1669 = vmatprep.subr.bf16.mxu0 0
    %1670 = vmatpush2.bf16.xpose.msra.mxu0 0
    %1671 = vmatprep.subr.bf16.mxu0 0
    %1672 = vmatpush2.bf16.xpose.msra.mxu0 0
    %1673 = vmatprep.subr.bf16.mxu0 0
    %1674 = vmatpush2.bf16.xpose.msra.mxu0 0
    %1675 = vmatprep.subr.bf16.mxu0 0
    %1676 = vmatpush2.bf16.xpose.msra.mxu0 0
    %1677 = vmatprep.subr.bf16.mxu0 0
    %1678 = vmatpush2.bf16.xpose.msra.mxu0 0
    %1679 = vmatprep.subr.bf16.mxu0 0
    %1680 = vmatpush2.bf16.xpose.msra.mxu0 0
    %1681 = vmatprep.mubr.bf16.mxu0 0
    %1682 = vmatmul.mubr.bf16.gmra.mxu0 %v1644
    %v1683 = vpop.f32.mrf.mxu0
    %v1684 = vadd.f32 0.0, %v1683
    %v1685 = vpop.f32.mrf.mxu0
    %v1686 = vpop.f32.mrf.mxu0
    %v1687 = vadd.f32 0.0, %v1686
    %v1688 = vpop.f32.mrf.mxu0
    %1689 = vdwg.mxu0
    %1691 = vrot.lane.b32.xlu0 %v1196, 96
    %v1692 = vpop.permute.xlu0 %1691
    %1694 = vrot.lane.b32.xlu0 %v1295, 96
    %v1695 = vpop.permute.xlu0 %1694
    %v1697 = vsel %vm1395, %v1692, 0
    %v1700 = vsel %vm1395, %v1695, 0
    %1702 = vmatprep.subr.bf16.mxu0 0
    %1703 = vmatpush1.bf16.xpose.msra.mxu0 0
    %1704 = vmatprep.subr.bf16.mxu0 0
    %1705 = vmatpush1.bf16.xpose.msra.mxu0 0
    %1706 = vmatprep.subr.bf16.mxu0 0
    %1707 = vmatpush1.bf16.xpose.msra.mxu0 0
    %1708 = vmatprep.subr.bf16.mxu0 0
    %1709 = vmatpush1.bf16.xpose.msra.mxu0 0
    %1710 = vmatprep.subr.bf16.mxu0 0
    %1711 = vmatpush1.bf16.xpose.msra.mxu0 0
    %1712 = vmatprep.subr.bf16.mxu0 0
    %1713 = vmatpush1.bf16.xpose.msra.mxu0 0
    %1714 = vmatprep.subr.bf16.mxu0 0
    %1715 = vmatpush1.bf16.xpose.msra.mxu0 0
    %1716 = vmatprep.subr.bf16.mxu0 0
    %1717 = vmatpush1.bf16.xpose.msra.mxu0 %v1700
    %1718 = vmatprep.subr.bf16.mxu0 0
    %1719 = vmatpush2.bf16.xpose.msra.mxu0 0
    %1720 = vmatprep.subr.bf16.mxu0 0
    %1721 = vmatpush2.bf16.xpose.msra.mxu0 0
    %1722 = vmatprep.subr.bf16.mxu0 0
    %1723 = vmatpush2.bf16.xpose.msra.mxu0 0
    %1724 = vmatprep.subr.bf16.mxu0 0
    %1725 = vmatpush2.bf16.xpose.msra.mxu0 0
    %1726 = vmatprep.subr.bf16.mxu0 0
    %1727 = vmatpush2.bf16.xpose.msra.mxu0 0
    %1728 = vmatprep.subr.bf16.mxu0 0
    %1729 = vmatpush2.bf16.xpose.msra.mxu0 0
    %1730 = vmatprep.subr.bf16.mxu0 0
    %1731 = vmatpush2.bf16.xpose.msra.mxu0 0
    %1732 = vmatprep.subr.bf16.mxu0 0
    %1733 = vmatpush2.bf16.xpose.msra.mxu0 0
    %1734 = vmatprep.mubr.bf16.mxu0 0
    %1735 = vmatmul.mubr.bf16.gmra.mxu0 %v1697
    %v1736 = vpop.f32.mrf.mxu0
    %v1737 = vadd.f32 0.0, %v1736
    %v1738 = vpop.f32.mrf.mxu0
    %v1739 = vpop.f32.mrf.mxu0
    %v1740 = vadd.f32 0.0, %v1739
    %v1741 = vpop.f32.mrf.mxu0
    %1742 = vdwg.mxu0
    %v1743 = vmul.f32 %v1684, 0.17677669
    %v1744 = vmul.f32 %v1687, 0.17677669
    %v1745 = vmul.f32 %v1737, 0.17677669
    %v1746 = vmul.f32 %v1740, 0.17677669
    %v1747 = vsel %vm1494, %v1743, -inf
    %1748 = vmax.xlane.f32.xlu0 %v1747
    %v1749 = vpop.xlane.xlu0 %1748
    %v1750 = vsel %vm1498, %v1744, -inf
    %1751 = vmax.xlane.f32.xlu0 %v1750
    %v1752 = vpop.xlane.xlu0 %1751
    %v1753 = vsel %vm1494, %v1745, -inf
    %1754 = vmax.xlane.f32.xlu0 %v1753
    %v1755 = vpop.xlane.xlu0 %1754
    %v1756 = vsel %vm1498, %v1746, -inf
    %1757 = vmax.xlane.f32.xlu0 %v1756
    %v1758 = vpop.xlane.xlu0 %1757
    %v1759 = vsub.f32 %v1743, %v1749
    %v1760 = vsub.f32 %v1744, %v1752
    %v1761 = vsub.f32 %v1745, %v1755
    %v1762 = vsub.f32 %v1746, %v1758
    %v1763 = vmul.f32 %v1759, 1.442695
    %v1764 = vpow.pop %v1763
    %v1765 = vmul.f32 %v1760, 1.442695
    %v1766 = vpow.pop %v1765
    %v1767 = vmul.f32 %v1761, 1.442695
    %v1768 = vpow.pop %v1767
    %v1769 = vmul.f32 %v1762, 1.442695
    %v1770 = vpow.pop %v1769
    %v1771 = vsel %vm1494, %v1764, 0.0
    %1772 = vadd.xlane.f32.xlu0 %v1771
    %v1773 = vpop.xlane.xlu0 %1772
    %v1774 = vsel %vm1498, %v1766, 0.0
    %1775 = vadd.xlane.f32.xlu0 %v1774
    %v1776 = vpop.xlane.xlu0 %1775
    %v1777 = vsel %vm1494, %v1768, 0.0
    %1778 = vadd.xlane.f32.xlu0 %v1777
    %v1779 = vpop.xlane.xlu0 %1778
    %v1780 = vsel %vm1498, %v1770, 0.0
    %1781 = vadd.xlane.f32.xlu0 %v1780
    %v1782 = vpop.xlane.xlu0 %1781
    %v1783 = vrcp.pop %v1773
    %v1784 = vrcp.pop %v1776
    %v1785 = vrcp.pop %v1779
    %v1786 = vrcp.pop %v1782
    %v1787 = vmul.f32 %v1764, %v1783
    %v1788 = vmul.f32 %v1766, %v1784
    %v1789 = vmul.f32 %v1768, %v1785
    %v1790 = vmul.f32 %v1770, %v1786
    %v1791 = vpack.c.bf16 %v1788, %v1787
    %v1792 = vpack.c.bf16 %v1790, %v1789
    %1794 = vrot.lane.b32.xlu0 %v1393, 96
    %v1795 = vpop.permute.xlu0 %1794
    %v1797 = vsel %vm1494, %v1791, 0
    %v1800 = vsel %vm1545, %v1795, 0
    %1802 = vmatprep.subr.bf16.mxu0 0
    %1803 = vmatpush1.bf16.msra.mxu0 0
    %1804 = vmatprep.subr.bf16.mxu0 0
    %1805 = vmatpush1.bf16.msra.mxu0 0
    %1806 = vmatprep.subr.bf16.mxu0 0
    %1807 = vmatpush1.bf16.msra.mxu0 0
    %1808 = vmatprep.subr.bf16.mxu0 0
    %1809 = vmatpush1.bf16.msra.mxu0 0
    %1810 = vmatprep.subr.bf16.mxu0 0
    %1811 = vmatpush1.bf16.msra.mxu0 0
    %1812 = vmatprep.subr.bf16.mxu0 0
    %1813 = vmatpush1.bf16.msra.mxu0 0
    %1814 = vmatprep.subr.bf16.mxu0 0
    %1815 = vmatpush1.bf16.msra.mxu0 0
    %1816 = vmatprep.subr.bf16.mxu0 0
    %1817 = vmatpush1.bf16.msra.mxu0 %v1800
    %1818 = vmatprep.subr.bf16.mxu0 0
    %1819 = vmatpush2.bf16.msra.mxu0 0
    %1820 = vmatprep.subr.bf16.mxu0 0
    %1821 = vmatpush2.bf16.msra.mxu0 0
    %1822 = vmatprep.subr.bf16.mxu0 0
    %1823 = vmatpush2.bf16.msra.mxu0 0
    %1824 = vmatprep.subr.bf16.mxu0 0
    %1825 = vmatpush2.bf16.msra.mxu0 0
    %1826 = vmatprep.subr.bf16.mxu0 0
    %1827 = vmatpush2.bf16.msra.mxu0 0
    %1828 = vmatprep.subr.bf16.mxu0 0
    %1829 = vmatpush2.bf16.msra.mxu0 0
    %1830 = vmatprep.subr.bf16.mxu0 0
    %1831 = vmatpush2.bf16.msra.mxu0 0
    %1832 = vmatprep.subr.bf16.mxu0 0
    %1833 = vmatpush2.bf16.msra.mxu0 0
    %1834 = vmatprep.mubr.bf16.mxu0 0
    %1835 = vmatmul.mubr.bf16.gmra.mxu0 %v1797
    %v1836 = vpop.f32.mrf.mxu0
    %v1837 = vadd.f32 0.0, %v1836
    %v1838 = vpop.f32.mrf.mxu0
    %v1839 = vpop.f32.mrf.mxu0
    %v1840 = vadd.f32 0.0, %v1839
    %v1841 = vpop.f32.mrf.mxu0
    %1842 = vdwg.mxu0
    %1844 = vrot.lane.b32.xlu0 %v1394, 96
    %v1845 = vpop.permute.xlu0 %1844
    %v1847 = vsel %vm1494, %v1792, 0
    %v1850 = vsel %vm1545, %v1845, 0
    %1852 = vmatprep.subr.bf16.mxu0 0
    %1853 = vmatpush1.bf16.msra.mxu0 0
    %1854 = vmatprep.subr.bf16.mxu0 0
    %1855 = vmatpush1.bf16.msra.mxu0 0
    %1856 = vmatprep.subr.bf16.mxu0 0
    %1857 = vmatpush1.bf16.msra.mxu0 0
    %1858 = vmatprep.subr.bf16.mxu0 0
    %1859 = vmatpush1.bf16.msra.mxu0 0
    %1860 = vmatprep.subr.bf16.mxu0 0
    %1861 = vmatpush1.bf16.msra.mxu0 0
    %1862 = vmatprep.subr.bf16.mxu0 0
    %1863 = vmatpush1.bf16.msra.mxu0 0
    %1864 = vmatprep.subr.bf16.mxu0 0
    %1865 = vmatpush1.bf16.msra.mxu0 0
    %1866 = vmatprep.subr.bf16.mxu0 0
    %1867 = vmatpush1.bf16.msra.mxu0 %v1850
    %1868 = vmatprep.subr.bf16.mxu0 0
    %1869 = vmatpush2.bf16.msra.mxu0 0
    %1870 = vmatprep.subr.bf16.mxu0 0
    %1871 = vmatpush2.bf16.msra.mxu0 0
    %1872 = vmatprep.subr.bf16.mxu0 0
    %1873 = vmatpush2.bf16.msra.mxu0 0
    %1874 = vmatprep.subr.bf16.mxu0 0
    %1875 = vmatpush2.bf16.msra.mxu0 0
    %1876 = vmatprep.subr.bf16.mxu0 0
    %1877 = vmatpush2.bf16.msra.mxu0 0
    %1878 = vmatprep.subr.bf16.mxu0 0
    %1879 = vmatpush2.bf16.msra.mxu0 0
    %1880 = vmatprep.subr.bf16.mxu0 0
    %1881 = vmatpush2.bf16.msra.mxu0 0
    %1882 = vmatprep.subr.bf16.mxu0 0
    %1883 = vmatpush2.bf16.msra.mxu0 0
    %1884 = vmatprep.mubr.bf16.mxu0 0
    %1885 = vmatmul.mubr.bf16.gmra.mxu0 %v1847
    %v1886 = vpop.f32.mrf.mxu0
    %v1887 = vadd.f32 0.0, %v1886
    %v1888 = vpop.f32.mrf.mxu0
    %v1889 = vpop.f32.mrf.mxu0
    %v1890 = vadd.f32 0.0, %v1889
    %v1891 = vpop.f32.mrf.mxu0
    %1892 = vdwg.mxu0
    %1893 = vrot.lane.b32.xlu0 %v1195, 64
    %v1894 = vpop.permute.xlu0 %1893
    %1895 = vrot.lane.b32.xlu0 %v1294, 64
    %v1896 = vpop.permute.xlu0 %1895
    %v1898 = vsel %vm1395, %v1894, 0
    %v1901 = vsel %vm1395, %v1896, 0
    %1903 = vmatprep.subr.bf16.mxu0 0
    %1904 = vmatpush1.bf16.xpose.msra.mxu0 0
    %1905 = vmatprep.subr.bf16.mxu0 0
    %1906 = vmatpush1.bf16.xpose.msra.mxu0 0
    %1907 = vmatprep.subr.bf16.mxu0 0
    %1908 = vmatpush1.bf16.xpose.msra.mxu0 0
    %1909 = vmatprep.subr.bf16.mxu0 0
    %1910 = vmatpush1.bf16.xpose.msra.mxu0 0
    %1911 = vmatprep.subr.bf16.mxu0 0
    %1912 = vmatpush1.bf16.xpose.msra.mxu0 0
    %1913 = vmatprep.subr.bf16.mxu0 0
    %1914 = vmatpush1.bf16.xpose.msra.mxu0 0
    %1915 = vmatprep.subr.bf16.mxu0 0
    %1916 = vmatpush1.bf16.xpose.msra.mxu0 0
    %1917 = vmatprep.subr.bf16.mxu0 0
    %1918 = vmatpush1.bf16.xpose.msra.mxu0 %v1901
    %1919 = vmatprep.subr.bf16.mxu0 0
    %1920 = vmatpush2.bf16.xpose.msra.mxu0 0
    %1921 = vmatprep.subr.bf16.mxu0 0
    %1922 = vmatpush2.bf16.xpose.msra.mxu0 0
    %1923 = vmatprep.subr.bf16.mxu0 0
    %1924 = vmatpush2.bf16.xpose.msra.mxu0 0
    %1925 = vmatprep.subr.bf16.mxu0 0
    %1926 = vmatpush2.bf16.xpose.msra.mxu0 0
    %1927 = vmatprep.subr.bf16.mxu0 0
    %1928 = vmatpush2.bf16.xpose.msra.mxu0 0
    %1929 = vmatprep.subr.bf16.mxu0 0
    %1930 = vmatpush2.bf16.xpose.msra.mxu0 0
    %1931 = vmatprep.subr.bf16.mxu0 0
    %1932 = vmatpush2.bf16.xpose.msra.mxu0 0
    %1933 = vmatprep.subr.bf16.mxu0 0
    %1934 = vmatpush2.bf16.xpose.msra.mxu0 0
    %1935 = vmatprep.mubr.bf16.mxu0 0
    %1936 = vmatmul.mubr.bf16.gmra.mxu0 %v1898
    %v1937 = vpop.f32.mrf.mxu0
    %v1938 = vadd.f32 0.0, %v1937
    %v1939 = vpop.f32.mrf.mxu0
    %v1940 = vpop.f32.mrf.mxu0
    %v1941 = vadd.f32 0.0, %v1940
    %v1942 = vpop.f32.mrf.mxu0
    %1943 = vdwg.mxu0
    %1944 = vrot.lane.b32.xlu0 %v1196, 64
    %v1945 = vpop.permute.xlu0 %1944
    %1946 = vrot.lane.b32.xlu0 %v1295, 64
    %v1947 = vpop.permute.xlu0 %1946
    %v1949 = vsel %vm1395, %v1945, 0
    %v1952 = vsel %vm1395, %v1947, 0
    %1954 = vmatprep.subr.bf16.mxu0 0
    %1955 = vmatpush1.bf16.xpose.msra.mxu0 0
    %1956 = vmatprep.subr.bf16.mxu0 0
    %1957 = vmatpush1.bf16.xpose.msra.mxu0 0
    %1958 = vmatprep.subr.bf16.mxu0 0
    %1959 = vmatpush1.bf16.xpose.msra.mxu0 0
    %1960 = vmatprep.subr.bf16.mxu0 0
    %1961 = vmatpush1.bf16.xpose.msra.mxu0 0
    %1962 = vmatprep.subr.bf16.mxu0 0
    %1963 = vmatpush1.bf16.xpose.msra.mxu0 0
    %1964 = vmatprep.subr.bf16.mxu0 0
    %1965 = vmatpush1.bf16.xpose.msra.mxu0 0
    %1966 = vmatprep.subr.bf16.mxu0 0
    %1967 = vmatpush1.bf16.xpose.msra.mxu0 0
    %1968 = vmatprep.subr.bf16.mxu0 0
    %1969 = vmatpush1.bf16.xpose.msra.mxu0 %v1952
    %1970 = vmatprep.subr.bf16.mxu0 0
    %1971 = vmatpush2.bf16.xpose.msra.mxu0 0
    %1972 = vmatprep.subr.bf16.mxu0 0
    %1973 = vmatpush2.bf16.xpose.msra.mxu0 0
    %1974 = vmatprep.subr.bf16.mxu0 0
    %1975 = vmatpush2.bf16.xpose.msra.mxu0 0
    %1976 = vmatprep.subr.bf16.mxu0 0
    %1977 = vmatpush2.bf16.xpose.msra.mxu0 0
    %1978 = vmatprep.subr.bf16.mxu0 0
    %1979 = vmatpush2.bf16.xpose.msra.mxu0 0
    %1980 = vmatprep.subr.bf16.mxu0 0
    %1981 = vmatpush2.bf16.xpose.msra.mxu0 0
    %1982 = vmatprep.subr.bf16.mxu0 0
    %1983 = vmatpush2.bf16.xpose.msra.mxu0 0
    %1984 = vmatprep.subr.bf16.mxu0 0
    %1985 = vmatpush2.bf16.xpose.msra.mxu0 0
    %1986 = vmatprep.mubr.bf16.mxu0 0
    %1987 = vmatmul.mubr.bf16.gmra.mxu0 %v1949
    %v1988 = vpop.f32.mrf.mxu0
    %v1989 = vadd.f32 0.0, %v1988
    %v1990 = vpop.f32.mrf.mxu0
    %v1991 = vpop.f32.mrf.mxu0
    %v1992 = vadd.f32 0.0, %v1991
    %v1993 = vpop.f32.mrf.mxu0
    %1994 = vdwg.mxu0
    %v1995 = vmul.f32 %v1938, 0.17677669
    %v1996 = vmul.f32 %v1941, 0.17677669
    %v1997 = vmul.f32 %v1989, 0.17677669
    %v1998 = vmul.f32 %v1992, 0.17677669
    %v1999 = vsel %vm1494, %v1995, -inf
    %2000 = vmax.xlane.f32.xlu0 %v1999
    %v2001 = vpop.xlane.xlu0 %2000
    %v2002 = vsel %vm1498, %v1996, -inf
    %2003 = vmax.xlane.f32.xlu0 %v2002
    %v2004 = vpop.xlane.xlu0 %2003
    %v2005 = vsel %vm1494, %v1997, -inf
    %2006 = vmax.xlane.f32.xlu0 %v2005
    %v2007 = vpop.xlane.xlu0 %2006
    %v2008 = vsel %vm1498, %v1998, -inf
    %2009 = vmax.xlane.f32.xlu0 %v2008
    %v2010 = vpop.xlane.xlu0 %2009
    %v2011 = vsub.f32 %v1995, %v2001
    %v2012 = vsub.f32 %v1996, %v2004
    %v2013 = vsub.f32 %v1997, %v2007
    %v2014 = vsub.f32 %v1998, %v2010
    %v2015 = vmul.f32 %v2011, 1.442695
    %v2016 = vpow.pop %v2015
    %v2017 = vmul.f32 %v2012, 1.442695
    %v2018 = vpow.pop %v2017
    %v2019 = vmul.f32 %v2013, 1.442695
    %v2020 = vpow.pop %v2019
    %v2021 = vmul.f32 %v2014, 1.442695
    %v2022 = vpow.pop %v2021
    %v2023 = vsel %vm1494, %v2016, 0.0
    %2024 = vadd.xlane.f32.xlu0 %v2023
    %v2025 = vpop.xlane.xlu0 %2024
    %v2026 = vsel %vm1498, %v2018, 0.0
    %2027 = vadd.xlane.f32.xlu0 %v2026
    %v2028 = vpop.xlane.xlu0 %2027
    %v2029 = vsel %vm1494, %v2020, 0.0
    %2030 = vadd.xlane.f32.xlu0 %v2029
    %v2031 = vpop.xlane.xlu0 %2030
    %v2032 = vsel %vm1498, %v2022, 0.0
    %2033 = vadd.xlane.f32.xlu0 %v2032
    %v2034 = vpop.xlane.xlu0 %2033
    %v2035 = vrcp.pop %v2025
    %v2036 = vrcp.pop %v2028
    %v2037 = vrcp.pop %v2031
    %v2038 = vrcp.pop %v2034
    %v2039 = vmul.f32 %v2016, %v2035
    %v2040 = vmul.f32 %v2018, %v2036
    %v2041 = vmul.f32 %v2020, %v2037
    %v2042 = vmul.f32 %v2022, %v2038
    %v2043 = vpack.c.bf16 %v2040, %v2039
    %v2044 = vpack.c.bf16 %v2042, %v2041
    %2045 = vrot.lane.b32.xlu0 %v1393, 64
    %v2046 = vpop.permute.xlu0 %2045
    %v2048 = vsel %vm1494, %v2043, 0
    %v2051 = vsel %vm1545, %v2046, 0
    %2053 = vmatprep.subr.bf16.mxu0 0
    %2054 = vmatpush1.bf16.msra.mxu0 0
    %2055 = vmatprep.subr.bf16.mxu0 0
    %2056 = vmatpush1.bf16.msra.mxu0 0
    %2057 = vmatprep.subr.bf16.mxu0 0
    %2058 = vmatpush1.bf16.msra.mxu0 0
    %2059 = vmatprep.subr.bf16.mxu0 0
    %2060 = vmatpush1.bf16.msra.mxu0 0
    %2061 = vmatprep.subr.bf16.mxu0 0
    %2062 = vmatpush1.bf16.msra.mxu0 0
    %2063 = vmatprep.subr.bf16.mxu0 0
    %2064 = vmatpush1.bf16.msra.mxu0 0
    %2065 = vmatprep.subr.bf16.mxu0 0
    %2066 = vmatpush1.bf16.msra.mxu0 0
    %2067 = vmatprep.subr.bf16.mxu0 0
    %2068 = vmatpush1.bf16.msra.mxu0 %v2051
    %2069 = vmatprep.subr.bf16.mxu0 0
    %2070 = vmatpush2.bf16.msra.mxu0 0
    %2071 = vmatprep.subr.bf16.mxu0 0
    %2072 = vmatpush2.bf16.msra.mxu0 0
    %2073 = vmatprep.subr.bf16.mxu0 0
    %2074 = vmatpush2.bf16.msra.mxu0 0
    %2075 = vmatprep.subr.bf16.mxu0 0
    %2076 = vmatpush2.bf16.msra.mxu0 0
    %2077 = vmatprep.subr.bf16.mxu0 0
    %2078 = vmatpush2.bf16.msra.mxu0 0
    %2079 = vmatprep.subr.bf16.mxu0 0
    %2080 = vmatpush2.bf16.msra.mxu0 0
    %2081 = vmatprep.subr.bf16.mxu0 0
    %2082 = vmatpush2.bf16.msra.mxu0 0
    %2083 = vmatprep.subr.bf16.mxu0 0
    %2084 = vmatpush2.bf16.msra.mxu0 0
    %2085 = vmatprep.mubr.bf16.mxu0 0
    %2086 = vmatmul.mubr.bf16.gmra.mxu0 %v2048
    %v2087 = vpop.f32.mrf.mxu0
    %v2088 = vadd.f32 0.0, %v2087
    %v2089 = vpop.f32.mrf.mxu0
    %v2090 = vpop.f32.mrf.mxu0
    %v2091 = vadd.f32 0.0, %v2090
    %v2092 = vpop.f32.mrf.mxu0
    %2093 = vdwg.mxu0
    %2094 = vrot.lane.b32.xlu0 %v1394, 64
    %v2095 = vpop.permute.xlu0 %2094
    %v2097 = vsel %vm1494, %v2044, 0
    %v2100 = vsel %vm1545, %v2095, 0
    %2102 = vmatprep.subr.bf16.mxu0 0
    %2103 = vmatpush1.bf16.msra.mxu0 0
    %2104 = vmatprep.subr.bf16.mxu0 0
    %2105 = vmatpush1.bf16.msra.mxu0 0
    %2106 = vmatprep.subr.bf16.mxu0 0
    %2107 = vmatpush1.bf16.msra.mxu0 0
    %2108 = vmatprep.subr.bf16.mxu0 0
    %2109 = vmatpush1.bf16.msra.mxu0 0
    %2110 = vmatprep.subr.bf16.mxu0 0
    %2111 = vmatpush1.bf16.msra.mxu0 0
    %2112 = vmatprep.subr.bf16.mxu0 0
    %2113 = vmatpush1.bf16.msra.mxu0 0
    %2114 = vmatprep.subr.bf16.mxu0 0
    %2115 = vmatpush1.bf16.msra.mxu0 0
    %2116 = vmatprep.subr.bf16.mxu0 0
    %2117 = vmatpush1.bf16.msra.mxu0 %v2100
    %2118 = vmatprep.subr.bf16.mxu0 0
    %2119 = vmatpush2.bf16.msra.mxu0 0
    %2120 = vmatprep.subr.bf16.mxu0 0
    %2121 = vmatpush2.bf16.msra.mxu0 0
    %2122 = vmatprep.subr.bf16.mxu0 0
    %2123 = vmatpush2.bf16.msra.mxu0 0
    %2124 = vmatprep.subr.bf16.mxu0 0
    %2125 = vmatpush2.bf16.msra.mxu0 0
    %2126 = vmatprep.subr.bf16.mxu0 0
    %2127 = vmatpush2.bf16.msra.mxu0 0
    %2128 = vmatprep.subr.bf16.mxu0 0
    %2129 = vmatpush2.bf16.msra.mxu0 0
    %2130 = vmatprep.subr.bf16.mxu0 0
    %2131 = vmatpush2.bf16.msra.mxu0 0
    %2132 = vmatprep.subr.bf16.mxu0 0
    %2133 = vmatpush2.bf16.msra.mxu0 0
    %2134 = vmatprep.mubr.bf16.mxu0 0
    %2135 = vmatmul.mubr.bf16.gmra.mxu0 %v2097
    %v2136 = vpop.f32.mrf.mxu0
    %v2137 = vadd.f32 0.0, %v2136
    %v2138 = vpop.f32.mrf.mxu0
    %v2139 = vpop.f32.mrf.mxu0
    %v2140 = vadd.f32 0.0, %v2139
    %v2141 = vpop.f32.mrf.mxu0
    %2142 = vdwg.mxu0
    %2143 = vrot.lane.b32.xlu0 %v1195, 32
    %v2144 = vpop.permute.xlu0 %2143
    %2145 = vrot.lane.b32.xlu0 %v1294, 32
    %v2146 = vpop.permute.xlu0 %2145
    %v2148 = vsel %vm1395, %v2144, 0
    %v2151 = vsel %vm1395, %v2146, 0
    %2153 = vmatprep.subr.bf16.mxu0 0
    %2154 = vmatpush1.bf16.xpose.msra.mxu0 0
    %2155 = vmatprep.subr.bf16.mxu0 0
    %2156 = vmatpush1.bf16.xpose.msra.mxu0 0
    %2157 = vmatprep.subr.bf16.mxu0 0
    %2158 = vmatpush1.bf16.xpose.msra.mxu0 0
    %2159 = vmatprep.subr.bf16.mxu0 0
    %2160 = vmatpush1.bf16.xpose.msra.mxu0 0
    %2161 = vmatprep.subr.bf16.mxu0 0
    %2162 = vmatpush1.bf16.xpose.msra.mxu0 0
    %2163 = vmatprep.subr.bf16.mxu0 0
    %2164 = vmatpush1.bf16.xpose.msra.mxu0 0
    %2165 = vmatprep.subr.bf16.mxu0 0
    %2166 = vmatpush1.bf16.xpose.msra.mxu0 0
    %2167 = vmatprep.subr.bf16.mxu0 0
    %2168 = vmatpush1.bf16.xpose.msra.mxu0 %v2151
    %2169 = vmatprep.subr.bf16.mxu0 0
    %2170 = vmatpush2.bf16.xpose.msra.mxu0 0
    %2171 = vmatprep.subr.bf16.mxu0 0
    %2172 = vmatpush2.bf16.xpose.msra.mxu0 0
    %2173 = vmatprep.subr.bf16.mxu0 0
    %2174 = vmatpush2.bf16.xpose.msra.mxu0 0
    %2175 = vmatprep.subr.bf16.mxu0 0
    %2176 = vmatpush2.bf16.xpose.msra.mxu0 0
    %2177 = vmatprep.subr.bf16.mxu0 0
    %2178 = vmatpush2.bf16.xpose.msra.mxu0 0
    %2179 = vmatprep.subr.bf16.mxu0 0
    %2180 = vmatpush2.bf16.xpose.msra.mxu0 0
    %2181 = vmatprep.subr.bf16.mxu0 0
    %2182 = vmatpush2.bf16.xpose.msra.mxu0 0
    %2183 = vmatprep.subr.bf16.mxu0 0
    %2184 = vmatpush2.bf16.xpose.msra.mxu0 0
    %2185 = vmatprep.mubr.bf16.mxu0 0
    %2186 = vmatmul.mubr.bf16.gmra.mxu0 %v2148
    %v2187 = vpop.f32.mrf.mxu0
    %v2188 = vadd.f32 0.0, %v2187
    %v2189 = vpop.f32.mrf.mxu0
    %v2190 = vpop.f32.mrf.mxu0
    %v2191 = vadd.f32 0.0, %v2190
    %v2192 = vpop.f32.mrf.mxu0
    %2193 = vdwg.mxu0
    %2194 = vrot.lane.b32.xlu0 %v1196, 32
    %v2195 = vpop.permute.xlu0 %2194
    %2196 = vrot.lane.b32.xlu0 %v1295, 32
    %v2197 = vpop.permute.xlu0 %2196
    %v2199 = vsel %vm1395, %v2195, 0
    %v2202 = vsel %vm1395, %v2197, 0
    %2204 = vmatprep.subr.bf16.mxu0 0
    %2205 = vmatpush1.bf16.xpose.msra.mxu0 0
    %2206 = vmatprep.subr.bf16.mxu0 0
    %2207 = vmatpush1.bf16.xpose.msra.mxu0 0
    %2208 = vmatprep.subr.bf16.mxu0 0
    %2209 = vmatpush1.bf16.xpose.msra.mxu0 0
    %2210 = vmatprep.subr.bf16.mxu0 0
    %2211 = vmatpush1.bf16.xpose.msra.mxu0 0
    %2212 = vmatprep.subr.bf16.mxu0 0
    %2213 = vmatpush1.bf16.xpose.msra.mxu0 0
    %2214 = vmatprep.subr.bf16.mxu0 0
    %2215 = vmatpush1.bf16.xpose.msra.mxu0 0
    %2216 = vmatprep.subr.bf16.mxu0 0
    %2217 = vmatpush1.bf16.xpose.msra.mxu0 0
    %2218 = vmatprep.subr.bf16.mxu0 0
    %2219 = vmatpush1.bf16.xpose.msra.mxu0 %v2202
    %2220 = vmatprep.subr.bf16.mxu0 0
    %2221 = vmatpush2.bf16.xpose.msra.mxu0 0
    %2222 = vmatprep.subr.bf16.mxu0 0
    %2223 = vmatpush2.bf16.xpose.msra.mxu0 0
    %2224 = vmatprep.subr.bf16.mxu0 0
    %2225 = vmatpush2.bf16.xpose.msra.mxu0 0
    %2226 = vmatprep.subr.bf16.mxu0 0
    %2227 = vmatpush2.bf16.xpose.msra.mxu0 0
    %2228 = vmatprep.subr.bf16.mxu0 0
    %2229 = vmatpush2.bf16.xpose.msra.mxu0 0
    %2230 = vmatprep.subr.bf16.mxu0 0
    %2231 = vmatpush2.bf16.xpose.msra.mxu0 0
    %2232 = vmatprep.subr.bf16.mxu0 0
    %2233 = vmatpush2.bf16.xpose.msra.mxu0 0
    %2234 = vmatprep.subr.bf16.mxu0 0
    %2235 = vmatpush2.bf16.xpose.msra.mxu0 0
    %2236 = vmatprep.mubr.bf16.mxu0 0
    %2237 = vmatmul.mubr.bf16.gmra.mxu0 %v2199
    %v2238 = vpop.f32.mrf.mxu0
    %v2239 = vadd.f32 0.0, %v2238
    %v2240 = vpop.f32.mrf.mxu0
    %v2241 = vpop.f32.mrf.mxu0
    %v2242 = vadd.f32 0.0, %v2241
    %v2243 = vpop.f32.mrf.mxu0
    %2244 = vdwg.mxu0
    %v2245 = vmul.f32 %v2188, 0.17677669
    %v2246 = vmul.f32 %v2191, 0.17677669
    %v2247 = vmul.f32 %v2239, 0.17677669
    %v2248 = vmul.f32 %v2242, 0.17677669
    %v2249 = vsel %vm1494, %v2245, -inf
    %2250 = vmax.xlane.f32.xlu0 %v2249
    %v2251 = vpop.xlane.xlu0 %2250
    %v2252 = vsel %vm1498, %v2246, -inf
    %2253 = vmax.xlane.f32.xlu0 %v2252
    %v2254 = vpop.xlane.xlu0 %2253
    %v2255 = vsel %vm1494, %v2247, -inf
    %2256 = vmax.xlane.f32.xlu0 %v2255
    %v2257 = vpop.xlane.xlu0 %2256
    %v2258 = vsel %vm1498, %v2248, -inf
    %2259 = vmax.xlane.f32.xlu0 %v2258
    %v2260 = vpop.xlane.xlu0 %2259
    %v2261 = vsub.f32 %v2245, %v2251
    %v2262 = vsub.f32 %v2246, %v2254
    %v2263 = vsub.f32 %v2247, %v2257
    %v2264 = vsub.f32 %v2248, %v2260
    %v2265 = vmul.f32 %v2261, 1.442695
    %v2266 = vpow.pop %v2265
    %v2267 = vmul.f32 %v2262, 1.442695
    %v2268 = vpow.pop %v2267
    %v2269 = vmul.f32 %v2263, 1.442695
    %v2270 = vpow.pop %v2269
    %v2271 = vmul.f32 %v2264, 1.442695
    %v2272 = vpow.pop %v2271
    %v2273 = vsel %vm1494, %v2266, 0.0
    %2274 = vadd.xlane.f32.xlu0 %v2273
    %v2275 = vpop.xlane.xlu0 %2274
    %v2276 = vsel %vm1498, %v2268, 0.0
    %2277 = vadd.xlane.f32.xlu0 %v2276
    %v2278 = vpop.xlane.xlu0 %2277
    %v2279 = vsel %vm1494, %v2270, 0.0
    %2280 = vadd.xlane.f32.xlu0 %v2279
    %v2281 = vpop.xlane.xlu0 %2280
    %v2282 = vsel %vm1498, %v2272, 0.0
    %2283 = vadd.xlane.f32.xlu0 %v2282
    %v2284 = vpop.xlane.xlu0 %2283
    %v2285 = vrcp.pop %v2275
    %v2286 = vrcp.pop %v2278
    %v2287 = vrcp.pop %v2281
    %v2288 = vrcp.pop %v2284
    %v2289 = vmul.f32 %v2266, %v2285
    %v2290 = vmul.f32 %v2268, %v2286
    %v2291 = vmul.f32 %v2270, %v2287
    %v2292 = vmul.f32 %v2272, %v2288
    %v2293 = vpack.c.bf16 %v2290, %v2289
    %v2294 = vpack.c.bf16 %v2292, %v2291
    %2295 = vrot.lane.b32.xlu0 %v1393, 32
    %v2296 = vpop.permute.xlu0 %2295
    %v2298 = vsel %vm1494, %v2293, 0
    %v2301 = vsel %vm1545, %v2296, 0
    %2303 = vmatprep.subr.bf16.mxu0 0
    %2304 = vmatpush1.bf16.msra.mxu0 0
    %2305 = vmatprep.subr.bf16.mxu0 0
    %2306 = vmatpush1.bf16.msra.mxu0 0
    %2307 = vmatprep.subr.bf16.mxu0 0
    %2308 = vmatpush1.bf16.msra.mxu0 0
    %2309 = vmatprep.subr.bf16.mxu0 0
    %2310 = vmatpush1.bf16.msra.mxu0 0
    %2311 = vmatprep.subr.bf16.mxu0 0
    %2312 = vmatpush1.bf16.msra.mxu0 0
    %2313 = vmatprep.subr.bf16.mxu0 0
    %2314 = vmatpush1.bf16.msra.mxu0 0
    %2315 = vmatprep.subr.bf16.mxu0 0
    %2316 = vmatpush1.bf16.msra.mxu0 0
    %2317 = vmatprep.subr.bf16.mxu0 0
    %2318 = vmatpush1.bf16.msra.mxu0 %v2301
    %2319 = vmatprep.subr.bf16.mxu0 0
    %2320 = vmatpush2.bf16.msra.mxu0 0
    %2321 = vmatprep.subr.bf16.mxu0 0
    %2322 = vmatpush2.bf16.msra.mxu0 0
    %2323 = vmatprep.subr.bf16.mxu0 0
    %2324 = vmatpush2.bf16.msra.mxu0 0
    %2325 = vmatprep.subr.bf16.mxu0 0
    %2326 = vmatpush2.bf16.msra.mxu0 0
    %2327 = vmatprep.subr.bf16.mxu0 0
    %2328 = vmatpush2.bf16.msra.mxu0 0
    %2329 = vmatprep.subr.bf16.mxu0 0
    %2330 = vmatpush2.bf16.msra.mxu0 0
    %2331 = vmatprep.subr.bf16.mxu0 0
    %2332 = vmatpush2.bf16.msra.mxu0 0
    %2333 = vmatprep.subr.bf16.mxu0 0
    %2334 = vmatpush2.bf16.msra.mxu0 0
    %2335 = vmatprep.mubr.bf16.mxu0 0
    %2336 = vmatmul.mubr.bf16.gmra.mxu0 %v2298
    %v2337 = vpop.f32.mrf.mxu0
    %v2338 = vadd.f32 0.0, %v2337
    %v2339 = vpop.f32.mrf.mxu0
    %v2340 = vpop.f32.mrf.mxu0
    %v2341 = vadd.f32 0.0, %v2340
    %v2342 = vpop.f32.mrf.mxu0
    %2343 = vdwg.mxu0
    %2344 = vrot.lane.b32.xlu0 %v1394, 32
    %v2345 = vpop.permute.xlu0 %2344
    %v2347 = vsel %vm1494, %v2294, 0
    %v2350 = vsel %vm1545, %v2345, 0
    %2352 = vmatprep.subr.bf16.mxu0 0
    %2353 = vmatpush1.bf16.msra.mxu0 0
    %2354 = vmatprep.subr.bf16.mxu0 0
    %2355 = vmatpush1.bf16.msra.mxu0 0
    %2356 = vmatprep.subr.bf16.mxu0 0
    %2357 = vmatpush1.bf16.msra.mxu0 0
    %2358 = vmatprep.subr.bf16.mxu0 0
    %2359 = vmatpush1.bf16.msra.mxu0 0
    %2360 = vmatprep.subr.bf16.mxu0 0
    %2361 = vmatpush1.bf16.msra.mxu0 0
    %2362 = vmatprep.subr.bf16.mxu0 0
    %2363 = vmatpush1.bf16.msra.mxu0 0
    %2364 = vmatprep.subr.bf16.mxu0 0
    %2365 = vmatpush1.bf16.msra.mxu0 0
    %2366 = vmatprep.subr.bf16.mxu0 0
    %2367 = vmatpush1.bf16.msra.mxu0 %v2350
    %2368 = vmatprep.subr.bf16.mxu0 0
    %2369 = vmatpush2.bf16.msra.mxu0 0
    %2370 = vmatprep.subr.bf16.mxu0 0
    %2371 = vmatpush2.bf16.msra.mxu0 0
    %2372 = vmatprep.subr.bf16.mxu0 0
    %2373 = vmatpush2.bf16.msra.mxu0 0
    %2374 = vmatprep.subr.bf16.mxu0 0
    %2375 = vmatpush2.bf16.msra.mxu0 0
    %2376 = vmatprep.subr.bf16.mxu0 0
    %2377 = vmatpush2.bf16.msra.mxu0 0
    %2378 = vmatprep.subr.bf16.mxu0 0
    %2379 = vmatpush2.bf16.msra.mxu0 0
    %2380 = vmatprep.subr.bf16.mxu0 0
    %2381 = vmatpush2.bf16.msra.mxu0 0
    %2382 = vmatprep.subr.bf16.mxu0 0
    %2383 = vmatpush2.bf16.msra.mxu0 0
    %2384 = vmatprep.mubr.bf16.mxu0 0
    %2385 = vmatmul.mubr.bf16.gmra.mxu0 %v2347
    %v2386 = vpop.f32.mrf.mxu0
    %v2387 = vadd.f32 0.0, %v2386
    %v2388 = vpop.f32.mrf.mxu0
    %v2389 = vpop.f32.mrf.mxu0
    %v2390 = vadd.f32 0.0, %v2389
    %v2391 = vpop.f32.mrf.mxu0
    %2392 = vdwg.mxu0
    %2397 = vrot.lane.b32.xlu0 %v1837, 32
    %v2398 = vpop.permute.xlu0 %2397
    %2399 = vrot.lane.b32.xlu0 %v1840, 32
    %v2400 = vpop.permute.xlu0 %2399
    %2401 = vrot.lane.b32.xlu0 %v1887, 32
    %v2402 = vpop.permute.xlu0 %2401
    %2403 = vrot.lane.b32.xlu0 %v1890, 32
    %v2404 = vpop.permute.xlu0 %2403
    %2413 = vrot.lane.b32.xlu0 %v2088, 64
    %v2414 = vpop.permute.xlu0 %2413
    %2415 = vrot.lane.b32.xlu0 %v2091, 64
    %v2416 = vpop.permute.xlu0 %2415
    %2417 = vrot.lane.b32.xlu0 %v2137, 64
    %v2418 = vpop.permute.xlu0 %2417
    %2419 = vrot.lane.b32.xlu0 %v2140, 64
    %v2420 = vpop.permute.xlu0 %2419
    %2429 = vrot.lane.b32.xlu0 %v2338, 96
    %v2430 = vpop.permute.xlu0 %2429
    %2431 = vrot.lane.b32.xlu0 %v2341, 96
    %v2432 = vpop.permute.xlu0 %2431
    %2433 = vrot.lane.b32.xlu0 %v2387, 96
    %v2434 = vpop.permute.xlu0 %2433
    %2435 = vrot.lane.b32.xlu0 %v2390, 96
    %v2436 = vpop.permute.xlu0 %2435
    %v2441 = vsel %vm1395, %v1584, %v2398
    %v2442 = vsel %vm1395, %v1587, %v2400
    %v2443 = vsel %vm1395, %v1631, %v2402
    %v2444 = vsel %vm1395, %v1634, %v2404
    %vm2445 = vcmask 523264
    %v2446 = vsel %vm2445, %v2441, %v2414
    %v2447 = vsel %vm2445, %v2442, %v2416
    %v2448 = vsel %vm2445, %v2443, %v2418
    %v2449 = vsel %vm2445, %v2444, %v2420
    %vm2450 = vcmask 785408
    %v2451 = vsel %vm2450, %v2446, %v2430
    %v2452 = vsel %vm2450, %v2447, %v2432
    %v2453 = vsel %vm2450, %v2448, %v2434
    %v2454 = vsel %vm2450, %v2449, %v2436
    %v2459 = vcombine.high %v2451, %v2451
    %v2461 = vunpack.c.l.s4 1983009808
    %v2462 = vunpack.c.0.s8 %v2461
    %v2463 = vlaneseq
    %v2464 = vshrl.u32 %v2463, 7
    %v2465 = vsub.s32 %v2462, %v2464
    %v2466 = vrot.slane %v2451, %v2465
    %v2468 = vunpack.c.l.s4 1983009808
    %v2469 = vunpack.c.0.s8 %v2468
    %v2470 = vlaneseq
    %v2471 = vshrl.u32 %v2470, 7
    %v2472 = vsub.s32 %v2469, %v2471
    %v2473 = vrot.slane %v2459, %v2472
    %v2474 = vcombine.high %v2466, %v2466
    %v2475 = vcombine.high %v2473, %v2473
    %v2477 = vunpack.c.l.s4 1983009808
    %v2478 = vunpack.c.0.s8 %v2477
    %v2479 = vlaneseq
    %v2480 = vshrl.u32 %v2479, 7
    %v2481 = vsub.s32 %v2478, %v2480
    %v2482 = vrot.slane %v2452, %v2481
    %v2483 = vcombine.high %v2453, %v2453
    %v2485 = vunpack.c.l.s4 1983009808
    %v2486 = vunpack.c.0.s8 %v2485
    %v2487 = vlaneseq
    %v2488 = vshrl.u32 %v2487, 7
    %v2489 = vsub.s32 %v2486, %v2488
    %v2490 = vrot.slane %v2453, %v2489
    %v2492 = vunpack.c.l.s4 1983009808
    %v2493 = vunpack.c.0.s8 %v2492
    %v2494 = vlaneseq
    %v2495 = vshrl.u32 %v2494, 7
    %v2496 = vsub.s32 %v2493, %v2495
    %v2497 = vrot.slane %v2483, %v2496
    %v2498 = vcombine.high %v2490, %v2490
    %v2499 = vcombine.high %v2497, %v2497
    %v2501 = vunpack.c.l.s4 1983009808
    %v2502 = vunpack.c.0.s8 %v2501
    %v2503 = vlaneseq
    %v2504 = vshrl.u32 %v2503, 7
    %v2505 = vsub.s32 %v2502, %v2504
    %v2506 = vrot.slane %v2454, %v2505
    %v2507 = vcombine.low %v2466, %v2474
    %v2508 = vcombine.low %v2473, %v2475
    %v2510 = vunpack.c.l.s4 1983009808
    %v2511 = vunpack.c.0.s8 %v2510
    %v2512 = vlaneseq
    %v2513 = vshrl.u32 %v2512, 7
    %v2514 = vsub.s32 %v2511, %v2513
    %v2515 = vrot.slane %v2507, %v2514
    %v2517 = vunpack.c.l.s4 1983009808
    %v2518 = vunpack.c.0.s8 %v2517
    %v2519 = vlaneseq
    %v2520 = vshrl.u32 %v2519, 7
    %v2521 = vsub.s32 %v2518, %v2520
    %v2522 = vrot.slane %v2508, %v2521
    %v2523 = vcombine.low %v2515, %v2522
    %v2524 = vcombine.low %v2482, %v2490
    %v2525 = vcombine.low %v2498, %v2497
    %v2527 = vunpack.c.l.s4 1983009808
    %v2528 = vunpack.c.0.s8 %v2527
    %v2529 = vlaneseq
    %v2530 = vshrl.u32 %v2529, 7
    %v2531 = vsub.s32 %v2528, %v2530
    %v2532 = vrot.slane %v2524, %v2531
    %v2534 = vunpack.c.l.s4 1983009808
    %v2535 = vunpack.c.0.s8 %v2534
    %v2536 = vlaneseq
    %v2537 = vshrl.u32 %v2536, 7
    %v2538 = vsub.s32 %v2535, %v2537
    %v2539 = vrot.slane %v2525, %v2538
    %v2540 = vcombine.low %v2532, %v2539
    %v2541 = vcombine.low %v2499, %v2506
    %v2543 = vunpack.c.l.s4 1983009808
    %v2544 = vunpack.c.0.s8 %v2543
    %v2545 = vlaneseq
    %v2546 = vshrl.u32 %v2545, 7
    %v2547 = vsub.s32 %v2544, %v2546
    %v2548 = vrot.slane %v2541, %v2547
    %v2552 = vpack.c.bf16 %v2540, %v2523
    %v2553 = vpack.c.bf16 %v2548, %v2548
    %v2555 = vlaneseq
    %v2556 = vshrl.u32 %v2555, 7
    %v2557 = vsub.s32 0, %v2556
    %v2558 = vrot.slane %v461, %v2557
    %v2576 = vunpack.c.l.b16 %v445
    %v2577 = vunpack.c.l.b16 %v446
    %v2578 = vunpack.c.l.b16 %v447
    %v2579 = vunpack.c.l.b16 %v448
    %v2580 = vunpack.c.l.b16 %v449
    %v2581 = vunpack.c.l.b16 %v450
    %v2582 = vunpack.c.l.b16 %v451
    %v2583 = vunpack.c.l.b16 %v452
    %v2584 = vunpack.c.l.b16 %v453
    %v2585 = vunpack.c.l.b16 %v454
    %v2586 = vunpack.c.l.b16 %v455
    %v2587 = vunpack.c.l.b16 %v456
    %v2588 = vunpack.c.l.b16 %v457
    %v2589 = vunpack.c.l.b16 %v458
    %v2590 = vunpack.c.l.b16 %v459
    %v2591 = vunpack.c.l.b16 %v460
    %v2592 = vpack.c.b16 %v2577, %v2576
    %v2593 = vpack.c.b16 %v2579, %v2578
    %v2594 = vpack.c.b16 %v2581, %v2580
    %v2595 = vpack.c.b16 %v2583, %v2582
    %v2596 = vpack.c.b16 %v2585, %v2584
    %v2597 = vpack.c.b16 %v2587, %v2586
    %v2598 = vpack.c.b16 %v2589, %v2588
    %v2599 = vpack.c.b16 %v2591, %v2590
    %2608 = vmatprep.subr.bf16.mxu0 0
    %2609 = vmatpush1.bf16.msra.mxu0 %v2599
    %2610 = vmatprep.subr.bf16.mxu0 0
    %2611 = vmatpush1.bf16.msra.mxu0 %v2598
    %2612 = vmatprep.subr.bf16.mxu0 0
    %2613 = vmatpush1.bf16.msra.mxu0 %v2597
    %2614 = vmatprep.subr.bf16.mxu0 0
    %2615 = vmatpush1.bf16.msra.mxu0 %v2596
    %2616 = vmatprep.subr.bf16.mxu0 0
    %2617 = vmatpush1.bf16.msra.mxu0 %v2595
    %2618 = vmatprep.subr.bf16.mxu0 0
    %2619 = vmatpush1.bf16.msra.mxu0 %v2594
    %2620 = vmatprep.subr.bf16.mxu0 0
    %2621 = vmatpush1.bf16.msra.mxu0 %v2593
    %2622 = vmatprep.subr.bf16.mxu0 0
    %2623 = vmatpush1.bf16.msra.mxu0 %v2592
    %2624 = vmatprep.subr.bf16.mxu0 0
    %2625 = vmatpush2.bf16.msra.mxu0 0
    %2626 = vmatprep.subr.bf16.mxu0 0
    %2627 = vmatpush2.bf16.msra.mxu0 0
    %2628 = vmatprep.subr.bf16.mxu0 0
    %2629 = vmatpush2.bf16.msra.mxu0 0
    %2630 = vmatprep.subr.bf16.mxu0 0
    %2631 = vmatpush2.bf16.msra.mxu0 0
    %2632 = vmatprep.subr.bf16.mxu0 0
    %2633 = vmatpush2.bf16.msra.mxu0 0
    %2634 = vmatprep.subr.bf16.mxu0 0
    %2635 = vmatpush2.bf16.msra.mxu0 0
    %2636 = vmatprep.subr.bf16.mxu0 0
    %2637 = vmatpush2.bf16.msra.mxu0 0
    %2638 = vmatprep.subr.bf16.mxu0 0
    %2639 = vmatpush2.bf16.msra.mxu0 0
    %2640 = vmatprep.mubr.bf16.mxu0 0
    %2641 = vmatmul.mubr.bf16.gmra.mxu0 %v2552
    %v2642 = vpop.f32.mrf.mxu0
    %v2643 = vadd.f32 %v2558, %v2642
    %v2644 = vpop.f32.mrf.mxu0
    %v2645 = vpop.f32.mrf.mxu0
    %v2646 = vadd.f32 %v2558, %v2645
    %v2647 = vpop.f32.mrf.mxu0
    %2648 = vmatprep.mubr.bf16.mxu0 0
    %2649 = vmatmul.mubr.bf16.gmra.mxu0 %v2553
    %v2650 = vpop.f32.mrf.mxu0
    %v2651 = vadd.f32 %v2558, %v2650
    %v2652 = vpop.f32.mrf.mxu0
    %v2653 = vpop.f32.mrf.mxu0
    %v2654 = vpop.f32.mrf.mxu0
    %2655 = vdwg.mxu0
    %v2656 = vadd.f32 %v409, %v2643
    %v2657 = vadd.f32 %v410, %v2646
    %v2658 = vadd.f32 %v411, %v2651
    %2659 = vadd.xlane.f32.xlu0 %v2656
    %v2660 = vpop.xlane.xlu0 %2659
    %2661 = vadd.xlane.f32.xlu0 %v2657
    %v2662 = vpop.xlane.xlu0 %2661
    %vm2663 = vcmask 1043456
    %v2664 = vsel %vm2663, %v2658, 0.0
    %2665 = vadd.xlane.f32.xlu0 %v2664
    %v2666 = vpop.xlane.xlu0 %2665
    %v2667 = vrcp.pop 128.0
    %v2668 = vmul.f32 %v2660, %v2667
    %v2669 = vmul.f32 %v2662, %v2667
    %v2670 = vmul.f32 %v2666, %v2667
    %v2671 = vsub.f32 %v2656, %v2668
    %v2672 = vsub.f32 %v2657, %v2669
    %v2673 = vsub.f32 %v2658, %v2670
    %v2674 = vmul.f32 %v2671, %v2671
    %v2675 = vmul.f32 %v2672, %v2672
    %v2676 = vmul.f32 %v2673, %v2673
    %2677 = vadd.xlane.f32.xlu0 %v2674
    %v2678 = vpop.xlane.xlu0 %2677
    %2679 = vadd.xlane.f32.xlu0 %v2675
    %v2680 = vpop.xlane.xlu0 %2679
    %v2681 = vsel %vm2663, %v2676, 0.0
    %2682 = vadd.xlane.f32.xlu0 %v2681
    %v2683 = vpop.xlane.xlu0 %2682
    %v2684 = vmul.f32 %v2678, %v2667
    %v2685 = vmul.f32 %v2680, %v2667
    %v2686 = vmul.f32 %v2683, %v2667
    %v2687 = vadd.f32 %v2684, 1e-05
    %v2688 = vadd.f32 %v2685, 1e-05
    %v2689 = vadd.f32 %v2686, 1e-05
    %v2690 = vrsqrt.pop %v2687
    %v2691 = vrsqrt.pop %v2688
    %v2692 = vrsqrt.pop %v2689
    %v2693 = vmul.f32 %v2671, %v2690
    %v2694 = vmul.f32 %v2672, %v2691
    %v2695 = vmul.f32 %v2673, %v2692
    %v2697 = vlaneseq
    %v2698 = vshrl.u32 %v2697, 7
    %v2699 = vsub.s32 0, %v2698
    %v2700 = vrot.slane %v462, %v2699
    %v2702 = vmul.f32 %v2693, %v2700
    %v2703 = vmul.f32 %v2694, %v2700
    %v2704 = vmul.f32 %v2695, %v2700
    %v2706 = vlaneseq
    %v2707 = vshrl.u32 %v2706, 7
    %v2708 = vsub.s32 0, %v2707
    %v2709 = vrot.slane %v463, %v2708
    %v2711 = vadd.f32 %v2702, %v2709
    %v2712 = vadd.f32 %v2703, %v2709
    %v2713 = vadd.f32 %v2704, %v2709
    %v2714 = vpack.c.bf16 %v2712, %v2711
    %v2715 = vpack.c.bf16 %v2713, %v2713
    %v2718 = vlaneseq
    %v2719 = vshrl.u32 %v2718, 7
    %v2720 = vsub.s32 0, %v2719
    %v2721 = vrot.slane %v594, %v2720
    %v2722 = vlaneseq
    %v2723 = vshrl.u32 %v2722, 7
    %v2724 = vsub.s32 1, %v2723
    %v2725 = vrot.slane %v594, %v2724
    %v2726 = vlaneseq
    %v2727 = vshrl.u32 %v2726, 7
    %v2728 = vsub.s32 2, %v2727
    %v2729 = vrot.slane %v594, %v2728
    %v2730 = vlaneseq
    %v2731 = vshrl.u32 %v2730, 7
    %v2732 = vsub.s32 3, %v2731
    %v2733 = vrot.slane %v594, %v2732
    %v2734 = vlaneseq
    %v2735 = vshrl.u32 %v2734, 7
    %v2736 = vsub.s32 4, %v2735
    %v2737 = vrot.slane %v594, %v2736
    %v2738 = vlaneseq
    %v2739 = vshrl.u32 %v2738, 7
    %v2740 = vsub.s32 5, %v2739
    %v2741 = vrot.slane %v594, %v2740
    %v2742 = vlaneseq
    %v2743 = vshrl.u32 %v2742, 7
    %v2744 = vsub.s32 6, %v2743
    %v2745 = vrot.slane %v594, %v2744
    %v2746 = vlaneseq
    %v2747 = vshrl.u32 %v2746, 7
    %v2748 = vsub.s32 7, %v2747
    %v2749 = vrot.slane %v594, %v2748
    %v2750 = vlaneseq
    %v2751 = vshrl.u32 %v2750, 7
    %v2752 = vsub.s32 0, %v2751
    %v2753 = vrot.slane %v595, %v2752
    %v2754 = vlaneseq
    %v2755 = vshrl.u32 %v2754, 7
    %v2756 = vsub.s32 1, %v2755
    %v2757 = vrot.slane %v595, %v2756
    %v2758 = vlaneseq
    %v2759 = vshrl.u32 %v2758, 7
    %v2760 = vsub.s32 2, %v2759
    %v2761 = vrot.slane %v595, %v2760
    %v2762 = vlaneseq
    %v2763 = vshrl.u32 %v2762, 7
    %v2764 = vsub.s32 3, %v2763
    %v2765 = vrot.slane %v595, %v2764
    %v2766 = vlaneseq
    %v2767 = vshrl.u32 %v2766, 7
    %v2768 = vsub.s32 4, %v2767
    %v2769 = vrot.slane %v595, %v2768
    %v2770 = vlaneseq
    %v2771 = vshrl.u32 %v2770, 7
    %v2772 = vsub.s32 5, %v2771
    %v2773 = vrot.slane %v595, %v2772
    %v2774 = vlaneseq
    %v2775 = vshrl.u32 %v2774, 7
    %v2776 = vsub.s32 6, %v2775
    %v2777 = vrot.slane %v595, %v2776
    %v2778 = vlaneseq
    %v2779 = vshrl.u32 %v2778, 7
    %v2780 = vsub.s32 7, %v2779
    %v2781 = vrot.slane %v595, %v2780
    %v2926 = vunpack.c.l.b16 %v466
    %v2927 = vunpack.c.h.b16 %v466
    %v2928 = vunpack.c.l.b16 %v467
    %v2929 = vunpack.c.h.b16 %v467
    %v2930 = vunpack.c.l.b16 %v468
    %v2931 = vunpack.c.h.b16 %v468
    %v2932 = vunpack.c.l.b16 %v469
    %v2933 = vunpack.c.h.b16 %v469
    %v2934 = vunpack.c.l.b16 %v470
    %v2935 = vunpack.c.h.b16 %v470
    %v2936 = vunpack.c.l.b16 %v471
    %v2937 = vunpack.c.h.b16 %v471
    %v2938 = vunpack.c.l.b16 %v472
    %v2939 = vunpack.c.h.b16 %v472
    %v2940 = vunpack.c.l.b16 %v473
    %v2941 = vunpack.c.h.b16 %v473
    %v2942 = vunpack.c.l.b16 %v474
    %v2943 = vunpack.c.h.b16 %v474
    %v2944 = vunpack.c.l.b16 %v475
    %v2945 = vunpack.c.h.b16 %v475
    %v2946 = vunpack.c.l.b16 %v476
    %v2947 = vunpack.c.h.b16 %v476
    %v2948 = vunpack.c.l.b16 %v477
    %v2949 = vunpack.c.h.b16 %v477
    %v2950 = vunpack.c.l.b16 %v478
    %v2951 = vunpack.c.h.b16 %v478
    %v2952 = vunpack.c.l.b16 %v479
    %v2953 = vunpack.c.h.b16 %v479
    %v2954 = vunpack.c.l.b16 %v480
    %v2955 = vunpack.c.h.b16 %v480
    %v2956 = vunpack.c.l.b16 %v481
    %v2957 = vunpack.c.h.b16 %v481
    %v2958 = vunpack.c.l.b16 %v482
    %v2959 = vunpack.c.h.b16 %v482
    %v2960 = vunpack.c.l.b16 %v483
    %v2961 = vunpack.c.h.b16 %v483
    %v2962 = vunpack.c.l.b16 %v484
    %v2963 = vunpack.c.h.b16 %v484
    %v2964 = vunpack.c.l.b16 %v485
    %v2965 = vunpack.c.h.b16 %v485
    %v2966 = vunpack.c.l.b16 %v486
    %v2967 = vunpack.c.h.b16 %v486
    %v2968 = vunpack.c.l.b16 %v487
    %v2969 = vunpack.c.h.b16 %v487
    %v2970 = vunpack.c.l.b16 %v488
    %v2971 = vunpack.c.h.b16 %v488
    %v2972 = vunpack.c.l.b16 %v489
    %v2973 = vunpack.c.h.b16 %v489
    %v2974 = vunpack.c.l.b16 %v490
    %v2975 = vunpack.c.h.b16 %v490
    %v2976 = vunpack.c.l.b16 %v491
    %v2977 = vunpack.c.h.b16 %v491
    %v2978 = vunpack.c.l.b16 %v492
    %v2979 = vunpack.c.h.b16 %v492
    %v2980 = vunpack.c.l.b16 %v493
    %v2981 = vunpack.c.h.b16 %v493
    %v2982 = vunpack.c.l.b16 %v494
    %v2983 = vunpack.c.h.b16 %v494
    %v2984 = vunpack.c.l.b16 %v495
    %v2985 = vunpack.c.h.b16 %v495
    %v2986 = vunpack.c.l.b16 %v496
    %v2987 = vunpack.c.h.b16 %v496
    %v2988 = vunpack.c.l.b16 %v497
    %v2989 = vunpack.c.h.b16 %v497
    %v2990 = vunpack.c.l.b16 %v498
    %v2991 = vunpack.c.h.b16 %v498
    %v2992 = vunpack.c.l.b16 %v499
    %v2993 = vunpack.c.h.b16 %v499
    %v2994 = vunpack.c.l.b16 %v500
    %v2995 = vunpack.c.h.b16 %v500
    %v2996 = vunpack.c.l.b16 %v501
    %v2997 = vunpack.c.h.b16 %v501
    %v2998 = vunpack.c.l.b16 %v502
    %v2999 = vunpack.c.h.b16 %v502
    %v3000 = vunpack.c.l.b16 %v503
    %v3001 = vunpack.c.h.b16 %v503
    %v3002 = vunpack.c.l.b16 %v504
    %v3003 = vunpack.c.h.b16 %v504
    %v3004 = vunpack.c.l.b16 %v505
    %v3005 = vunpack.c.h.b16 %v505
    %v3006 = vunpack.c.l.b16 %v506
    %v3007 = vunpack.c.h.b16 %v506
    %v3008 = vunpack.c.l.b16 %v507
    %v3009 = vunpack.c.h.b16 %v507
    %v3010 = vunpack.c.l.b16 %v508
    %v3011 = vunpack.c.h.b16 %v508
    %v3012 = vunpack.c.l.b16 %v509
    %v3013 = vunpack.c.h.b16 %v509
    %v3014 = vunpack.c.l.b16 %v510
    %v3015 = vunpack.c.h.b16 %v510
    %v3016 = vunpack.c.l.b16 %v511
    %v3017 = vunpack.c.h.b16 %v511
    %v3018 = vunpack.c.l.b16 %v512
    %v3019 = vunpack.c.h.b16 %v512
    %v3020 = vunpack.c.l.b16 %v513
    %v3021 = vunpack.c.h.b16 %v513
    %v3022 = vunpack.c.l.b16 %v514
    %v3023 = vunpack.c.h.b16 %v514
    %v3024 = vunpack.c.l.b16 %v515
    %v3025 = vunpack.c.h.b16 %v515
    %v3026 = vunpack.c.l.b16 %v516
    %v3027 = vunpack.c.h.b16 %v516
    %v3028 = vunpack.c.l.b16 %v517
    %v3029 = vunpack.c.h.b16 %v517
    %v3030 = vunpack.c.l.b16 %v518
    %v3031 = vunpack.c.h.b16 %v518
    %v3032 = vunpack.c.l.b16 %v519
    %v3033 = vunpack.c.h.b16 %v519
    %v3034 = vunpack.c.l.b16 %v520
    %v3035 = vunpack.c.h.b16 %v520
    %v3036 = vunpack.c.l.b16 %v521
    %v3037 = vunpack.c.h.b16 %v521
    %v3038 = vunpack.c.l.b16 %v522
    %v3039 = vunpack.c.h.b16 %v522
    %v3040 = vunpack.c.l.b16 %v523
    %v3041 = vunpack.c.h.b16 %v523
    %v3042 = vunpack.c.l.b16 %v524
    %v3043 = vunpack.c.h.b16 %v524
    %v3044 = vunpack.c.l.b16 %v525
    %v3045 = vunpack.c.h.b16 %v525
    %v3046 = vunpack.c.l.b16 %v526
    %v3047 = vunpack.c.h.b16 %v526
    %v3048 = vunpack.c.l.b16 %v527
    %v3049 = vunpack.c.h.b16 %v527
    %v3050 = vunpack.c.l.b16 %v528
    %v3051 = vunpack.c.h.b16 %v528
    %v3052 = vunpack.c.l.b16 %v529
    %v3053 = vunpack.c.h.b16 %v529
    %v3054 = vunpack.c.l.b16 %v530
    %v3055 = vunpack.c.h.b16 %v530
    %v3056 = vunpack.c.l.b16 %v531
    %v3057 = vunpack.c.h.b16 %v531
    %v3058 = vunpack.c.l.b16 %v532
    %v3059 = vunpack.c.h.b16 %v532
    %v3060 = vunpack.c.l.b16 %v533
    %v3061 = vunpack.c.h.b16 %v533
    %v3062 = vunpack.c.l.b16 %v534
    %v3063 = vunpack.c.h.b16 %v534
    %v3064 = vunpack.c.l.b16 %v535
    %v3065 = vunpack.c.h.b16 %v535
    %v3066 = vunpack.c.l.b16 %v536
    %v3067 = vunpack.c.h.b16 %v536
    %v3068 = vunpack.c.l.b16 %v537
    %v3069 = vunpack.c.h.b16 %v537
    %v3070 = vunpack.c.l.b16 %v538
    %v3071 = vunpack.c.h.b16 %v538
    %v3072 = vunpack.c.l.b16 %v539
    %v3073 = vunpack.c.h.b16 %v539
    %v3074 = vunpack.c.l.b16 %v540
    %v3075 = vunpack.c.h.b16 %v540
    %v3076 = vunpack.c.l.b16 %v541
    %v3077 = vunpack.c.h.b16 %v541
    %v3078 = vunpack.c.l.b16 %v542
    %v3079 = vunpack.c.h.b16 %v542
    %v3080 = vunpack.c.l.b16 %v543
    %v3081 = vunpack.c.h.b16 %v543
    %v3082 = vunpack.c.l.b16 %v544
    %v3083 = vunpack.c.h.b16 %v544
    %v3084 = vunpack.c.l.b16 %v545
    %v3085 = vunpack.c.h.b16 %v545
    %v3086 = vunpack.c.l.b16 %v546
    %v3087 = vunpack.c.h.b16 %v546
    %v3088 = vunpack.c.l.b16 %v547
    %v3089 = vunpack.c.h.b16 %v547
    %v3090 = vunpack.c.l.b16 %v548
    %v3091 = vunpack.c.h.b16 %v548
    %v3092 = vunpack.c.l.b16 %v549
    %v3093 = vunpack.c.h.b16 %v549
    %v3094 = vunpack.c.l.b16 %v550
    %v3095 = vunpack.c.h.b16 %v550
    %v3096 = vunpack.c.l.b16 %v551
    %v3097 = vunpack.c.h.b16 %v551
    %v3098 = vunpack.c.l.b16 %v552
    %v3099 = vunpack.c.h.b16 %v552
    %v3100 = vunpack.c.l.b16 %v553
    %v3101 = vunpack.c.h.b16 %v553
    %v3102 = vunpack.c.l.b16 %v554
    %v3103 = vunpack.c.h.b16 %v554
    %v3104 = vunpack.c.l.b16 %v555
    %v3105 = vunpack.c.h.b16 %v555
    %v3106 = vunpack.c.l.b16 %v556
    %v3107 = vunpack.c.h.b16 %v556
    %v3108 = vunpack.c.l.b16 %v557
    %v3109 = vunpack.c.h.b16 %v557
    %v3110 = vunpack.c.l.b16 %v558
    %v3111 = vunpack.c.h.b16 %v558
    %v3112 = vunpack.c.l.b16 %v559
    %v3113 = vunpack.c.h.b16 %v559
    %v3114 = vunpack.c.l.b16 %v560
    %v3115 = vunpack.c.h.b16 %v560
    %v3116 = vunpack.c.l.b16 %v561
    %v3117 = vunpack.c.h.b16 %v561
    %v3118 = vunpack.c.l.b16 %v562
    %v3119 = vunpack.c.h.b16 %v562
    %v3120 = vunpack.c.l.b16 %v563
    %v3121 = vunpack.c.h.b16 %v563
    %v3122 = vunpack.c.l.b16 %v564
    %v3123 = vunpack.c.h.b16 %v564
    %v3124 = vunpack.c.l.b16 %v565
    %v3125 = vunpack.c.h.b16 %v565
    %v3126 = vunpack.c.l.b16 %v566
    %v3127 = vunpack.c.h.b16 %v566
    %v3128 = vunpack.c.l.b16 %v567
    %v3129 = vunpack.c.h.b16 %v567
    %v3130 = vunpack.c.l.b16 %v568
    %v3131 = vunpack.c.h.b16 %v568
    %v3132 = vunpack.c.l.b16 %v569
    %v3133 = vunpack.c.h.b16 %v569
    %v3134 = vunpack.c.l.b16 %v570
    %v3135 = vunpack.c.h.b16 %v570
    %v3136 = vunpack.c.l.b16 %v571
    %v3137 = vunpack.c.h.b16 %v571
    %v3138 = vunpack.c.l.b16 %v572
    %v3139 = vunpack.c.h.b16 %v572
    %v3140 = vunpack.c.l.b16 %v573
    %v3141 = vunpack.c.h.b16 %v573
    %v3142 = vunpack.c.l.b16 %v574
    %v3143 = vunpack.c.h.b16 %v574
    %v3144 = vunpack.c.l.b16 %v575
    %v3145 = vunpack.c.h.b16 %v575
    %v3146 = vunpack.c.l.b16 %v576
    %v3147 = vunpack.c.h.b16 %v576
    %v3148 = vunpack.c.l.b16 %v577
    %v3149 = vunpack.c.h.b16 %v577
    %v3150 = vunpack.c.l.b16 %v578
    %v3151 = vunpack.c.h.b16 %v578
    %v3152 = vunpack.c.l.b16 %v579
    %v3153 = vunpack.c.h.b16 %v579
    %v3154 = vunpack.c.l.b16 %v580
    %v3155 = vunpack.c.h.b16 %v580
    %v3156 = vunpack.c.l.b16 %v581
    %v3157 = vunpack.c.h.b16 %v581
    %v3158 = vunpack.c.l.b16 %v582
    %v3159 = vunpack.c.h.b16 %v582
    %v3160 = vunpack.c.l.b16 %v583
    %v3161 = vunpack.c.h.b16 %v583
    %v3162 = vunpack.c.l.b16 %v584
    %v3163 = vunpack.c.h.b16 %v584
    %v3164 = vunpack.c.l.b16 %v585
    %v3165 = vunpack.c.h.b16 %v585
    %v3166 = vunpack.c.l.b16 %v586
    %v3167 = vunpack.c.h.b16 %v586
    %v3168 = vunpack.c.l.b16 %v587
    %v3169 = vunpack.c.h.b16 %v587
    %v3170 = vunpack.c.l.b16 %v588
    %v3171 = vunpack.c.h.b16 %v588
    %v3172 = vunpack.c.l.b16 %v589
    %v3173 = vunpack.c.h.b16 %v589
    %v3174 = vunpack.c.l.b16 %v590
    %v3175 = vunpack.c.h.b16 %v590
    %v3176 = vunpack.c.l.b16 %v591
    %v3177 = vunpack.c.h.b16 %v591
    %v3178 = vunpack.c.l.b16 %v592
    %v3179 = vunpack.c.h.b16 %v592
    %v3180 = vunpack.c.l.b16 %v593
    %v3181 = vunpack.c.h.b16 %v593
    %v3182 = vpack.c.b16 %v2942, %v2926
    %v3183 = vpack.c.b16 %v2943, %v2927
    %v3184 = vpack.c.b16 %v2944, %v2928
    %v3185 = vpack.c.b16 %v2945, %v2929
    %v3186 = vpack.c.b16 %v2946, %v2930
    %v3187 = vpack.c.b16 %v2947, %v2931
    %v3188 = vpack.c.b16 %v2948, %v2932
    %v3189 = vpack.c.b16 %v2949, %v2933
    %v3190 = vpack.c.b16 %v2950, %v2934
    %v3191 = vpack.c.b16 %v2951, %v2935
    %v3192 = vpack.c.b16 %v2952, %v2936
    %v3193 = vpack.c.b16 %v2953, %v2937
    %v3194 = vpack.c.b16 %v2954, %v2938
    %v3195 = vpack.c.b16 %v2955, %v2939
    %v3196 = vpack.c.b16 %v2956, %v2940
    %v3197 = vpack.c.b16 %v2957, %v2941
    %v3198 = vpack.c.b16 %v2974, %v2958
    %v3199 = vpack.c.b16 %v2975, %v2959
    %v3200 = vpack.c.b16 %v2976, %v2960
    %v3201 = vpack.c.b16 %v2977, %v2961
    %v3202 = vpack.c.b16 %v2978, %v2962
    %v3203 = vpack.c.b16 %v2979, %v2963
    %v3204 = vpack.c.b16 %v2980, %v2964
    %v3205 = vpack.c.b16 %v2981, %v2965
    %v3206 = vpack.c.b16 %v2982, %v2966
    %v3207 = vpack.c.b16 %v2983, %v2967
    %v3208 = vpack.c.b16 %v2984, %v2968
    %v3209 = vpack.c.b16 %v2985, %v2969
    %v3210 = vpack.c.b16 %v2986, %v2970
    %v3211 = vpack.c.b16 %v2987, %v2971
    %v3212 = vpack.c.b16 %v2988, %v2972
    %v3213 = vpack.c.b16 %v2989, %v2973
    %v3214 = vpack.c.b16 %v3006, %v2990
    %v3215 = vpack.c.b16 %v3007, %v2991
    %v3216 = vpack.c.b16 %v3008, %v2992
    %v3217 = vpack.c.b16 %v3009, %v2993
    %v3218 = vpack.c.b16 %v3010, %v2994
    %v3219 = vpack.c.b16 %v3011, %v2995
    %v3220 = vpack.c.b16 %v3012, %v2996
    %v3221 = vpack.c.b16 %v3013, %v2997
    %v3222 = vpack.c.b16 %v3014, %v2998
    %v3223 = vpack.c.b16 %v3015, %v2999
    %v3224 = vpack.c.b16 %v3016, %v3000
    %v3225 = vpack.c.b16 %v3017, %v3001
    %v3226 = vpack.c.b16 %v3018, %v3002
    %v3227 = vpack.c.b16 %v3019, %v3003
    %v3228 = vpack.c.b16 %v3020, %v3004
    %v3229 = vpack.c.b16 %v3021, %v3005
    %v3230 = vpack.c.b16 %v3038, %v3022
    %v3231 = vpack.c.b16 %v3039, %v3023
    %v3232 = vpack.c.b16 %v3040, %v3024
    %v3233 = vpack.c.b16 %v3041, %v3025
    %v3234 = vpack.c.b16 %v3042, %v3026
    %v3235 = vpack.c.b16 %v3043, %v3027
    %v3236 = vpack.c.b16 %v3044, %v3028
    %v3237 = vpack.c.b16 %v3045, %v3029
    %v3238 = vpack.c.b16 %v3046, %v3030
    %v3239 = vpack.c.b16 %v3047, %v3031
    %v3240 = vpack.c.b16 %v3048, %v3032
    %v3241 = vpack.c.b16 %v3049, %v3033
    %v3242 = vpack.c.b16 %v3050, %v3034
    %v3243 = vpack.c.b16 %v3051, %v3035
    %v3244 = vpack.c.b16 %v3052, %v3036
    %v3245 = vpack.c.b16 %v3053, %v3037
    %v3246 = vpack.c.b16 %v3070, %v3054
    %v3247 = vpack.c.b16 %v3071, %v3055
    %v3248 = vpack.c.b16 %v3072, %v3056
    %v3249 = vpack.c.b16 %v3073, %v3057
    %v3250 = vpack.c.b16 %v3074, %v3058
    %v3251 = vpack.c.b16 %v3075, %v3059
    %v3252 = vpack.c.b16 %v3076, %v3060
    %v3253 = vpack.c.b16 %v3077, %v3061
    %v3254 = vpack.c.b16 %v3078, %v3062
    %v3255 = vpack.c.b16 %v3079, %v3063
    %v3256 = vpack.c.b16 %v3080, %v3064
    %v3257 = vpack.c.b16 %v3081, %v3065
    %v3258 = vpack.c.b16 %v3082, %v3066
    %v3259 = vpack.c.b16 %v3083, %v3067
    %v3260 = vpack.c.b16 %v3084, %v3068
    %v3261 = vpack.c.b16 %v3085, %v3069
    %v3262 = vpack.c.b16 %v3102, %v3086
    %v3263 = vpack.c.b16 %v3103, %v3087
    %v3264 = vpack.c.b16 %v3104, %v3088
    %v3265 = vpack.c.b16 %v3105, %v3089
    %v3266 = vpack.c.b16 %v3106, %v3090
    %v3267 = vpack.c.b16 %v3107, %v3091
    %v3268 = vpack.c.b16 %v3108, %v3092
    %v3269 = vpack.c.b16 %v3109, %v3093
    %v3270 = vpack.c.b16 %v3110, %v3094
    %v3271 = vpack.c.b16 %v3111, %v3095
    %v3272 = vpack.c.b16 %v3112, %v3096
    %v3273 = vpack.c.b16 %v3113, %v3097
    %v3274 = vpack.c.b16 %v3114, %v3098
    %v3275 = vpack.c.b16 %v3115, %v3099
    %v3276 = vpack.c.b16 %v3116, %v3100
    %v3277 = vpack.c.b16 %v3117, %v3101
    %v3278 = vpack.c.b16 %v3134, %v3118
    %v3279 = vpack.c.b16 %v3135, %v3119
    %v3280 = vpack.c.b16 %v3136, %v3120
    %v3281 = vpack.c.b16 %v3137, %v3121
    %v3282 = vpack.c.b16 %v3138, %v3122
    %v3283 = vpack.c.b16 %v3139, %v3123
    %v3284 = vpack.c.b16 %v3140, %v3124
    %v3285 = vpack.c.b16 %v3141, %v3125
    %v3286 = vpack.c.b16 %v3142, %v3126
    %v3287 = vpack.c.b16 %v3143, %v3127
    %v3288 = vpack.c.b16 %v3144, %v3128
    %v3289 = vpack.c.b16 %v3145, %v3129
    %v3290 = vpack.c.b16 %v3146, %v3130
    %v3291 = vpack.c.b16 %v3147, %v3131
    %v3292 = vpack.c.b16 %v3148, %v3132
    %v3293 = vpack.c.b16 %v3149, %v3133
    %v3294 = vpack.c.b16 %v3166, %v3150
    %v3295 = vpack.c.b16 %v3167, %v3151
    %v3296 = vpack.c.b16 %v3168, %v3152
    %v3297 = vpack.c.b16 %v3169, %v3153
    %v3298 = vpack.c.b16 %v3170, %v3154
    %v3299 = vpack.c.b16 %v3171, %v3155
    %v3300 = vpack.c.b16 %v3172, %v3156
    %v3301 = vpack.c.b16 %v3173, %v3157
    %v3302 = vpack.c.b16 %v3174, %v3158
    %v3303 = vpack.c.b16 %v3175, %v3159
    %v3304 = vpack.c.b16 %v3176, %v3160
    %v3305 = vpack.c.b16 %v3177, %v3161
    %v3306 = vpack.c.b16 %v3178, %v3162
    %v3307 = vpack.c.b16 %v3179, %v3163
    %v3308 = vpack.c.b16 %v3180, %v3164
    %v3309 = vpack.c.b16 %v3181, %v3165
    %3438 = vmatprep.subr.bf16.mxu0 %v3295
    %3439 = vmatpush1.bf16.msra.mxu0 %v3294
    %3440 = vmatprep.subr.bf16.mxu0 %v3279
    %3441 = vmatpush1.bf16.msra.mxu0 %v3278
    %3442 = vmatprep.subr.bf16.mxu0 %v3263
    %3443 = vmatpush1.bf16.msra.mxu0 %v3262
    %3444 = vmatprep.subr.bf16.mxu0 %v3247
    %3445 = vmatpush1.bf16.msra.mxu0 %v3246
    %3446 = vmatprep.subr.bf16.mxu0 %v3231
    %3447 = vmatpush1.bf16.msra.mxu0 %v3230
    %3448 = vmatprep.subr.bf16.mxu0 %v3215
    %3449 = vmatpush1.bf16.msra.mxu0 %v3214
    %3450 = vmatprep.subr.bf16.mxu0 %v3199
    %3451 = vmatpush1.bf16.msra.mxu0 %v3198
    %3452 = vmatprep.subr.bf16.mxu0 %v3183
    %3453 = vmatpush1.bf16.msra.mxu0 %v3182
    %3454 = vmatprep.subr.bf16.mxu0 0
    %3455 = vmatpush2.bf16.msra.mxu0 0
    %3456 = vmatprep.subr.bf16.mxu0 0
    %3457 = vmatpush2.bf16.msra.mxu0 0
    %3458 = vmatprep.subr.bf16.mxu0 0
    %3459 = vmatpush2.bf16.msra.mxu0 0
    %3460 = vmatprep.subr.bf16.mxu0 0
    %3461 = vmatpush2.bf16.msra.mxu0 0
    %3462 = vmatprep.subr.bf16.mxu0 0
    %3463 = vmatpush2.bf16.msra.mxu0 0
    %3464 = vmatprep.subr.bf16.mxu0 0
    %3465 = vmatpush2.bf16.msra.mxu0 0
    %3466 = vmatprep.subr.bf16.mxu0 0
    %3467 = vmatpush2.bf16.msra.mxu0 0
    %3468 = vmatprep.subr.bf16.mxu0 0
    %3469 = vmatpush2.bf16.msra.mxu0 0
    %3470 = vmatprep.mubr.bf16.mxu0 0
    %3471 = vmatmul.mubr.bf16.gmra.mxu0 %v2714
    %v3472 = vpop.f32.mrf.mxu0
    %v3473 = vadd.f32 %v2721, %v3472
    %v3474 = vpop.f32.mrf.mxu0
    %v3475 = vadd.f32 %v2725, %v3474
    %v3476 = vpop.f32.mrf.mxu0
    %v3477 = vadd.f32 %v2721, %v3476
    %v3478 = vpop.f32.mrf.mxu0
    %v3479 = vadd.f32 %v2725, %v3478
    %3480 = vmatprep.mubr.bf16.mxu0 0
    %3481 = vmatmul.mubr.bf16.gmra.mxu0 %v2715
    %v3482 = vpop.f32.mrf.mxu0
    %v3483 = vadd.f32 %v2721, %v3482
    %v3484 = vpop.f32.mrf.mxu0
    %v3485 = vadd.f32 %v2725, %v3484
    %v3486 = vpop.f32.mrf.mxu0
    %v3487 = vpop.f32.mrf.mxu0
    %3488 = vdwg.mxu0
    %3489 = vmatprep.subr.bf16.mxu0 %v3297
    %3490 = vmatpush1.bf16.msra.mxu0 %v3296
    %3491 = vmatprep.subr.bf16.mxu0 %v3281
    %3492 = vmatpush1.bf16.msra.mxu0 %v3280
    %3493 = vmatprep.subr.bf16.mxu0 %v3265
    %3494 = vmatpush1.bf16.msra.mxu0 %v3264
    %3495 = vmatprep.subr.bf16.mxu0 %v3249
    %3496 = vmatpush1.bf16.msra.mxu0 %v3248
    %3497 = vmatprep.subr.bf16.mxu0 %v3233
    %3498 = vmatpush1.bf16.msra.mxu0 %v3232
    %3499 = vmatprep.subr.bf16.mxu0 %v3217
    %3500 = vmatpush1.bf16.msra.mxu0 %v3216
    %3501 = vmatprep.subr.bf16.mxu0 %v3201
    %3502 = vmatpush1.bf16.msra.mxu0 %v3200
    %3503 = vmatprep.subr.bf16.mxu0 %v3185
    %3504 = vmatpush1.bf16.msra.mxu0 %v3184
    %3505 = vmatprep.subr.bf16.mxu0 0
    %3506 = vmatpush2.bf16.msra.mxu0 0
    %3507 = vmatprep.subr.bf16.mxu0 0
    %3508 = vmatpush2.bf16.msra.mxu0 0
    %3509 = vmatprep.subr.bf16.mxu0 0
    %3510 = vmatpush2.bf16.msra.mxu0 0
    %3511 = vmatprep.subr.bf16.mxu0 0
    %3512 = vmatpush2.bf16.msra.mxu0 0
    %3513 = vmatprep.subr.bf16.mxu0 0
    %3514 = vmatpush2.bf16.msra.mxu0 0
    %3515 = vmatprep.subr.bf16.mxu0 0
    %3516 = vmatpush2.bf16.msra.mxu0 0
    %3517 = vmatprep.subr.bf16.mxu0 0
    %3518 = vmatpush2.bf16.msra.mxu0 0
    %3519 = vmatprep.subr.bf16.mxu0 0
    %3520 = vmatpush2.bf16.msra.mxu0 0
    %3521 = vmatprep.mubr.bf16.mxu0 0
    %3522 = vmatmul.mubr.bf16.gmra.mxu0 %v2714
    %v3523 = vpop.f32.mrf.mxu0
    %v3524 = vadd.f32 %v2729, %v3523
    %v3525 = vpop.f32.mrf.mxu0
    %v3526 = vadd.f32 %v2733, %v3525
    %v3527 = vpop.f32.mrf.mxu0
    %v3528 = vadd.f32 %v2729, %v3527
    %v3529 = vpop.f32.mrf.mxu0
    %v3530 = vadd.f32 %v2733, %v3529
    %3531 = vmatprep.mubr.bf16.mxu0 0
    %3532 = vmatmul.mubr.bf16.gmra.mxu0 %v2715
    %v3533 = vpop.f32.mrf.mxu0
    %v3534 = vadd.f32 %v2729, %v3533
    %v3535 = vpop.f32.mrf.mxu0
    %v3536 = vadd.f32 %v2733, %v3535
    %v3537 = vpop.f32.mrf.mxu0
    %v3538 = vpop.f32.mrf.mxu0
    %3539 = vdwg.mxu0
    %3540 = vmatprep.subr.bf16.mxu0 %v3299
    %3541 = vmatpush1.bf16.msra.mxu0 %v3298
    %3542 = vmatprep.subr.bf16.mxu0 %v3283
    %3543 = vmatpush1.bf16.msra.mxu0 %v3282
    %3544 = vmatprep.subr.bf16.mxu0 %v3267
    %3545 = vmatpush1.bf16.msra.mxu0 %v3266
    %3546 = vmatprep.subr.bf16.mxu0 %v3251
    %3547 = vmatpush1.bf16.msra.mxu0 %v3250
    %3548 = vmatprep.subr.bf16.mxu0 %v3235
    %3549 = vmatpush1.bf16.msra.mxu0 %v3234
    %3550 = vmatprep.subr.bf16.mxu0 %v3219
    %3551 = vmatpush1.bf16.msra.mxu0 %v3218
    %3552 = vmatprep.subr.bf16.mxu0 %v3203
    %3553 = vmatpush1.bf16.msra.mxu0 %v3202
    %3554 = vmatprep.subr.bf16.mxu0 %v3187
    %3555 = vmatpush1.bf16.msra.mxu0 %v3186
    %3556 = vmatprep.subr.bf16.mxu0 0
    %3557 = vmatpush2.bf16.msra.mxu0 0
    %3558 = vmatprep.subr.bf16.mxu0 0
    %3559 = vmatpush2.bf16.msra.mxu0 0
    %3560 = vmatprep.subr.bf16.mxu0 0
    %3561 = vmatpush2.bf16.msra.mxu0 0
    %3562 = vmatprep.subr.bf16.mxu0 0
    %3563 = vmatpush2.bf16.msra.mxu0 0
    %3564 = vmatprep.subr.bf16.mxu0 0
    %3565 = vmatpush2.bf16.msra.mxu0 0
    %3566 = vmatprep.subr.bf16.mxu0 0
    %3567 = vmatpush2.bf16.msra.mxu0 0
    %3568 = vmatprep.subr.bf16.mxu0 0
    %3569 = vmatpush2.bf16.msra.mxu0 0
    %3570 = vmatprep.subr.bf16.mxu0 0
    %3571 = vmatpush2.bf16.msra.mxu0 0
    %3572 = vmatprep.mubr.bf16.mxu0 0
    %3573 = vmatmul.mubr.bf16.gmra.mxu0 %v2714
    %v3574 = vpop.f32.mrf.mxu0
    %v3575 = vadd.f32 %v2737, %v3574
    %v3576 = vpop.f32.mrf.mxu0
    %v3577 = vadd.f32 %v2741, %v3576
    %v3578 = vpop.f32.mrf.mxu0
    %v3579 = vadd.f32 %v2737, %v3578
    %v3580 = vpop.f32.mrf.mxu0
    %v3581 = vadd.f32 %v2741, %v3580
    %3582 = vmatprep.mubr.bf16.mxu0 0
    %3583 = vmatmul.mubr.bf16.gmra.mxu0 %v2715
    %v3584 = vpop.f32.mrf.mxu0
    %v3585 = vadd.f32 %v2737, %v3584
    %v3586 = vpop.f32.mrf.mxu0
    %v3587 = vadd.f32 %v2741, %v3586
    %v3588 = vpop.f32.mrf.mxu0
    %v3589 = vpop.f32.mrf.mxu0
    %3590 = vdwg.mxu0
    %3591 = vmatprep.subr.bf16.mxu0 %v3301
    %3592 = vmatpush1.bf16.msra.mxu0 %v3300
    %3593 = vmatprep.subr.bf16.mxu0 %v3285
    %3594 = vmatpush1.bf16.msra.mxu0 %v3284
    %3595 = vmatprep.subr.bf16.mxu0 %v3269
    %3596 = vmatpush1.bf16.msra.mxu0 %v3268
    %3597 = vmatprep.subr.bf16.mxu0 %v3253
    %3598 = vmatpush1.bf16.msra.mxu0 %v3252
    %3599 = vmatprep.subr.bf16.mxu0 %v3237
    %3600 = vmatpush1.bf16.msra.mxu0 %v3236
    %3601 = vmatprep.subr.bf16.mxu0 %v3221
    %3602 = vmatpush1.bf16.msra.mxu0 %v3220
    %3603 = vmatprep.subr.bf16.mxu0 %v3205
    %3604 = vmatpush1.bf16.msra.mxu0 %v3204
    %3605 = vmatprep.subr.bf16.mxu0 %v3189
    %3606 = vmatpush1.bf16.msra.mxu0 %v3188
    %3607 = vmatprep.subr.bf16.mxu0 0
    %3608 = vmatpush2.bf16.msra.mxu0 0
    %3609 = vmatprep.subr.bf16.mxu0 0
    %3610 = vmatpush2.bf16.msra.mxu0 0
    %3611 = vmatprep.subr.bf16.mxu0 0
    %3612 = vmatpush2.bf16.msra.mxu0 0
    %3613 = vmatprep.subr.bf16.mxu0 0
    %3614 = vmatpush2.bf16.msra.mxu0 0
    %3615 = vmatprep.subr.bf16.mxu0 0
    %3616 = vmatpush2.bf16.msra.mxu0 0
    %3617 = vmatprep.subr.bf16.mxu0 0
    %3618 = vmatpush2.bf16.msra.mxu0 0
    %3619 = vmatprep.subr.bf16.mxu0 0
    %3620 = vmatpush2.bf16.msra.mxu0 0
    %3621 = vmatprep.subr.bf16.mxu0 0
    %3622 = vmatpush2.bf16.msra.mxu0 0
    %3623 = vmatprep.mubr.bf16.mxu0 0
    %3624 = vmatmul.mubr.bf16.gmra.mxu0 %v2714
    %v3625 = vpop.f32.mrf.mxu0
    %v3626 = vadd.f32 %v2745, %v3625
    %v3627 = vpop.f32.mrf.mxu0
    %v3628 = vadd.f32 %v2749, %v3627
    %v3629 = vpop.f32.mrf.mxu0
    %v3630 = vadd.f32 %v2745, %v3629
    %v3631 = vpop.f32.mrf.mxu0
    %v3632 = vadd.f32 %v2749, %v3631
    %3633 = vmatprep.mubr.bf16.mxu0 0
    %3634 = vmatmul.mubr.bf16.gmra.mxu0 %v2715
    %v3635 = vpop.f32.mrf.mxu0
    %v3636 = vadd.f32 %v2745, %v3635
    %v3637 = vpop.f32.mrf.mxu0
    %v3638 = vadd.f32 %v2749, %v3637
    %v3639 = vpop.f32.mrf.mxu0
    %v3640 = vpop.f32.mrf.mxu0
    %3641 = vdwg.mxu0
    %3642 = vmatprep.subr.bf16.mxu0 %v3303
    %3643 = vmatpush1.bf16.msra.mxu0 %v3302
    %3644 = vmatprep.subr.bf16.mxu0 %v3287
    %3645 = vmatpush1.bf16.msra.mxu0 %v3286
    %3646 = vmatprep.subr.bf16.mxu0 %v3271
    %3647 = vmatpush1.bf16.msra.mxu0 %v3270
    %3648 = vmatprep.subr.bf16.mxu0 %v3255
    %3649 = vmatpush1.bf16.msra.mxu0 %v3254
    %3650 = vmatprep.subr.bf16.mxu0 %v3239
    %3651 = vmatpush1.bf16.msra.mxu0 %v3238
    %3652 = vmatprep.subr.bf16.mxu0 %v3223
    %3653 = vmatpush1.bf16.msra.mxu0 %v3222
    %3654 = vmatprep.subr.bf16.mxu0 %v3207
    %3655 = vmatpush1.bf16.msra.mxu0 %v3206
    %3656 = vmatprep.subr.bf16.mxu0 %v3191
    %3657 = vmatpush1.bf16.msra.mxu0 %v3190
    %3658 = vmatprep.subr.bf16.mxu0 0
    %3659 = vmatpush2.bf16.msra.mxu0 0
    %3660 = vmatprep.subr.bf16.mxu0 0
    %3661 = vmatpush2.bf16.msra.mxu0 0
    %3662 = vmatprep.subr.bf16.mxu0 0
    %3663 = vmatpush2.bf16.msra.mxu0 0
    %3664 = vmatprep.subr.bf16.mxu0 0
    %3665 = vmatpush2.bf16.msra.mxu0 0
    %3666 = vmatprep.subr.bf16.mxu0 0
    %3667 = vmatpush2.bf16.msra.mxu0 0
    %3668 = vmatprep.subr.bf16.mxu0 0
    %3669 = vmatpush2.bf16.msra.mxu0 0
    %3670 = vmatprep.subr.bf16.mxu0 0
    %3671 = vmatpush2.bf16.msra.mxu0 0
    %3672 = vmatprep.subr.bf16.mxu0 0
    %3673 = vmatpush2.bf16.msra.mxu0 0
    %3674 = vmatprep.mubr.bf16.mxu0 0
    %3675 = vmatmul.mubr.bf16.gmra.mxu0 %v2714
    %v3676 = vpop.f32.mrf.mxu0
    %v3677 = vadd.f32 %v2753, %v3676
    %v3678 = vpop.f32.mrf.mxu0
    %v3679 = vadd.f32 %v2757, %v3678
    %v3680 = vpop.f32.mrf.mxu0
    %v3681 = vadd.f32 %v2753, %v3680
    %v3682 = vpop.f32.mrf.mxu0
    %v3683 = vadd.f32 %v2757, %v3682
    %3684 = vmatprep.mubr.bf16.mxu0 0
    %3685 = vmatmul.mubr.bf16.gmra.mxu0 %v2715
    %v3686 = vpop.f32.mrf.mxu0
    %v3687 = vadd.f32 %v2753, %v3686
    %v3688 = vpop.f32.mrf.mxu0
    %v3689 = vadd.f32 %v2757, %v3688
    %v3690 = vpop.f32.mrf.mxu0
    %v3691 = vpop.f32.mrf.mxu0
    %3692 = vdwg.mxu0
    %3693 = vmatprep.subr.bf16.mxu0 %v3305
    %3694 = vmatpush1.bf16.msra.mxu0 %v3304
    %3695 = vmatprep.subr.bf16.mxu0 %v3289
    %3696 = vmatpush1.bf16.msra.mxu0 %v3288
    %3697 = vmatprep.subr.bf16.mxu0 %v3273
    %3698 = vmatpush1.bf16.msra.mxu0 %v3272
    %3699 = vmatprep.subr.bf16.mxu0 %v3257
    %3700 = vmatpush1.bf16.msra.mxu0 %v3256
    %3701 = vmatprep.subr.bf16.mxu0 %v3241
    %3702 = vmatpush1.bf16.msra.mxu0 %v3240
    %3703 = vmatprep.subr.bf16.mxu0 %v3225
    %3704 = vmatpush1.bf16.msra.mxu0 %v3224
    %3705 = vmatprep.subr.bf16.mxu0 %v3209
    %3706 = vmatpush1.bf16.msra.mxu0 %v3208
    %3707 = vmatprep.subr.bf16.mxu0 %v3193
    %3708 = vmatpush1.bf16.msra.mxu0 %v3192
    %3709 = vmatprep.subr.bf16.mxu0 0
    %3710 = vmatpush2.bf16.msra.mxu0 0
    %3711 = vmatprep.subr.bf16.mxu0 0
    %3712 = vmatpush2.bf16.msra.mxu0 0
    %3713 = vmatprep.subr.bf16.mxu0 0
    %3714 = vmatpush2.bf16.msra.mxu0 0
    %3715 = vmatprep.subr.bf16.mxu0 0
    %3716 = vmatpush2.bf16.msra.mxu0 0
    %3717 = vmatprep.subr.bf16.mxu0 0
    %3718 = vmatpush2.bf16.msra.mxu0 0
    %3719 = vmatprep.subr.bf16.mxu0 0
    %3720 = vmatpush2.bf16.msra.mxu0 0
    %3721 = vmatprep.subr.bf16.mxu0 0
    %3722 = vmatpush2.bf16.msra.mxu0 0
    %3723 = vmatprep.subr.bf16.mxu0 0
    %3724 = vmatpush2.bf16.msra.mxu0 0
    %3725 = vmatprep.mubr.bf16.mxu0 0
    %3726 = vmatmul.mubr.bf16.gmra.mxu0 %v2714
    %v3727 = vpop.f32.mrf.mxu0
    %v3728 = vadd.f32 %v2761, %v3727
    %v3729 = vpop.f32.mrf.mxu0
    %v3730 = vadd.f32 %v2765, %v3729
    %v3731 = vpop.f32.mrf.mxu0
    %v3732 = vadd.f32 %v2761, %v3731
    %v3733 = vpop.f32.mrf.mxu0
    %v3734 = vadd.f32 %v2765, %v3733
    %3735 = vmatprep.mubr.bf16.mxu0 0
    %3736 = vmatmul.mubr.bf16.gmra.mxu0 %v2715
    %v3737 = vpop.f32.mrf.mxu0
    %v3738 = vadd.f32 %v2761, %v3737
    %v3739 = vpop.f32.mrf.mxu0
    %v3740 = vadd.f32 %v2765, %v3739
    %v3741 = vpop.f32.mrf.mxu0
    %v3742 = vpop.f32.mrf.mxu0
    %3743 = vdwg.mxu0
    %3744 = vmatprep.subr.bf16.mxu0 %v3307
    %3745 = vmatpush1.bf16.msra.mxu0 %v3306
    %3746 = vmatprep.subr.bf16.mxu0 %v3291
    %3747 = vmatpush1.bf16.msra.mxu0 %v3290
    %3748 = vmatprep.subr.bf16.mxu0 %v3275
    %3749 = vmatpush1.bf16.msra.mxu0 %v3274
    %3750 = vmatprep.subr.bf16.mxu0 %v3259
    %3751 = vmatpush1.bf16.msra.mxu0 %v3258
    %3752 = vmatprep.subr.bf16.mxu0 %v3243
    %3753 = vmatpush1.bf16.msra.mxu0 %v3242
    %3754 = vmatprep.subr.bf16.mxu0 %v3227
    %3755 = vmatpush1.bf16.msra.mxu0 %v3226
    %3756 = vmatprep.subr.bf16.mxu0 %v3211
    %3757 = vmatpush1.bf16.msra.mxu0 %v3210
    %3758 = vmatprep.subr.bf16.mxu0 %v3195
    %3759 = vmatpush1.bf16.msra.mxu0 %v3194
    %3760 = vmatprep.subr.bf16.mxu0 0
    %3761 = vmatpush2.bf16.msra.mxu0 0
    %3762 = vmatprep.subr.bf16.mxu0 0
    %3763 = vmatpush2.bf16.msra.mxu0 0
    %3764 = vmatprep.subr.bf16.mxu0 0
    %3765 = vmatpush2.bf16.msra.mxu0 0
    %3766 = vmatprep.subr.bf16.mxu0 0
    %3767 = vmatpush2.bf16.msra.mxu0 0
    %3768 = vmatprep.subr.bf16.mxu0 0
    %3769 = vmatpush2.bf16.msra.mxu0 0
    %3770 = vmatprep.subr.bf16.mxu0 0
    %3771 = vmatpush2.bf16.msra.mxu0 0
    %3772 = vmatprep.subr.bf16.mxu0 0
    %3773 = vmatpush2.bf16.msra.mxu0 0
    %3774 = vmatprep.subr.bf16.mxu0 0
    %3775 = vmatpush2.bf16.msra.mxu0 0
    %3776 = vmatprep.mubr.bf16.mxu0 0
    %3777 = vmatmul.mubr.bf16.gmra.mxu0 %v2714
    %v3778 = vpop.f32.mrf.mxu0
    %v3779 = vadd.f32 %v2769, %v3778
    %v3780 = vpop.f32.mrf.mxu0
    %v3781 = vadd.f32 %v2773, %v3780
    %v3782 = vpop.f32.mrf.mxu0
    %v3783 = vadd.f32 %v2769, %v3782
    %v3784 = vpop.f32.mrf.mxu0
    %v3785 = vadd.f32 %v2773, %v3784
    %3786 = vmatprep.mubr.bf16.mxu0 0
    %3787 = vmatmul.mubr.bf16.gmra.mxu0 %v2715
    %v3788 = vpop.f32.mrf.mxu0
    %v3789 = vadd.f32 %v2769, %v3788
    %v3790 = vpop.f32.mrf.mxu0
    %v3791 = vadd.f32 %v2773, %v3790
    %v3792 = vpop.f32.mrf.mxu0
    %v3793 = vpop.f32.mrf.mxu0
    %3794 = vdwg.mxu0
    %3795 = vmatprep.subr.bf16.mxu0 %v3309
    %3796 = vmatpush1.bf16.msra.mxu0 %v3308
    %3797 = vmatprep.subr.bf16.mxu0 %v3293
    %3798 = vmatpush1.bf16.msra.mxu0 %v3292
    %3799 = vmatprep.subr.bf16.mxu0 %v3277
    %3800 = vmatpush1.bf16.msra.mxu0 %v3276
    %3801 = vmatprep.subr.bf16.mxu0 %v3261
    %3802 = vmatpush1.bf16.msra.mxu0 %v3260
    %3803 = vmatprep.subr.bf16.mxu0 %v3245
    %3804 = vmatpush1.bf16.msra.mxu0 %v3244
    %3805 = vmatprep.subr.bf16.mxu0 %v3229
    %3806 = vmatpush1.bf16.msra.mxu0 %v3228
    %3807 = vmatprep.subr.bf16.mxu0 %v3213
    %3808 = vmatpush1.bf16.msra.mxu0 %v3212
    %3809 = vmatprep.subr.bf16.mxu0 %v3197
    %3810 = vmatpush1.bf16.msra.mxu0 %v3196
    %3811 = vmatprep.subr.bf16.mxu0 0
    %3812 = vmatpush2.bf16.msra.mxu0 0
    %3813 = vmatprep.subr.bf16.mxu0 0
    %3814 = vmatpush2.bf16.msra.mxu0 0
    %3815 = vmatprep.subr.bf16.mxu0 0
    %3816 = vmatpush2.bf16.msra.mxu0 0
    %3817 = vmatprep.subr.bf16.mxu0 0
    %3818 = vmatpush2.bf16.msra.mxu0 0
    %3819 = vmatprep.subr.bf16.mxu0 0
    %3820 = vmatpush2.bf16.msra.mxu0 0
    %3821 = vmatprep.subr.bf16.mxu0 0
    %3822 = vmatpush2.bf16.msra.mxu0 0
    %3823 = vmatprep.subr.bf16.mxu0 0
    %3824 = vmatpush2.bf16.msra.mxu0 0
    %3825 = vmatprep.subr.bf16.mxu0 0
    %3826 = vmatpush2.bf16.msra.mxu0 0
    %3827 = vmatprep.mubr.bf16.mxu0 0
    %3828 = vmatmul.mubr.bf16.gmra.mxu0 %v2714
    %v3829 = vpop.f32.mrf.mxu0
    %v3830 = vadd.f32 %v2777, %v3829
    %v3831 = vpop.f32.mrf.mxu0
    %v3832 = vadd.f32 %v2781, %v3831
    %v3833 = vpop.f32.mrf.mxu0
    %v3834 = vadd.f32 %v2777, %v3833
    %v3835 = vpop.f32.mrf.mxu0
    %v3836 = vadd.f32 %v2781, %v3835
    %3837 = vmatprep.mubr.bf16.mxu0 0
    %3838 = vmatmul.mubr.bf16.gmra.mxu0 %v2715
    %v3839 = vpop.f32.mrf.mxu0
    %v3840 = vadd.f32 %v2777, %v3839
    %v3841 = vpop.f32.mrf.mxu0
    %v3842 = vadd.f32 %v2781, %v3841
    %v3843 = vpop.f32.mrf.mxu0
    %v3844 = vpop.f32.mrf.mxu0
    %3845 = vdwg.mxu0
    %v3846 = vmax.f32 %v3473, 0.0
    %v3847 = vmax.f32 %v3475, 0.0
    %v3848 = vmax.f32 %v3524, 0.0
    %v3849 = vmax.f32 %v3526, 0.0
    %v3850 = vmax.f32 %v3575, 0.0
    %v3851 = vmax.f32 %v3577, 0.0
    %v3852 = vmax.f32 %v3626, 0.0
    %v3853 = vmax.f32 %v3628, 0.0
    %v3854 = vmax.f32 %v3677, 0.0
    %v3855 = vmax.f32 %v3679, 0.0
    %v3856 = vmax.f32 %v3728, 0.0
    %v3857 = vmax.f32 %v3730, 0.0
    %v3858 = vmax.f32 %v3779, 0.0
    %v3859 = vmax.f32 %v3781, 0.0
    %v3860 = vmax.f32 %v3830, 0.0
    %v3861 = vmax.f32 %v3832, 0.0
    %v3862 = vmax.f32 %v3477, 0.0
    %v3863 = vmax.f32 %v3479, 0.0
    %v3864 = vmax.f32 %v3528, 0.0
    %v3865 = vmax.f32 %v3530, 0.0
    %v3866 = vmax.f32 %v3579, 0.0
    %v3867 = vmax.f32 %v3581, 0.0
    %v3868 = vmax.f32 %v3630, 0.0
    %v3869 = vmax.f32 %v3632, 0.0
    %v3870 = vmax.f32 %v3681, 0.0
    %v3871 = vmax.f32 %v3683, 0.0
    %v3872 = vmax.f32 %v3732, 0.0
    %v3873 = vmax.f32 %v3734, 0.0
    %v3874 = vmax.f32 %v3783, 0.0
    %v3875 = vmax.f32 %v3785, 0.0
    %v3876 = vmax.f32 %v3834, 0.0
    %v3877 = vmax.f32 %v3836, 0.0
    %v3878 = vmax.f32 %v3483, 0.0
    %v3879 = vmax.f32 %v3485, 0.0
    %v3880 = vmax.f32 %v3534, 0.0
    %v3881 = vmax.f32 %v3536, 0.0
    %v3882 = vmax.f32 %v3585, 0.0
    %v3883 = vmax.f32 %v3587, 0.0
    %v3884 = vmax.f32 %v3636, 0.0
    %v3885 = vmax.f32 %v3638, 0.0
    %v3886 = vmax.f32 %v3687, 0.0
    %v3887 = vmax.f32 %v3689, 0.0
    %v3888 = vmax.f32 %v3738, 0.0
    %v3889 = vmax.f32 %v3740, 0.0
    %v3890 = vmax.f32 %v3789, 0.0
    %v3891 = vmax.f32 %v3791, 0.0
    %v3892 = vmax.f32 %v3840, 0.0
    %v3893 = vmax.f32 %v3842, 0.0
    %v3894 = vpack.c.bf16 %v3862, %v3846
    %v3895 = vpack.c.bf16 %v3863, %v3847
    %v3896 = vpack.c.bf16 %v3864, %v3848
    %v3897 = vpack.c.bf16 %v3865, %v3849
    %v3898 = vpack.c.bf16 %v3866, %v3850
    %v3899 = vpack.c.bf16 %v3867, %v3851
    %v3900 = vpack.c.bf16 %v3868, %v3852
    %v3901 = vpack.c.bf16 %v3869, %v3853
    %v3902 = vpack.c.bf16 %v3870, %v3854
    %v3903 = vpack.c.bf16 %v3871, %v3855
    %v3904 = vpack.c.bf16 %v3872, %v3856
    %v3905 = vpack.c.bf16 %v3873, %v3857
    %v3906 = vpack.c.bf16 %v3874, %v3858
    %v3907 = vpack.c.bf16 %v3875, %v3859
    %v3908 = vpack.c.bf16 %v3876, %v3860
    %v3909 = vpack.c.bf16 %v3877, %v3861
    %v3910 = vpack.c.bf16 %v3878, %v3878
    %v3911 = vpack.c.bf16 %v3879, %v3879
    %v3912 = vpack.c.bf16 %v3880, %v3880
    %v3913 = vpack.c.bf16 %v3881, %v3881
    %v3914 = vpack.c.bf16 %v3882, %v3882
    %v3915 = vpack.c.bf16 %v3883, %v3883
    %v3916 = vpack.c.bf16 %v3884, %v3884
    %v3917 = vpack.c.bf16 %v3885, %v3885
    %v3918 = vpack.c.bf16 %v3886, %v3886
    %v3919 = vpack.c.bf16 %v3887, %v3887
    %v3920 = vpack.c.bf16 %v3888, %v3888
    %v3921 = vpack.c.bf16 %v3889, %v3889
    %v3922 = vpack.c.bf16 %v3890, %v3890
    %v3923 = vpack.c.bf16 %v3891, %v3891
    %v3924 = vpack.c.bf16 %v3892, %v3892
    %v3925 = vpack.c.bf16 %v3893, %v3893
    %v3927 = vlaneseq
    %v3928 = vshrl.u32 %v3927, 7
    %v3929 = vsub.s32 0, %v3928
    %v3930 = vrot.slane %v852, %v3929
    %v4188 = vunpack.c.l.b16 %v596
    %v4189 = vunpack.c.l.b16 %v597
    %v4190 = vunpack.c.l.b16 %v598
    %v4191 = vunpack.c.l.b16 %v599
    %v4192 = vunpack.c.l.b16 %v600
    %v4193 = vunpack.c.l.b16 %v601
    %v4194 = vunpack.c.l.b16 %v602
    %v4195 = vunpack.c.l.b16 %v603
    %v4196 = vunpack.c.l.b16 %v604
    %v4197 = vunpack.c.l.b16 %v605
    %v4198 = vunpack.c.l.b16 %v606
    %v4199 = vunpack.c.l.b16 %v607
    %v4200 = vunpack.c.l.b16 %v608
    %v4201 = vunpack.c.l.b16 %v609
    %v4202 = vunpack.c.l.b16 %v610
    %v4203 = vunpack.c.l.b16 %v611
    %v4204 = vunpack.c.l.b16 %v612
    %v4205 = vunpack.c.l.b16 %v613
    %v4206 = vunpack.c.l.b16 %v614
    %v4207 = vunpack.c.l.b16 %v615
    %v4208 = vunpack.c.l.b16 %v616
    %v4209 = vunpack.c.l.b16 %v617
    %v4210 = vunpack.c.l.b16 %v618
    %v4211 = vunpack.c.l.b16 %v619
    %v4212 = vunpack.c.l.b16 %v620
    %v4213 = vunpack.c.l.b16 %v621
    %v4214 = vunpack.c.l.b16 %v622
    %v4215 = vunpack.c.l.b16 %v623
    %v4216 = vunpack.c.l.b16 %v624
    %v4217 = vunpack.c.l.b16 %v625
    %v4218 = vunpack.c.l.b16 %v626
    %v4219 = vunpack.c.l.b16 %v627
    %v4220 = vunpack.c.l.b16 %v628
    %v4221 = vunpack.c.l.b16 %v629
    %v4222 = vunpack.c.l.b16 %v630
    %v4223 = vunpack.c.l.b16 %v631
    %v4224 = vunpack.c.l.b16 %v632
    %v4225 = vunpack.c.l.b16 %v633
    %v4226 = vunpack.c.l.b16 %v634
    %v4227 = vunpack.c.l.b16 %v635
    %v4228 = vunpack.c.l.b16 %v636
    %v4229 = vunpack.c.l.b16 %v637
    %v4230 = vunpack.c.l.b16 %v638
    %v4231 = vunpack.c.l.b16 %v639
    %v4232 = vunpack.c.l.b16 %v640
    %v4233 = vunpack.c.l.b16 %v641
    %v4234 = vunpack.c.l.b16 %v642
    %v4235 = vunpack.c.l.b16 %v643
    %v4236 = vunpack.c.l.b16 %v644
    %v4237 = vunpack.c.l.b16 %v645
    %v4238 = vunpack.c.l.b16 %v646
    %v4239 = vunpack.c.l.b16 %v647
    %v4240 = vunpack.c.l.b16 %v648
    %v4241 = vunpack.c.l.b16 %v649
    %v4242 = vunpack.c.l.b16 %v650
    %v4243 = vunpack.c.l.b16 %v651
    %v4244 = vunpack.c.l.b16 %v652
    %v4245 = vunpack.c.l.b16 %v653
    %v4246 = vunpack.c.l.b16 %v654
    %v4247 = vunpack.c.l.b16 %v655
    %v4248 = vunpack.c.l.b16 %v656
    %v4249 = vunpack.c.l.b16 %v657
    %v4250 = vunpack.c.l.b16 %v658
    %v4251 = vunpack.c.l.b16 %v659
    %v4252 = vunpack.c.l.b16 %v660
    %v4253 = vunpack.c.l.b16 %v661
    %v4254 = vunpack.c.l.b16 %v662
    %v4255 = vunpack.c.l.b16 %v663
    %v4256 = vunpack.c.l.b16 %v664
    %v4257 = vunpack.c.l.b16 %v665
    %v4258 = vunpack.c.l.b16 %v666
    %v4259 = vunpack.c.l.b16 %v667
    %v4260 = vunpack.c.l.b16 %v668
    %v4261 = vunpack.c.l.b16 %v669
    %v4262 = vunpack.c.l.b16 %v670
    %v4263 = vunpack.c.l.b16 %v671
    %v4264 = vunpack.c.l.b16 %v672
    %v4265 = vunpack.c.l.b16 %v673
    %v4266 = vunpack.c.l.b16 %v674
    %v4267 = vunpack.c.l.b16 %v675
    %v4268 = vunpack.c.l.b16 %v676
    %v4269 = vunpack.c.l.b16 %v677
    %v4270 = vunpack.c.l.b16 %v678
    %v4271 = vunpack.c.l.b16 %v679
    %v4272 = vunpack.c.l.b16 %v680
    %v4273 = vunpack.c.l.b16 %v681
    %v4274 = vunpack.c.l.b16 %v682
    %v4275 = vunpack.c.l.b16 %v683
    %v4276 = vunpack.c.l.b16 %v684
    %v4277 = vunpack.c.l.b16 %v685
    %v4278 = vunpack.c.l.b16 %v686
    %v4279 = vunpack.c.l.b16 %v687
    %v4280 = vunpack.c.l.b16 %v688
    %v4281 = vunpack.c.l.b16 %v689
    %v4282 = vunpack.c.l.b16 %v690
    %v4283 = vunpack.c.l.b16 %v691
    %v4284 = vunpack.c.l.b16 %v692
    %v4285 = vunpack.c.l.b16 %v693
    %v4286 = vunpack.c.l.b16 %v694
    %v4287 = vunpack.c.l.b16 %v695
    %v4288 = vunpack.c.l.b16 %v696
    %v4289 = vunpack.c.l.b16 %v697
    %v4290 = vunpack.c.l.b16 %v698
    %v4291 = vunpack.c.l.b16 %v699
    %v4292 = vunpack.c.l.b16 %v700
    %v4293 = vunpack.c.l.b16 %v701
    %v4294 = vunpack.c.l.b16 %v702
    %v4295 = vunpack.c.l.b16 %v703
    %v4296 = vunpack.c.l.b16 %v704
    %v4297 = vunpack.c.l.b16 %v705
    %v4298 = vunpack.c.l.b16 %v706
    %v4299 = vunpack.c.l.b16 %v707
    %v4300 = vunpack.c.l.b16 %v708
    %v4301 = vunpack.c.l.b16 %v709
    %v4302 = vunpack.c.l.b16 %v710
    %v4303 = vunpack.c.l.b16 %v711
    %v4304 = vunpack.c.l.b16 %v712
    %v4305 = vunpack.c.l.b16 %v713
    %v4306 = vunpack.c.l.b16 %v714
    %v4307 = vunpack.c.l.b16 %v715
    %v4308 = vunpack.c.l.b16 %v716
    %v4309 = vunpack.c.l.b16 %v717
    %v4310 = vunpack.c.l.b16 %v718
    %v4311 = vunpack.c.l.b16 %v719
    %v4312 = vunpack.c.l.b16 %v720
    %v4313 = vunpack.c.l.b16 %v721
    %v4314 = vunpack.c.l.b16 %v722
    %v4315 = vunpack.c.l.b16 %v723
    %v4316 = vunpack.c.l.b16 %v724
    %v4317 = vunpack.c.l.b16 %v725
    %v4318 = vunpack.c.l.b16 %v726
    %v4319 = vunpack.c.l.b16 %v727
    %v4320 = vunpack.c.l.b16 %v728
    %v4321 = vunpack.c.l.b16 %v729
    %v4322 = vunpack.c.l.b16 %v730
    %v4323 = vunpack.c.l.b16 %v731
    %v4324 = vunpack.c.l.b16 %v732
    %v4325 = vunpack.c.l.b16 %v733
    %v4326 = vunpack.c.l.b16 %v734
    %v4327 = vunpack.c.l.b16 %v735
    %v4328 = vunpack.c.l.b16 %v736
    %v4329 = vunpack.c.l.b16 %v737
    %v4330 = vunpack.c.l.b16 %v738
    %v4331 = vunpack.c.l.b16 %v739
    %v4332 = vunpack.c.l.b16 %v740
    %v4333 = vunpack.c.l.b16 %v741
    %v4334 = vunpack.c.l.b16 %v742
    %v4335 = vunpack.c.l.b16 %v743
    %v4336 = vunpack.c.l.b16 %v744
    %v4337 = vunpack.c.l.b16 %v745
    %v4338 = vunpack.c.l.b16 %v746
    %v4339 = vunpack.c.l.b16 %v747
    %v4340 = vunpack.c.l.b16 %v748
    %v4341 = vunpack.c.l.b16 %v749
    %v4342 = vunpack.c.l.b16 %v750
    %v4343 = vunpack.c.l.b16 %v751
    %v4344 = vunpack.c.l.b16 %v752
    %v4345 = vunpack.c.l.b16 %v753
    %v4346 = vunpack.c.l.b16 %v754
    %v4347 = vunpack.c.l.b16 %v755
    %v4348 = vunpack.c.l.b16 %v756
    %v4349 = vunpack.c.l.b16 %v757
    %v4350 = vunpack.c.l.b16 %v758
    %v4351 = vunpack.c.l.b16 %v759
    %v4352 = vunpack.c.l.b16 %v760
    %v4353 = vunpack.c.l.b16 %v761
    %v4354 = vunpack.c.l.b16 %v762
    %v4355 = vunpack.c.l.b16 %v763
    %v4356 = vunpack.c.l.b16 %v764
    %v4357 = vunpack.c.l.b16 %v765
    %v4358 = vunpack.c.l.b16 %v766
    %v4359 = vunpack.c.l.b16 %v767
    %v4360 = vunpack.c.l.b16 %v768
    %v4361 = vunpack.c.l.b16 %v769
    %v4362 = vunpack.c.l.b16 %v770
    %v4363 = vunpack.c.l.b16 %v771
    %v4364 = vunpack.c.l.b16 %v772
    %v4365 = vunpack.c.l.b16 %v773
    %v4366 = vunpack.c.l.b16 %v774
    %v4367 = vunpack.c.l.b16 %v775
    %v4368 = vunpack.c.l.b16 %v776
    %v4369 = vunpack.c.l.b16 %v777
    %v4370 = vunpack.c.l.b16 %v778
    %v4371 = vunpack.c.l.b16 %v779
    %v4372 = vunpack.c.l.b16 %v780
    %v4373 = vunpack.c.l.b16 %v781
    %v4374 = vunpack.c.l.b16 %v782
    %v4375 = vunpack.c.l.b16 %v783
    %v4376 = vunpack.c.l.b16 %v784
    %v4377 = vunpack.c.l.b16 %v785
    %v4378 = vunpack.c.l.b16 %v786
    %v4379 = vunpack.c.l.b16 %v787
    %v4380 = vunpack.c.l.b16 %v788
    %v4381 = vunpack.c.l.b16 %v789
    %v4382 = vunpack.c.l.b16 %v790
    %v4383 = vunpack.c.l.b16 %v791
    %v4384 = vunpack.c.l.b16 %v792
    %v4385 = vunpack.c.l.b16 %v793
    %v4386 = vunpack.c.l.b16 %v794
    %v4387 = vunpack.c.l.b16 %v795
    %v4388 = vunpack.c.l.b16 %v796
    %v4389 = vunpack.c.l.b16 %v797
    %v4390 = vunpack.c.l.b16 %v798
    %v4391 = vunpack.c.l.b16 %v799
    %v4392 = vunpack.c.l.b16 %v800
    %v4393 = vunpack.c.l.b16 %v801
    %v4394 = vunpack.c.l.b16 %v802
    %v4395 = vunpack.c.l.b16 %v803
    %v4396 = vunpack.c.l.b16 %v804
    %v4397 = vunpack.c.l.b16 %v805
    %v4398 = vunpack.c.l.b16 %v806
    %v4399 = vunpack.c.l.b16 %v807
    %v4400 = vunpack.c.l.b16 %v808
    %v4401 = vunpack.c.l.b16 %v809
    %v4402 = vunpack.c.l.b16 %v810
    %v4403 = vunpack.c.l.b16 %v811
    %v4404 = vunpack.c.l.b16 %v812
    %v4405 = vunpack.c.l.b16 %v813
    %v4406 = vunpack.c.l.b16 %v814
    %v4407 = vunpack.c.l.b16 %v815
    %v4408 = vunpack.c.l.b16 %v816
    %v4409 = vunpack.c.l.b16 %v817
    %v4410 = vunpack.c.l.b16 %v818
    %v4411 = vunpack.c.l.b16 %v819
    %v4412 = vunpack.c.l.b16 %v820
    %v4413 = vunpack.c.l.b16 %v821
    %v4414 = vunpack.c.l.b16 %v822
    %v4415 = vunpack.c.l.b16 %v823
    %v4416 = vunpack.c.l.b16 %v824
    %v4417 = vunpack.c.l.b16 %v825
    %v4418 = vunpack.c.l.b16 %v826
    %v4419 = vunpack.c.l.b16 %v827
    %v4420 = vunpack.c.l.b16 %v828
    %v4421 = vunpack.c.l.b16 %v829
    %v4422 = vunpack.c.l.b16 %v830
    %v4423 = vunpack.c.l.b16 %v831
    %v4424 = vunpack.c.l.b16 %v832
    %v4425 = vunpack.c.l.b16 %v833
    %v4426 = vunpack.c.l.b16 %v834
    %v4427 = vunpack.c.l.b16 %v835
    %v4428 = vunpack.c.l.b16 %v836
    %v4429 = vunpack.c.l.b16 %v837
    %v4430 = vunpack.c.l.b16 %v838
    %v4431 = vunpack.c.l.b16 %v839
    %v4432 = vunpack.c.l.b16 %v840
    %v4433 = vunpack.c.l.b16 %v841
    %v4434 = vunpack.c.l.b16 %v842
    %v4435 = vunpack.c.l.b16 %v843
    %v4436 = vunpack.c.l.b16 %v844
    %v4437 = vunpack.c.l.b16 %v845
    %v4438 = vunpack.c.l.b16 %v846
    %v4439 = vunpack.c.l.b16 %v847
    %v4440 = vunpack.c.l.b16 %v848
    %v4441 = vunpack.c.l.b16 %v849
    %v4442 = vunpack.c.l.b16 %v850
    %v4443 = vunpack.c.l.b16 %v851
    %v4444 = vpack.c.b16 %v4189, %v4188
    %v4445 = vpack.c.b16 %v4191, %v4190
    %v4446 = vpack.c.b16 %v4193, %v4192
    %v4447 = vpack.c.b16 %v4195, %v4194
    %v4448 = vpack.c.b16 %v4197, %v4196
    %v4449 = vpack.c.b16 %v4199, %v4198
    %v4450 = vpack.c.b16 %v4201, %v4200
    %v4451 = vpack.c.b16 %v4203, %v4202
    %v4452 = vpack.c.b16 %v4205, %v4204
    %v4453 = vpack.c.b16 %v4207, %v4206
    %v4454 = vpack.c.b16 %v4209, %v4208
    %v4455 = vpack.c.b16 %v4211, %v4210
    %v4456 = vpack.c.b16 %v4213, %v4212
    %v4457 = vpack.c.b16 %v4215, %v4214
    %v4458 = vpack.c.b16 %v4217, %v4216
    %v4459 = vpack.c.b16 %v4219, %v4218
    %v4460 = vpack.c.b16 %v4221, %v4220
    %v4461 = vpack.c.b16 %v4223, %v4222
    %v4462 = vpack.c.b16 %v4225, %v4224
    %v4463 = vpack.c.b16 %v4227, %v4226
    %v4464 = vpack.c.b16 %v4229, %v4228
    %v4465 = vpack.c.b16 %v4231, %v4230
    %v4466 = vpack.c.b16 %v4233, %v4232
    %v4467 = vpack.c.b16 %v4235, %v4234
    %v4468 = vpack.c.b16 %v4237, %v4236
    %v4469 = vpack.c.b16 %v4239, %v4238
    %v4470 = vpack.c.b16 %v4241, %v4240
    %v4471 = vpack.c.b16 %v4243, %v4242
    %v4472 = vpack.c.b16 %v4245, %v4244
    %v4473 = vpack.c.b16 %v4247, %v4246
    %v4474 = vpack.c.b16 %v4249, %v4248
    %v4475 = vpack.c.b16 %v4251, %v4250
    %v4476 = vpack.c.b16 %v4253, %v4252
    %v4477 = vpack.c.b16 %v4255, %v4254
    %v4478 = vpack.c.b16 %v4257, %v4256
    %v4479 = vpack.c.b16 %v4259, %v4258
    %v4480 = vpack.c.b16 %v4261, %v4260
    %v4481 = vpack.c.b16 %v4263, %v4262
    %v4482 = vpack.c.b16 %v4265, %v4264
    %v4483 = vpack.c.b16 %v4267, %v4266
    %v4484 = vpack.c.b16 %v4269, %v4268
    %v4485 = vpack.c.b16 %v4271, %v4270
    %v4486 = vpack.c.b16 %v4273, %v4272
    %v4487 = vpack.c.b16 %v4275, %v4274
    %v4488 = vpack.c.b16 %v4277, %v4276
    %v4489 = vpack.c.b16 %v4279, %v4278
    %v4490 = vpack.c.b16 %v4281, %v4280
    %v4491 = vpack.c.b16 %v4283, %v4282
    %v4492 = vpack.c.b16 %v4285, %v4284
    %v4493 = vpack.c.b16 %v4287, %v4286
    %v4494 = vpack.c.b16 %v4289, %v4288
    %v4495 = vpack.c.b16 %v4291, %v4290
    %v4496 = vpack.c.b16 %v4293, %v4292
    %v4497 = vpack.c.b16 %v4295, %v4294
    %v4498 = vpack.c.b16 %v4297, %v4296
    %v4499 = vpack.c.b16 %v4299, %v4298
    %v4500 = vpack.c.b16 %v4301, %v4300
    %v4501 = vpack.c.b16 %v4303, %v4302
    %v4502 = vpack.c.b16 %v4305, %v4304
    %v4503 = vpack.c.b16 %v4307, %v4306
    %v4504 = vpack.c.b16 %v4309, %v4308
    %v4505 = vpack.c.b16 %v4311, %v4310
    %v4506 = vpack.c.b16 %v4313, %v4312
    %v4507 = vpack.c.b16 %v4315, %v4314
    %v4508 = vpack.c.b16 %v4317, %v4316
    %v4509 = vpack.c.b16 %v4319, %v4318
    %v4510 = vpack.c.b16 %v4321, %v4320
    %v4511 = vpack.c.b16 %v4323, %v4322
    %v4512 = vpack.c.b16 %v4325, %v4324
    %v4513 = vpack.c.b16 %v4327, %v4326
    %v4514 = vpack.c.b16 %v4329, %v4328
    %v4515 = vpack.c.b16 %v4331, %v4330
    %v4516 = vpack.c.b16 %v4333, %v4332
    %v4517 = vpack.c.b16 %v4335, %v4334
    %v4518 = vpack.c.b16 %v4337, %v4336
    %v4519 = vpack.c.b16 %v4339, %v4338
    %v4520 = vpack.c.b16 %v4341, %v4340
    %v4521 = vpack.c.b16 %v4343, %v4342
    %v4522 = vpack.c.b16 %v4345, %v4344
    %v4523 = vpack.c.b16 %v4347, %v4346
    %v4524 = vpack.c.b16 %v4349, %v4348
    %v4525 = vpack.c.b16 %v4351, %v4350
    %v4526 = vpack.c.b16 %v4353, %v4352
    %v4527 = vpack.c.b16 %v4355, %v4354
    %v4528 = vpack.c.b16 %v4357, %v4356
    %v4529 = vpack.c.b16 %v4359, %v4358
    %v4530 = vpack.c.b16 %v4361, %v4360
    %v4531 = vpack.c.b16 %v4363, %v4362
    %v4532 = vpack.c.b16 %v4365, %v4364
    %v4533 = vpack.c.b16 %v4367, %v4366
    %v4534 = vpack.c.b16 %v4369, %v4368
    %v4535 = vpack.c.b16 %v4371, %v4370
    %v4536 = vpack.c.b16 %v4373, %v4372
    %v4537 = vpack.c.b16 %v4375, %v4374
    %v4538 = vpack.c.b16 %v4377, %v4376
    %v4539 = vpack.c.b16 %v4379, %v4378
    %v4540 = vpack.c.b16 %v4381, %v4380
    %v4541 = vpack.c.b16 %v4383, %v4382
    %v4542 = vpack.c.b16 %v4385, %v4384
    %v4543 = vpack.c.b16 %v4387, %v4386
    %v4544 = vpack.c.b16 %v4389, %v4388
    %v4545 = vpack.c.b16 %v4391, %v4390
    %v4546 = vpack.c.b16 %v4393, %v4392
    %v4547 = vpack.c.b16 %v4395, %v4394
    %v4548 = vpack.c.b16 %v4397, %v4396
    %v4549 = vpack.c.b16 %v4399, %v4398
    %v4550 = vpack.c.b16 %v4401, %v4400
    %v4551 = vpack.c.b16 %v4403, %v4402
    %v4552 = vpack.c.b16 %v4405, %v4404
    %v4553 = vpack.c.b16 %v4407, %v4406
    %v4554 = vpack.c.b16 %v4409, %v4408
    %v4555 = vpack.c.b16 %v4411, %v4410
    %v4556 = vpack.c.b16 %v4413, %v4412
    %v4557 = vpack.c.b16 %v4415, %v4414
    %v4558 = vpack.c.b16 %v4417, %v4416
    %v4559 = vpack.c.b16 %v4419, %v4418
    %v4560 = vpack.c.b16 %v4421, %v4420
    %v4561 = vpack.c.b16 %v4423, %v4422
    %v4562 = vpack.c.b16 %v4425, %v4424
    %v4563 = vpack.c.b16 %v4427, %v4426
    %v4564 = vpack.c.b16 %v4429, %v4428
    %v4565 = vpack.c.b16 %v4431, %v4430
    %v4566 = vpack.c.b16 %v4433, %v4432
    %v4567 = vpack.c.b16 %v4435, %v4434
    %v4568 = vpack.c.b16 %v4437, %v4436
    %v4569 = vpack.c.b16 %v4439, %v4438
    %v4570 = vpack.c.b16 %v4441, %v4440
    %v4571 = vpack.c.b16 %v4443, %v4442
    %4700 = vmatprep.subr.bf16.mxu0 0
    %4701 = vmatpush1.bf16.msra.mxu0 %v4451
    %4702 = vmatprep.subr.bf16.mxu0 0
    %4703 = vmatpush1.bf16.msra.mxu0 %v4450
    %4704 = vmatprep.subr.bf16.mxu0 0
    %4705 = vmatpush1.bf16.msra.mxu0 %v4449
    %4706 = vmatprep.subr.bf16.mxu0 0
    %4707 = vmatpush1.bf16.msra.mxu0 %v4448
    %4708 = vmatprep.subr.bf16.mxu0 0
    %4709 = vmatpush1.bf16.msra.mxu0 %v4447
    %4710 = vmatprep.subr.bf16.mxu0 0
    %4711 = vmatpush1.bf16.msra.mxu0 %v4446
    %4712 = vmatprep.subr.bf16.mxu0 0
    %4713 = vmatpush1.bf16.msra.mxu0 %v4445
    %4714 = vmatprep.subr.bf16.mxu0 0
    %4715 = vmatpush1.bf16.msra.mxu0 %v4444
    %4716 = vmatprep.subr.bf16.mxu0 0
    %4717 = vmatpush2.bf16.msra.mxu0 %v4459
    %4718 = vmatprep.subr.bf16.mxu0 0
    %4719 = vmatpush2.bf16.msra.mxu0 %v4458
    %4720 = vmatprep.subr.bf16.mxu0 0
    %4721 = vmatpush2.bf16.msra.mxu0 %v4457
    %4722 = vmatprep.subr.bf16.mxu0 0
    %4723 = vmatpush2.bf16.msra.mxu0 %v4456
    %4724 = vmatprep.subr.bf16.mxu0 0
    %4725 = vmatpush2.bf16.msra.mxu0 %v4455
    %4726 = vmatprep.subr.bf16.mxu0 0
    %4727 = vmatpush2.bf16.msra.mxu0 %v4454
    %4728 = vmatprep.subr.bf16.mxu0 0
    %4729 = vmatpush2.bf16.msra.mxu0 %v4453
    %4730 = vmatprep.subr.bf16.mxu0 0
    %4731 = vmatpush2.bf16.msra.mxu0 %v4452
    %4732 = vmatprep.mubr.bf16.mxu0 %v3895
    %4733 = vmatmul.mubr.bf16.gmra.mxu0 %v3894
    %v4734 = vpop.f32.mrf.mxu0
    %v4735 = vadd.f32 %v3930, %v4734
    %v4736 = vpop.f32.mrf.mxu0
    %v4737 = vpop.f32.mrf.mxu0
    %v4738 = vadd.f32 %v3930, %v4737
    %v4739 = vpop.f32.mrf.mxu0
    %4740 = vmatprep.mubr.bf16.mxu0 %v3911
    %4741 = vmatmul.mubr.bf16.gmra.mxu0 %v3910
    %v4742 = vpop.f32.mrf.mxu0
    %v4743 = vadd.f32 %v3930, %v4742
    %v4744 = vpop.f32.mrf.mxu0
    %v4745 = vpop.f32.mrf.mxu0
    %v4746 = vpop.f32.mrf.mxu0
    %4747 = vdwg.mxu0
    %4748 = vmatprep.subr.bf16.mxu0 0
    %4749 = vmatpush1.bf16.msra.mxu0 %v4467
    %4750 = vmatprep.subr.bf16.mxu0 0
    %4751 = vmatpush1.bf16.msra.mxu0 %v4466
    %4752 = vmatprep.subr.bf16.mxu0 0
    %4753 = vmatpush1.bf16.msra.mxu0 %v4465
    %4754 = vmatprep.subr.bf16.mxu0 0
    %4755 = vmatpush1.bf16.msra.mxu0 %v4464
    %4756 = vmatprep.subr.bf16.mxu0 0
    %4757 = vmatpush1.bf16.msra.mxu0 %v4463
    %4758 = vmatprep.subr.bf16.mxu0 0
    %4759 = vmatpush1.bf16.msra.mxu0 %v4462
    %4760 = vmatprep.subr.bf16.mxu0 0
    %4761 = vmatpush1.bf16.msra.mxu0 %v4461
    %4762 = vmatprep.subr.bf16.mxu0 0
    %4763 = vmatpush1.bf16.msra.mxu0 %v4460
    %4764 = vmatprep.subr.bf16.mxu0 0
    %4765 = vmatpush2.bf16.msra.mxu0 %v4475
    %4766 = vmatprep.subr.bf16.mxu0 0
    %4767 = vmatpush2.bf16.msra.mxu0 %v4474
    %4768 = vmatprep.subr.bf16.mxu0 0
    %4769 = vmatpush2.bf16.msra.mxu0 %v4473
    %4770 = vmatprep.subr.bf16.mxu0 0
    %4771 = vmatpush2.bf16.msra.mxu0 %v4472
    %4772 = vmatprep.subr.bf16.mxu0 0
    %4773 = vmatpush2.bf16.msra.mxu0 %v4471
    %4774 = vmatprep.subr.bf16.mxu0 0
    %4775 = vmatpush2.bf16.msra.mxu0 %v4470
    %4776 = vmatprep.subr.bf16.mxu0 0
    %4777 = vmatpush2.bf16.msra.mxu0 %v4469
    %4778 = vmatprep.subr.bf16.mxu0 0
    %4779 = vmatpush2.bf16.msra.mxu0 %v4468
    %4780 = vmatprep.mubr.bf16.mxu0 %v3897
    %4781 = vmatmul.mubr.bf16.gmra.mxu0 %v3896
    %v4782 = vpop.f32.mrf.mxu0
    %v4783 = vadd.f32 %v4735, %v4782
    %v4784 = vpop.f32.mrf.mxu0
    %v4785 = vpop.f32.mrf.mxu0
    %v4786 = vadd.f32 %v4738, %v4785
    %v4787 = vpop.f32.mrf.mxu0
    %4788 = vmatprep.mubr.bf16.mxu0 %v3913
    %4789 = vmatmul.mubr.bf16.gmra.mxu0 %v3912
    %v4790 = vpop.f32.mrf.mxu0
    %v4791 = vadd.f32 %v4743, %v4790
    %v4792 = vpop.f32.mrf.mxu0
    %v4793 = vpop.f32.mrf.mxu0
    %v4794 = vpop.f32.mrf.mxu0
    %4795 = vdwg.mxu0
    %4796 = vmatprep.subr.bf16.mxu0 0
    %4797 = vmatpush1.bf16.msra.mxu0 %v4483
    %4798 = vmatprep.subr.bf16.mxu0 0
    %4799 = vmatpush1.bf16.msra.mxu0 %v4482
    %4800 = vmatprep.subr.bf16.mxu0 0
    %4801 = vmatpush1.bf16.msra.mxu0 %v4481
    %4802 = vmatprep.subr.bf16.mxu0 0
    %4803 = vmatpush1.bf16.msra.mxu0 %v4480
    %4804 = vmatprep.subr.bf16.mxu0 0
    %4805 = vmatpush1.bf16.msra.mxu0 %v4479
    %4806 = vmatprep.subr.bf16.mxu0 0
    %4807 = vmatpush1.bf16.msra.mxu0 %v4478
    %4808 = vmatprep.subr.bf16.mxu0 0
    %4809 = vmatpush1.bf16.msra.mxu0 %v4477
    %4810 = vmatprep.subr.bf16.mxu0 0
    %4811 = vmatpush1.bf16.msra.mxu0 %v4476
    %4812 = vmatprep.subr.bf16.mxu0 0
    %4813 = vmatpush2.bf16.msra.mxu0 %v4491
    %4814 = vmatprep.subr.bf16.mxu0 0
    %4815 = vmatpush2.bf16.msra.mxu0 %v4490
    %4816 = vmatprep.subr.bf16.mxu0 0
    %4817 = vmatpush2.bf16.msra.mxu0 %v4489
    %4818 = vmatprep.subr.bf16.mxu0 0
    %4819 = vmatpush2.bf16.msra.mxu0 %v4488
    %4820 = vmatprep.subr.bf16.mxu0 0
    %4821 = vmatpush2.bf16.msra.mxu0 %v4487
    %4822 = vmatprep.subr.bf16.mxu0 0
    %4823 = vmatpush2.bf16.msra.mxu0 %v4486
    %4824 = vmatprep.subr.bf16.mxu0 0
    %4825 = vmatpush2.bf16.msra.mxu0 %v4485
    %4826 = vmatprep.subr.bf16.mxu0 0
    %4827 = vmatpush2.bf16.msra.mxu0 %v4484
    %4828 = vmatprep.mubr.bf16.mxu0 %v3899
    %4829 = vmatmul.mubr.bf16.gmra.mxu0 %v3898
    %v4830 = vpop.f32.mrf.mxu0
    %v4831 = vadd.f32 %v4783, %v4830
    %v4832 = vpop.f32.mrf.mxu0
    %v4833 = vpop.f32.mrf.mxu0
    %v4834 = vadd.f32 %v4786, %v4833
    %v4835 = vpop.f32.mrf.mxu0
    %4836 = vmatprep.mubr.bf16.mxu0 %v3915
    %4837 = vmatmul.mubr.bf16.gmra.mxu0 %v3914
    %v4838 = vpop.f32.mrf.mxu0
    %v4839 = vadd.f32 %v4791, %v4838
    %v4840 = vpop.f32.mrf.mxu0
    %v4841 = vpop.f32.mrf.mxu0
    %v4842 = vpop.f32.mrf.mxu0
    %4843 = vdwg.mxu0
    %4844 = vmatprep.subr.bf16.mxu0 0
    %4845 = vmatpush1.bf16.msra.mxu0 %v4499
    %4846 = vmatprep.subr.bf16.mxu0 0
    %4847 = vmatpush1.bf16.msra.mxu0 %v4498
    %4848 = vmatprep.subr.bf16.mxu0 0
    %4849 = vmatpush1.bf16.msra.mxu0 %v4497
    %4850 = vmatprep.subr.bf16.mxu0 0
    %4851 = vmatpush1.bf16.msra.mxu0 %v4496
    %4852 = vmatprep.subr.bf16.mxu0 0
    %4853 = vmatpush1.bf16.msra.mxu0 %v4495
    %4854 = vmatprep.subr.bf16.mxu0 0
    %4855 = vmatpush1.bf16.msra.mxu0 %v4494
    %4856 = vmatprep.subr.bf16.mxu0 0
    %4857 = vmatpush1.bf16.msra.mxu0 %v4493
    %4858 = vmatprep.subr.bf16.mxu0 0
    %4859 = vmatpush1.bf16.msra.mxu0 %v4492
    %4860 = vmatprep.subr.bf16.mxu0 0
    %4861 = vmatpush2.bf16.msra.mxu0 %v4507
    %4862 = vmatprep.subr.bf16.mxu0 0
    %4863 = vmatpush2.bf16.msra.mxu0 %v4506
    %4864 = vmatprep.subr.bf16.mxu0 0
    %4865 = vmatpush2.bf16.msra.mxu0 %v4505
    %4866 = vmatprep.subr.bf16.mxu0 0
    %4867 = vmatpush2.bf16.msra.mxu0 %v4504
    %4868 = vmatprep.subr.bf16.mxu0 0
    %4869 = vmatpush2.bf16.msra.mxu0 %v4503
    %4870 = vmatprep.subr.bf16.mxu0 0
    %4871 = vmatpush2.bf16.msra.mxu0 %v4502
    %4872 = vmatprep.subr.bf16.mxu0 0
    %4873 = vmatpush2.bf16.msra.mxu0 %v4501
    %4874 = vmatprep.subr.bf16.mxu0 0
    %4875 = vmatpush2.bf16.msra.mxu0 %v4500
    %4876 = vmatprep.mubr.bf16.mxu0 %v3901
    %4877 = vmatmul.mubr.bf16.gmra.mxu0 %v3900
    %v4878 = vpop.f32.mrf.mxu0
    %v4879 = vadd.f32 %v4831, %v4878
    %v4880 = vpop.f32.mrf.mxu0
    %v4881 = vpop.f32.mrf.mxu0
    %v4882 = vadd.f32 %v4834, %v4881
    %v4883 = vpop.f32.mrf.mxu0
    %4884 = vmatprep.mubr.bf16.mxu0 %v3917
    %4885 = vmatmul.mubr.bf16.gmra.mxu0 %v3916
    %v4886 = vpop.f32.mrf.mxu0
    %v4887 = vadd.f32 %v4839, %v4886
    %v4888 = vpop.f32.mrf.mxu0
    %v4889 = vpop.f32.mrf.mxu0
    %v4890 = vpop.f32.mrf.mxu0
    %4891 = vdwg.mxu0
    %4892 = vmatprep.subr.bf16.mxu0 0
    %4893 = vmatpush1.bf16.msra.mxu0 %v4515
    %4894 = vmatprep.subr.bf16.mxu0 0
    %4895 = vmatpush1.bf16.msra.mxu0 %v4514
    %4896 = vmatprep.subr.bf16.mxu0 0
    %4897 = vmatpush1.bf16.msra.mxu0 %v4513
    %4898 = vmatprep.subr.bf16.mxu0 0
    %4899 = vmatpush1.bf16.msra.mxu0 %v4512
    %4900 = vmatprep.subr.bf16.mxu0 0
    %4901 = vmatpush1.bf16.msra.mxu0 %v4511
    %4902 = vmatprep.subr.bf16.mxu0 0
    %4903 = vmatpush1.bf16.msra.mxu0 %v4510
    %4904 = vmatprep.subr.bf16.mxu0 0
    %4905 = vmatpush1.bf16.msra.mxu0 %v4509
    %4906 = vmatprep.subr.bf16.mxu0 0
    %4907 = vmatpush1.bf16.msra.mxu0 %v4508
    %4908 = vmatprep.subr.bf16.mxu0 0
    %4909 = vmatpush2.bf16.msra.mxu0 %v4523
    %4910 = vmatprep.subr.bf16.mxu0 0
    %4911 = vmatpush2.bf16.msra.mxu0 %v4522
    %4912 = vmatprep.subr.bf16.mxu0 0
    %4913 = vmatpush2.bf16.msra.mxu0 %v4521
    %4914 = vmatprep.subr.bf16.mxu0 0
    %4915 = vmatpush2.bf16.msra.mxu0 %v4520
    %4916 = vmatprep.subr.bf16.mxu0 0
    %4917 = vmatpush2.bf16.msra.mxu0 %v4519
    %4918 = vmatprep.subr.bf16.mxu0 0
    %4919 = vmatpush2.bf16.msra.mxu0 %v4518
    %4920 = vmatprep.subr.bf16.mxu0 0
    %4921 = vmatpush2.bf16.msra.mxu0 %v4517
    %4922 = vmatprep.subr.bf16.mxu0 0
    %4923 = vmatpush2.bf16.msra.mxu0 %v4516
    %4924 = vmatprep.mubr.bf16.mxu0 %v3903
    %4925 = vmatmul.mubr.bf16.gmra.mxu0 %v3902
    %v4926 = vpop.f32.mrf.mxu0
    %v4927 = vadd.f32 %v4879, %v4926
    %v4928 = vpop.f32.mrf.mxu0
    %v4929 = vpop.f32.mrf.mxu0
    %v4930 = vadd.f32 %v4882, %v4929
    %v4931 = vpop.f32.mrf.mxu0
    %4932 = vmatprep.mubr.bf16.mxu0 %v3919
    %4933 = vmatmul.mubr.bf16.gmra.mxu0 %v3918
    %v4934 = vpop.f32.mrf.mxu0
    %v4935 = vadd.f32 %v4887, %v4934
    %v4936 = vpop.f32.mrf.mxu0
    %v4937 = vpop.f32.mrf.mxu0
    %v4938 = vpop.f32.mrf.mxu0
    %4939 = vdwg.mxu0
    %4940 = vmatprep.subr.bf16.mxu0 0
    %4941 = vmatpush1.bf16.msra.mxu0 %v4531
    %4942 = vmatprep.subr.bf16.mxu0 0
    %4943 = vmatpush1.bf16.msra.mxu0 %v4530
    %4944 = vmatprep.subr.bf16.mxu0 0
    %4945 = vmatpush1.bf16.msra.mxu0 %v4529
    %4946 = vmatprep.subr.bf16.mxu0 0
    %4947 = vmatpush1.bf16.msra.mxu0 %v4528
    %4948 = vmatprep.subr.bf16.mxu0 0
    %4949 = vmatpush1.bf16.msra.mxu0 %v4527
    %4950 = vmatprep.subr.bf16.mxu0 0
    %4951 = vmatpush1.bf16.msra.mxu0 %v4526
    %4952 = vmatprep.subr.bf16.mxu0 0
    %4953 = vmatpush1.bf16.msra.mxu0 %v4525
    %4954 = vmatprep.subr.bf16.mxu0 0
    %4955 = vmatpush1.bf16.msra.mxu0 %v4524
    %4956 = vmatprep.subr.bf16.mxu0 0
    %4957 = vmatpush2.bf16.msra.mxu0 %v4539
    %4958 = vmatprep.subr.bf16.mxu0 0
    %4959 = vmatpush2.bf16.msra.mxu0 %v4538
    %4960 = vmatprep.subr.bf16.mxu0 0
    %4961 = vmatpush2.bf16.msra.mxu0 %v4537
    %4962 = vmatprep.subr.bf16.mxu0 0
    %4963 = vmatpush2.bf16.msra.mxu0 %v4536
    %4964 = vmatprep.subr.bf16.mxu0 0
    %4965 = vmatpush2.bf16.msra.mxu0 %v4535
    %4966 = vmatprep.subr.bf16.mxu0 0
    %4967 = vmatpush2.bf16.msra.mxu0 %v4534
    %4968 = vmatprep.subr.bf16.mxu0 0
    %4969 = vmatpush2.bf16.msra.mxu0 %v4533
    %4970 = vmatprep.subr.bf16.mxu0 0
    %4971 = vmatpush2.bf16.msra.mxu0 %v4532
    %4972 = vmatprep.mubr.bf16.mxu0 %v3905
    %4973 = vmatmul.mubr.bf16.gmra.mxu0 %v3904
    %v4974 = vpop.f32.mrf.mxu0
    %v4975 = vadd.f32 %v4927, %v4974
    %v4976 = vpop.f32.mrf.mxu0
    %v4977 = vpop.f32.mrf.mxu0
    %v4978 = vadd.f32 %v4930, %v4977
    %v4979 = vpop.f32.mrf.mxu0
    %4980 = vmatprep.mubr.bf16.mxu0 %v3921
    %4981 = vmatmul.mubr.bf16.gmra.mxu0 %v3920
    %v4982 = vpop.f32.mrf.mxu0
    %v4983 = vadd.f32 %v4935, %v4982
    %v4984 = vpop.f32.mrf.mxu0
    %v4985 = vpop.f32.mrf.mxu0
    %v4986 = vpop.f32.mrf.mxu0
    %4987 = vdwg.mxu0
    %4988 = vmatprep.subr.bf16.mxu0 0
    %4989 = vmatpush1.bf16.msra.mxu0 %v4547
    %4990 = vmatprep.subr.bf16.mxu0 0
    %4991 = vmatpush1.bf16.msra.mxu0 %v4546
    %4992 = vmatprep.subr.bf16.mxu0 0
    %4993 = vmatpush1.bf16.msra.mxu0 %v4545
    %4994 = vmatprep.subr.bf16.mxu0 0
    %4995 = vmatpush1.bf16.msra.mxu0 %v4544
    %4996 = vmatprep.subr.bf16.mxu0 0
    %4997 = vmatpush1.bf16.msra.mxu0 %v4543
    %4998 = vmatprep.subr.bf16.mxu0 0
    %4999 = vmatpush1.bf16.msra.mxu0 %v4542
    %5000 = vmatprep.subr.bf16.mxu0 0
    %5001 = vmatpush1.bf16.msra.mxu0 %v4541
    %5002 = vmatprep.subr.bf16.mxu0 0
    %5003 = vmatpush1.bf16.msra.mxu0 %v4540
    %5004 = vmatprep.subr.bf16.mxu0 0
    %5005 = vmatpush2.bf16.msra.mxu0 %v4555
    %5006 = vmatprep.subr.bf16.mxu0 0
    %5007 = vmatpush2.bf16.msra.mxu0 %v4554
    %5008 = vmatprep.subr.bf16.mxu0 0
    %5009 = vmatpush2.bf16.msra.mxu0 %v4553
    %5010 = vmatprep.subr.bf16.mxu0 0
    %5011 = vmatpush2.bf16.msra.mxu0 %v4552
    %5012 = vmatprep.subr.bf16.mxu0 0
    %5013 = vmatpush2.bf16.msra.mxu0 %v4551
    %5014 = vmatprep.subr.bf16.mxu0 0
    %5015 = vmatpush2.bf16.msra.mxu0 %v4550
    %5016 = vmatprep.subr.bf16.mxu0 0
    %5017 = vmatpush2.bf16.msra.mxu0 %v4549
    %5018 = vmatprep.subr.bf16.mxu0 0
    %5019 = vmatpush2.bf16.msra.mxu0 %v4548
    %5020 = vmatprep.mubr.bf16.mxu0 %v3907
    %5021 = vmatmul.mubr.bf16.gmra.mxu0 %v3906
    %v5022 = vpop.f32.mrf.mxu0
    %v5023 = vadd.f32 %v4975, %v5022
    %v5024 = vpop.f32.mrf.mxu0
    %v5025 = vpop.f32.mrf.mxu0
    %v5026 = vadd.f32 %v4978, %v5025
    %v5027 = vpop.f32.mrf.mxu0
    %5028 = vmatprep.mubr.bf16.mxu0 %v3923
    %5029 = vmatmul.mubr.bf16.gmra.mxu0 %v3922
    %v5030 = vpop.f32.mrf.mxu0
    %v5031 = vadd.f32 %v4983, %v5030
    %v5032 = vpop.f32.mrf.mxu0
    %v5033 = vpop.f32.mrf.mxu0
    %v5034 = vpop.f32.mrf.mxu0
    %5035 = vdwg.mxu0
    %5036 = vmatprep.subr.bf16.mxu0 0
    %5037 = vmatpush1.bf16.msra.mxu0 %v4563
    %5038 = vmatprep.subr.bf16.mxu0 0
    %5039 = vmatpush1.bf16.msra.mxu0 %v4562
    %5040 = vmatprep.subr.bf16.mxu0 0
    %5041 = vmatpush1.bf16.msra.mxu0 %v4561
    %5042 = vmatprep.subr.bf16.mxu0 0
    %5043 = vmatpush1.bf16.msra.mxu0 %v4560
    %5044 = vmatprep.subr.bf16.mxu0 0
    %5045 = vmatpush1.bf16.msra.mxu0 %v4559
    %5046 = vmatprep.subr.bf16.mxu0 0
    %5047 = vmatpush1.bf16.msra.mxu0 %v4558
    %5048 = vmatprep.subr.bf16.mxu0 0
    %5049 = vmatpush1.bf16.msra.mxu0 %v4557
    %5050 = vmatprep.subr.bf16.mxu0 0
    %5051 = vmatpush1.bf16.msra.mxu0 %v4556
    %5052 = vmatprep.subr.bf16.mxu0 0
    %5053 = vmatpush2.bf16.msra.mxu0 %v4571
    %5054 = vmatprep.subr.bf16.mxu0 0
    %5055 = vmatpush2.bf16.msra.mxu0 %v4570
    %5056 = vmatprep.subr.bf16.mxu0 0
    %5057 = vmatpush2.bf16.msra.mxu0 %v4569
    %5058 = vmatprep.subr.bf16.mxu0 0
    %5059 = vmatpush2.bf16.msra.mxu0 %v4568
    %5060 = vmatprep.subr.bf16.mxu0 0
    %5061 = vmatpush2.bf16.msra.mxu0 %v4567
    %5062 = vmatprep.subr.bf16.mxu0 0
    %5063 = vmatpush2.bf16.msra.mxu0 %v4566
    %5064 = vmatprep.subr.bf16.mxu0 0
    %5065 = vmatpush2.bf16.msra.mxu0 %v4565
    %5066 = vmatprep.subr.bf16.mxu0 0
    %5067 = vmatpush2.bf16.msra.mxu0 %v4564
    %5068 = vmatprep.mubr.bf16.mxu0 %v3909
    %5069 = vmatmul.mubr.bf16.gmra.mxu0 %v3908
    %v5070 = vpop.f32.mrf.mxu0
    %v5071 = vadd.f32 %v5023, %v5070
    %v5072 = vpop.f32.mrf.mxu0
    %v5073 = vpop.f32.mrf.mxu0
    %v5074 = vadd.f32 %v5026, %v5073
    %v5075 = vpop.f32.mrf.mxu0
    %5076 = vmatprep.mubr.bf16.mxu0 %v3925
    %5077 = vmatmul.mubr.bf16.gmra.mxu0 %v3924
    %v5078 = vpop.f32.mrf.mxu0
    %v5079 = vadd.f32 %v5031, %v5078
    %v5080 = vpop.f32.mrf.mxu0
    %v5081 = vpop.f32.mrf.mxu0
    %v5082 = vpop.f32.mrf.mxu0
    %5083 = vdwg.mxu0
    %v5084 = vadd.f32 %v2711, %v5071
    %v5085 = vadd.f32 %v2712, %v5074
    %v5086 = vadd.f32 %v2713, %v5079
    %5087 = vadd.xlane.f32.xlu0 %v5084
    %v5088 = vpop.xlane.xlu0 %5087
    %5089 = vadd.xlane.f32.xlu0 %v5085
    %v5090 = vpop.xlane.xlu0 %5089
    %v5091 = vsel %vm2663, %v5086, 0.0
    %5092 = vadd.xlane.f32.xlu0 %v5091
    %v5093 = vpop.xlane.xlu0 %5092
    %v5094 = vmul.f32 %v5088, %v2667
    %v5095 = vmul.f32 %v5090, %v2667
    %v5096 = vmul.f32 %v5093, %v2667
    %v5097 = vsub.f32 %v5084, %v5094
    %v5098 = vsub.f32 %v5085, %v5095
    %v5099 = vsub.f32 %v5086, %v5096
    %v5100 = vmul.f32 %v5097, %v5097
    %v5101 = vmul.f32 %v5098, %v5098
    %v5102 = vmul.f32 %v5099, %v5099
    %5103 = vadd.xlane.f32.xlu0 %v5100
    %v5104 = vpop.xlane.xlu0 %5103
    %5105 = vadd.xlane.f32.xlu0 %v5101
    %v5106 = vpop.xlane.xlu0 %5105
    %v5107 = vsel %vm2663, %v5102, 0.0
    %5108 = vadd.xlane.f32.xlu0 %v5107
    %v5109 = vpop.xlane.xlu0 %5108
    %v5110 = vmul.f32 %v5104, %v2667
    %v5111 = vmul.f32 %v5106, %v2667
    %v5112 = vmul.f32 %v5109, %v2667
    %v5113 = vadd.f32 %v5110, 1e-05
    %v5114 = vadd.f32 %v5111, 1e-05
    %v5115 = vadd.f32 %v5112, 1e-05
    %v5116 = vrsqrt.pop %v5113
    %v5117 = vrsqrt.pop %v5114
    %v5118 = vrsqrt.pop %v5115
    %v5119 = vmul.f32 %v5097, %v5116
    %v5120 = vmul.f32 %v5098, %v5117
    %v5121 = vmul.f32 %v5099, %v5118
    %v5123 = vlaneseq
    %v5124 = vshrl.u32 %v5123, 7
    %v5125 = vsub.s32 0, %v5124
    %v5126 = vrot.slane %v464, %v5125
    %v5128 = vmul.f32 %v5119, %v5126
    %v5129 = vmul.f32 %v5120, %v5126
    %v5130 = vmul.f32 %v5121, %v5126
    %v5132 = vlaneseq
    %v5133 = vshrl.u32 %v5132, 7
    %v5134 = vsub.s32 0, %v5133
    %v5135 = vrot.slane %v465, %v5134
    %v5137 = vadd.f32 %v5128, %v5135
    %v5138 = vadd.f32 %v5129, %v5135
    %v5139 = vadd.f32 %v5130, %v5135
    %v5140 = vld [vmem:[#allocation22] sm:$0xff]
    %v5141 = vld [vmem:[#allocation22 + $0x8] sm:$0xf]
    %v5142 = vld [vmem:[#allocation22 + $0xc] sm:$0xff]
    %v5143 = vld [vmem:[#allocation22 + $0x14] sm:$0xf]
    %v5144 = vld [vmem:[#allocation22 + $0x18] sm:$0xff]
    %v5145 = vld [vmem:[#allocation22 + $0x20] sm:$0xf]
    %v5146 = vld [vmem:[#allocation22 + $0x24] sm:$0xff]
    %v5147 = vld [vmem:[#allocation22 + $0x2c] sm:$0xf]
    %v5148 = vld [vmem:[#allocation22 + $0x30] sm:$0xff]
    %v5149 = vld [vmem:[#allocation22 + $0x38] sm:$0xf]
    %v5150 = vld [vmem:[#allocation22 + $0x3c] sm:$0xff]
    %v5151 = vld [vmem:[#allocation22 + $0x44] sm:$0xf]
    %v5152 = vld [vmem:[#allocation22 + $0x48] sm:$0xff]
    %v5153 = vld [vmem:[#allocation22 + $0x50] sm:$0xf]
    %v5154 = vld [vmem:[#allocation22 + $0x54] sm:$0xff]
    %v5155 = vld [vmem:[#allocation22 + $0x5c] sm:$0xf]
    %v5156 = vld [vmem:[#allocation22 + $0x60] sm:$0xff]
    %v5157 = vld [vmem:[#allocation22 + $0x68] sm:$0xf]
    %v5158 = vld [vmem:[#allocation22 + $0x6c] sm:$0xff]
    %v5159 = vld [vmem:[#allocation22 + $0x74] sm:$0xf]
    %v5160 = vld [vmem:[#allocation22 + $0x78] sm:$0xff]
    %v5161 = vld [vmem:[#allocation22 + $0x80] sm:$0xf]
    %v5162 = vld [vmem:[#allocation22 + $0x84] sm:$0xff]
    %v5163 = vld [vmem:[#allocation22 + $0x8c] sm:$0xf]
    %v5164 = vld [vmem:[#allocation22 + $0x90] sm:$0xff]
    %v5165 = vld [vmem:[#allocation22 + $0x98] sm:$0xf]
    %v5166 = vld [vmem:[#allocation22 + $0x9c] sm:$0xff]
    %v5167 = vld [vmem:[#allocation22 + $0xa4] sm:$0xf]
    %v5168 = vld [vmem:[#allocation22 + $0xa8] sm:$0xff]
    %v5169 = vld [vmem:[#allocation22 + $0xb0] sm:$0xf]
    %v5170 = vld [vmem:[#allocation22 + $0xb4] sm:$0xff]
    %v5171 = vld [vmem:[#allocation22 + $0xbc] sm:$0xf]
    %v5172 = vld [vmem:[#allocation23] sm:$0x7]
    %v5173 = vld [vmem:[#allocation25] sm:$0xf]
    %v5174 = vld [vmem:[#allocation25 + $0x4] sm:$0xf]
    %v5175 = vld [vmem:[#allocation25 + $0x8] sm:$0xf]
    %v5176 = vld [vmem:[#allocation25 + $0xc] sm:$0xf]
    %v5177 = vld [vmem:[#allocation25 + $0x10] sm:$0xf]
    %v5178 = vld [vmem:[#allocation25 + $0x14] sm:$0xf]
    %v5179 = vld [vmem:[#allocation25 + $0x18] sm:$0xf]
    %v5180 = vld [vmem:[#allocation25 + $0x1c] sm:$0xf]
    %v5181 = vld [vmem:[#allocation25 + $0x20] sm:$0xf]
    %v5182 = vld [vmem:[#allocation25 + $0x24] sm:$0xf]
    %v5183 = vld [vmem:[#allocation25 + $0x28] sm:$0xf]
    %v5184 = vld [vmem:[#allocation25 + $0x2c] sm:$0xf]
    %v5185 = vld [vmem:[#allocation25 + $0x30] sm:$0xf]
    %v5186 = vld [vmem:[#allocation25 + $0x34] sm:$0xf]
    %v5187 = vld [vmem:[#allocation25 + $0x38] sm:$0xf]
    %v5188 = vld [vmem:[#allocation25 + $0x3c] sm:$0xf]
    %v5189 = vld [vmem:[#allocation26] sm:$0x1]
    %v5190 = vld [vmem:[#allocation28] sm:$0x1]
    %v5191 = vld [vmem:[#allocation29] sm:$0x1]
    %v5192 = vld [vmem:[#allocation31] sm:$0x1]
    %v5193 = vld [vmem:[#allocation32] sm:$0x1]
    %v5194 = vld [vmem:[#allocation34] sm:$0xff]
    %v5195 = vld [vmem:[#allocation34 + $0x8] sm:$0xff]
    %v5196 = vld [vmem:[#allocation34 + $0x10] sm:$0xff]
    %v5197 = vld [vmem:[#allocation34 + $0x18] sm:$0xff]
    %v5198 = vld [vmem:[#allocation34 + $0x20] sm:$0xff]
    %v5199 = vld [vmem:[#allocation34 + $0x28] sm:$0xff]
    %v5200 = vld [vmem:[#allocation34 + $0x30] sm:$0xff]
    %v5201 = vld [vmem:[#allocation34 + $0x38] sm:$0xff]
    %v5202 = vld [vmem:[#allocation34 + $0x40] sm:$0xff]
    %v5203 = vld [vmem:[#allocation34 + $0x48] sm:$0xff]
    %v5204 = vld [vmem:[#allocation34 + $0x50] sm:$0xff]
    %v5205 = vld [vmem:[#allocation34 + $0x58] sm:$0xff]
    %v5206 = vld [vmem:[#allocation34 + $0x60] sm:$0xff]
    %v5207 = vld [vmem:[#allocation34 + $0x68] sm:$0xff]
    %v5208 = vld [vmem:[#allocation34 + $0x70] sm:$0xff]
    %v5209 = vld [vmem:[#allocation34 + $0x78] sm:$0xff]
    %v5210 = vld [vmem:[#allocation34 + $0x80] sm:$0xff]
    %v5211 = vld [vmem:[#allocation34 + $0x88] sm:$0xff]
    %v5212 = vld [vmem:[#allocation34 + $0x90] sm:$0xff]
    %v5213 = vld [vmem:[#allocation34 + $0x98] sm:$0xff]
    %v5214 = vld [vmem:[#allocation34 + $0xa0] sm:$0xff]
    %v5215 = vld [vmem:[#allocation34 + $0xa8] sm:$0xff]
    %v5216 = vld [vmem:[#allocation34 + $0xb0] sm:$0xff]
    %v5217 = vld [vmem:[#allocation34 + $0xb8] sm:$0xff]
    %v5218 = vld [vmem:[#allocation34 + $0xc0] sm:$0xff]
    %v5219 = vld [vmem:[#allocation34 + $0xc8] sm:$0xff]
    %v5220 = vld [vmem:[#allocation34 + $0xd0] sm:$0xff]
    %v5221 = vld [vmem:[#allocation34 + $0xd8] sm:$0xff]
    %v5222 = vld [vmem:[#allocation34 + $0xe0] sm:$0xff]
    %v5223 = vld [vmem:[#allocation34 + $0xe8] sm:$0xff]
    %v5224 = vld [vmem:[#allocation34 + $0xf0] sm:$0xff]
    %v5225 = vld [vmem:[#allocation34 + $0xf8] sm:$0xff]
    %v5226 = vld [vmem:[#allocation34 + $0x100] sm:$0xff]
    %v5227 = vld [vmem:[#allocation34 + $0x108] sm:$0xff]
    %v5228 = vld [vmem:[#allocation34 + $0x110] sm:$0xff]
    %v5229 = vld [vmem:[#allocation34 + $0x118] sm:$0xff]
    %v5230 = vld [vmem:[#allocation34 + $0x120] sm:$0xff]
    %v5231 = vld [vmem:[#allocation34 + $0x128] sm:$0xff]
    %v5232 = vld [vmem:[#allocation34 + $0x130] sm:$0xff]
    %v5233 = vld [vmem:[#allocation34 + $0x138] sm:$0xff]
    %v5234 = vld [vmem:[#allocation34 + $0x140] sm:$0xff]
    %v5235 = vld [vmem:[#allocation34 + $0x148] sm:$0xff]
    %v5236 = vld [vmem:[#allocation34 + $0x150] sm:$0xff]
    %v5237 = vld [vmem:[#allocation34 + $0x158] sm:$0xff]
    %v5238 = vld [vmem:[#allocation34 + $0x160] sm:$0xff]
    %v5239 = vld [vmem:[#allocation34 + $0x168] sm:$0xff]
    %v5240 = vld [vmem:[#allocation34 + $0x170] sm:$0xff]
    %v5241 = vld [vmem:[#allocation34 + $0x178] sm:$0xff]
    %v5242 = vld [vmem:[#allocation34 + $0x180] sm:$0xff]
    %v5243 = vld [vmem:[#allocation34 + $0x188] sm:$0xff]
    %v5244 = vld [vmem:[#allocation34 + $0x190] sm:$0xff]
    %v5245 = vld [vmem:[#allocation34 + $0x198] sm:$0xff]
    %v5246 = vld [vmem:[#allocation34 + $0x1a0] sm:$0xff]
    %v5247 = vld [vmem:[#allocation34 + $0x1a8] sm:$0xff]
    %v5248 = vld [vmem:[#allocation34 + $0x1b0] sm:$0xff]
    %v5249 = vld [vmem:[#allocation34 + $0x1b8] sm:$0xff]
    %v5250 = vld [vmem:[#allocation34 + $0x1c0] sm:$0xff]
    %v5251 = vld [vmem:[#allocation34 + $0x1c8] sm:$0xff]
    %v5252 = vld [vmem:[#allocation34 + $0x1d0] sm:$0xff]
    %v5253 = vld [vmem:[#allocation34 + $0x1d8] sm:$0xff]
    %v5254 = vld [vmem:[#allocation34 + $0x1e0] sm:$0xff]
    %v5255 = vld [vmem:[#allocation34 + $0x1e8] sm:$0xff]
    %v5256 = vld [vmem:[#allocation34 + $0x1f0] sm:$0xff]
    %v5257 = vld [vmem:[#allocation34 + $0x1f8] sm:$0xff]
    %v5258 = vld [vmem:[#allocation34 + $0x200] sm:$0xff]
    %v5259 = vld [vmem:[#allocation34 + $0x208] sm:$0xff]
    %v5260 = vld [vmem:[#allocation34 + $0x210] sm:$0xff]
    %v5261 = vld [vmem:[#allocation34 + $0x218] sm:$0xff]
    %v5262 = vld [vmem:[#allocation34 + $0x220] sm:$0xff]
    %v5263 = vld [vmem:[#allocation34 + $0x228] sm:$0xff]
    %v5264 = vld [vmem:[#allocation34 + $0x230] sm:$0xff]
    %v5265 = vld [vmem:[#allocation34 + $0x238] sm:$0xff]
    %v5266 = vld [vmem:[#allocation34 + $0x240] sm:$0xff]
    %v5267 = vld [vmem:[#allocation34 + $0x248] sm:$0xff]
    %v5268 = vld [vmem:[#allocation34 + $0x250] sm:$0xff]
    %v5269 = vld [vmem:[#allocation34 + $0x258] sm:$0xff]
    %v5270 = vld [vmem:[#allocation34 + $0x260] sm:$0xff]
    %v5271 = vld [vmem:[#allocation34 + $0x268] sm:$0xff]
    %v5272 = vld [vmem:[#allocation34 + $0x270] sm:$0xff]
    %v5273 = vld [vmem:[#allocation34 + $0x278] sm:$0xff]
    %v5274 = vld [vmem:[#allocation34 + $0x280] sm:$0xff]
    %v5275 = vld [vmem:[#allocation34 + $0x288] sm:$0xff]
    %v5276 = vld [vmem:[#allocation34 + $0x290] sm:$0xff]
    %v5277 = vld [vmem:[#allocation34 + $0x298] sm:$0xff]
    %v5278 = vld [vmem:[#allocation34 + $0x2a0] sm:$0xff]
    %v5279 = vld [vmem:[#allocation34 + $0x2a8] sm:$0xff]
    %v5280 = vld [vmem:[#allocation34 + $0x2b0] sm:$0xff]
    %v5281 = vld [vmem:[#allocation34 + $0x2b8] sm:$0xff]
    %v5282 = vld [vmem:[#allocation34 + $0x2c0] sm:$0xff]
    %v5283 = vld [vmem:[#allocation34 + $0x2c8] sm:$0xff]
    %v5284 = vld [vmem:[#allocation34 + $0x2d0] sm:$0xff]
    %v5285 = vld [vmem:[#allocation34 + $0x2d8] sm:$0xff]
    %v5286 = vld [vmem:[#allocation34 + $0x2e0] sm:$0xff]
    %v5287 = vld [vmem:[#allocation34 + $0x2e8] sm:$0xff]
    %v5288 = vld [vmem:[#allocation34 + $0x2f0] sm:$0xff]
    %v5289 = vld [vmem:[#allocation34 + $0x2f8] sm:$0xff]
    %v5290 = vld [vmem:[#allocation34 + $0x300] sm:$0xff]
    %v5291 = vld [vmem:[#allocation34 + $0x308] sm:$0xff]
    %v5292 = vld [vmem:[#allocation34 + $0x310] sm:$0xff]
    %v5293 = vld [vmem:[#allocation34 + $0x318] sm:$0xff]
    %v5294 = vld [vmem:[#allocation34 + $0x320] sm:$0xff]
    %v5295 = vld [vmem:[#allocation34 + $0x328] sm:$0xff]
    %v5296 = vld [vmem:[#allocation34 + $0x330] sm:$0xff]
    %v5297 = vld [vmem:[#allocation34 + $0x338] sm:$0xff]
    %v5298 = vld [vmem:[#allocation34 + $0x340] sm:$0xff]
    %v5299 = vld [vmem:[#allocation34 + $0x348] sm:$0xff]
    %v5300 = vld [vmem:[#allocation34 + $0x350] sm:$0xff]
    %v5301 = vld [vmem:[#allocation34 + $0x358] sm:$0xff]
    %v5302 = vld [vmem:[#allocation34 + $0x360] sm:$0xff]
    %v5303 = vld [vmem:[#allocation34 + $0x368] sm:$0xff]
    %v5304 = vld [vmem:[#allocation34 + $0x370] sm:$0xff]
    %v5305 = vld [vmem:[#allocation34 + $0x378] sm:$0xff]
    %v5306 = vld [vmem:[#allocation34 + $0x380] sm:$0xff]
    %v5307 = vld [vmem:[#allocation34 + $0x388] sm:$0xff]
    %v5308 = vld [vmem:[#allocation34 + $0x390] sm:$0xff]
    %v5309 = vld [vmem:[#allocation34 + $0x398] sm:$0xff]
    %v5310 = vld [vmem:[#allocation34 + $0x3a0] sm:$0xff]
    %v5311 = vld [vmem:[#allocation34 + $0x3a8] sm:$0xff]
    %v5312 = vld [vmem:[#allocation34 + $0x3b0] sm:$0xff]
    %v5313 = vld [vmem:[#allocation34 + $0x3b8] sm:$0xff]
    %v5314 = vld [vmem:[#allocation34 + $0x3c0] sm:$0xff]
    %v5315 = vld [vmem:[#allocation34 + $0x3c8] sm:$0xff]
    %v5316 = vld [vmem:[#allocation34 + $0x3d0] sm:$0xff]
    %v5317 = vld [vmem:[#allocation34 + $0x3d8] sm:$0xff]
    %v5318 = vld [vmem:[#allocation34 + $0x3e0] sm:$0xff]
    %v5319 = vld [vmem:[#allocation34 + $0x3e8] sm:$0xff]
    %v5320 = vld [vmem:[#allocation34 + $0x3f0] sm:$0xff]
    %v5321 = vld [vmem:[#allocation34 + $0x3f8] sm:$0xff]
    %v5322 = vld [vmem:[%s45] sm:$0xff]
    %v5323 = vld [vmem:[%s45 + $0x8] sm:$0xff]
    %v5324 = vld [vmem:[#allocation35] sm:$0xf]
    %v5325 = vld [vmem:[#allocation35 + $0x4] sm:$0xf]
    %v5326 = vld [vmem:[#allocation35 + $0x8] sm:$0xf]
    %v5327 = vld [vmem:[#allocation35 + $0xc] sm:$0xf]
    %v5328 = vld [vmem:[#allocation35 + $0x10] sm:$0xf]
    %v5329 = vld [vmem:[#allocation35 + $0x14] sm:$0xf]
    %v5330 = vld [vmem:[#allocation35 + $0x18] sm:$0xf]
    %v5331 = vld [vmem:[#allocation35 + $0x1c] sm:$0xf]
    %v5332 = vld [vmem:[#allocation35 + $0x20] sm:$0xf]
    %v5333 = vld [vmem:[#allocation35 + $0x24] sm:$0xf]
    %v5334 = vld [vmem:[#allocation35 + $0x28] sm:$0xf]
    %v5335 = vld [vmem:[#allocation35 + $0x2c] sm:$0xf]
    %v5336 = vld [vmem:[#allocation35 + $0x30] sm:$0xf]
    %v5337 = vld [vmem:[#allocation35 + $0x34] sm:$0xf]
    %v5338 = vld [vmem:[#allocation35 + $0x38] sm:$0xf]
    %v5339 = vld [vmem:[#allocation35 + $0x3c] sm:$0xf]
    %v5340 = vld [vmem:[#allocation35 + $0x40] sm:$0xf]
    %v5341 = vld [vmem:[#allocation35 + $0x44] sm:$0xf]
    %v5342 = vld [vmem:[#allocation35 + $0x48] sm:$0xf]
    %v5343 = vld [vmem:[#allocation35 + $0x4c] sm:$0xf]
    %v5344 = vld [vmem:[#allocation35 + $0x50] sm:$0xf]
    %v5345 = vld [vmem:[#allocation35 + $0x54] sm:$0xf]
    %v5346 = vld [vmem:[#allocation35 + $0x58] sm:$0xf]
    %v5347 = vld [vmem:[#allocation35 + $0x5c] sm:$0xf]
    %v5348 = vld [vmem:[#allocation35 + $0x60] sm:$0xf]
    %v5349 = vld [vmem:[#allocation35 + $0x64] sm:$0xf]
    %v5350 = vld [vmem:[#allocation35 + $0x68] sm:$0xf]
    %v5351 = vld [vmem:[#allocation35 + $0x6c] sm:$0xf]
    %v5352 = vld [vmem:[#allocation35 + $0x70] sm:$0xf]
    %v5353 = vld [vmem:[#allocation35 + $0x74] sm:$0xf]
    %v5354 = vld [vmem:[#allocation35 + $0x78] sm:$0xf]
    %v5355 = vld [vmem:[#allocation35 + $0x7c] sm:$0xf]
    %v5356 = vld [vmem:[#allocation35 + $0x80] sm:$0xf]
    %v5357 = vld [vmem:[#allocation35 + $0x84] sm:$0xf]
    %v5358 = vld [vmem:[#allocation35 + $0x88] sm:$0xf]
    %v5359 = vld [vmem:[#allocation35 + $0x8c] sm:$0xf]
    %v5360 = vld [vmem:[#allocation35 + $0x90] sm:$0xf]
    %v5361 = vld [vmem:[#allocation35 + $0x94] sm:$0xf]
    %v5362 = vld [vmem:[#allocation35 + $0x98] sm:$0xf]
    %v5363 = vld [vmem:[#allocation35 + $0x9c] sm:$0xf]
    %v5364 = vld [vmem:[#allocation35 + $0xa0] sm:$0xf]
    %v5365 = vld [vmem:[#allocation35 + $0xa4] sm:$0xf]
    %v5366 = vld [vmem:[#allocation35 + $0xa8] sm:$0xf]
    %v5367 = vld [vmem:[#allocation35 + $0xac] sm:$0xf]
    %v5368 = vld [vmem:[#allocation35 + $0xb0] sm:$0xf]
    %v5369 = vld [vmem:[#allocation35 + $0xb4] sm:$0xf]
    %v5370 = vld [vmem:[#allocation35 + $0xb8] sm:$0xf]
    %v5371 = vld [vmem:[#allocation35 + $0xbc] sm:$0xf]
    %v5372 = vld [vmem:[#allocation35 + $0xc0] sm:$0xf]
    %v5373 = vld [vmem:[#allocation35 + $0xc4] sm:$0xf]
    %v5374 = vld [vmem:[#allocation35 + $0xc8] sm:$0xf]
    %v5375 = vld [vmem:[#allocation35 + $0xcc] sm:$0xf]
    %v5376 = vld [vmem:[#allocation35 + $0xd0] sm:$0xf]
    %v5377 = vld [vmem:[#allocation35 + $0xd4] sm:$0xf]
    %v5378 = vld [vmem:[#allocation35 + $0xd8] sm:$0xf]
    %v5379 = vld [vmem:[#allocation35 + $0xdc] sm:$0xf]
    %v5380 = vld [vmem:[#allocation35 + $0xe0] sm:$0xf]
    %v5381 = vld [vmem:[#allocation35 + $0xe4] sm:$0xf]
    %v5382 = vld [vmem:[#allocation35 + $0xe8] sm:$0xf]
    %v5383 = vld [vmem:[#allocation35 + $0xec] sm:$0xf]
    %v5384 = vld [vmem:[#allocation35 + $0xf0] sm:$0xf]
    %v5385 = vld [vmem:[#allocation35 + $0xf4] sm:$0xf]
    %v5386 = vld [vmem:[#allocation35 + $0xf8] sm:$0xf]
    %v5387 = vld [vmem:[#allocation35 + $0xfc] sm:$0xf]
    %v5388 = vld [vmem:[#allocation35 + $0x100] sm:$0xf]
    %v5389 = vld [vmem:[#allocation35 + $0x104] sm:$0xf]
    %v5390 = vld [vmem:[#allocation35 + $0x108] sm:$0xf]
    %v5391 = vld [vmem:[#allocation35 + $0x10c] sm:$0xf]
    %v5392 = vld [vmem:[#allocation35 + $0x110] sm:$0xf]
    %v5393 = vld [vmem:[#allocation35 + $0x114] sm:$0xf]
    %v5394 = vld [vmem:[#allocation35 + $0x118] sm:$0xf]
    %v5395 = vld [vmem:[#allocation35 + $0x11c] sm:$0xf]
    %v5396 = vld [vmem:[#allocation35 + $0x120] sm:$0xf]
    %v5397 = vld [vmem:[#allocation35 + $0x124] sm:$0xf]
    %v5398 = vld [vmem:[#allocation35 + $0x128] sm:$0xf]
    %v5399 = vld [vmem:[#allocation35 + $0x12c] sm:$0xf]
    %v5400 = vld [vmem:[#allocation35 + $0x130] sm:$0xf]
    %v5401 = vld [vmem:[#allocation35 + $0x134] sm:$0xf]
    %v5402 = vld [vmem:[#allocation35 + $0x138] sm:$0xf]
    %v5403 = vld [vmem:[#allocation35 + $0x13c] sm:$0xf]
    %v5404 = vld [vmem:[#allocation35 + $0x140] sm:$0xf]
    %v5405 = vld [vmem:[#allocation35 + $0x144] sm:$0xf]
    %v5406 = vld [vmem:[#allocation35 + $0x148] sm:$0xf]
    %v5407 = vld [vmem:[#allocation35 + $0x14c] sm:$0xf]
    %v5408 = vld [vmem:[#allocation35 + $0x150] sm:$0xf]
    %v5409 = vld [vmem:[#allocation35 + $0x154] sm:$0xf]
    %v5410 = vld [vmem:[#allocation35 + $0x158] sm:$0xf]
    %v5411 = vld [vmem:[#allocation35 + $0x15c] sm:$0xf]
    %v5412 = vld [vmem:[#allocation35 + $0x160] sm:$0xf]
    %v5413 = vld [vmem:[#allocation35 + $0x164] sm:$0xf]
    %v5414 = vld [vmem:[#allocation35 + $0x168] sm:$0xf]
    %v5415 = vld [vmem:[#allocation35 + $0x16c] sm:$0xf]
    %v5416 = vld [vmem:[#allocation35 + $0x170] sm:$0xf]
    %v5417 = vld [vmem:[#allocation35 + $0x174] sm:$0xf]
    %v5418 = vld [vmem:[#allocation35 + $0x178] sm:$0xf]
    %v5419 = vld [vmem:[#allocation35 + $0x17c] sm:$0xf]
    %v5420 = vld [vmem:[#allocation35 + $0x180] sm:$0xf]
    %v5421 = vld [vmem:[#allocation35 + $0x184] sm:$0xf]
    %v5422 = vld [vmem:[#allocation35 + $0x188] sm:$0xf]
    %v5423 = vld [vmem:[#allocation35 + $0x18c] sm:$0xf]
    %v5424 = vld [vmem:[#allocation35 + $0x190] sm:$0xf]
    %v5425 = vld [vmem:[#allocation35 + $0x194] sm:$0xf]
    %v5426 = vld [vmem:[#allocation35 + $0x198] sm:$0xf]
    %v5427 = vld [vmem:[#allocation35 + $0x19c] sm:$0xf]
    %v5428 = vld [vmem:[#allocation35 + $0x1a0] sm:$0xf]
    %v5429 = vld [vmem:[#allocation35 + $0x1a4] sm:$0xf]
    %v5430 = vld [vmem:[#allocation35 + $0x1a8] sm:$0xf]
    %v5431 = vld [vmem:[#allocation35 + $0x1ac] sm:$0xf]
    %v5432 = vld [vmem:[#allocation35 + $0x1b0] sm:$0xf]
    %v5433 = vld [vmem:[#allocation35 + $0x1b4] sm:$0xf]
    %v5434 = vld [vmem:[#allocation35 + $0x1b8] sm:$0xf]
    %v5435 = vld [vmem:[#allocation35 + $0x1bc] sm:$0xf]
    %v5436 = vld [vmem:[#allocation35 + $0x1c0] sm:$0xf]
    %v5437 = vld [vmem:[#allocation35 + $0x1c4] sm:$0xf]
    %v5438 = vld [vmem:[#allocation35 + $0x1c8] sm:$0xf]
    %v5439 = vld [vmem:[#allocation35 + $0x1cc] sm:$0xf]
    %v5440 = vld [vmem:[#allocation35 + $0x1d0] sm:$0xf]
    %v5441 = vld [vmem:[#allocation35 + $0x1d4] sm:$0xf]
    %v5442 = vld [vmem:[#allocation35 + $0x1d8] sm:$0xf]
    %v5443 = vld [vmem:[#allocation35 + $0x1dc] sm:$0xf]
    %v5444 = vld [vmem:[#allocation35 + $0x1e0] sm:$0xf]
    %v5445 = vld [vmem:[#allocation35 + $0x1e4] sm:$0xf]
    %v5446 = vld [vmem:[#allocation35 + $0x1e8] sm:$0xf]
    %v5447 = vld [vmem:[#allocation35 + $0x1ec] sm:$0xf]
    %v5448 = vld [vmem:[#allocation35 + $0x1f0] sm:$0xf]
    %v5449 = vld [vmem:[#allocation35 + $0x1f4] sm:$0xf]
    %v5450 = vld [vmem:[#allocation35 + $0x1f8] sm:$0xf]
    %v5451 = vld [vmem:[#allocation35 + $0x1fc] sm:$0xf]
    %v5452 = vld [vmem:[#allocation35 + $0x200] sm:$0xf]
    %v5453 = vld [vmem:[#allocation35 + $0x204] sm:$0xf]
    %v5454 = vld [vmem:[#allocation35 + $0x208] sm:$0xf]
    %v5455 = vld [vmem:[#allocation35 + $0x20c] sm:$0xf]
    %v5456 = vld [vmem:[#allocation35 + $0x210] sm:$0xf]
    %v5457 = vld [vmem:[#allocation35 + $0x214] sm:$0xf]
    %v5458 = vld [vmem:[#allocation35 + $0x218] sm:$0xf]
    %v5459 = vld [vmem:[#allocation35 + $0x21c] sm:$0xf]
    %v5460 = vld [vmem:[#allocation35 + $0x220] sm:$0xf]
    %v5461 = vld [vmem:[#allocation35 + $0x224] sm:$0xf]
    %v5462 = vld [vmem:[#allocation35 + $0x228] sm:$0xf]
    %v5463 = vld [vmem:[#allocation35 + $0x22c] sm:$0xf]
    %v5464 = vld [vmem:[#allocation35 + $0x230] sm:$0xf]
    %v5465 = vld [vmem:[#allocation35 + $0x234] sm:$0xf]
    %v5466 = vld [vmem:[#allocation35 + $0x238] sm:$0xf]
    %v5467 = vld [vmem:[#allocation35 + $0x23c] sm:$0xf]
    %v5468 = vld [vmem:[#allocation35 + $0x240] sm:$0xf]
    %v5469 = vld [vmem:[#allocation35 + $0x244] sm:$0xf]
    %v5470 = vld [vmem:[#allocation35 + $0x248] sm:$0xf]
    %v5471 = vld [vmem:[#allocation35 + $0x24c] sm:$0xf]
    %v5472 = vld [vmem:[#allocation35 + $0x250] sm:$0xf]
    %v5473 = vld [vmem:[#allocation35 + $0x254] sm:$0xf]
    %v5474 = vld [vmem:[#allocation35 + $0x258] sm:$0xf]
    %v5475 = vld [vmem:[#allocation35 + $0x25c] sm:$0xf]
    %v5476 = vld [vmem:[#allocation35 + $0x260] sm:$0xf]
    %v5477 = vld [vmem:[#allocation35 + $0x264] sm:$0xf]
    %v5478 = vld [vmem:[#allocation35 + $0x268] sm:$0xf]
    %v5479 = vld [vmem:[#allocation35 + $0x26c] sm:$0xf]
    %v5480 = vld [vmem:[#allocation35 + $0x270] sm:$0xf]
    %v5481 = vld [vmem:[#allocation35 + $0x274] sm:$0xf]
    %v5482 = vld [vmem:[#allocation35 + $0x278] sm:$0xf]
    %v5483 = vld [vmem:[#allocation35 + $0x27c] sm:$0xf]
    %v5484 = vld [vmem:[#allocation35 + $0x280] sm:$0xf]
    %v5485 = vld [vmem:[#allocation35 + $0x284] sm:$0xf]
    %v5486 = vld [vmem:[#allocation35 + $0x288] sm:$0xf]
    %v5487 = vld [vmem:[#allocation35 + $0x28c] sm:$0xf]
    %v5488 = vld [vmem:[#allocation35 + $0x290] sm:$0xf]
    %v5489 = vld [vmem:[#allocation35 + $0x294] sm:$0xf]
    %v5490 = vld [vmem:[#allocation35 + $0x298] sm:$0xf]
    %v5491 = vld [vmem:[#allocation35 + $0x29c] sm:$0xf]
    %v5492 = vld [vmem:[#allocation35 + $0x2a0] sm:$0xf]
    %v5493 = vld [vmem:[#allocation35 + $0x2a4] sm:$0xf]
    %v5494 = vld [vmem:[#allocation35 + $0x2a8] sm:$0xf]
    %v5495 = vld [vmem:[#allocation35 + $0x2ac] sm:$0xf]
    %v5496 = vld [vmem:[#allocation35 + $0x2b0] sm:$0xf]
    %v5497 = vld [vmem:[#allocation35 + $0x2b4] sm:$0xf]
    %v5498 = vld [vmem:[#allocation35 + $0x2b8] sm:$0xf]
    %v5499 = vld [vmem:[#allocation35 + $0x2bc] sm:$0xf]
    %v5500 = vld [vmem:[#allocation35 + $0x2c0] sm:$0xf]
    %v5501 = vld [vmem:[#allocation35 + $0x2c4] sm:$0xf]
    %v5502 = vld [vmem:[#allocation35 + $0x2c8] sm:$0xf]
    %v5503 = vld [vmem:[#allocation35 + $0x2cc] sm:$0xf]
    %v5504 = vld [vmem:[#allocation35 + $0x2d0] sm:$0xf]
    %v5505 = vld [vmem:[#allocation35 + $0x2d4] sm:$0xf]
    %v5506 = vld [vmem:[#allocation35 + $0x2d8] sm:$0xf]
    %v5507 = vld [vmem:[#allocation35 + $0x2dc] sm:$0xf]
    %v5508 = vld [vmem:[#allocation35 + $0x2e0] sm:$0xf]
    %v5509 = vld [vmem:[#allocation35 + $0x2e4] sm:$0xf]
    %v5510 = vld [vmem:[#allocation35 + $0x2e8] sm:$0xf]
    %v5511 = vld [vmem:[#allocation35 + $0x2ec] sm:$0xf]
    %v5512 = vld [vmem:[#allocation35 + $0x2f0] sm:$0xf]
    %v5513 = vld [vmem:[#allocation35 + $0x2f4] sm:$0xf]
    %v5514 = vld [vmem:[#allocation35 + $0x2f8] sm:$0xf]
    %v5515 = vld [vmem:[#allocation35 + $0x2fc] sm:$0xf]
    %v5516 = vld [vmem:[#allocation35 + $0x300] sm:$0xf]
    %v5517 = vld [vmem:[#allocation35 + $0x304] sm:$0xf]
    %v5518 = vld [vmem:[#allocation35 + $0x308] sm:$0xf]
    %v5519 = vld [vmem:[#allocation35 + $0x30c] sm:$0xf]
    %v5520 = vld [vmem:[#allocation35 + $0x310] sm:$0xf]
    %v5521 = vld [vmem:[#allocation35 + $0x314] sm:$0xf]
    %v5522 = vld [vmem:[#allocation35 + $0x318] sm:$0xf]
    %v5523 = vld [vmem:[#allocation35 + $0x31c] sm:$0xf]
    %v5524 = vld [vmem:[#allocation35 + $0x320] sm:$0xf]
    %v5525 = vld [vmem:[#allocation35 + $0x324] sm:$0xf]
    %v5526 = vld [vmem:[#allocation35 + $0x328] sm:$0xf]
    %v5527 = vld [vmem:[#allocation35 + $0x32c] sm:$0xf]
    %v5528 = vld [vmem:[#allocation35 + $0x330] sm:$0xf]
    %v5529 = vld [vmem:[#allocation35 + $0x334] sm:$0xf]
    %v5530 = vld [vmem:[#allocation35 + $0x338] sm:$0xf]
    %v5531 = vld [vmem:[#allocation35 + $0x33c] sm:$0xf]
    %v5532 = vld [vmem:[#allocation35 + $0x340] sm:$0xf]
    %v5533 = vld [vmem:[#allocation35 + $0x344] sm:$0xf]
    %v5534 = vld [vmem:[#allocation35 + $0x348] sm:$0xf]
    %v5535 = vld [vmem:[#allocation35 + $0x34c] sm:$0xf]
    %v5536 = vld [vmem:[#allocation35 + $0x350] sm:$0xf]
    %v5537 = vld [vmem:[#allocation35 + $0x354] sm:$0xf]
    %v5538 = vld [vmem:[#allocation35 + $0x358] sm:$0xf]
    %v5539 = vld [vmem:[#allocation35 + $0x35c] sm:$0xf]
    %v5540 = vld [vmem:[#allocation35 + $0x360] sm:$0xf]
    %v5541 = vld [vmem:[#allocation35 + $0x364] sm:$0xf]
    %v5542 = vld [vmem:[#allocation35 + $0x368] sm:$0xf]
    %v5543 = vld [vmem:[#allocation35 + $0x36c] sm:$0xf]
    %v5544 = vld [vmem:[#allocation35 + $0x370] sm:$0xf]
    %v5545 = vld [vmem:[#allocation35 + $0x374] sm:$0xf]
    %v5546 = vld [vmem:[#allocation35 + $0x378] sm:$0xf]
    %v5547 = vld [vmem:[#allocation35 + $0x37c] sm:$0xf]
    %v5548 = vld [vmem:[#allocation35 + $0x380] sm:$0xf]
    %v5549 = vld [vmem:[#allocation35 + $0x384] sm:$0xf]
    %v5550 = vld [vmem:[#allocation35 + $0x388] sm:$0xf]
    %v5551 = vld [vmem:[#allocation35 + $0x38c] sm:$0xf]
    %v5552 = vld [vmem:[#allocation35 + $0x390] sm:$0xf]
    %v5553 = vld [vmem:[#allocation35 + $0x394] sm:$0xf]
    %v5554 = vld [vmem:[#allocation35 + $0x398] sm:$0xf]
    %v5555 = vld [vmem:[#allocation35 + $0x39c] sm:$0xf]
    %v5556 = vld [vmem:[#allocation35 + $0x3a0] sm:$0xf]
    %v5557 = vld [vmem:[#allocation35 + $0x3a4] sm:$0xf]
    %v5558 = vld [vmem:[#allocation35 + $0x3a8] sm:$0xf]
    %v5559 = vld [vmem:[#allocation35 + $0x3ac] sm:$0xf]
    %v5560 = vld [vmem:[#allocation35 + $0x3b0] sm:$0xf]
    %v5561 = vld [vmem:[#allocation35 + $0x3b4] sm:$0xf]
    %v5562 = vld [vmem:[#allocation35 + $0x3b8] sm:$0xf]
    %v5563 = vld [vmem:[#allocation35 + $0x3bc] sm:$0xf]
    %v5564 = vld [vmem:[#allocation35 + $0x3c0] sm:$0xf]
    %v5565 = vld [vmem:[#allocation35 + $0x3c4] sm:$0xf]
    %v5566 = vld [vmem:[#allocation35 + $0x3c8] sm:$0xf]
    %v5567 = vld [vmem:[#allocation35 + $0x3cc] sm:$0xf]
    %v5568 = vld [vmem:[#allocation35 + $0x3d0] sm:$0xf]
    %v5569 = vld [vmem:[#allocation35 + $0x3d4] sm:$0xf]
    %v5570 = vld [vmem:[#allocation35 + $0x3d8] sm:$0xf]
    %v5571 = vld [vmem:[#allocation35 + $0x3dc] sm:$0xf]
    %v5572 = vld [vmem:[#allocation35 + $0x3e0] sm:$0xf]
    %v5573 = vld [vmem:[#allocation35 + $0x3e4] sm:$0xf]
    %v5574 = vld [vmem:[#allocation35 + $0x3e8] sm:$0xf]
    %v5575 = vld [vmem:[#allocation35 + $0x3ec] sm:$0xf]
    %v5576 = vld [vmem:[#allocation35 + $0x3f0] sm:$0xf]
    %v5577 = vld [vmem:[#allocation35 + $0x3f4] sm:$0xf]
    %v5578 = vld [vmem:[#allocation35 + $0x3f8] sm:$0xf]
    %v5579 = vld [vmem:[#allocation35 + $0x3fc] sm:$0xf]
    %v5580 = vld [vmem:[%s49] sm:$0x1]
    %v5581 = vpack.c.bf16 %v5138, %v5137
    %v5582 = vpack.c.bf16 %v5139, %v5139
    %v5584 = vlaneseq
    %v5585 = vshrl.u32 %v5584, 7
    %v5586 = vsub.s32 0, %v5585
    %v5587 = vrot.slane %v5172, %v5586
    %v5588 = vlaneseq
    %v5589 = vshrl.u32 %v5588, 7
    %v5590 = vsub.s32 1, %v5589
    %v5591 = vrot.slane %v5172, %v5590
    %v5592 = vlaneseq
    %v5593 = vshrl.u32 %v5592, 7
    %v5594 = vsub.s32 2, %v5593
    %v5595 = vrot.slane %v5172, %v5594
    %v5631 = vunpack.c.l.b16 %v5140
    %v5632 = vunpack.c.h.b16 %v5140
    %v5633 = vunpack.c.l.b16 %v5141
    %v5634 = vunpack.c.l.b16 %v5142
    %v5635 = vunpack.c.h.b16 %v5142
    %v5636 = vunpack.c.l.b16 %v5143
    %v5637 = vunpack.c.l.b16 %v5144
    %v5638 = vunpack.c.h.b16 %v5144
    %v5639 = vunpack.c.l.b16 %v5145
    %v5640 = vunpack.c.l.b16 %v5146
    %v5641 = vunpack.c.h.b16 %v5146
    %v5642 = vunpack.c.l.b16 %v5147
    %v5643 = vunpack.c.l.b16 %v5148
    %v5644 = vunpack.c.h.b16 %v5148
    %v5645 = vunpack.c.l.b16 %v5149
    %v5646 = vunpack.c.l.b16 %v5150
    %v5647 = vunpack.c.h.b16 %v5150
    %v5648 = vunpack.c.l.b16 %v5151
    %v5649 = vunpack.c.l.b16 %v5152
    %v5650 = vunpack.c.h.b16 %v5152
    %v5651 = vunpack.c.l.b16 %v5153
    %v5652 = vunpack.c.l.b16 %v5154
    %v5653 = vunpack.c.h.b16 %v5154
    %v5654 = vunpack.c.l.b16 %v5155
    %v5655 = vunpack.c.l.b16 %v5156
    %v5656 = vunpack.c.h.b16 %v5156
    %v5657 = vunpack.c.l.b16 %v5157
    %v5658 = vunpack.c.l.b16 %v5158
    %v5659 = vunpack.c.h.b16 %v5158
    %v5660 = vunpack.c.l.b16 %v5159
    %v5661 = vunpack.c.l.b16 %v5160
    %v5662 = vunpack.c.h.b16 %v5160
    %v5663 = vunpack.c.l.b16 %v5161
    %v5664 = vunpack.c.l.b16 %v5162
    %v5665 = vunpack.c.h.b16 %v5162
    %v5666 = vunpack.c.l.b16 %v5163
    %v5667 = vunpack.c.l.b16 %v5164
    %v5668 = vunpack.c.h.b16 %v5164
    %v5669 = vunpack.c.l.b16 %v5165
    %v5670 = vunpack.c.l.b16 %v5166
    %v5671 = vunpack.c.h.b16 %v5166
    %v5672 = vunpack.c.l.b16 %v5167
    %v5673 = vunpack.c.l.b16 %v5168
    %v5674 = vunpack.c.h.b16 %v5168
    %v5675 = vunpack.c.l.b16 %v5169
    %v5676 = vunpack.c.l.b16 %v5170
    %v5677 = vunpack.c.h.b16 %v5170
    %v5678 = vunpack.c.l.b16 %v5171
    %v5679 = vpack.c.b16 %v5634, %v5631
    %v5680 = vpack.c.b16 %v5635, %v5632
    %v5681 = vpack.c.b16 %v5636, %v5633
    %v5682 = vpack.c.b16 %v5640, %v5637
    %v5683 = vpack.c.b16 %v5641, %v5638
    %v5684 = vpack.c.b16 %v5642, %v5639
    %v5685 = vpack.c.b16 %v5646, %v5643
    %v5686 = vpack.c.b16 %v5647, %v5644
    %v5687 = vpack.c.b16 %v5648, %v5645
    %v5688 = vpack.c.b16 %v5652, %v5649
    %v5689 = vpack.c.b16 %v5653, %v5650
    %v5690 = vpack.c.b16 %v5654, %v5651
    %v5691 = vpack.c.b16 %v5658, %v5655
    %v5692 = vpack.c.b16 %v5659, %v5656
    %v5693 = vpack.c.b16 %v5660, %v5657
    %v5694 = vpack.c.b16 %v5664, %v5661
    %v5695 = vpack.c.b16 %v5665, %v5662
    %v5696 = vpack.c.b16 %v5666, %v5663
    %v5697 = vpack.c.b16 %v5670, %v5667
    %v5698 = vpack.c.b16 %v5671, %v5668
    %v5699 = vpack.c.b16 %v5672, %v5669
    %v5700 = vpack.c.b16 %v5676, %v5673
    %v5701 = vpack.c.b16 %v5677, %v5674
    %v5702 = vpack.c.b16 %v5678, %v5675
    %5727 = vmatprep.subr.bf16.mxu0 %v5701
    %5728 = vmatpush1.bf16.msra.mxu0 %v5700
    %5729 = vmatprep.subr.bf16.mxu0 %v5698
    %5730 = vmatpush1.bf16.msra.mxu0 %v5697
    %5731 = vmatprep.subr.bf16.mxu0 %v5695
    %5732 = vmatpush1.bf16.msra.mxu0 %v5694
    %5733 = vmatprep.subr.bf16.mxu0 %v5692
    %5734 = vmatpush1.bf16.msra.mxu0 %v5691
    %5735 = vmatprep.subr.bf16.mxu0 %v5689
    %5736 = vmatpush1.bf16.msra.mxu0 %v5688
    %5737 = vmatprep.subr.bf16.mxu0 %v5686
    %5738 = vmatpush1.bf16.msra.mxu0 %v5685
    %5739 = vmatprep.subr.bf16.mxu0 %v5683
    %5740 = vmatpush1.bf16.msra.mxu0 %v5682
    %5741 = vmatprep.subr.bf16.mxu0 %v5680
    %5742 = vmatpush1.bf16.msra.mxu0 %v5679
    %5743 = vmatprep.subr.bf16.mxu0 0
    %5744 = vmatpush2.bf16.msra.mxu0 0
    %5745 = vmatprep.subr.bf16.mxu0 0
    %5746 = vmatpush2.bf16.msra.mxu0 0
    %5747 = vmatprep.subr.bf16.mxu0 0
    %5748 = vmatpush2.bf16.msra.mxu0 0
    %5749 = vmatprep.subr.bf16.mxu0 0
    %5750 = vmatpush2.bf16.msra.mxu0 0
    %5751 = vmatprep.subr.bf16.mxu0 0
    %5752 = vmatpush2.bf16.msra.mxu0 0
    %5753 = vmatprep.subr.bf16.mxu0 0
    %5754 = vmatpush2.bf16.msra.mxu0 0
    %5755 = vmatprep.subr.bf16.mxu0 0
    %5756 = vmatpush2.bf16.msra.mxu0 0
    %5757 = vmatprep.subr.bf16.mxu0 0
    %5758 = vmatpush2.bf16.msra.mxu0 0
    %5759 = vmatprep.mubr.bf16.mxu0 0
    %5760 = vmatmul.mubr.bf16.gmra.mxu0 %v5581
    %v5761 = vpop.f32.mrf.mxu0
    %v5762 = vadd.f32 %v5587, %v5761
    %v5763 = vpop.f32.mrf.mxu0
    %v5764 = vadd.f32 %v5591, %v5763
    %v5765 = vpop.f32.mrf.mxu0
    %v5766 = vadd.f32 %v5587, %v5765
    %v5767 = vpop.f32.mrf.mxu0
    %v5768 = vadd.f32 %v5591, %v5767
    %5769 = vmatprep.mubr.bf16.mxu0 0
    %5770 = vmatmul.mubr.bf16.gmra.mxu0 %v5582
    %v5771 = vpop.f32.mrf.mxu0
    %v5772 = vadd.f32 %v5587, %v5771
    %v5773 = vpop.f32.mrf.mxu0
    %v5774 = vadd.f32 %v5591, %v5773
    %v5775 = vpop.f32.mrf.mxu0
    %v5776 = vpop.f32.mrf.mxu0
    %5777 = vdwg.mxu0
    %5778 = vmatprep.subr.bf16.mxu0 0
    %5779 = vmatpush1.bf16.msra.mxu0 %v5702
    %5780 = vmatprep.subr.bf16.mxu0 0
    %5781 = vmatpush1.bf16.msra.mxu0 %v5699
    %5782 = vmatprep.subr.bf16.mxu0 0
    %5783 = vmatpush1.bf16.msra.mxu0 %v5696
    %5784 = vmatprep.subr.bf16.mxu0 0
    %5785 = vmatpush1.bf16.msra.mxu0 %v5693
    %5786 = vmatprep.subr.bf16.mxu0 0
    %5787 = vmatpush1.bf16.msra.mxu0 %v5690
    %5788 = vmatprep.subr.bf16.mxu0 0
    %5789 = vmatpush1.bf16.msra.mxu0 %v5687
    %5790 = vmatprep.subr.bf16.mxu0 0
    %5791 = vmatpush1.bf16.msra.mxu0 %v5684
    %5792 = vmatprep.subr.bf16.mxu0 0
    %5793 = vmatpush1.bf16.msra.mxu0 %v5681
    %5794 = vmatprep.subr.bf16.mxu0 0
    %5795 = vmatpush2.bf16.msra.mxu0 0
    %5796 = vmatprep.subr.bf16.mxu0 0
    %5797 = vmatpush2.bf16.msra.mxu0 0
    %5798 = vmatprep.subr.bf16.mxu0 0
    %5799 = vmatpush2.bf16.msra.mxu0 0
    %5800 = vmatprep.subr.bf16.mxu0 0
    %5801 = vmatpush2.bf16.msra.mxu0 0
    %5802 = vmatprep.subr.bf16.mxu0 0
    %5803 = vmatpush2.bf16.msra.mxu0 0
    %5804 = vmatprep.subr.bf16.mxu0 0
    %5805 = vmatpush2.bf16.msra.mxu0 0
    %5806 = vmatprep.subr.bf16.mxu0 0
    %5807 = vmatpush2.bf16.msra.mxu0 0
    %5808 = vmatprep.subr.bf16.mxu0 0
    %5809 = vmatpush2.bf16.msra.mxu0 0
    %5810 = vmatprep.mubr.bf16.mxu0 0
    %5811 = vmatmul.mubr.bf16.gmra.mxu0 %v5581
    %v5812 = vpop.f32.mrf.mxu0
    %v5813 = vadd.f32 %v5595, %v5812
    %v5814 = vpop.f32.mrf.mxu0
    %v5815 = vpop.f32.mrf.mxu0
    %v5816 = vadd.f32 %v5595, %v5815
    %v5817 = vpop.f32.mrf.mxu0
    %5818 = vmatprep.mubr.bf16.mxu0 0
    %5819 = vmatmul.mubr.bf16.gmra.mxu0 %v5582
    %v5820 = vpop.f32.mrf.mxu0
    %v5821 = vadd.f32 %v5595, %v5820
    %v5822 = vpop.f32.mrf.mxu0
    %v5823 = vpop.f32.mrf.mxu0
    %v5824 = vpop.f32.mrf.mxu0
    %5825 = vdwg.mxu0
    %v5829 = vcombine.high %v5762, %v5762
    %v5831 = vunpack.c.l.s4 1983009808
    %v5832 = vunpack.c.0.s8 %v5831
    %v5833 = vlaneseq
    %v5834 = vshrl.u32 %v5833, 7
    %v5835 = vsub.s32 %v5832, %v5834
    %v5836 = vrot.slane %v5762, %v5835
    %v5838 = vunpack.c.l.s4 1983009808
    %v5839 = vunpack.c.0.s8 %v5838
    %v5840 = vlaneseq
    %v5841 = vshrl.u32 %v5840, 7
    %v5842 = vsub.s32 %v5839, %v5841
    %v5843 = vrot.slane %v5829, %v5842
    %v5844 = vcombine.high %v5836, %v5836
    %v5845 = vcombine.high %v5843, %v5843
    %v5846 = vcombine.high %v5766, %v5766
    %v5848 = vunpack.c.l.s4 1983009808
    %v5849 = vunpack.c.0.s8 %v5848
    %v5850 = vlaneseq
    %v5851 = vshrl.u32 %v5850, 7
    %v5852 = vsub.s32 %v5849, %v5851
    %v5853 = vrot.slane %v5766, %v5852
    %v5855 = vunpack.c.l.s4 1983009808
    %v5856 = vunpack.c.0.s8 %v5855
    %v5857 = vlaneseq
    %v5858 = vshrl.u32 %v5857, 7
    %v5859 = vsub.s32 %v5856, %v5858
    %v5860 = vrot.slane %v5846, %v5859
    %v5861 = vcombine.high %v5853, %v5853
    %v5862 = vcombine.high %v5860, %v5860
    %v5864 = vunpack.c.l.s4 1983009808
    %v5865 = vunpack.c.0.s8 %v5864
    %v5866 = vlaneseq
    %v5867 = vshrl.u32 %v5866, 7
    %v5868 = vsub.s32 %v5865, %v5867
    %v5869 = vrot.slane %v5772, %v5868
    %v5870 = vcombine.high %v5869, %v5869
    %v5871 = vcombine.low %v5836, %v5844
    %v5872 = vcombine.low %v5843, %v5845
    %v5874 = vunpack.c.l.s4 1983009808
    %v5875 = vunpack.c.0.s8 %v5874
    %v5876 = vlaneseq
    %v5877 = vshrl.u32 %v5876, 7
    %v5878 = vsub.s32 %v5875, %v5877
    %v5879 = vrot.slane %v5871, %v5878
    %v5881 = vunpack.c.l.s4 1983009808
    %v5882 = vunpack.c.0.s8 %v5881
    %v5883 = vlaneseq
    %v5884 = vshrl.u32 %v5883, 7
    %v5885 = vsub.s32 %v5882, %v5884
    %v5886 = vrot.slane %v5872, %v5885
    %v5887 = vcombine.low %v5879, %v5886
    %v5889 = vunpack.c.l.s4 1983009808
    %v5890 = vunpack.c.0.s8 %v5889
    %v5891 = vlaneseq
    %v5892 = vshrl.u32 %v5891, 7
    %v5893 = vsub.s32 %v5890, %v5892
    %v5894 = vrot.slane %v5853, %v5893
    %v5895 = vcombine.low %v5861, %v5860
    %v5896 = vcombine.low %v5862, %v5869
    %v5898 = vunpack.c.l.s4 1983009808
    %v5899 = vunpack.c.0.s8 %v5898
    %v5900 = vlaneseq
    %v5901 = vshrl.u32 %v5900, 7
    %v5902 = vsub.s32 %v5899, %v5901
    %v5903 = vrot.slane %v5895, %v5902
    %v5905 = vunpack.c.l.s4 1983009808
    %v5906 = vunpack.c.0.s8 %v5905
    %v5907 = vlaneseq
    %v5908 = vshrl.u32 %v5907, 7
    %v5909 = vsub.s32 %v5906, %v5908
    %v5910 = vrot.slane %v5896, %v5909
    %v5911 = vcombine.low %v5903, %v5910
    %v5913 = vunpack.c.l.s4 1983009808
    %v5914 = vunpack.c.0.s8 %v5913
    %v5915 = vlaneseq
    %v5916 = vshrl.u32 %v5915, 7
    %v5917 = vsub.s32 %v5914, %v5916
    %v5918 = vrot.slane %v5870, %v5917
    %v5923 = vpack.c.bf16 %v5894, %v5887
    %v5924 = vpack.c.bf16 %v5918, %v5911
    %v5928 = vcombine.high %v5764, %v5764
    %v5930 = vunpack.c.l.s4 1983009808
    %v5931 = vunpack.c.0.s8 %v5930
    %v5932 = vlaneseq
    %v5933 = vshrl.u32 %v5932, 7
    %v5934 = vsub.s32 %v5931, %v5933
    %v5935 = vrot.slane %v5764, %v5934
    %v5937 = vunpack.c.l.s4 1983009808
    %v5938 = vunpack.c.0.s8 %v5937
    %v5939 = vlaneseq
    %v5940 = vshrl.u32 %v5939, 7
    %v5941 = vsub.s32 %v5938, %v5940
    %v5942 = vrot.slane %v5928, %v5941
    %v5943 = vcombine.high %v5935, %v5935
    %v5944 = vcombine.high %v5942, %v5942
    %v5945 = vcombine.high %v5768, %v5768
    %v5947 = vunpack.c.l.s4 1983009808
    %v5948 = vunpack.c.0.s8 %v5947
    %v5949 = vlaneseq
    %v5950 = vshrl.u32 %v5949, 7
    %v5951 = vsub.s32 %v5948, %v5950
    %v5952 = vrot.slane %v5768, %v5951
    %v5954 = vunpack.c.l.s4 1983009808
    %v5955 = vunpack.c.0.s8 %v5954
    %v5956 = vlaneseq
    %v5957 = vshrl.u32 %v5956, 7
    %v5958 = vsub.s32 %v5955, %v5957
    %v5959 = vrot.slane %v5945, %v5958
    %v5960 = vcombine.high %v5952, %v5952
    %v5961 = vcombine.high %v5959, %v5959
    %v5963 = vunpack.c.l.s4 1983009808
    %v5964 = vunpack.c.0.s8 %v5963
    %v5965 = vlaneseq
    %v5966 = vshrl.u32 %v5965, 7
    %v5967 = vsub.s32 %v5964, %v5966
    %v5968 = vrot.slane %v5774, %v5967
    %v5969 = vcombine.high %v5968, %v5968
    %v5970 = vcombine.low %v5935, %v5943
    %v5971 = vcombine.low %v5942, %v5944
    %v5973 = vunpack.c.l.s4 1983009808
    %v5974 = vunpack.c.0.s8 %v5973
    %v5975 = vlaneseq
    %v5976 = vshrl.u32 %v5975, 7
    %v5977 = vsub.s32 %v5974, %v5976
    %v5978 = vrot.slane %v5970, %v5977
    %v5980 = vunpack.c.l.s4 1983009808
    %v5981 = vunpack.c.0.s8 %v5980
    %v5982 = vlaneseq
    %v5983 = vshrl.u32 %v5982, 7
    %v5984 = vsub.s32 %v5981, %v5983
    %v5985 = vrot.slane %v5971, %v5984
    %v5986 = vcombine.low %v5978, %v5985
    %v5988 = vunpack.c.l.s4 1983009808
    %v5989 = vunpack.c.0.s8 %v5988
    %v5990 = vlaneseq
    %v5991 = vshrl.u32 %v5990, 7
    %v5992 = vsub.s32 %v5989, %v5991
    %v5993 = vrot.slane %v5952, %v5992
    %v5994 = vcombine.low %v5960, %v5959
    %v5995 = vcombine.low %v5961, %v5968
    %v5997 = vunpack.c.l.s4 1983009808
    %v5998 = vunpack.c.0.s8 %v5997
    %v5999 = vlaneseq
    %v6000 = vshrl.u32 %v5999, 7
    %v6001 = vsub.s32 %v5998, %v6000
    %v6002 = vrot.slane %v5994, %v6001
    %v6004 = vunpack.c.l.s4 1983009808
    %v6005 = vunpack.c.0.s8 %v6004
    %v6006 = vlaneseq
    %v6007 = vshrl.u32 %v6006, 7
    %v6008 = vsub.s32 %v6005, %v6007
    %v6009 = vrot.slane %v5995, %v6008
    %v6010 = vcombine.low %v6002, %v6009
    %v6012 = vunpack.c.l.s4 1983009808
    %v6013 = vunpack.c.0.s8 %v6012
    %v6014 = vlaneseq
    %v6015 = vshrl.u32 %v6014, 7
    %v6016 = vsub.s32 %v6013, %v6015
    %v6017 = vrot.slane %v5969, %v6016
    %v6022 = vpack.c.bf16 %v5993, %v5986
    %v6023 = vpack.c.bf16 %v6017, %v6010
    %v6027 = vcombine.high %v5813, %v5813
    %v6029 = vunpack.c.l.s4 1983009808
    %v6030 = vunpack.c.0.s8 %v6029
    %v6031 = vlaneseq
    %v6032 = vshrl.u32 %v6031, 7
    %v6033 = vsub.s32 %v6030, %v6032
    %v6034 = vrot.slane %v5813, %v6033
    %v6036 = vunpack.c.l.s4 1983009808
    %v6037 = vunpack.c.0.s8 %v6036
    %v6038 = vlaneseq
    %v6039 = vshrl.u32 %v6038, 7
    %v6040 = vsub.s32 %v6037, %v6039
    %v6041 = vrot.slane %v6027, %v6040
    %v6042 = vcombine.high %v6034, %v6034
    %v6043 = vcombine.high %v6041, %v6041
    %v6044 = vcombine.high %v5816, %v5816
    %v6046 = vunpack.c.l.s4 1983009808
    %v6047 = vunpack.c.0.s8 %v6046
    %v6048 = vlaneseq
    %v6049 = vshrl.u32 %v6048, 7
    %v6050 = vsub.s32 %v6047, %v6049
    %v6051 = vrot.slane %v5816, %v6050
    %v6053 = vunpack.c.l.s4 1983009808
    %v6054 = vunpack.c.0.s8 %v6053
    %v6055 = vlaneseq
    %v6056 = vshrl.u32 %v6055, 7
    %v6057 = vsub.s32 %v6054, %v6056
    %v6058 = vrot.slane %v6044, %v6057
    %v6059 = vcombine.high %v6051, %v6051
    %v6060 = vcombine.high %v6058, %v6058
    %v6062 = vunpack.c.l.s4 1983009808
    %v6063 = vunpack.c.0.s8 %v6062
    %v6064 = vlaneseq
    %v6065 = vshrl.u32 %v6064, 7
    %v6066 = vsub.s32 %v6063, %v6065
    %v6067 = vrot.slane %v5821, %v6066
    %v6068 = vcombine.high %v6067, %v6067
    %v6069 = vcombine.low %v6034, %v6042
    %v6070 = vcombine.low %v6041, %v6043
    %v6072 = vunpack.c.l.s4 1983009808
    %v6073 = vunpack.c.0.s8 %v6072
    %v6074 = vlaneseq
    %v6075 = vshrl.u32 %v6074, 7
    %v6076 = vsub.s32 %v6073, %v6075
    %v6077 = vrot.slane %v6069, %v6076
    %v6079 = vunpack.c.l.s4 1983009808
    %v6080 = vunpack.c.0.s8 %v6079
    %v6081 = vlaneseq
    %v6082 = vshrl.u32 %v6081, 7
    %v6083 = vsub.s32 %v6080, %v6082
    %v6084 = vrot.slane %v6070, %v6083
    %v6085 = vcombine.low %v6077, %v6084
    %v6087 = vunpack.c.l.s4 1983009808
    %v6088 = vunpack.c.0.s8 %v6087
    %v6089 = vlaneseq
    %v6090 = vshrl.u32 %v6089, 7
    %v6091 = vsub.s32 %v6088, %v6090
    %v6092 = vrot.slane %v6051, %v6091
    %v6093 = vcombine.low %v6059, %v6058
    %v6094 = vcombine.low %v6060, %v6067
    %v6096 = vunpack.c.l.s4 1983009808
    %v6097 = vunpack.c.0.s8 %v6096
    %v6098 = vlaneseq
    %v6099 = vshrl.u32 %v6098, 7
    %v6100 = vsub.s32 %v6097, %v6099
    %v6101 = vrot.slane %v6093, %v6100
    %v6103 = vunpack.c.l.s4 1983009808
    %v6104 = vunpack.c.0.s8 %v6103
    %v6105 = vlaneseq
    %v6106 = vshrl.u32 %v6105, 7
    %v6107 = vsub.s32 %v6104, %v6106
    %v6108 = vrot.slane %v6094, %v6107
    %v6109 = vcombine.low %v6101, %v6108
    %v6111 = vunpack.c.l.s4 1983009808
    %v6112 = vunpack.c.0.s8 %v6111
    %v6113 = vlaneseq
    %v6114 = vshrl.u32 %v6113, 7
    %v6115 = vsub.s32 %v6112, %v6114
    %v6116 = vrot.slane %v6068, %v6115
    %v6121 = vpack.c.bf16 %v6092, %v6085
    %v6122 = vpack.c.bf16 %v6116, %v6109
    %v6124 = vsel %vm1395, %v5923, 0
    %v6127 = vsel %vm1395, %v6022, 0
    %6129 = vmatprep.subr.bf16.mxu0 0
    %6130 = vmatpush1.bf16.xpose.msra.mxu0 0
    %6131 = vmatprep.subr.bf16.mxu0 0
    %6132 = vmatpush1.bf16.xpose.msra.mxu0 0
    %6133 = vmatprep.subr.bf16.mxu0 0
    %6134 = vmatpush1.bf16.xpose.msra.mxu0 0
    %6135 = vmatprep.subr.bf16.mxu0 0
    %6136 = vmatpush1.bf16.xpose.msra.mxu0 0
    %6137 = vmatprep.subr.bf16.mxu0 0
    %6138 = vmatpush1.bf16.xpose.msra.mxu0 0
    %6139 = vmatprep.subr.bf16.mxu0 0
    %6140 = vmatpush1.bf16.xpose.msra.mxu0 0
    %6141 = vmatprep.subr.bf16.mxu0 0
    %6142 = vmatpush1.bf16.xpose.msra.mxu0 0
    %6143 = vmatprep.subr.bf16.mxu0 0
    %6144 = vmatpush1.bf16.xpose.msra.mxu0 %v6127
    %6145 = vmatprep.subr.bf16.mxu0 0
    %6146 = vmatpush2.bf16.xpose.msra.mxu0 0
    %6147 = vmatprep.subr.bf16.mxu0 0
    %6148 = vmatpush2.bf16.xpose.msra.mxu0 0
    %6149 = vmatprep.subr.bf16.mxu0 0
    %6150 = vmatpush2.bf16.xpose.msra.mxu0 0
    %6151 = vmatprep.subr.bf16.mxu0 0
    %6152 = vmatpush2.bf16.xpose.msra.mxu0 0
    %6153 = vmatprep.subr.bf16.mxu0 0
    %6154 = vmatpush2.bf16.xpose.msra.mxu0 0
    %6155 = vmatprep.subr.bf16.mxu0 0
    %6156 = vmatpush2.bf16.xpose.msra.mxu0 0
    %6157 = vmatprep.subr.bf16.mxu0 0
    %6158 = vmatpush2.bf16.xpose.msra.mxu0 0
    %6159 = vmatprep.subr.bf16.mxu0 0
    %6160 = vmatpush2.bf16.xpose.msra.mxu0 0
    %6161 = vmatprep.mubr.bf16.mxu0 0
    %6162 = vmatmul.mubr.bf16.gmra.mxu0 %v6124
    %v6163 = vpop.f32.mrf.mxu0
    %v6164 = vadd.f32 0.0, %v6163
    %v6165 = vpop.f32.mrf.mxu0
    %v6166 = vpop.f32.mrf.mxu0
    %v6167 = vadd.f32 0.0, %v6166
    %v6168 = vpop.f32.mrf.mxu0
    %6169 = vdwg.mxu0
    %v6171 = vsel %vm1395, %v5924, 0
    %v6174 = vsel %vm1395, %v6023, 0
    %6176 = vmatprep.subr.bf16.mxu0 0
    %6177 = vmatpush1.bf16.xpose.msra.mxu0 0
    %6178 = vmatprep.subr.bf16.mxu0 0
    %6179 = vmatpush1.bf16.xpose.msra.mxu0 0
    %6180 = vmatprep.subr.bf16.mxu0 0
    %6181 = vmatpush1.bf16.xpose.msra.mxu0 0
    %6182 = vmatprep.subr.bf16.mxu0 0
    %6183 = vmatpush1.bf16.xpose.msra.mxu0 0
    %6184 = vmatprep.subr.bf16.mxu0 0
    %6185 = vmatpush1.bf16.xpose.msra.mxu0 0
    %6186 = vmatprep.subr.bf16.mxu0 0
    %6187 = vmatpush1.bf16.xpose.msra.mxu0 0
    %6188 = vmatprep.subr.bf16.mxu0 0
    %6189 = vmatpush1.bf16.xpose.msra.mxu0 0
    %6190 = vmatprep.subr.bf16.mxu0 0
    %6191 = vmatpush1.bf16.xpose.msra.mxu0 %v6174
    %6192 = vmatprep.subr.bf16.mxu0 0
    %6193 = vmatpush2.bf16.xpose.msra.mxu0 0
    %6194 = vmatprep.subr.bf16.mxu0 0
    %6195 = vmatpush2.bf16.xpose.msra.mxu0 0
    %6196 = vmatprep.subr.bf16.mxu0 0
    %6197 = vmatpush2.bf16.xpose.msra.mxu0 0
    %6198 = vmatprep.subr.bf16.mxu0 0
    %6199 = vmatpush2.bf16.xpose.msra.mxu0 0
    %6200 = vmatprep.subr.bf16.mxu0 0
    %6201 = vmatpush2.bf16.xpose.msra.mxu0 0
    %6202 = vmatprep.subr.bf16.mxu0 0
    %6203 = vmatpush2.bf16.xpose.msra.mxu0 0
    %6204 = vmatprep.subr.bf16.mxu0 0
    %6205 = vmatpush2.bf16.xpose.msra.mxu0 0
    %6206 = vmatprep.subr.bf16.mxu0 0
    %6207 = vmatpush2.bf16.xpose.msra.mxu0 0
    %6208 = vmatprep.mubr.bf16.mxu0 0
    %6209 = vmatmul.mubr.bf16.gmra.mxu0 %v6171
    %v6210 = vpop.f32.mrf.mxu0
    %v6211 = vadd.f32 0.0, %v6210
    %v6212 = vpop.f32.mrf.mxu0
    %v6213 = vpop.f32.mrf.mxu0
    %v6214 = vadd.f32 0.0, %v6213
    %v6215 = vpop.f32.mrf.mxu0
    %6216 = vdwg.mxu0
    %v6217 = vmul.f32 %v6164, 0.17677669
    %v6218 = vmul.f32 %v6167, 0.17677669
    %v6219 = vmul.f32 %v6211, 0.17677669
    %v6220 = vmul.f32 %v6214, 0.17677669
    %v6221 = vsel %vm1494, %v6217, -inf
    %6222 = vmax.xlane.f32.xlu0 %v6221
    %v6223 = vpop.xlane.xlu0 %6222
    %v6224 = vsel %vm1498, %v6218, -inf
    %6225 = vmax.xlane.f32.xlu0 %v6224
    %v6226 = vpop.xlane.xlu0 %6225
    %v6227 = vsel %vm1494, %v6219, -inf
    %6228 = vmax.xlane.f32.xlu0 %v6227
    %v6229 = vpop.xlane.xlu0 %6228
    %v6230 = vsel %vm1498, %v6220, -inf
    %6231 = vmax.xlane.f32.xlu0 %v6230
    %v6232 = vpop.xlane.xlu0 %6231
    %v6233 = vsub.f32 %v6217, %v6223
    %v6234 = vsub.f32 %v6218, %v6226
    %v6235 = vsub.f32 %v6219, %v6229
    %v6236 = vsub.f32 %v6220, %v6232
    %v6237 = vmul.f32 %v6233, 1.442695
    %v6238 = vpow.pop %v6237
    %v6239 = vmul.f32 %v6234, 1.442695
    %v6240 = vpow.pop %v6239
    %v6241 = vmul.f32 %v6235, 1.442695
    %v6242 = vpow.pop %v6241
    %v6243 = vmul.f32 %v6236, 1.442695
    %v6244 = vpow.pop %v6243
    %v6245 = vsel %vm1494, %v6238, 0.0
    %6246 = vadd.xlane.f32.xlu0 %v6245
    %v6247 = vpop.xlane.xlu0 %6246
    %v6248 = vsel %vm1498, %v6240, 0.0
    %6249 = vadd.xlane.f32.xlu0 %v6248
    %v6250 = vpop.xlane.xlu0 %6249
    %v6251 = vsel %vm1494, %v6242, 0.0
    %6252 = vadd.xlane.f32.xlu0 %v6251
    %v6253 = vpop.xlane.xlu0 %6252
    %v6254 = vsel %vm1498, %v6244, 0.0
    %6255 = vadd.xlane.f32.xlu0 %v6254
    %v6256 = vpop.xlane.xlu0 %6255
    %v6257 = vrcp.pop %v6247
    %v6258 = vrcp.pop %v6250
    %v6259 = vrcp.pop %v6253
    %v6260 = vrcp.pop %v6256
    %v6261 = vmul.f32 %v6238, %v6257
    %v6262 = vmul.f32 %v6240, %v6258
    %v6263 = vmul.f32 %v6242, %v6259
    %v6264 = vmul.f32 %v6244, %v6260
    %v6265 = vpack.c.bf16 %v6262, %v6261
    %v6266 = vpack.c.bf16 %v6264, %v6263
    %v6268 = vsel %vm1494, %v6265, 0
    %v6271 = vsel %vm1545, %v6121, 0
    %6273 = vmatprep.subr.bf16.mxu0 0
    %6274 = vmatpush1.bf16.msra.mxu0 0
    %6275 = vmatprep.subr.bf16.mxu0 0
    %6276 = vmatpush1.bf16.msra.mxu0 0
    %6277 = vmatprep.subr.bf16.mxu0 0
    %6278 = vmatpush1.bf16.msra.mxu0 0
    %6279 = vmatprep.subr.bf16.mxu0 0
    %6280 = vmatpush1.bf16.msra.mxu0 0
    %6281 = vmatprep.subr.bf16.mxu0 0
    %6282 = vmatpush1.bf16.msra.mxu0 0
    %6283 = vmatprep.subr.bf16.mxu0 0
    %6284 = vmatpush1.bf16.msra.mxu0 0
    %6285 = vmatprep.subr.bf16.mxu0 0
    %6286 = vmatpush1.bf16.msra.mxu0 0
    %6287 = vmatprep.subr.bf16.mxu0 0
    %6288 = vmatpush1.bf16.msra.mxu0 %v6271
    %6289 = vmatprep.subr.bf16.mxu0 0
    %6290 = vmatpush2.bf16.msra.mxu0 0
    %6291 = vmatprep.subr.bf16.mxu0 0
    %6292 = vmatpush2.bf16.msra.mxu0 0
    %6293 = vmatprep.subr.bf16.mxu0 0
    %6294 = vmatpush2.bf16.msra.mxu0 0
    %6295 = vmatprep.subr.bf16.mxu0 0
    %6296 = vmatpush2.bf16.msra.mxu0 0
    %6297 = vmatprep.subr.bf16.mxu0 0
    %6298 = vmatpush2.bf16.msra.mxu0 0
    %6299 = vmatprep.subr.bf16.mxu0 0
    %6300 = vmatpush2.bf16.msra.mxu0 0
    %6301 = vmatprep.subr.bf16.mxu0 0
    %6302 = vmatpush2.bf16.msra.mxu0 0
    %6303 = vmatprep.subr.bf16.mxu0 0
    %6304 = vmatpush2.bf16.msra.mxu0 0
    %6305 = vmatprep.mubr.bf16.mxu0 0
    %6306 = vmatmul.mubr.bf16.gmra.mxu0 %v6268
    %v6307 = vpop.f32.mrf.mxu0
    %v6308 = vadd.f32 0.0, %v6307
    %v6309 = vpop.f32.mrf.mxu0
    %v6310 = vpop.f32.mrf.mxu0
    %v6311 = vadd.f32 0.0, %v6310
    %v6312 = vpop.f32.mrf.mxu0
    %6313 = vdwg.mxu0
    %v6315 = vsel %vm1494, %v6266, 0
    %v6318 = vsel %vm1545, %v6122, 0
    %6320 = vmatprep.subr.bf16.mxu0 0
    %6321 = vmatpush1.bf16.msra.mxu0 0
    %6322 = vmatprep.subr.bf16.mxu0 0
    %6323 = vmatpush1.bf16.msra.mxu0 0
    %6324 = vmatprep.subr.bf16.mxu0 0
    %6325 = vmatpush1.bf16.msra.mxu0 0
    %6326 = vmatprep.subr.bf16.mxu0 0
    %6327 = vmatpush1.bf16.msra.mxu0 0
    %6328 = vmatprep.subr.bf16.mxu0 0
    %6329 = vmatpush1.bf16.msra.mxu0 0
    %6330 = vmatprep.subr.bf16.mxu0 0
    %6331 = vmatpush1.bf16.msra.mxu0 0
    %6332 = vmatprep.subr.bf16.mxu0 0
    %6333 = vmatpush1.bf16.msra.mxu0 0
    %6334 = vmatprep.subr.bf16.mxu0 0
    %6335 = vmatpush1.bf16.msra.mxu0 %v6318
    %6336 = vmatprep.subr.bf16.mxu0 0
    %6337 = vmatpush2.bf16.msra.mxu0 0
    %6338 = vmatprep.subr.bf16.mxu0 0
    %6339 = vmatpush2.bf16.msra.mxu0 0
    %6340 = vmatprep.subr.bf16.mxu0 0
    %6341 = vmatpush2.bf16.msra.mxu0 0
    %6342 = vmatprep.subr.bf16.mxu0 0
    %6343 = vmatpush2.bf16.msra.mxu0 0
    %6344 = vmatprep.subr.bf16.mxu0 0
    %6345 = vmatpush2.bf16.msra.mxu0 0
    %6346 = vmatprep.subr.bf16.mxu0 0
    %6347 = vmatpush2.bf16.msra.mxu0 0
    %6348 = vmatprep.subr.bf16.mxu0 0
    %6349 = vmatpush2.bf16.msra.mxu0 0
    %6350 = vmatprep.subr.bf16.mxu0 0
    %6351 = vmatpush2.bf16.msra.mxu0 0
    %6352 = vmatprep.mubr.bf16.mxu0 0
    %6353 = vmatmul.mubr.bf16.gmra.mxu0 %v6315
    %v6354 = vpop.f32.mrf.mxu0
    %v6355 = vadd.f32 0.0, %v6354
    %v6356 = vpop.f32.mrf.mxu0
    %v6357 = vpop.f32.mrf.mxu0
    %v6358 = vadd.f32 0.0, %v6357
    %v6359 = vpop.f32.mrf.mxu0
    %6360 = vdwg.mxu0
    %6362 = vrot.lane.b32.xlu0 %v5923, 96
    %v6363 = vpop.permute.xlu0 %6362
    %6365 = vrot.lane.b32.xlu0 %v6022, 96
    %v6366 = vpop.permute.xlu0 %6365
    %v6368 = vsel %vm1395, %v6363, 0
    %v6371 = vsel %vm1395, %v6366, 0
    %6373 = vmatprep.subr.bf16.mxu0 0
    %6374 = vmatpush1.bf16.xpose.msra.mxu0 0
    %6375 = vmatprep.subr.bf16.mxu0 0
    %6376 = vmatpush1.bf16.xpose.msra.mxu0 0
    %6377 = vmatprep.subr.bf16.mxu0 0
    %6378 = vmatpush1.bf16.xpose.msra.mxu0 0
    %6379 = vmatprep.subr.bf16.mxu0 0
    %6380 = vmatpush1.bf16.xpose.msra.mxu0 0
    %6381 = vmatprep.subr.bf16.mxu0 0
    %6382 = vmatpush1.bf16.xpose.msra.mxu0 0
    %6383 = vmatprep.subr.bf16.mxu0 0
    %6384 = vmatpush1.bf16.xpose.msra.mxu0 0
    %6385 = vmatprep.subr.bf16.mxu0 0
    %6386 = vmatpush1.bf16.xpose.msra.mxu0 0
    %6387 = vmatprep.subr.bf16.mxu0 0
    %6388 = vmatpush1.bf16.xpose.msra.mxu0 %v6371
    %6389 = vmatprep.subr.bf16.mxu0 0
    %6390 = vmatpush2.bf16.xpose.msra.mxu0 0
    %6391 = vmatprep.subr.bf16.mxu0 0
    %6392 = vmatpush2.bf16.xpose.msra.mxu0 0
    %6393 = vmatprep.subr.bf16.mxu0 0
    %6394 = vmatpush2.bf16.xpose.msra.mxu0 0
    %6395 = vmatprep.subr.bf16.mxu0 0
    %6396 = vmatpush2.bf16.xpose.msra.mxu0 0
    %6397 = vmatprep.subr.bf16.mxu0 0
    %6398 = vmatpush2.bf16.xpose.msra.mxu0 0
    %6399 = vmatprep.subr.bf16.mxu0 0
    %6400 = vmatpush2.bf16.xpose.msra.mxu0 0
    %6401 = vmatprep.subr.bf16.mxu0 0
    %6402 = vmatpush2.bf16.xpose.msra.mxu0 0
    %6403 = vmatprep.subr.bf16.mxu0 0
    %6404 = vmatpush2.bf16.xpose.msra.mxu0 0
    %6405 = vmatprep.mubr.bf16.mxu0 0
    %6406 = vmatmul.mubr.bf16.gmra.mxu0 %v6368
    %v6407 = vpop.f32.mrf.mxu0
    %v6408 = vadd.f32 0.0, %v6407
    %v6409 = vpop.f32.mrf.mxu0
    %v6410 = vpop.f32.mrf.mxu0
    %v6411 = vadd.f32 0.0, %v6410
    %v6412 = vpop.f32.mrf.mxu0
    %6413 = vdwg.mxu0
    %6415 = vrot.lane.b32.xlu0 %v5924, 96
    %v6416 = vpop.permute.xlu0 %6415
    %6418 = vrot.lane.b32.xlu0 %v6023, 96
    %v6419 = vpop.permute.xlu0 %6418
    %v6421 = vsel %vm1395, %v6416, 0
    %v6424 = vsel %vm1395, %v6419, 0
    %6426 = vmatprep.subr.bf16.mxu0 0
    %6427 = vmatpush1.bf16.xpose.msra.mxu0 0
    %6428 = vmatprep.subr.bf16.mxu0 0
    %6429 = vmatpush1.bf16.xpose.msra.mxu0 0
    %6430 = vmatprep.subr.bf16.mxu0 0
    %6431 = vmatpush1.bf16.xpose.msra.mxu0 0
    %6432 = vmatprep.subr.bf16.mxu0 0
    %6433 = vmatpush1.bf16.xpose.msra.mxu0 0
    %6434 = vmatprep.subr.bf16.mxu0 0
    %6435 = vmatpush1.bf16.xpose.msra.mxu0 0
    %6436 = vmatprep.subr.bf16.mxu0 0
    %6437 = vmatpush1.bf16.xpose.msra.mxu0 0
    %6438 = vmatprep.subr.bf16.mxu0 0
    %6439 = vmatpush1.bf16.xpose.msra.mxu0 0
    %6440 = vmatprep.subr.bf16.mxu0 0
    %6441 = vmatpush1.bf16.xpose.msra.mxu0 %v6424
    %6442 = vmatprep.subr.bf16.mxu0 0
    %6443 = vmatpush2.bf16.xpose.msra.mxu0 0
    %6444 = vmatprep.subr.bf16.mxu0 0
    %6445 = vmatpush2.bf16.xpose.msra.mxu0 0
    %6446 = vmatprep.subr.bf16.mxu0 0
    %6447 = vmatpush2.bf16.xpose.msra.mxu0 0
    %6448 = vmatprep.subr.bf16.mxu0 0
    %6449 = vmatpush2.bf16.xpose.msra.mxu0 0
    %6450 = vmatprep.subr.bf16.mxu0 0
    %6451 = vmatpush2.bf16.xpose.msra.mxu0 0
    %6452 = vmatprep.subr.bf16.mxu0 0
    %6453 = vmatpush2.bf16.xpose.msra.mxu0 0
    %6454 = vmatprep.subr.bf16.mxu0 0
    %6455 = vmatpush2.bf16.xpose.msra.mxu0 0
    %6456 = vmatprep.subr.bf16.mxu0 0
    %6457 = vmatpush2.bf16.xpose.msra.mxu0 0
    %6458 = vmatprep.mubr.bf16.mxu0 0
    %6459 = vmatmul.mubr.bf16.gmra.mxu0 %v6421
    %v6460 = vpop.f32.mrf.mxu0
    %v6461 = vadd.f32 0.0, %v6460
    %v6462 = vpop.f32.mrf.mxu0
    %v6463 = vpop.f32.mrf.mxu0
    %v6464 = vadd.f32 0.0, %v6463
    %v6465 = vpop.f32.mrf.mxu0
    %6466 = vdwg.mxu0
    %v6467 = vmul.f32 %v6408, 0.17677669
    %v6468 = vmul.f32 %v6411, 0.17677669
    %v6469 = vmul.f32 %v6461, 0.17677669
    %v6470 = vmul.f32 %v6464, 0.17677669
    %v6471 = vsel %vm1494, %v6467, -inf
    %6472 = vmax.xlane.f32.xlu0 %v6471
    %v6473 = vpop.xlane.xlu0 %6472
    %v6474 = vsel %vm1498, %v6468, -inf
    %6475 = vmax.xlane.f32.xlu0 %v6474
    %v6476 = vpop.xlane.xlu0 %6475
    %v6477 = vsel %vm1494, %v6469, -inf
    %6478 = vmax.xlane.f32.xlu0 %v6477
    %v6479 = vpop.xlane.xlu0 %6478
    %v6480 = vsel %vm1498, %v6470, -inf
    %6481 = vmax.xlane.f32.xlu0 %v6480
    %v6482 = vpop.xlane.xlu0 %6481
    %v6483 = vsub.f32 %v6467, %v6473
    %v6484 = vsub.f32 %v6468, %v6476
    %v6485 = vsub.f32 %v6469, %v6479
    %v6486 = vsub.f32 %v6470, %v6482
    %v6487 = vmul.f32 %v6483, 1.442695
    %v6488 = vpow.pop %v6487
    %v6489 = vmul.f32 %v6484, 1.442695
    %v6490 = vpow.pop %v6489
    %v6491 = vmul.f32 %v6485, 1.442695
    %v6492 = vpow.pop %v6491
    %v6493 = vmul.f32 %v6486, 1.442695
    %v6494 = vpow.pop %v6493
    %v6495 = vsel %vm1494, %v6488, 0.0
    %6496 = vadd.xlane.f32.xlu0 %v6495
    %v6497 = vpop.xlane.xlu0 %6496
    %v6498 = vsel %vm1498, %v6490, 0.0
    %6499 = vadd.xlane.f32.xlu0 %v6498
    %v6500 = vpop.xlane.xlu0 %6499
    %v6501 = vsel %vm1494, %v6492, 0.0
    %6502 = vadd.xlane.f32.xlu0 %v6501
    %v6503 = vpop.xlane.xlu0 %6502
    %v6504 = vsel %vm1498, %v6494, 0.0
    %6505 = vadd.xlane.f32.xlu0 %v6504
    %v6506 = vpop.xlane.xlu0 %6505
    %v6507 = vrcp.pop %v6497
    %v6508 = vrcp.pop %v6500
    %v6509 = vrcp.pop %v6503
    %v6510 = vrcp.pop %v6506
    %v6511 = vmul.f32 %v6488, %v6507
    %v6512 = vmul.f32 %v6490, %v6508
    %v6513 = vmul.f32 %v6492, %v6509
    %v6514 = vmul.f32 %v6494, %v6510
    %v6515 = vpack.c.bf16 %v6512, %v6511
    %v6516 = vpack.c.bf16 %v6514, %v6513
    %6518 = vrot.lane.b32.xlu0 %v6121, 96
    %v6519 = vpop.permute.xlu0 %6518
    %v6521 = vsel %vm1494, %v6515, 0
    %v6524 = vsel %vm1545, %v6519, 0
    %6526 = vmatprep.subr.bf16.mxu0 0
    %6527 = vmatpush1.bf16.msra.mxu0 0
    %6528 = vmatprep.subr.bf16.mxu0 0
    %6529 = vmatpush1.bf16.msra.mxu0 0
    %6530 = vmatprep.subr.bf16.mxu0 0
    %6531 = vmatpush1.bf16.msra.mxu0 0
    %6532 = vmatprep.subr.bf16.mxu0 0
    %6533 = vmatpush1.bf16.msra.mxu0 0
    %6534 = vmatprep.subr.bf16.mxu0 0
    %6535 = vmatpush1.bf16.msra.mxu0 0
    %6536 = vmatprep.subr.bf16.mxu0 0
    %6537 = vmatpush1.bf16.msra.mxu0 0
    %6538 = vmatprep.subr.bf16.mxu0 0
    %6539 = vmatpush1.bf16.msra.mxu0 0
    %6540 = vmatprep.subr.bf16.mxu0 0
    %6541 = vmatpush1.bf16.msra.mxu0 %v6524
    %6542 = vmatprep.subr.bf16.mxu0 0
    %6543 = vmatpush2.bf16.msra.mxu0 0
    %6544 = vmatprep.subr.bf16.mxu0 0
    %6545 = vmatpush2.bf16.msra.mxu0 0
    %6546 = vmatprep.subr.bf16.mxu0 0
    %6547 = vmatpush2.bf16.msra.mxu0 0
    %6548 = vmatprep.subr.bf16.mxu0 0
    %6549 = vmatpush2.bf16.msra.mxu0 0
    %6550 = vmatprep.subr.bf16.mxu0 0
    %6551 = vmatpush2.bf16.msra.mxu0 0
    %6552 = vmatprep.subr.bf16.mxu0 0
    %6553 = vmatpush2.bf16.msra.mxu0 0
    %6554 = vmatprep.subr.bf16.mxu0 0
    %6555 = vmatpush2.bf16.msra.mxu0 0
    %6556 = vmatprep.subr.bf16.mxu0 0
    %6557 = vmatpush2.bf16.msra.mxu0 0
    %6558 = vmatprep.mubr.bf16.mxu0 0
    %6559 = vmatmul.mubr.bf16.gmra.mxu0 %v6521
    %v6560 = vpop.f32.mrf.mxu0
    %v6561 = vadd.f32 0.0, %v6560
    %v6562 = vpop.f32.mrf.mxu0
    %v6563 = vpop.f32.mrf.mxu0
    %v6564 = vadd.f32 0.0, %v6563
    %v6565 = vpop.f32.mrf.mxu0
    %6566 = vdwg.mxu0
    %6568 = vrot.lane.b32.xlu0 %v6122, 96
    %v6569 = vpop.permute.xlu0 %6568
    %v6571 = vsel %vm1494, %v6516, 0
    %v6574 = vsel %vm1545, %v6569, 0
    %6576 = vmatprep.subr.bf16.mxu0 0
    %6577 = vmatpush1.bf16.msra.mxu0 0
    %6578 = vmatprep.subr.bf16.mxu0 0
    %6579 = vmatpush1.bf16.msra.mxu0 0
    %6580 = vmatprep.subr.bf16.mxu0 0
    %6581 = vmatpush1.bf16.msra.mxu0 0
    %6582 = vmatprep.subr.bf16.mxu0 0
    %6583 = vmatpush1.bf16.msra.mxu0 0
    %6584 = vmatprep.subr.bf16.mxu0 0
    %6585 = vmatpush1.bf16.msra.mxu0 0
    %6586 = vmatprep.subr.bf16.mxu0 0
    %6587 = vmatpush1.bf16.msra.mxu0 0
    %6588 = vmatprep.subr.bf16.mxu0 0
    %6589 = vmatpush1.bf16.msra.mxu0 0
    %6590 = vmatprep.subr.bf16.mxu0 0
    %6591 = vmatpush1.bf16.msra.mxu0 %v6574
    %6592 = vmatprep.subr.bf16.mxu0 0
    %6593 = vmatpush2.bf16.msra.mxu0 0
    %6594 = vmatprep.subr.bf16.mxu0 0
    %6595 = vmatpush2.bf16.msra.mxu0 0
    %6596 = vmatprep.subr.bf16.mxu0 0
    %6597 = vmatpush2.bf16.msra.mxu0 0
    %6598 = vmatprep.subr.bf16.mxu0 0
    %6599 = vmatpush2.bf16.msra.mxu0 0
    %6600 = vmatprep.subr.bf16.mxu0 0
    %6601 = vmatpush2.bf16.msra.mxu0 0
    %6602 = vmatprep.subr.bf16.mxu0 0
    %6603 = vmatpush2.bf16.msra.mxu0 0
    %6604 = vmatprep.subr.bf16.mxu0 0
    %6605 = vmatpush2.bf16.msra.mxu0 0
    %6606 = vmatprep.subr.bf16.mxu0 0
    %6607 = vmatpush2.bf16.msra.mxu0 0
    %6608 = vmatprep.mubr.bf16.mxu0 0
    %6609 = vmatmul.mubr.bf16.gmra.mxu0 %v6571
    %v6610 = vpop.f32.mrf.mxu0
    %v6611 = vadd.f32 0.0, %v6610
    %v6612 = vpop.f32.mrf.mxu0
    %v6613 = vpop.f32.mrf.mxu0
    %v6614 = vadd.f32 0.0, %v6613
    %v6615 = vpop.f32.mrf.mxu0
    %6616 = vdwg.mxu0
    %6617 = vrot.lane.b32.xlu0 %v5923, 64
    %v6618 = vpop.permute.xlu0 %6617
    %6619 = vrot.lane.b32.xlu0 %v6022, 64
    %v6620 = vpop.permute.xlu0 %6619
    %v6622 = vsel %vm1395, %v6618, 0
    %v6625 = vsel %vm1395, %v6620, 0
    %6627 = vmatprep.subr.bf16.mxu0 0
    %6628 = vmatpush1.bf16.xpose.msra.mxu0 0
    %6629 = vmatprep.subr.bf16.mxu0 0
    %6630 = vmatpush1.bf16.xpose.msra.mxu0 0
    %6631 = vmatprep.subr.bf16.mxu0 0
    %6632 = vmatpush1.bf16.xpose.msra.mxu0 0
    %6633 = vmatprep.subr.bf16.mxu0 0
    %6634 = vmatpush1.bf16.xpose.msra.mxu0 0
    %6635 = vmatprep.subr.bf16.mxu0 0
    %6636 = vmatpush1.bf16.xpose.msra.mxu0 0
    %6637 = vmatprep.subr.bf16.mxu0 0
    %6638 = vmatpush1.bf16.xpose.msra.mxu0 0
    %6639 = vmatprep.subr.bf16.mxu0 0
    %6640 = vmatpush1.bf16.xpose.msra.mxu0 0
    %6641 = vmatprep.subr.bf16.mxu0 0
    %6642 = vmatpush1.bf16.xpose.msra.mxu0 %v6625
    %6643 = vmatprep.subr.bf16.mxu0 0
    %6644 = vmatpush2.bf16.xpose.msra.mxu0 0
    %6645 = vmatprep.subr.bf16.mxu0 0
    %6646 = vmatpush2.bf16.xpose.msra.mxu0 0
    %6647 = vmatprep.subr.bf16.mxu0 0
    %6648 = vmatpush2.bf16.xpose.msra.mxu0 0
    %6649 = vmatprep.subr.bf16.mxu0 0
    %6650 = vmatpush2.bf16.xpose.msra.mxu0 0
    %6651 = vmatprep.subr.bf16.mxu0 0
    %6652 = vmatpush2.bf16.xpose.msra.mxu0 0
    %6653 = vmatprep.subr.bf16.mxu0 0
    %6654 = vmatpush2.bf16.xpose.msra.mxu0 0
    %6655 = vmatprep.subr.bf16.mxu0 0
    %6656 = vmatpush2.bf16.xpose.msra.mxu0 0
    %6657 = vmatprep.subr.bf16.mxu0 0
    %6658 = vmatpush2.bf16.xpose.msra.mxu0 0
    %6659 = vmatprep.mubr.bf16.mxu0 0
    %6660 = vmatmul.mubr.bf16.gmra.mxu0 %v6622
    %v6661 = vpop.f32.mrf.mxu0
    %v6662 = vadd.f32 0.0, %v6661
    %v6663 = vpop.f32.mrf.mxu0
    %v6664 = vpop.f32.mrf.mxu0
    %v6665 = vadd.f32 0.0, %v6664
    %v6666 = vpop.f32.mrf.mxu0
    %6667 = vdwg.mxu0
    %6668 = vrot.lane.b32.xlu0 %v5924, 64
    %v6669 = vpop.permute.xlu0 %6668
    %6670 = vrot.lane.b32.xlu0 %v6023, 64
    %v6671 = vpop.permute.xlu0 %6670
    %v6673 = vsel %vm1395, %v6669, 0
    %v6676 = vsel %vm1395, %v6671, 0
    %6678 = vmatprep.subr.bf16.mxu0 0
    %6679 = vmatpush1.bf16.xpose.msra.mxu0 0
    %6680 = vmatprep.subr.bf16.mxu0 0
    %6681 = vmatpush1.bf16.xpose.msra.mxu0 0
    %6682 = vmatprep.subr.bf16.mxu0 0
    %6683 = vmatpush1.bf16.xpose.msra.mxu0 0
    %6684 = vmatprep.subr.bf16.mxu0 0
    %6685 = vmatpush1.bf16.xpose.msra.mxu0 0
    %6686 = vmatprep.subr.bf16.mxu0 0
    %6687 = vmatpush1.bf16.xpose.msra.mxu0 0
    %6688 = vmatprep.subr.bf16.mxu0 0
    %6689 = vmatpush1.bf16.xpose.msra.mxu0 0
    %6690 = vmatprep.subr.bf16.mxu0 0
    %6691 = vmatpush1.bf16.xpose.msra.mxu0 0
    %6692 = vmatprep.subr.bf16.mxu0 0
    %6693 = vmatpush1.bf16.xpose.msra.mxu0 %v6676
    %6694 = vmatprep.subr.bf16.mxu0 0
    %6695 = vmatpush2.bf16.xpose.msra.mxu0 0
    %6696 = vmatprep.subr.bf16.mxu0 0
    %6697 = vmatpush2.bf16.xpose.msra.mxu0 0
    %6698 = vmatprep.subr.bf16.mxu0 0
    %6699 = vmatpush2.bf16.xpose.msra.mxu0 0
    %6700 = vmatprep.subr.bf16.mxu0 0
    %6701 = vmatpush2.bf16.xpose.msra.mxu0 0
    %6702 = vmatprep.subr.bf16.mxu0 0
    %6703 = vmatpush2.bf16.xpose.msra.mxu0 0
    %6704 = vmatprep.subr.bf16.mxu0 0
    %6705 = vmatpush2.bf16.xpose.msra.mxu0 0
    %6706 = vmatprep.subr.bf16.mxu0 0
    %6707 = vmatpush2.bf16.xpose.msra.mxu0 0
    %6708 = vmatprep.subr.bf16.mxu0 0
    %6709 = vmatpush2.bf16.xpose.msra.mxu0 0
    %6710 = vmatprep.mubr.bf16.mxu0 0
    %6711 = vmatmul.mubr.bf16.gmra.mxu0 %v6673
    %v6712 = vpop.f32.mrf.mxu0
    %v6713 = vadd.f32 0.0, %v6712
    %v6714 = vpop.f32.mrf.mxu0
    %v6715 = vpop.f32.mrf.mxu0
    %v6716 = vadd.f32 0.0, %v6715
    %v6717 = vpop.f32.mrf.mxu0
    %6718 = vdwg.mxu0
    %v6719 = vmul.f32 %v6662, 0.17677669
    %v6720 = vmul.f32 %v6665, 0.17677669
    %v6721 = vmul.f32 %v6713, 0.17677669
    %v6722 = vmul.f32 %v6716, 0.17677669
    %v6723 = vsel %vm1494, %v6719, -inf
    %6724 = vmax.xlane.f32.xlu0 %v6723
    %v6725 = vpop.xlane.xlu0 %6724
    %v6726 = vsel %vm1498, %v6720, -inf
    %6727 = vmax.xlane.f32.xlu0 %v6726
    %v6728 = vpop.xlane.xlu0 %6727
    %v6729 = vsel %vm1494, %v6721, -inf
    %6730 = vmax.xlane.f32.xlu0 %v6729
    %v6731 = vpop.xlane.xlu0 %6730
    %v6732 = vsel %vm1498, %v6722, -inf
    %6733 = vmax.xlane.f32.xlu0 %v6732
    %v6734 = vpop.xlane.xlu0 %6733
    %v6735 = vsub.f32 %v6719, %v6725
    %v6736 = vsub.f32 %v6720, %v6728
    %v6737 = vsub.f32 %v6721, %v6731
    %v6738 = vsub.f32 %v6722, %v6734
    %v6739 = vmul.f32 %v6735, 1.442695
    %v6740 = vpow.pop %v6739
    %v6741 = vmul.f32 %v6736, 1.442695
    %v6742 = vpow.pop %v6741
    %v6743 = vmul.f32 %v6737, 1.442695
    %v6744 = vpow.pop %v6743
    %v6745 = vmul.f32 %v6738, 1.442695
    %v6746 = vpow.pop %v6745
    %v6747 = vsel %vm1494, %v6740, 0.0
    %6748 = vadd.xlane.f32.xlu0 %v6747
    %v6749 = vpop.xlane.xlu0 %6748
    %v6750 = vsel %vm1498, %v6742, 0.0
    %6751 = vadd.xlane.f32.xlu0 %v6750
    %v6752 = vpop.xlane.xlu0 %6751
    %v6753 = vsel %vm1494, %v6744, 0.0
    %6754 = vadd.xlane.f32.xlu0 %v6753
    %v6755 = vpop.xlane.xlu0 %6754
    %v6756 = vsel %vm1498, %v6746, 0.0
    %6757 = vadd.xlane.f32.xlu0 %v6756
    %v6758 = vpop.xlane.xlu0 %6757
    %v6759 = vrcp.pop %v6749
    %v6760 = vrcp.pop %v6752
    %v6761 = vrcp.pop %v6755
    %v6762 = vrcp.pop %v6758
    %v6763 = vmul.f32 %v6740, %v6759
    %v6764 = vmul.f32 %v6742, %v6760
    %v6765 = vmul.f32 %v6744, %v6761
    %v6766 = vmul.f32 %v6746, %v6762
    %v6767 = vpack.c.bf16 %v6764, %v6763
    %v6768 = vpack.c.bf16 %v6766, %v6765
    %6769 = vrot.lane.b32.xlu0 %v6121, 64
    %v6770 = vpop.permute.xlu0 %6769
    %v6772 = vsel %vm1494, %v6767, 0
    %v6775 = vsel %vm1545, %v6770, 0
    %6777 = vmatprep.subr.bf16.mxu0 0
    %6778 = vmatpush1.bf16.msra.mxu0 0
    %6779 = vmatprep.subr.bf16.mxu0 0
    %6780 = vmatpush1.bf16.msra.mxu0 0
    %6781 = vmatprep.subr.bf16.mxu0 0
    %6782 = vmatpush1.bf16.msra.mxu0 0
    %6783 = vmatprep.subr.bf16.mxu0 0
    %6784 = vmatpush1.bf16.msra.mxu0 0
    %6785 = vmatprep.subr.bf16.mxu0 0
    %6786 = vmatpush1.bf16.msra.mxu0 0
    %6787 = vmatprep.subr.bf16.mxu0 0
    %6788 = vmatpush1.bf16.msra.mxu0 0
    %6789 = vmatprep.subr.bf16.mxu0 0
    %6790 = vmatpush1.bf16.msra.mxu0 0
    %6791 = vmatprep.subr.bf16.mxu0 0
    %6792 = vmatpush1.bf16.msra.mxu0 %v6775
    %6793 = vmatprep.subr.bf16.mxu0 0
    %6794 = vmatpush2.bf16.msra.mxu0 0
    %6795 = vmatprep.subr.bf16.mxu0 0
    %6796 = vmatpush2.bf16.msra.mxu0 0
    %6797 = vmatprep.subr.bf16.mxu0 0
    %6798 = vmatpush2.bf16.msra.mxu0 0
    %6799 = vmatprep.subr.bf16.mxu0 0
    %6800 = vmatpush2.bf16.msra.mxu0 0
    %6801 = vmatprep.subr.bf16.mxu0 0
    %6802 = vmatpush2.bf16.msra.mxu0 0
    %6803 = vmatprep.subr.bf16.mxu0 0
    %6804 = vmatpush2.bf16.msra.mxu0 0
    %6805 = vmatprep.subr.bf16.mxu0 0
    %6806 = vmatpush2.bf16.msra.mxu0 0
    %6807 = vmatprep.subr.bf16.mxu0 0
    %6808 = vmatpush2.bf16.msra.mxu0 0
    %6809 = vmatprep.mubr.bf16.mxu0 0
    %6810 = vmatmul.mubr.bf16.gmra.mxu0 %v6772
    %v6811 = vpop.f32.mrf.mxu0
    %v6812 = vadd.f32 0.0, %v6811
    %v6813 = vpop.f32.mrf.mxu0
    %v6814 = vpop.f32.mrf.mxu0
    %v6815 = vadd.f32 0.0, %v6814
    %v6816 = vpop.f32.mrf.mxu0
    %6817 = vdwg.mxu0
    %6818 = vrot.lane.b32.xlu0 %v6122, 64
    %v6819 = vpop.permute.xlu0 %6818
    %v6821 = vsel %vm1494, %v6768, 0
    %v6824 = vsel %vm1545, %v6819, 0
    %6826 = vmatprep.subr.bf16.mxu0 0
    %6827 = vmatpush1.bf16.msra.mxu0 0
    %6828 = vmatprep.subr.bf16.mxu0 0
    %6829 = vmatpush1.bf16.msra.mxu0 0
    %6830 = vmatprep.subr.bf16.mxu0 0
    %6831 = vmatpush1.bf16.msra.mxu0 0
    %6832 = vmatprep.subr.bf16.mxu0 0
    %6833 = vmatpush1.bf16.msra.mxu0 0
    %6834 = vmatprep.subr.bf16.mxu0 0
    %6835 = vmatpush1.bf16.msra.mxu0 0
    %6836 = vmatprep.subr.bf16.mxu0 0
    %6837 = vmatpush1.bf16.msra.mxu0 0
    %6838 = vmatprep.subr.bf16.mxu0 0
    %6839 = vmatpush1.bf16.msra.mxu0 0
    %6840 = vmatprep.subr.bf16.mxu0 0
    %6841 = vmatpush1.bf16.msra.mxu0 %v6824
    %6842 = vmatprep.subr.bf16.mxu0 0
    %6843 = vmatpush2.bf16.msra.mxu0 0
    %6844 = vmatprep.subr.bf16.mxu0 0
    %6845 = vmatpush2.bf16.msra.mxu0 0
    %6846 = vmatprep.subr.bf16.mxu0 0
    %6847 = vmatpush2.bf16.msra.mxu0 0
    %6848 = vmatprep.subr.bf16.mxu0 0
    %6849 = vmatpush2.bf16.msra.mxu0 0
    %6850 = vmatprep.subr.bf16.mxu0 0
    %6851 = vmatpush2.bf16.msra.mxu0 0
    %6852 = vmatprep.subr.bf16.mxu0 0
    %6853 = vmatpush2.bf16.msra.mxu0 0
    %6854 = vmatprep.subr.bf16.mxu0 0
    %6855 = vmatpush2.bf16.msra.mxu0 0
    %6856 = vmatprep.subr.bf16.mxu0 0
    %6857 = vmatpush2.bf16.msra.mxu0 0
    %6858 = vmatprep.mubr.bf16.mxu0 0
    %6859 = vmatmul.mubr.bf16.gmra.mxu0 %v6821
    %v6860 = vpop.f32.mrf.mxu0
    %v6861 = vadd.f32 0.0, %v6860
    %v6862 = vpop.f32.mrf.mxu0
    %v6863 = vpop.f32.mrf.mxu0
    %v6864 = vadd.f32 0.0, %v6863
    %v6865 = vpop.f32.mrf.mxu0
    %6866 = vdwg.mxu0
    %6867 = vrot.lane.b32.xlu0 %v5923, 32
    %v6868 = vpop.permute.xlu0 %6867
    %6869 = vrot.lane.b32.xlu0 %v6022, 32
    %v6870 = vpop.permute.xlu0 %6869
    %v6872 = vsel %vm1395, %v6868, 0
    %v6875 = vsel %vm1395, %v6870, 0
    %6877 = vmatprep.subr.bf16.mxu0 0
    %6878 = vmatpush1.bf16.xpose.msra.mxu0 0
    %6879 = vmatprep.subr.bf16.mxu0 0
    %6880 = vmatpush1.bf16.xpose.msra.mxu0 0
    %6881 = vmatprep.subr.bf16.mxu0 0
    %6882 = vmatpush1.bf16.xpose.msra.mxu0 0
    %6883 = vmatprep.subr.bf16.mxu0 0
    %6884 = vmatpush1.bf16.xpose.msra.mxu0 0
    %6885 = vmatprep.subr.bf16.mxu0 0
    %6886 = vmatpush1.bf16.xpose.msra.mxu0 0
    %6887 = vmatprep.subr.bf16.mxu0 0
    %6888 = vmatpush1.bf16.xpose.msra.mxu0 0
    %6889 = vmatprep.subr.bf16.mxu0 0
    %6890 = vmatpush1.bf16.xpose.msra.mxu0 0
    %6891 = vmatprep.subr.bf16.mxu0 0
    %6892 = vmatpush1.bf16.xpose.msra.mxu0 %v6875
    %6893 = vmatprep.subr.bf16.mxu0 0
    %6894 = vmatpush2.bf16.xpose.msra.mxu0 0
    %6895 = vmatprep.subr.bf16.mxu0 0
    %6896 = vmatpush2.bf16.xpose.msra.mxu0 0
    %6897 = vmatprep.subr.bf16.mxu0 0
    %6898 = vmatpush2.bf16.xpose.msra.mxu0 0
    %6899 = vmatprep.subr.bf16.mxu0 0
    %6900 = vmatpush2.bf16.xpose.msra.mxu0 0
    %6901 = vmatprep.subr.bf16.mxu0 0
    %6902 = vmatpush2.bf16.xpose.msra.mxu0 0
    %6903 = vmatprep.subr.bf16.mxu0 0
    %6904 = vmatpush2.bf16.xpose.msra.mxu0 0
    %6905 = vmatprep.subr.bf16.mxu0 0
    %6906 = vmatpush2.bf16.xpose.msra.mxu0 0
    %6907 = vmatprep.subr.bf16.mxu0 0
    %6908 = vmatpush2.bf16.xpose.msra.mxu0 0
    %6909 = vmatprep.mubr.bf16.mxu0 0
    %6910 = vmatmul.mubr.bf16.gmra.mxu0 %v6872
    %v6911 = vpop.f32.mrf.mxu0
    %v6912 = vadd.f32 0.0, %v6911
    %v6913 = vpop.f32.mrf.mxu0
    %v6914 = vpop.f32.mrf.mxu0
    %v6915 = vadd.f32 0.0, %v6914
    %v6916 = vpop.f32.mrf.mxu0
    %6917 = vdwg.mxu0
    %6918 = vrot.lane.b32.xlu0 %v5924, 32
    %v6919 = vpop.permute.xlu0 %6918
    %6920 = vrot.lane.b32.xlu0 %v6023, 32
    %v6921 = vpop.permute.xlu0 %6920
    %v6923 = vsel %vm1395, %v6919, 0
    %v6926 = vsel %vm1395, %v6921, 0
    %6928 = vmatprep.subr.bf16.mxu0 0
    %6929 = vmatpush1.bf16.xpose.msra.mxu0 0
    %6930 = vmatprep.subr.bf16.mxu0 0
    %6931 = vmatpush1.bf16.xpose.msra.mxu0 0
    %6932 = vmatprep.subr.bf16.mxu0 0
    %6933 = vmatpush1.bf16.xpose.msra.mxu0 0
    %6934 = vmatprep.subr.bf16.mxu0 0
    %6935 = vmatpush1.bf16.xpose.msra.mxu0 0
    %6936 = vmatprep.subr.bf16.mxu0 0
    %6937 = vmatpush1.bf16.xpose.msra.mxu0 0
    %6938 = vmatprep.subr.bf16.mxu0 0
    %6939 = vmatpush1.bf16.xpose.msra.mxu0 0
    %6940 = vmatprep.subr.bf16.mxu0 0
    %6941 = vmatpush1.bf16.xpose.msra.mxu0 0
    %6942 = vmatprep.subr.bf16.mxu0 0
    %6943 = vmatpush1.bf16.xpose.msra.mxu0 %v6926
    %6944 = vmatprep.subr.bf16.mxu0 0
    %6945 = vmatpush2.bf16.xpose.msra.mxu0 0
    %6946 = vmatprep.subr.bf16.mxu0 0
    %6947 = vmatpush2.bf16.xpose.msra.mxu0 0
    %6948 = vmatprep.subr.bf16.mxu0 0
    %6949 = vmatpush2.bf16.xpose.msra.mxu0 0
    %6950 = vmatprep.subr.bf16.mxu0 0
    %6951 = vmatpush2.bf16.xpose.msra.mxu0 0
    %6952 = vmatprep.subr.bf16.mxu0 0
    %6953 = vmatpush2.bf16.xpose.msra.mxu0 0
    %6954 = vmatprep.subr.bf16.mxu0 0
    %6955 = vmatpush2.bf16.xpose.msra.mxu0 0
    %6956 = vmatprep.subr.bf16.mxu0 0
    %6957 = vmatpush2.bf16.xpose.msra.mxu0 0
    %6958 = vmatprep.subr.bf16.mxu0 0
    %6959 = vmatpush2.bf16.xpose.msra.mxu0 0
    %6960 = vmatprep.mubr.bf16.mxu0 0
    %6961 = vmatmul.mubr.bf16.gmra.mxu0 %v6923
    %v6962 = vpop.f32.mrf.mxu0
    %v6963 = vadd.f32 0.0, %v6962
    %v6964 = vpop.f32.mrf.mxu0
    %v6965 = vpop.f32.mrf.mxu0
    %v6966 = vadd.f32 0.0, %v6965
    %v6967 = vpop.f32.mrf.mxu0
    %6968 = vdwg.mxu0
    %v6969 = vmul.f32 %v6912, 0.17677669
    %v6970 = vmul.f32 %v6915, 0.17677669
    %v6971 = vmul.f32 %v6963, 0.17677669
    %v6972 = vmul.f32 %v6966, 0.17677669
    %v6973 = vsel %vm1494, %v6969, -inf
    %6974 = vmax.xlane.f32.xlu0 %v6973
    %v6975 = vpop.xlane.xlu0 %6974
    %v6976 = vsel %vm1498, %v6970, -inf
    %6977 = vmax.xlane.f32.xlu0 %v6976
    %v6978 = vpop.xlane.xlu0 %6977
    %v6979 = vsel %vm1494, %v6971, -inf
    %6980 = vmax.xlane.f32.xlu0 %v6979
    %v6981 = vpop.xlane.xlu0 %6980
    %v6982 = vsel %vm1498, %v6972, -inf
    %6983 = vmax.xlane.f32.xlu0 %v6982
    %v6984 = vpop.xlane.xlu0 %6983
    %v6985 = vsub.f32 %v6969, %v6975
    %v6986 = vsub.f32 %v6970, %v6978
    %v6987 = vsub.f32 %v6971, %v6981
    %v6988 = vsub.f32 %v6972, %v6984
    %v6989 = vmul.f32 %v6985, 1.442695
    %v6990 = vpow.pop %v6989
    %v6991 = vmul.f32 %v6986, 1.442695
    %v6992 = vpow.pop %v6991
    %v6993 = vmul.f32 %v6987, 1.442695
    %v6994 = vpow.pop %v6993
    %v6995 = vmul.f32 %v6988, 1.442695
    %v6996 = vpow.pop %v6995
    %v6997 = vsel %vm1494, %v6990, 0.0
    %6998 = vadd.xlane.f32.xlu0 %v6997
    %v6999 = vpop.xlane.xlu0 %6998
    %v7000 = vsel %vm1498, %v6992, 0.0
    %7001 = vadd.xlane.f32.xlu0 %v7000
    %v7002 = vpop.xlane.xlu0 %7001
    %v7003 = vsel %vm1494, %v6994, 0.0
    %7004 = vadd.xlane.f32.xlu0 %v7003
    %v7005 = vpop.xlane.xlu0 %7004
    %v7006 = vsel %vm1498, %v6996, 0.0
    %7007 = vadd.xlane.f32.xlu0 %v7006
    %v7008 = vpop.xlane.xlu0 %7007
    %v7009 = vrcp.pop %v6999
    %v7010 = vrcp.pop %v7002
    %v7011 = vrcp.pop %v7005
    %v7012 = vrcp.pop %v7008
    %v7013 = vmul.f32 %v6990, %v7009
    %v7014 = vmul.f32 %v6992, %v7010
    %v7015 = vmul.f32 %v6994, %v7011
    %v7016 = vmul.f32 %v6996, %v7012
    %v7017 = vpack.c.bf16 %v7014, %v7013
    %v7018 = vpack.c.bf16 %v7016, %v7015
    %7019 = vrot.lane.b32.xlu0 %v6121, 32
    %v7020 = vpop.permute.xlu0 %7019
    %v7022 = vsel %vm1494, %v7017, 0
    %v7025 = vsel %vm1545, %v7020, 0
    %7027 = vmatprep.subr.bf16.mxu0 0
    %7028 = vmatpush1.bf16.msra.mxu0 0
    %7029 = vmatprep.subr.bf16.mxu0 0
    %7030 = vmatpush1.bf16.msra.mxu0 0
    %7031 = vmatprep.subr.bf16.mxu0 0
    %7032 = vmatpush1.bf16.msra.mxu0 0
    %7033 = vmatprep.subr.bf16.mxu0 0
    %7034 = vmatpush1.bf16.msra.mxu0 0
    %7035 = vmatprep.subr.bf16.mxu0 0
    %7036 = vmatpush1.bf16.msra.mxu0 0
    %7037 = vmatprep.subr.bf16.mxu0 0
    %7038 = vmatpush1.bf16.msra.mxu0 0
    %7039 = vmatprep.subr.bf16.mxu0 0
    %7040 = vmatpush1.bf16.msra.mxu0 0
    %7041 = vmatprep.subr.bf16.mxu0 0
    %7042 = vmatpush1.bf16.msra.mxu0 %v7025
    %7043 = vmatprep.subr.bf16.mxu0 0
    %7044 = vmatpush2.bf16.msra.mxu0 0
    %7045 = vmatprep.subr.bf16.mxu0 0
    %7046 = vmatpush2.bf16.msra.mxu0 0
    %7047 = vmatprep.subr.bf16.mxu0 0
    %7048 = vmatpush2.bf16.msra.mxu0 0
    %7049 = vmatprep.subr.bf16.mxu0 0
    %7050 = vmatpush2.bf16.msra.mxu0 0
    %7051 = vmatprep.subr.bf16.mxu0 0
    %7052 = vmatpush2.bf16.msra.mxu0 0
    %7053 = vmatprep.subr.bf16.mxu0 0
    %7054 = vmatpush2.bf16.msra.mxu0 0
    %7055 = vmatprep.subr.bf16.mxu0 0
    %7056 = vmatpush2.bf16.msra.mxu0 0
    %7057 = vmatprep.subr.bf16.mxu0 0
    %7058 = vmatpush2.bf16.msra.mxu0 0
    %7059 = vmatprep.mubr.bf16.mxu0 0
    %7060 = vmatmul.mubr.bf16.gmra.mxu0 %v7022
    %v7061 = vpop.f32.mrf.mxu0
    %v7062 = vadd.f32 0.0, %v7061
    %v7063 = vpop.f32.mrf.mxu0
    %v7064 = vpop.f32.mrf.mxu0
    %v7065 = vadd.f32 0.0, %v7064
    %v7066 = vpop.f32.mrf.mxu0
    %7067 = vdwg.mxu0
    %7068 = vrot.lane.b32.xlu0 %v6122, 32
    %v7069 = vpop.permute.xlu0 %7068
    %v7071 = vsel %vm1494, %v7018, 0
    %v7074 = vsel %vm1545, %v7069, 0
    %7076 = vmatprep.subr.bf16.mxu0 0
    %7077 = vmatpush1.bf16.msra.mxu0 0
    %7078 = vmatprep.subr.bf16.mxu0 0
    %7079 = vmatpush1.bf16.msra.mxu0 0
    %7080 = vmatprep.subr.bf16.mxu0 0
    %7081 = vmatpush1.bf16.msra.mxu0 0
    %7082 = vmatprep.subr.bf16.mxu0 0
    %7083 = vmatpush1.bf16.msra.mxu0 0
    %7084 = vmatprep.subr.bf16.mxu0 0
    %7085 = vmatpush1.bf16.msra.mxu0 0
    %7086 = vmatprep.subr.bf16.mxu0 0
    %7087 = vmatpush1.bf16.msra.mxu0 0
    %7088 = vmatprep.subr.bf16.mxu0 0
    %7089 = vmatpush1.bf16.msra.mxu0 0
    %7090 = vmatprep.subr.bf16.mxu0 0
    %7091 = vmatpush1.bf16.msra.mxu0 %v7074
    %7092 = vmatprep.subr.bf16.mxu0 0
    %7093 = vmatpush2.bf16.msra.mxu0 0
    %7094 = vmatprep.subr.bf16.mxu0 0
    %7095 = vmatpush2.bf16.msra.mxu0 0
    %7096 = vmatprep.subr.bf16.mxu0 0
    %7097 = vmatpush2.bf16.msra.mxu0 0
    %7098 = vmatprep.subr.bf16.mxu0 0
    %7099 = vmatpush2.bf16.msra.mxu0 0
    %7100 = vmatprep.subr.bf16.mxu0 0
    %7101 = vmatpush2.bf16.msra.mxu0 0
    %7102 = vmatprep.subr.bf16.mxu0 0
    %7103 = vmatpush2.bf16.msra.mxu0 0
    %7104 = vmatprep.subr.bf16.mxu0 0
    %7105 = vmatpush2.bf16.msra.mxu0 0
    %7106 = vmatprep.subr.bf16.mxu0 0
    %7107 = vmatpush2.bf16.msra.mxu0 0
    %7108 = vmatprep.mubr.bf16.mxu0 0
    %7109 = vmatmul.mubr.bf16.gmra.mxu0 %v7071
    %v7110 = vpop.f32.mrf.mxu0
    %v7111 = vadd.f32 0.0, %v7110
    %v7112 = vpop.f32.mrf.mxu0
    %v7113 = vpop.f32.mrf.mxu0
    %v7114 = vadd.f32 0.0, %v7113
    %v7115 = vpop.f32.mrf.mxu0
    %7116 = vdwg.mxu0
    %7121 = vrot.lane.b32.xlu0 %v6561, 32
    %v7122 = vpop.permute.xlu0 %7121
    %7123 = vrot.lane.b32.xlu0 %v6564, 32
    %v7124 = vpop.permute.xlu0 %7123
    %7125 = vrot.lane.b32.xlu0 %v6611, 32
    %v7126 = vpop.permute.xlu0 %7125
    %7127 = vrot.lane.b32.xlu0 %v6614, 32
    %v7128 = vpop.permute.xlu0 %7127
    %7137 = vrot.lane.b32.xlu0 %v6812, 64
    %v7138 = vpop.permute.xlu0 %7137
    %7139 = vrot.lane.b32.xlu0 %v6815, 64
    %v7140 = vpop.permute.xlu0 %7139
    %7141 = vrot.lane.b32.xlu0 %v6861, 64
    %v7142 = vpop.permute.xlu0 %7141
    %7143 = vrot.lane.b32.xlu0 %v6864, 64
    %v7144 = vpop.permute.xlu0 %7143
    %7153 = vrot.lane.b32.xlu0 %v7062, 96
    %v7154 = vpop.permute.xlu0 %7153
    %7155 = vrot.lane.b32.xlu0 %v7065, 96
    %v7156 = vpop.permute.xlu0 %7155
    %7157 = vrot.lane.b32.xlu0 %v7111, 96
    %v7158 = vpop.permute.xlu0 %7157
    %7159 = vrot.lane.b32.xlu0 %v7114, 96
    %v7160 = vpop.permute.xlu0 %7159
    %v7165 = vsel %vm1395, %v6308, %v7122
    %v7166 = vsel %vm1395, %v6311, %v7124
    %v7167 = vsel %vm1395, %v6355, %v7126
    %v7168 = vsel %vm1395, %v6358, %v7128
    %v7169 = vsel %vm2445, %v7165, %v7138
    %v7170 = vsel %vm2445, %v7166, %v7140
    %v7171 = vsel %vm2445, %v7167, %v7142
    %v7172 = vsel %vm2445, %v7168, %v7144
    %v7173 = vsel %vm2450, %v7169, %v7154
    %v7174 = vsel %vm2450, %v7170, %v7156
    %v7175 = vsel %vm2450, %v7171, %v7158
    %v7176 = vsel %vm2450, %v7172, %v7160
    %v7181 = vcombine.high %v7173, %v7173
    %v7183 = vunpack.c.l.s4 1983009808
    %v7184 = vunpack.c.0.s8 %v7183
    %v7185 = vlaneseq
    %v7186 = vshrl.u32 %v7185, 7
    %v7187 = vsub.s32 %v7184, %v7186
    %v7188 = vrot.slane %v7173, %v7187
    %v7190 = vunpack.c.l.s4 1983009808
    %v7191 = vunpack.c.0.s8 %v7190
    %v7192 = vlaneseq
    %v7193 = vshrl.u32 %v7192, 7
    %v7194 = vsub.s32 %v7191, %v7193
    %v7195 = vrot.slane %v7181, %v7194
    %v7196 = vcombine.high %v7188, %v7188
    %v7197 = vcombine.high %v7195, %v7195
    %v7199 = vunpack.c.l.s4 1983009808
    %v7200 = vunpack.c.0.s8 %v7199
    %v7201 = vlaneseq
    %v7202 = vshrl.u32 %v7201, 7
    %v7203 = vsub.s32 %v7200, %v7202
    %v7204 = vrot.slane %v7174, %v7203
    %v7205 = vcombine.high %v7175, %v7175
    %v7207 = vunpack.c.l.s4 1983009808
    %v7208 = vunpack.c.0.s8 %v7207
    %v7209 = vlaneseq
    %v7210 = vshrl.u32 %v7209, 7
    %v7211 = vsub.s32 %v7208, %v7210
    %v7212 = vrot.slane %v7175, %v7211
    %v7214 = vunpack.c.l.s4 1983009808
    %v7215 = vunpack.c.0.s8 %v7214
    %v7216 = vlaneseq
    %v7217 = vshrl.u32 %v7216, 7
    %v7218 = vsub.s32 %v7215, %v7217
    %v7219 = vrot.slane %v7205, %v7218
    %v7220 = vcombine.high %v7212, %v7212
    %v7221 = vcombine.high %v7219, %v7219
    %v7223 = vunpack.c.l.s4 1983009808
    %v7224 = vunpack.c.0.s8 %v7223
    %v7225 = vlaneseq
    %v7226 = vshrl.u32 %v7225, 7
    %v7227 = vsub.s32 %v7224, %v7226
    %v7228 = vrot.slane %v7176, %v7227
    %v7229 = vcombine.low %v7188, %v7196
    %v7230 = vcombine.low %v7195, %v7197
    %v7232 = vunpack.c.l.s4 1983009808
    %v7233 = vunpack.c.0.s8 %v7232
    %v7234 = vlaneseq
    %v7235 = vshrl.u32 %v7234, 7
    %v7236 = vsub.s32 %v7233, %v7235
    %v7237 = vrot.slane %v7229, %v7236
    %v7239 = vunpack.c.l.s4 1983009808
    %v7240 = vunpack.c.0.s8 %v7239
    %v7241 = vlaneseq
    %v7242 = vshrl.u32 %v7241, 7
    %v7243 = vsub.s32 %v7240, %v7242
    %v7244 = vrot.slane %v7230, %v7243
    %v7245 = vcombine.low %v7237, %v7244
    %v7246 = vcombine.low %v7204, %v7212
    %v7247 = vcombine.low %v7220, %v7219
    %v7249 = vunpack.c.l.s4 1983009808
    %v7250 = vunpack.c.0.s8 %v7249
    %v7251 = vlaneseq
    %v7252 = vshrl.u32 %v7251, 7
    %v7253 = vsub.s32 %v7250, %v7252
    %v7254 = vrot.slane %v7246, %v7253
    %v7256 = vunpack.c.l.s4 1983009808
    %v7257 = vunpack.c.0.s8 %v7256
    %v7258 = vlaneseq
    %v7259 = vshrl.u32 %v7258, 7
    %v7260 = vsub.s32 %v7257, %v7259
    %v7261 = vrot.slane %v7247, %v7260
    %v7262 = vcombine.low %v7254, %v7261
    %v7263 = vcombine.low %v7221, %v7228
    %v7265 = vunpack.c.l.s4 1983009808
    %v7266 = vunpack.c.0.s8 %v7265
    %v7267 = vlaneseq
    %v7268 = vshrl.u32 %v7267, 7
    %v7269 = vsub.s32 %v7266, %v7268
    %v7270 = vrot.slane %v7263, %v7269
    %v7274 = vpack.c.bf16 %v7262, %v7245
    %v7275 = vpack.c.bf16 %v7270, %v7270
    %v7277 = vlaneseq
    %v7278 = vshrl.u32 %v7277, 7
    %v7279 = vsub.s32 0, %v7278
    %v7280 = vrot.slane %v5189, %v7279
    %v7298 = vunpack.c.l.b16 %v5173
    %v7299 = vunpack.c.l.b16 %v5174
    %v7300 = vunpack.c.l.b16 %v5175
    %v7301 = vunpack.c.l.b16 %v5176
    %v7302 = vunpack.c.l.b16 %v5177
    %v7303 = vunpack.c.l.b16 %v5178
    %v7304 = vunpack.c.l.b16 %v5179
    %v7305 = vunpack.c.l.b16 %v5180
    %v7306 = vunpack.c.l.b16 %v5181
    %v7307 = vunpack.c.l.b16 %v5182
    %v7308 = vunpack.c.l.b16 %v5183
    %v7309 = vunpack.c.l.b16 %v5184
    %v7310 = vunpack.c.l.b16 %v5185
    %v7311 = vunpack.c.l.b16 %v5186
    %v7312 = vunpack.c.l.b16 %v5187
    %v7313 = vunpack.c.l.b16 %v5188
    %v7314 = vpack.c.b16 %v7299, %v7298
    %v7315 = vpack.c.b16 %v7301, %v7300
    %v7316 = vpack.c.b16 %v7303, %v7302
    %v7317 = vpack.c.b16 %v7305, %v7304
    %v7318 = vpack.c.b16 %v7307, %v7306
    %v7319 = vpack.c.b16 %v7309, %v7308
    %v7320 = vpack.c.b16 %v7311, %v7310
    %v7321 = vpack.c.b16 %v7313, %v7312
    %7330 = vmatprep.subr.bf16.mxu0 0
    %7331 = vmatpush1.bf16.msra.mxu0 %v7321
    %7332 = vmatprep.subr.bf16.mxu0 0
    %7333 = vmatpush1.bf16.msra.mxu0 %v7320
    %7334 = vmatprep.subr.bf16.mxu0 0
    %7335 = vmatpush1.bf16.msra.mxu0 %v7319
    %7336 = vmatprep.subr.bf16.mxu0 0
    %7337 = vmatpush1.bf16.msra.mxu0 %v7318
    %7338 = vmatprep.subr.bf16.mxu0 0
    %7339 = vmatpush1.bf16.msra.mxu0 %v7317
    %7340 = vmatprep.subr.bf16.mxu0 0
    %7341 = vmatpush1.bf16.msra.mxu0 %v7316
    %7342 = vmatprep.subr.bf16.mxu0 0
    %7343 = vmatpush1.bf16.msra.mxu0 %v7315
    %7344 = vmatprep.subr.bf16.mxu0 0
    %7345 = vmatpush1.bf16.msra.mxu0 %v7314
    %7346 = vmatprep.subr.bf16.mxu0 0
    %7347 = vmatpush2.bf16.msra.mxu0 0
    %7348 = vmatprep.subr.bf16.mxu0 0
    %7349 = vmatpush2.bf16.msra.mxu0 0
    %7350 = vmatprep.subr.bf16.mxu0 0
    %7351 = vmatpush2.bf16.msra.mxu0 0
    %7352 = vmatprep.subr.bf16.mxu0 0
    %7353 = vmatpush2.bf16.msra.mxu0 0
    %7354 = vmatprep.subr.bf16.mxu0 0
    %7355 = vmatpush2.bf16.msra.mxu0 0
    %7356 = vmatprep.subr.bf16.mxu0 0
    %7357 = vmatpush2.bf16.msra.mxu0 0
    %7358 = vmatprep.subr.bf16.mxu0 0
    %7359 = vmatpush2.bf16.msra.mxu0 0
    %7360 = vmatprep.subr.bf16.mxu0 0
    %7361 = vmatpush2.bf16.msra.mxu0 0
    %7362 = vmatprep.mubr.bf16.mxu0 0
    %7363 = vmatmul.mubr.bf16.gmra.mxu0 %v7274
    %v7364 = vpop.f32.mrf.mxu0
    %v7365 = vadd.f32 %v7280, %v7364
    %v7366 = vpop.f32.mrf.mxu0
    %v7367 = vpop.f32.mrf.mxu0
    %v7368 = vadd.f32 %v7280, %v7367
    %v7369 = vpop.f32.mrf.mxu0
    %7370 = vmatprep.mubr.bf16.mxu0 0
    %7371 = vmatmul.mubr.bf16.gmra.mxu0 %v7275
    %v7372 = vpop.f32.mrf.mxu0
    %v7373 = vadd.f32 %v7280, %v7372
    %v7374 = vpop.f32.mrf.mxu0
    %v7375 = vpop.f32.mrf.mxu0
    %v7376 = vpop.f32.mrf.mxu0
    %7377 = vdwg.mxu0
    %v7378 = vadd.f32 %v5137, %v7365
    %v7379 = vadd.f32 %v5138, %v7368
    %v7380 = vadd.f32 %v5139, %v7373
    %7381 = vadd.xlane.f32.xlu0 %v7378
    %v7382 = vpop.xlane.xlu0 %7381
    %7383 = vadd.xlane.f32.xlu0 %v7379
    %v7384 = vpop.xlane.xlu0 %7383
    %v7385 = vsel %vm2663, %v7380, 0.0
    %7386 = vadd.xlane.f32.xlu0 %v7385
    %v7387 = vpop.xlane.xlu0 %7386
    %v7388 = vmul.f32 %v7382, %v2667
    %v7389 = vmul.f32 %v7384, %v2667
    %v7390 = vmul.f32 %v7387, %v2667
    %v7391 = vsub.f32 %v7378, %v7388
    %v7392 = vsub.f32 %v7379, %v7389
    %v7393 = vsub.f32 %v7380, %v7390
    %v7394 = vmul.f32 %v7391, %v7391
    %v7395 = vmul.f32 %v7392, %v7392
    %v7396 = vmul.f32 %v7393, %v7393
    %7397 = vadd.xlane.f32.xlu0 %v7394
    %v7398 = vpop.xlane.xlu0 %7397
    %7399 = vadd.xlane.f32.xlu0 %v7395
    %v7400 = vpop.xlane.xlu0 %7399
    %v7401 = vsel %vm2663, %v7396, 0.0
    %7402 = vadd.xlane.f32.xlu0 %v7401
    %v7403 = vpop.xlane.xlu0 %7402
    %v7404 = vmul.f32 %v7398, %v2667
    %v7405 = vmul.f32 %v7400, %v2667
    %v7406 = vmul.f32 %v7403, %v2667
    %v7407 = vadd.f32 %v7404, 1e-05
    %v7408 = vadd.f32 %v7405, 1e-05
    %v7409 = vadd.f32 %v7406, 1e-05
    %v7410 = vrsqrt.pop %v7407
    %v7411 = vrsqrt.pop %v7408
    %v7412 = vrsqrt.pop %v7409
    %v7413 = vmul.f32 %v7391, %v7410
    %v7414 = vmul.f32 %v7392, %v7411
    %v7415 = vmul.f32 %v7393, %v7412
    %v7417 = vlaneseq
    %v7418 = vshrl.u32 %v7417, 7
    %v7419 = vsub.s32 0, %v7418
    %v7420 = vrot.slane %v5190, %v7419
    %v7422 = vmul.f32 %v7413, %v7420
    %v7423 = vmul.f32 %v7414, %v7420
    %v7424 = vmul.f32 %v7415, %v7420
    %v7426 = vlaneseq
    %v7427 = vshrl.u32 %v7426, 7
    %v7428 = vsub.s32 0, %v7427
    %v7429 = vrot.slane %v5191, %v7428
    %v7431 = vadd.f32 %v7422, %v7429
    %v7432 = vadd.f32 %v7423, %v7429
    %v7433 = vadd.f32 %v7424, %v7429
    %v7434 = vpack.c.bf16 %v7432, %v7431
    %v7435 = vpack.c.bf16 %v7433, %v7433
    %v7438 = vlaneseq
    %v7439 = vshrl.u32 %v7438, 7
    %v7440 = vsub.s32 0, %v7439
    %v7441 = vrot.slane %v5322, %v7440
    %v7442 = vlaneseq
    %v7443 = vshrl.u32 %v7442, 7
    %v7444 = vsub.s32 1, %v7443
    %v7445 = vrot.slane %v5322, %v7444
    %v7446 = vlaneseq
    %v7447 = vshrl.u32 %v7446, 7
    %v7448 = vsub.s32 2, %v7447
    %v7449 = vrot.slane %v5322, %v7448
    %v7450 = vlaneseq
    %v7451 = vshrl.u32 %v7450, 7
    %v7452 = vsub.s32 3, %v7451
    %v7453 = vrot.slane %v5322, %v7452
    %v7454 = vlaneseq
    %v7455 = vshrl.u32 %v7454, 7
    %v7456 = vsub.s32 4, %v7455
    %v7457 = vrot.slane %v5322, %v7456
    %v7458 = vlaneseq
    %v7459 = vshrl.u32 %v7458, 7
    %v7460 = vsub.s32 5, %v7459
    %v7461 = vrot.slane %v5322, %v7460
    %v7462 = vlaneseq
    %v7463 = vshrl.u32 %v7462, 7
    %v7464 = vsub.s32 6, %v7463
    %v7465 = vrot.slane %v5322, %v7464
    %v7466 = vlaneseq
    %v7467 = vshrl.u32 %v7466, 7
    %v7468 = vsub.s32 7, %v7467
    %v7469 = vrot.slane %v5322, %v7468
    %v7470 = vlaneseq
    %v7471 = vshrl.u32 %v7470, 7
    %v7472 = vsub.s32 0, %v7471
    %v7473 = vrot.slane %v5323, %v7472
    %v7474 = vlaneseq
    %v7475 = vshrl.u32 %v7474, 7
    %v7476 = vsub.s32 1, %v7475
    %v7477 = vrot.slane %v5323, %v7476
    %v7478 = vlaneseq
    %v7479 = vshrl.u32 %v7478, 7
    %v7480 = vsub.s32 2, %v7479
    %v7481 = vrot.slane %v5323, %v7480
    %v7482 = vlaneseq
    %v7483 = vshrl.u32 %v7482, 7
    %v7484 = vsub.s32 3, %v7483
    %v7485 = vrot.slane %v5323, %v7484
    %v7486 = vlaneseq
    %v7487 = vshrl.u32 %v7486, 7
    %v7488 = vsub.s32 4, %v7487
    %v7489 = vrot.slane %v5323, %v7488
    %v7490 = vlaneseq
    %v7491 = vshrl.u32 %v7490, 7
    %v7492 = vsub.s32 5, %v7491
    %v7493 = vrot.slane %v5323, %v7492
    %v7494 = vlaneseq
    %v7495 = vshrl.u32 %v7494, 7
    %v7496 = vsub.s32 6, %v7495
    %v7497 = vrot.slane %v5323, %v7496
    %v7498 = vlaneseq
    %v7499 = vshrl.u32 %v7498, 7
    %v7500 = vsub.s32 7, %v7499
    %v7501 = vrot.slane %v5323, %v7500
    %v7646 = vunpack.c.l.b16 %v5194
    %v7647 = vunpack.c.h.b16 %v5194
    %v7648 = vunpack.c.l.b16 %v5195
    %v7649 = vunpack.c.h.b16 %v5195
    %v7650 = vunpack.c.l.b16 %v5196
    %v7651 = vunpack.c.h.b16 %v5196
    %v7652 = vunpack.c.l.b16 %v5197
    %v7653 = vunpack.c.h.b16 %v5197
    %v7654 = vunpack.c.l.b16 %v5198
    %v7655 = vunpack.c.h.b16 %v5198
    %v7656 = vunpack.c.l.b16 %v5199
    %v7657 = vunpack.c.h.b16 %v5199
    %v7658 = vunpack.c.l.b16 %v5200
    %v7659 = vunpack.c.h.b16 %v5200
    %v7660 = vunpack.c.l.b16 %v5201
    %v7661 = vunpack.c.h.b16 %v5201
    %v7662 = vunpack.c.l.b16 %v5202
    %v7663 = vunpack.c.h.b16 %v5202
    %v7664 = vunpack.c.l.b16 %v5203
    %v7665 = vunpack.c.h.b16 %v5203
    %v7666 = vunpack.c.l.b16 %v5204
    %v7667 = vunpack.c.h.b16 %v5204
    %v7668 = vunpack.c.l.b16 %v5205
    %v7669 = vunpack.c.h.b16 %v5205
    %v7670 = vunpack.c.l.b16 %v5206
    %v7671 = vunpack.c.h.b16 %v5206
    %v7672 = vunpack.c.l.b16 %v5207
    %v7673 = vunpack.c.h.b16 %v5207
    %v7674 = vunpack.c.l.b16 %v5208
    %v7675 = vunpack.c.h.b16 %v5208
    %v7676 = vunpack.c.l.b16 %v5209
    %v7677 = vunpack.c.h.b16 %v5209
    %v7678 = vunpack.c.l.b16 %v5210
    %v7679 = vunpack.c.h.b16 %v5210
    %v7680 = vunpack.c.l.b16 %v5211
    %v7681 = vunpack.c.h.b16 %v5211
    %v7682 = vunpack.c.l.b16 %v5212
    %v7683 = vunpack.c.h.b16 %v5212
    %v7684 = vunpack.c.l.b16 %v5213
    %v7685 = vunpack.c.h.b16 %v5213
    %v7686 = vunpack.c.l.b16 %v5214
    %v7687 = vunpack.c.h.b16 %v5214
    %v7688 = vunpack.c.l.b16 %v5215
    %v7689 = vunpack.c.h.b16 %v5215
    %v7690 = vunpack.c.l.b16 %v5216
    %v7691 = vunpack.c.h.b16 %v5216
    %v7692 = vunpack.c.l.b16 %v5217
    %v7693 = vunpack.c.h.b16 %v5217
    %v7694 = vunpack.c.l.b16 %v5218
    %v7695 = vunpack.c.h.b16 %v5218
    %v7696 = vunpack.c.l.b16 %v5219
    %v7697 = vunpack.c.h.b16 %v5219
    %v7698 = vunpack.c.l.b16 %v5220
    %v7699 = vunpack.c.h.b16 %v5220
    %v7700 = vunpack.c.l.b16 %v5221
    %v7701 = vunpack.c.h.b16 %v5221
    %v7702 = vunpack.c.l.b16 %v5222
    %v7703 = vunpack.c.h.b16 %v5222
    %v7704 = vunpack.c.l.b16 %v5223
    %v7705 = vunpack.c.h.b16 %v5223
    %v7706 = vunpack.c.l.b16 %v5224
    %v7707 = vunpack.c.h.b16 %v5224
    %v7708 = vunpack.c.l.b16 %v5225
    %v7709 = vunpack.c.h.b16 %v5225
    %v7710 = vunpack.c.l.b16 %v5226
    %v7711 = vunpack.c.h.b16 %v5226
    %v7712 = vunpack.c.l.b16 %v5227
    %v7713 = vunpack.c.h.b16 %v5227
    %v7714 = vunpack.c.l.b16 %v5228
    %v7715 = vunpack.c.h.b16 %v5228
    %v7716 = vunpack.c.l.b16 %v5229
    %v7717 = vunpack.c.h.b16 %v5229
    %v7718 = vunpack.c.l.b16 %v5230
    %v7719 = vunpack.c.h.b16 %v5230
    %v7720 = vunpack.c.l.b16 %v5231
    %v7721 = vunpack.c.h.b16 %v5231
    %v7722 = vunpack.c.l.b16 %v5232
    %v7723 = vunpack.c.h.b16 %v5232
    %v7724 = vunpack.c.l.b16 %v5233
    %v7725 = vunpack.c.h.b16 %v5233
    %v7726 = vunpack.c.l.b16 %v5234
    %v7727 = vunpack.c.h.b16 %v5234
    %v7728 = vunpack.c.l.b16 %v5235
    %v7729 = vunpack.c.h.b16 %v5235
    %v7730 = vunpack.c.l.b16 %v5236
    %v7731 = vunpack.c.h.b16 %v5236
    %v7732 = vunpack.c.l.b16 %v5237
    %v7733 = vunpack.c.h.b16 %v5237
    %v7734 = vunpack.c.l.b16 %v5238
    %v7735 = vunpack.c.h.b16 %v5238
    %v7736 = vunpack.c.l.b16 %v5239
    %v7737 = vunpack.c.h.b16 %v5239
    %v7738 = vunpack.c.l.b16 %v5240
    %v7739 = vunpack.c.h.b16 %v5240
    %v7740 = vunpack.c.l.b16 %v5241
    %v7741 = vunpack.c.h.b16 %v5241
    %v7742 = vunpack.c.l.b16 %v5242
    %v7743 = vunpack.c.h.b16 %v5242
    %v7744 = vunpack.c.l.b16 %v5243
    %v7745 = vunpack.c.h.b16 %v5243
    %v7746 = vunpack.c.l.b16 %v5244
    %v7747 = vunpack.c.h.b16 %v5244
    %v7748 = vunpack.c.l.b16 %v5245
    %v7749 = vunpack.c.h.b16 %v5245
    %v7750 = vunpack.c.l.b16 %v5246
    %v7751 = vunpack.c.h.b16 %v5246
    %v7752 = vunpack.c.l.b16 %v5247
    %v7753 = vunpack.c.h.b16 %v5247
    %v7754 = vunpack.c.l.b16 %v5248
    %v7755 = vunpack.c.h.b16 %v5248
    %v7756 = vunpack.c.l.b16 %v5249
    %v7757 = vunpack.c.h.b16 %v5249
    %v7758 = vunpack.c.l.b16 %v5250
    %v7759 = vunpack.c.h.b16 %v5250
    %v7760 = vunpack.c.l.b16 %v5251
    %v7761 = vunpack.c.h.b16 %v5251
    %v7762 = vunpack.c.l.b16 %v5252
    %v7763 = vunpack.c.h.b16 %v5252
    %v7764 = vunpack.c.l.b16 %v5253
    %v7765 = vunpack.c.h.b16 %v5253
    %v7766 = vunpack.c.l.b16 %v5254
    %v7767 = vunpack.c.h.b16 %v5254
    %v7768 = vunpack.c.l.b16 %v5255
    %v7769 = vunpack.c.h.b16 %v5255
    %v7770 = vunpack.c.l.b16 %v5256
    %v7771 = vunpack.c.h.b16 %v5256
    %v7772 = vunpack.c.l.b16 %v5257
    %v7773 = vunpack.c.h.b16 %v5257
    %v7774 = vunpack.c.l.b16 %v5258
    %v7775 = vunpack.c.h.b16 %v5258
    %v7776 = vunpack.c.l.b16 %v5259
    %v7777 = vunpack.c.h.b16 %v5259
    %v7778 = vunpack.c.l.b16 %v5260
    %v7779 = vunpack.c.h.b16 %v5260
    %v7780 = vunpack.c.l.b16 %v5261
    %v7781 = vunpack.c.h.b16 %v5261
    %v7782 = vunpack.c.l.b16 %v5262
    %v7783 = vunpack.c.h.b16 %v5262
    %v7784 = vunpack.c.l.b16 %v5263
    %v7785 = vunpack.c.h.b16 %v5263
    %v7786 = vunpack.c.l.b16 %v5264
    %v7787 = vunpack.c.h.b16 %v5264
    %v7788 = vunpack.c.l.b16 %v5265
    %v7789 = vunpack.c.h.b16 %v5265
    %v7790 = vunpack.c.l.b16 %v5266
    %v7791 = vunpack.c.h.b16 %v5266
    %v7792 = vunpack.c.l.b16 %v5267
    %v7793 = vunpack.c.h.b16 %v5267
    %v7794 = vunpack.c.l.b16 %v5268
    %v7795 = vunpack.c.h.b16 %v5268
    %v7796 = vunpack.c.l.b16 %v5269
    %v7797 = vunpack.c.h.b16 %v5269
    %v7798 = vunpack.c.l.b16 %v5270
    %v7799 = vunpack.c.h.b16 %v5270
    %v7800 = vunpack.c.l.b16 %v5271
    %v7801 = vunpack.c.h.b16 %v5271
    %v7802 = vunpack.c.l.b16 %v5272
    %v7803 = vunpack.c.h.b16 %v5272
    %v7804 = vunpack.c.l.b16 %v5273
    %v7805 = vunpack.c.h.b16 %v5273
    %v7806 = vunpack.c.l.b16 %v5274
    %v7807 = vunpack.c.h.b16 %v5274
    %v7808 = vunpack.c.l.b16 %v5275
    %v7809 = vunpack.c.h.b16 %v5275
    %v7810 = vunpack.c.l.b16 %v5276
    %v7811 = vunpack.c.h.b16 %v5276
    %v7812 = vunpack.c.l.b16 %v5277
    %v7813 = vunpack.c.h.b16 %v5277
    %v7814 = vunpack.c.l.b16 %v5278
    %v7815 = vunpack.c.h.b16 %v5278
    %v7816 = vunpack.c.l.b16 %v5279
    %v7817 = vunpack.c.h.b16 %v5279
    %v7818 = vunpack.c.l.b16 %v5280
    %v7819 = vunpack.c.h.b16 %v5280
    %v7820 = vunpack.c.l.b16 %v5281
    %v7821 = vunpack.c.h.b16 %v5281
    %v7822 = vunpack.c.l.b16 %v5282
    %v7823 = vunpack.c.h.b16 %v5282
    %v7824 = vunpack.c.l.b16 %v5283
    %v7825 = vunpack.c.h.b16 %v5283
    %v7826 = vunpack.c.l.b16 %v5284
    %v7827 = vunpack.c.h.b16 %v5284
    %v7828 = vunpack.c.l.b16 %v5285
    %v7829 = vunpack.c.h.b16 %v5285
    %v7830 = vunpack.c.l.b16 %v5286
    %v7831 = vunpack.c.h.b16 %v5286
    %v7832 = vunpack.c.l.b16 %v5287
    %v7833 = vunpack.c.h.b16 %v5287
    %v7834 = vunpack.c.l.b16 %v5288
    %v7835 = vunpack.c.h.b16 %v5288
    %v7836 = vunpack.c.l.b16 %v5289
    %v7837 = vunpack.c.h.b16 %v5289
    %v7838 = vunpack.c.l.b16 %v5290
    %v7839 = vunpack.c.h.b16 %v5290
    %v7840 = vunpack.c.l.b16 %v5291
    %v7841 = vunpack.c.h.b16 %v5291
    %v7842 = vunpack.c.l.b16 %v5292
    %v7843 = vunpack.c.h.b16 %v5292
    %v7844 = vunpack.c.l.b16 %v5293
    %v7845 = vunpack.c.h.b16 %v5293
    %v7846 = vunpack.c.l.b16 %v5294
    %v7847 = vunpack.c.h.b16 %v5294
    %v7848 = vunpack.c.l.b16 %v5295
    %v7849 = vunpack.c.h.b16 %v5295
    %v7850 = vunpack.c.l.b16 %v5296
    %v7851 = vunpack.c.h.b16 %v5296
    %v7852 = vunpack.c.l.b16 %v5297
    %v7853 = vunpack.c.h.b16 %v5297
    %v7854 = vunpack.c.l.b16 %v5298
    %v7855 = vunpack.c.h.b16 %v5298
    %v7856 = vunpack.c.l.b16 %v5299
    %v7857 = vunpack.c.h.b16 %v5299
    %v7858 = vunpack.c.l.b16 %v5300
    %v7859 = vunpack.c.h.b16 %v5300
    %v7860 = vunpack.c.l.b16 %v5301
    %v7861 = vunpack.c.h.b16 %v5301
    %v7862 = vunpack.c.l.b16 %v5302
    %v7863 = vunpack.c.h.b16 %v5302
    %v7864 = vunpack.c.l.b16 %v5303
    %v7865 = vunpack.c.h.b16 %v5303
    %v7866 = vunpack.c.l.b16 %v5304
    %v7867 = vunpack.c.h.b16 %v5304
    %v7868 = vunpack.c.l.b16 %v5305
    %v7869 = vunpack.c.h.b16 %v5305
    %v7870 = vunpack.c.l.b16 %v5306
    %v7871 = vunpack.c.h.b16 %v5306
    %v7872 = vunpack.c.l.b16 %v5307
    %v7873 = vunpack.c.h.b16 %v5307
    %v7874 = vunpack.c.l.b16 %v5308
    %v7875 = vunpack.c.h.b16 %v5308
    %v7876 = vunpack.c.l.b16 %v5309
    %v7877 = vunpack.c.h.b16 %v5309
    %v7878 = vunpack.c.l.b16 %v5310
    %v7879 = vunpack.c.h.b16 %v5310
    %v7880 = vunpack.c.l.b16 %v5311
    %v7881 = vunpack.c.h.b16 %v5311
    %v7882 = vunpack.c.l.b16 %v5312
    %v7883 = vunpack.c.h.b16 %v5312
    %v7884 = vunpack.c.l.b16 %v5313
    %v7885 = vunpack.c.h.b16 %v5313
    %v7886 = vunpack.c.l.b16 %v5314
    %v7887 = vunpack.c.h.b16 %v5314
    %v7888 = vunpack.c.l.b16 %v5315
    %v7889 = vunpack.c.h.b16 %v5315
    %v7890 = vunpack.c.l.b16 %v5316
    %v7891 = vunpack.c.h.b16 %v5316
    %v7892 = vunpack.c.l.b16 %v5317
    %v7893 = vunpack.c.h.b16 %v5317
    %v7894 = vunpack.c.l.b16 %v5318
    %v7895 = vunpack.c.h.b16 %v5318
    %v7896 = vunpack.c.l.b16 %v5319
    %v7897 = vunpack.c.h.b16 %v5319
    %v7898 = vunpack.c.l.b16 %v5320
    %v7899 = vunpack.c.h.b16 %v5320
    %v7900 = vunpack.c.l.b16 %v5321
    %v7901 = vunpack.c.h.b16 %v5321
    %v7902 = vpack.c.b16 %v7662, %v7646
    %v7903 = vpack.c.b16 %v7663, %v7647
    %v7904 = vpack.c.b16 %v7664, %v7648
    %v7905 = vpack.c.b16 %v7665, %v7649
    %v7906 = vpack.c.b16 %v7666, %v7650
    %v7907 = vpack.c.b16 %v7667, %v7651
    %v7908 = vpack.c.b16 %v7668, %v7652
    %v7909 = vpack.c.b16 %v7669, %v7653
    %v7910 = vpack.c.b16 %v7670, %v7654
    %v7911 = vpack.c.b16 %v7671, %v7655
    %v7912 = vpack.c.b16 %v7672, %v7656
    %v7913 = vpack.c.b16 %v7673, %v7657
    %v7914 = vpack.c.b16 %v7674, %v7658
    %v7915 = vpack.c.b16 %v7675, %v7659
    %v7916 = vpack.c.b16 %v7676, %v7660
    %v7917 = vpack.c.b16 %v7677, %v7661
    %v7918 = vpack.c.b16 %v7694, %v7678
    %v7919 = vpack.c.b16 %v7695, %v7679
    %v7920 = vpack.c.b16 %v7696, %v7680
    %v7921 = vpack.c.b16 %v7697, %v7681
    %v7922 = vpack.c.b16 %v7698, %v7682
    %v7923 = vpack.c.b16 %v7699, %v7683
    %v7924 = vpack.c.b16 %v7700, %v7684
    %v7925 = vpack.c.b16 %v7701, %v7685
    %v7926 = vpack.c.b16 %v7702, %v7686
    %v7927 = vpack.c.b16 %v7703, %v7687
    %v7928 = vpack.c.b16 %v7704, %v7688
    %v7929 = vpack.c.b16 %v7705, %v7689
    %v7930 = vpack.c.b16 %v7706, %v7690
    %v7931 = vpack.c.b16 %v7707, %v7691
    %v7932 = vpack.c.b16 %v7708, %v7692
    %v7933 = vpack.c.b16 %v7709, %v7693
    %v7934 = vpack.c.b16 %v7726, %v7710
    %v7935 = vpack.c.b16 %v7727, %v7711
    %v7936 = vpack.c.b16 %v7728, %v7712
    %v7937 = vpack.c.b16 %v7729, %v7713
    %v7938 = vpack.c.b16 %v7730, %v7714
    %v7939 = vpack.c.b16 %v7731, %v7715
    %v7940 = vpack.c.b16 %v7732, %v7716
    %v7941 = vpack.c.b16 %v7733, %v7717
    %v7942 = vpack.c.b16 %v7734, %v7718
    %v7943 = vpack.c.b16 %v7735, %v7719
    %v7944 = vpack.c.b16 %v7736, %v7720
    %v7945 = vpack.c.b16 %v7737, %v7721
    %v7946 = vpack.c.b16 %v7738, %v7722
    %v7947 = vpack.c.b16 %v7739, %v7723
    %v7948 = vpack.c.b16 %v7740, %v7724
    %v7949 = vpack.c.b16 %v7741, %v7725
    %v7950 = vpack.c.b16 %v7758, %v7742
    %v7951 = vpack.c.b16 %v7759, %v7743
    %v7952 = vpack.c.b16 %v7760, %v7744
    %v7953 = vpack.c.b16 %v7761, %v7745
    %v7954 = vpack.c.b16 %v7762, %v7746
    %v7955 = vpack.c.b16 %v7763, %v7747
    %v7956 = vpack.c.b16 %v7764, %v7748
    %v7957 = vpack.c.b16 %v7765, %v7749
    %v7958 = vpack.c.b16 %v7766, %v7750
    %v7959 = vpack.c.b16 %v7767, %v7751
    %v7960 = vpack.c.b16 %v7768, %v7752
    %v7961 = vpack.c.b16 %v7769, %v7753
    %v7962 = vpack.c.b16 %v7770, %v7754
    %v7963 = vpack.c.b16 %v7771, %v7755
    %v7964 = vpack.c.b16 %v7772, %v7756
    %v7965 = vpack.c.b16 %v7773, %v7757
    %v7966 = vpack.c.b16 %v7790, %v7774
    %v7967 = vpack.c.b16 %v7791, %v7775
    %v7968 = vpack.c.b16 %v7792, %v7776
    %v7969 = vpack.c.b16 %v7793, %v7777
    %v7970 = vpack.c.b16 %v7794, %v7778
    %v7971 = vpack.c.b16 %v7795, %v7779
    %v7972 = vpack.c.b16 %v7796, %v7780
    %v7973 = vpack.c.b16 %v7797, %v7781
    %v7974 = vpack.c.b16 %v7798, %v7782
    %v7975 = vpack.c.b16 %v7799, %v7783
    %v7976 = vpack.c.b16 %v7800, %v7784
    %v7977 = vpack.c.b16 %v7801, %v7785
    %v7978 = vpack.c.b16 %v7802, %v7786
    %v7979 = vpack.c.b16 %v7803, %v7787
    %v7980 = vpack.c.b16 %v7804, %v7788
    %v7981 = vpack.c.b16 %v7805, %v7789
    %v7982 = vpack.c.b16 %v7822, %v7806
    %v7983 = vpack.c.b16 %v7823, %v7807
    %v7984 = vpack.c.b16 %v7824, %v7808
    %v7985 = vpack.c.b16 %v7825, %v7809
    %v7986 = vpack.c.b16 %v7826, %v7810
    %v7987 = vpack.c.b16 %v7827, %v7811
    %v7988 = vpack.c.b16 %v7828, %v7812
    %v7989 = vpack.c.b16 %v7829, %v7813
    %v7990 = vpack.c.b16 %v7830, %v7814
    %v7991 = vpack.c.b16 %v7831, %v7815
    %v7992 = vpack.c.b16 %v7832, %v7816
    %v7993 = vpack.c.b16 %v7833, %v7817
    %v7994 = vpack.c.b16 %v7834, %v7818
    %v7995 = vpack.c.b16 %v7835, %v7819
    %v7996 = vpack.c.b16 %v7836, %v7820
    %v7997 = vpack.c.b16 %v7837, %v7821
    %v7998 = vpack.c.b16 %v7854, %v7838
    %v7999 = vpack.c.b16 %v7855, %v7839
    %v8000 = vpack.c.b16 %v7856, %v7840
    %v8001 = vpack.c.b16 %v7857, %v7841
    %v8002 = vpack.c.b16 %v7858, %v7842
    %v8003 = vpack.c.b16 %v7859, %v7843
    %v8004 = vpack.c.b16 %v7860, %v7844
    %v8005 = vpack.c.b16 %v7861, %v7845
    %v8006 = vpack.c.b16 %v7862, %v7846
    %v8007 = vpack.c.b16 %v7863, %v7847
    %v8008 = vpack.c.b16 %v7864, %v7848
    %v8009 = vpack.c.b16 %v7865, %v7849
    %v8010 = vpack.c.b16 %v7866, %v7850
    %v8011 = vpack.c.b16 %v7867, %v7851
    %v8012 = vpack.c.b16 %v7868, %v7852
    %v8013 = vpack.c.b16 %v7869, %v7853
    %v8014 = vpack.c.b16 %v7886, %v7870
    %v8015 = vpack.c.b16 %v7887, %v7871
    %v8016 = vpack.c.b16 %v7888, %v7872
    %v8017 = vpack.c.b16 %v7889, %v7873
    %v8018 = vpack.c.b16 %v7890, %v7874
    %v8019 = vpack.c.b16 %v7891, %v7875
    %v8020 = vpack.c.b16 %v7892, %v7876
    %v8021 = vpack.c.b16 %v7893, %v7877
    %v8022 = vpack.c.b16 %v7894, %v7878
    %v8023 = vpack.c.b16 %v7895, %v7879
    %v8024 = vpack.c.b16 %v7896, %v7880
    %v8025 = vpack.c.b16 %v7897, %v7881
    %v8026 = vpack.c.b16 %v7898, %v7882
    %v8027 = vpack.c.b16 %v7899, %v7883
    %v8028 = vpack.c.b16 %v7900, %v7884
    %v8029 = vpack.c.b16 %v7901, %v7885
    %8158 = vmatprep.subr.bf16.mxu0 %v8015
    %8159 = vmatpush1.bf16.msra.mxu0 %v8014
    %8160 = vmatprep.subr.bf16.mxu0 %v7999
    %8161 = vmatpush1.bf16.msra.mxu0 %v7998
    %8162 = vmatprep.subr.bf16.mxu0 %v7983
    %8163 = vmatpush1.bf16.msra.mxu0 %v7982
    %8164 = vmatprep.subr.bf16.mxu0 %v7967
    %8165 = vmatpush1.bf16.msra.mxu0 %v7966
    %8166 = vmatprep.subr.bf16.mxu0 %v7951
    %8167 = vmatpush1.bf16.msra.mxu0 %v7950
    %8168 = vmatprep.subr.bf16.mxu0 %v7935
    %8169 = vmatpush1.bf16.msra.mxu0 %v7934
    %8170 = vmatprep.subr.bf16.mxu0 %v7919
    %8171 = vmatpush1.bf16.msra.mxu0 %v7918
    %8172 = vmatprep.subr.bf16.mxu0 %v7903
    %8173 = vmatpush1.bf16.msra.mxu0 %v7902
    %8174 = vmatprep.subr.bf16.mxu0 0
    %8175 = vmatpush2.bf16.msra.mxu0 0
    %8176 = vmatprep.subr.bf16.mxu0 0
    %8177 = vmatpush2.bf16.msra.mxu0 0
    %8178 = vmatprep.subr.bf16.mxu0 0
    %8179 = vmatpush2.bf16.msra.mxu0 0
    %8180 = vmatprep.subr.bf16.mxu0 0
    %8181 = vmatpush2.bf16.msra.mxu0 0
    %8182 = vmatprep.subr.bf16.mxu0 0
    %8183 = vmatpush2.bf16.msra.mxu0 0
    %8184 = vmatprep.subr.bf16.mxu0 0
    %8185 = vmatpush2.bf16.msra.mxu0 0
    %8186 = vmatprep.subr.bf16.mxu0 0
    %8187 = vmatpush2.bf16.msra.mxu0 0
    %8188 = vmatprep.subr.bf16.mxu0 0
    %8189 = vmatpush2.bf16.msra.mxu0 0
    %8190 = vmatprep.mubr.bf16.mxu0 0
    %8191 = vmatmul.mubr.bf16.gmra.mxu0 %v7434
    %v8192 = vpop.f32.mrf.mxu0
    %v8193 = vadd.f32 %v7441, %v8192
    %v8194 = vpop.f32.mrf.mxu0
    %v8195 = vadd.f32 %v7445, %v8194
    %v8196 = vpop.f32.mrf.mxu0
    %v8197 = vadd.f32 %v7441, %v8196
    %v8198 = vpop.f32.mrf.mxu0
    %v8199 = vadd.f32 %v7445, %v8198
    %8200 = vmatprep.mubr.bf16.mxu0 0
    %8201 = vmatmul.mubr.bf16.gmra.mxu0 %v7435
    %v8202 = vpop.f32.mrf.mxu0
    %v8203 = vadd.f32 %v7441, %v8202
    %v8204 = vpop.f32.mrf.mxu0
    %v8205 = vadd.f32 %v7445, %v8204
    %v8206 = vpop.f32.mrf.mxu0
    %v8207 = vpop.f32.mrf.mxu0
    %8208 = vdwg.mxu0
    %8209 = vmatprep.subr.bf16.mxu0 %v8017
    %8210 = vmatpush1.bf16.msra.mxu0 %v8016
    %8211 = vmatprep.subr.bf16.mxu0 %v8001
    %8212 = vmatpush1.bf16.msra.mxu0 %v8000
    %8213 = vmatprep.subr.bf16.mxu0 %v7985
    %8214 = vmatpush1.bf16.msra.mxu0 %v7984
    %8215 = vmatprep.subr.bf16.mxu0 %v7969
    %8216 = vmatpush1.bf16.msra.mxu0 %v7968
    %8217 = vmatprep.subr.bf16.mxu0 %v7953
    %8218 = vmatpush1.bf16.msra.mxu0 %v7952
    %8219 = vmatprep.subr.bf16.mxu0 %v7937
    %8220 = vmatpush1.bf16.msra.mxu0 %v7936
    %8221 = vmatprep.subr.bf16.mxu0 %v7921
    %8222 = vmatpush1.bf16.msra.mxu0 %v7920
    %8223 = vmatprep.subr.bf16.mxu0 %v7905
    %8224 = vmatpush1.bf16.msra.mxu0 %v7904
    %8225 = vmatprep.subr.bf16.mxu0 0
    %8226 = vmatpush2.bf16.msra.mxu0 0
    %8227 = vmatprep.subr.bf16.mxu0 0
    %8228 = vmatpush2.bf16.msra.mxu0 0
    %8229 = vmatprep.subr.bf16.mxu0 0
    %8230 = vmatpush2.bf16.msra.mxu0 0
    %8231 = vmatprep.subr.bf16.mxu0 0
    %8232 = vmatpush2.bf16.msra.mxu0 0
    %8233 = vmatprep.subr.bf16.mxu0 0
    %8234 = vmatpush2.bf16.msra.mxu0 0
    %8235 = vmatprep.subr.bf16.mxu0 0
    %8236 = vmatpush2.bf16.msra.mxu0 0
    %8237 = vmatprep.subr.bf16.mxu0 0
    %8238 = vmatpush2.bf16.msra.mxu0 0
    %8239 = vmatprep.subr.bf16.mxu0 0
    %8240 = vmatpush2.bf16.msra.mxu0 0
    %8241 = vmatprep.mubr.bf16.mxu0 0
    %8242 = vmatmul.mubr.bf16.gmra.mxu0 %v7434
    %v8243 = vpop.f32.mrf.mxu0
    %v8244 = vadd.f32 %v7449, %v8243
    %v8245 = vpop.f32.mrf.mxu0
    %v8246 = vadd.f32 %v7453, %v8245
    %v8247 = vpop.f32.mrf.mxu0
    %v8248 = vadd.f32 %v7449, %v8247
    %v8249 = vpop.f32.mrf.mxu0
    %v8250 = vadd.f32 %v7453, %v8249
    %8251 = vmatprep.mubr.bf16.mxu0 0
    %8252 = vmatmul.mubr.bf16.gmra.mxu0 %v7435
    %v8253 = vpop.f32.mrf.mxu0
    %v8254 = vadd.f32 %v7449, %v8253
    %v8255 = vpop.f32.mrf.mxu0
    %v8256 = vadd.f32 %v7453, %v8255
    %v8257 = vpop.f32.mrf.mxu0
    %v8258 = vpop.f32.mrf.mxu0
    %8259 = vdwg.mxu0
    %8260 = vmatprep.subr.bf16.mxu0 %v8019
    %8261 = vmatpush1.bf16.msra.mxu0 %v8018
    %8262 = vmatprep.subr.bf16.mxu0 %v8003
    %8263 = vmatpush1.bf16.msra.mxu0 %v8002
    %8264 = vmatprep.subr.bf16.mxu0 %v7987
    %8265 = vmatpush1.bf16.msra.mxu0 %v7986
    %8266 = vmatprep.subr.bf16.mxu0 %v7971
    %8267 = vmatpush1.bf16.msra.mxu0 %v7970
    %8268 = vmatprep.subr.bf16.mxu0 %v7955
    %8269 = vmatpush1.bf16.msra.mxu0 %v7954
    %8270 = vmatprep.subr.bf16.mxu0 %v7939
    %8271 = vmatpush1.bf16.msra.mxu0 %v7938
    %8272 = vmatprep.subr.bf16.mxu0 %v7923
    %8273 = vmatpush1.bf16.msra.mxu0 %v7922
    %8274 = vmatprep.subr.bf16.mxu0 %v7907
    %8275 = vmatpush1.bf16.msra.mxu0 %v7906
    %8276 = vmatprep.subr.bf16.mxu0 0
    %8277 = vmatpush2.bf16.msra.mxu0 0
    %8278 = vmatprep.subr.bf16.mxu0 0
    %8279 = vmatpush2.bf16.msra.mxu0 0
    %8280 = vmatprep.subr.bf16.mxu0 0
    %8281 = vmatpush2.bf16.msra.mxu0 0
    %8282 = vmatprep.subr.bf16.mxu0 0
    %8283 = vmatpush2.bf16.msra.mxu0 0
    %8284 = vmatprep.subr.bf16.mxu0 0
    %8285 = vmatpush2.bf16.msra.mxu0 0
    %8286 = vmatprep.subr.bf16.mxu0 0
    %8287 = vmatpush2.bf16.msra.mxu0 0
    %8288 = vmatprep.subr.bf16.mxu0 0
    %8289 = vmatpush2.bf16.msra.mxu0 0
    %8290 = vmatprep.subr.bf16.mxu0 0
    %8291 = vmatpush2.bf16.msra.mxu0 0
    %8292 = vmatprep.mubr.bf16.mxu0 0
    %8293 = vmatmul.mubr.bf16.gmra.mxu0 %v7434
    %v8294 = vpop.f32.mrf.mxu0
    %v8295 = vadd.f32 %v7457, %v8294
    %v8296 = vpop.f32.mrf.mxu0
    %v8297 = vadd.f32 %v7461, %v8296
    %v8298 = vpop.f32.mrf.mxu0
    %v8299 = vadd.f32 %v7457, %v8298
    %v8300 = vpop.f32.mrf.mxu0
    %v8301 = vadd.f32 %v7461, %v8300
    %8302 = vmatprep.mubr.bf16.mxu0 0
    %8303 = vmatmul.mubr.bf16.gmra.mxu0 %v7435
    %v8304 = vpop.f32.mrf.mxu0
    %v8305 = vadd.f32 %v7457, %v8304
    %v8306 = vpop.f32.mrf.mxu0
    %v8307 = vadd.f32 %v7461, %v8306
    %v8308 = vpop.f32.mrf.mxu0
    %v8309 = vpop.f32.mrf.mxu0
    %8310 = vdwg.mxu0
    %8311 = vmatprep.subr.bf16.mxu0 %v8021
    %8312 = vmatpush1.bf16.msra.mxu0 %v8020
    %8313 = vmatprep.subr.bf16.mxu0 %v8005
    %8314 = vmatpush1.bf16.msra.mxu0 %v8004
    %8315 = vmatprep.subr.bf16.mxu0 %v7989
    %8316 = vmatpush1.bf16.msra.mxu0 %v7988
    %8317 = vmatprep.subr.bf16.mxu0 %v7973
    %8318 = vmatpush1.bf16.msra.mxu0 %v7972
    %8319 = vmatprep.subr.bf16.mxu0 %v7957
    %8320 = vmatpush1.bf16.msra.mxu0 %v7956
    %8321 = vmatprep.subr.bf16.mxu0 %v7941
    %8322 = vmatpush1.bf16.msra.mxu0 %v7940
    %8323 = vmatprep.subr.bf16.mxu0 %v7925
    %8324 = vmatpush1.bf16.msra.mxu0 %v7924
    %8325 = vmatprep.subr.bf16.mxu0 %v7909
    %8326 = vmatpush1.bf16.msra.mxu0 %v7908
    %8327 = vmatprep.subr.bf16.mxu0 0
    %8328 = vmatpush2.bf16.msra.mxu0 0
    %8329 = vmatprep.subr.bf16.mxu0 0
    %8330 = vmatpush2.bf16.msra.mxu0 0
    %8331 = vmatprep.subr.bf16.mxu0 0
    %8332 = vmatpush2.bf16.msra.mxu0 0
    %8333 = vmatprep.subr.bf16.mxu0 0
    %8334 = vmatpush2.bf16.msra.mxu0 0
    %8335 = vmatprep.subr.bf16.mxu0 0
    %8336 = vmatpush2.bf16.msra.mxu0 0
    %8337 = vmatprep.subr.bf16.mxu0 0
    %8338 = vmatpush2.bf16.msra.mxu0 0
    %8339 = vmatprep.subr.bf16.mxu0 0
    %8340 = vmatpush2.bf16.msra.mxu0 0
    %8341 = vmatprep.subr.bf16.mxu0 0
    %8342 = vmatpush2.bf16.msra.mxu0 0
    %8343 = vmatprep.mubr.bf16.mxu0 0
    %8344 = vmatmul.mubr.bf16.gmra.mxu0 %v7434
    %v8345 = vpop.f32.mrf.mxu0
    %v8346 = vadd.f32 %v7465, %v8345
    %v8347 = vpop.f32.mrf.mxu0
    %v8348 = vadd.f32 %v7469, %v8347
    %v8349 = vpop.f32.mrf.mxu0
    %v8350 = vadd.f32 %v7465, %v8349
    %v8351 = vpop.f32.mrf.mxu0
    %v8352 = vadd.f32 %v7469, %v8351
    %8353 = vmatprep.mubr.bf16.mxu0 0
    %8354 = vmatmul.mubr.bf16.gmra.mxu0 %v7435
    %v8355 = vpop.f32.mrf.mxu0
    %v8356 = vadd.f32 %v7465, %v8355
    %v8357 = vpop.f32.mrf.mxu0
    %v8358 = vadd.f32 %v7469, %v8357
    %v8359 = vpop.f32.mrf.mxu0
    %v8360 = vpop.f32.mrf.mxu0
    %8361 = vdwg.mxu0
    %8362 = vmatprep.subr.bf16.mxu0 %v8023
    %8363 = vmatpush1.bf16.msra.mxu0 %v8022
    %8364 = vmatprep.subr.bf16.mxu0 %v8007
    %8365 = vmatpush1.bf16.msra.mxu0 %v8006
    %8366 = vmatprep.subr.bf16.mxu0 %v7991
    %8367 = vmatpush1.bf16.msra.mxu0 %v7990
    %8368 = vmatprep.subr.bf16.mxu0 %v7975
    %8369 = vmatpush1.bf16.msra.mxu0 %v7974
    %8370 = vmatprep.subr.bf16.mxu0 %v7959
    %8371 = vmatpush1.bf16.msra.mxu0 %v7958
    %8372 = vmatprep.subr.bf16.mxu0 %v7943
    %8373 = vmatpush1.bf16.msra.mxu0 %v7942
    %8374 = vmatprep.subr.bf16.mxu0 %v7927
    %8375 = vmatpush1.bf16.msra.mxu0 %v7926
    %8376 = vmatprep.subr.bf16.mxu0 %v7911
    %8377 = vmatpush1.bf16.msra.mxu0 %v7910
    %8378 = vmatprep.subr.bf16.mxu0 0
    %8379 = vmatpush2.bf16.msra.mxu0 0
    %8380 = vmatprep.subr.bf16.mxu0 0
    %8381 = vmatpush2.bf16.msra.mxu0 0
    %8382 = vmatprep.subr.bf16.mxu0 0
    %8383 = vmatpush2.bf16.msra.mxu0 0
    %8384 = vmatprep.subr.bf16.mxu0 0
    %8385 = vmatpush2.bf16.msra.mxu0 0
    %8386 = vmatprep.subr.bf16.mxu0 0
    %8387 = vmatpush2.bf16.msra.mxu0 0
    %8388 = vmatprep.subr.bf16.mxu0 0
    %8389 = vmatpush2.bf16.msra.mxu0 0
    %8390 = vmatprep.subr.bf16.mxu0 0
    %8391 = vmatpush2.bf16.msra.mxu0 0
    %8392 = vmatprep.subr.bf16.mxu0 0
    %8393 = vmatpush2.bf16.msra.mxu0 0
    %8394 = vmatprep.mubr.bf16.mxu0 0
    %8395 = vmatmul.mubr.bf16.gmra.mxu0 %v7434
    %v8396 = vpop.f32.mrf.mxu0
    %v8397 = vadd.f32 %v7473, %v8396
    %v8398 = vpop.f32.mrf.mxu0
    %v8399 = vadd.f32 %v7477, %v8398
    %v8400 = vpop.f32.mrf.mxu0
    %v8401 = vadd.f32 %v7473, %v8400
    %v8402 = vpop.f32.mrf.mxu0
    %v8403 = vadd.f32 %v7477, %v8402
    %8404 = vmatprep.mubr.bf16.mxu0 0
    %8405 = vmatmul.mubr.bf16.gmra.mxu0 %v7435
    %v8406 = vpop.f32.mrf.mxu0
    %v8407 = vadd.f32 %v7473, %v8406
    %v8408 = vpop.f32.mrf.mxu0
    %v8409 = vadd.f32 %v7477, %v8408
    %v8410 = vpop.f32.mrf.mxu0
    %v8411 = vpop.f32.mrf.mxu0
    %8412 = vdwg.mxu0
    %8413 = vmatprep.subr.bf16.mxu0 %v8025
    %8414 = vmatpush1.bf16.msra.mxu0 %v8024
    %8415 = vmatprep.subr.bf16.mxu0 %v8009
    %8416 = vmatpush1.bf16.msra.mxu0 %v8008
    %8417 = vmatprep.subr.bf16.mxu0 %v7993
    %8418 = vmatpush1.bf16.msra.mxu0 %v7992
    %8419 = vmatprep.subr.bf16.mxu0 %v7977
    %8420 = vmatpush1.bf16.msra.mxu0 %v7976
    %8421 = vmatprep.subr.bf16.mxu0 %v7961
    %8422 = vmatpush1.bf16.msra.mxu0 %v7960
    %8423 = vmatprep.subr.bf16.mxu0 %v7945
    %8424 = vmatpush1.bf16.msra.mxu0 %v7944
    %8425 = vmatprep.subr.bf16.mxu0 %v7929
    %8426 = vmatpush1.bf16.msra.mxu0 %v7928
    %8427 = vmatprep.subr.bf16.mxu0 %v7913
    %8428 = vmatpush1.bf16.msra.mxu0 %v7912
    %8429 = vmatprep.subr.bf16.mxu0 0
    %8430 = vmatpush2.bf16.msra.mxu0 0
    %8431 = vmatprep.subr.bf16.mxu0 0
    %8432 = vmatpush2.bf16.msra.mxu0 0
    %8433 = vmatprep.subr.bf16.mxu0 0
    %8434 = vmatpush2.bf16.msra.mxu0 0
    %8435 = vmatprep.subr.bf16.mxu0 0
    %8436 = vmatpush2.bf16.msra.mxu0 0
    %8437 = vmatprep.subr.bf16.mxu0 0
    %8438 = vmatpush2.bf16.msra.mxu0 0
    %8439 = vmatprep.subr.bf16.mxu0 0
    %8440 = vmatpush2.bf16.msra.mxu0 0
    %8441 = vmatprep.subr.bf16.mxu0 0
    %8442 = vmatpush2.bf16.msra.mxu0 0
    %8443 = vmatprep.subr.bf16.mxu0 0
    %8444 = vmatpush2.bf16.msra.mxu0 0
    %8445 = vmatprep.mubr.bf16.mxu0 0
    %8446 = vmatmul.mubr.bf16.gmra.mxu0 %v7434
    %v8447 = vpop.f32.mrf.mxu0
    %v8448 = vadd.f32 %v7481, %v8447
    %v8449 = vpop.f32.mrf.mxu0
    %v8450 = vadd.f32 %v7485, %v8449
    %v8451 = vpop.f32.mrf.mxu0
    %v8452 = vadd.f32 %v7481, %v8451
    %v8453 = vpop.f32.mrf.mxu0
    %v8454 = vadd.f32 %v7485, %v8453
    %8455 = vmatprep.mubr.bf16.mxu0 0
    %8456 = vmatmul.mubr.bf16.gmra.mxu0 %v7435
    %v8457 = vpop.f32.mrf.mxu0
    %v8458 = vadd.f32 %v7481, %v8457
    %v8459 = vpop.f32.mrf.mxu0
    %v8460 = vadd.f32 %v7485, %v8459
    %v8461 = vpop.f32.mrf.mxu0
    %v8462 = vpop.f32.mrf.mxu0
    %8463 = vdwg.mxu0
    %8464 = vmatprep.subr.bf16.mxu0 %v8027
    %8465 = vmatpush1.bf16.msra.mxu0 %v8026
    %8466 = vmatprep.subr.bf16.mxu0 %v8011
    %8467 = vmatpush1.bf16.msra.mxu0 %v8010
    %8468 = vmatprep.subr.bf16.mxu0 %v7995
    %8469 = vmatpush1.bf16.msra.mxu0 %v7994
    %8470 = vmatprep.subr.bf16.mxu0 %v7979
    %8471 = vmatpush1.bf16.msra.mxu0 %v7978
    %8472 = vmatprep.subr.bf16.mxu0 %v7963
    %8473 = vmatpush1.bf16.msra.mxu0 %v7962
    %8474 = vmatprep.subr.bf16.mxu0 %v7947
    %8475 = vmatpush1.bf16.msra.mxu0 %v7946
    %8476 = vmatprep.subr.bf16.mxu0 %v7931
    %8477 = vmatpush1.bf16.msra.mxu0 %v7930
    %8478 = vmatprep.subr.bf16.mxu0 %v7915
    %8479 = vmatpush1.bf16.msra.mxu0 %v7914
    %8480 = vmatprep.subr.bf16.mxu0 0
    %8481 = vmatpush2.bf16.msra.mxu0 0
    %8482 = vmatprep.subr.bf16.mxu0 0
    %8483 = vmatpush2.bf16.msra.mxu0 0
    %8484 = vmatprep.subr.bf16.mxu0 0
    %8485 = vmatpush2.bf16.msra.mxu0 0
    %8486 = vmatprep.subr.bf16.mxu0 0
    %8487 = vmatpush2.bf16.msra.mxu0 0
    %8488 = vmatprep.subr.bf16.mxu0 0
    %8489 = vmatpush2.bf16.msra.mxu0 0
    %8490 = vmatprep.subr.bf16.mxu0 0
    %8491 = vmatpush2.bf16.msra.mxu0 0
    %8492 = vmatprep.subr.bf16.mxu0 0
    %8493 = vmatpush2.bf16.msra.mxu0 0
    %8494 = vmatprep.subr.bf16.mxu0 0
    %8495 = vmatpush2.bf16.msra.mxu0 0
    %8496 = vmatprep.mubr.bf16.mxu0 0
    %8497 = vmatmul.mubr.bf16.gmra.mxu0 %v7434
    %v8498 = vpop.f32.mrf.mxu0
    %v8499 = vadd.f32 %v7489, %v8498
    %v8500 = vpop.f32.mrf.mxu0
    %v8501 = vadd.f32 %v7493, %v8500
    %v8502 = vpop.f32.mrf.mxu0
    %v8503 = vadd.f32 %v7489, %v8502
    %v8504 = vpop.f32.mrf.mxu0
    %v8505 = vadd.f32 %v7493, %v8504
    %8506 = vmatprep.mubr.bf16.mxu0 0
    %8507 = vmatmul.mubr.bf16.gmra.mxu0 %v7435
    %v8508 = vpop.f32.mrf.mxu0
    %v8509 = vadd.f32 %v7489, %v8508
    %v8510 = vpop.f32.mrf.mxu0
    %v8511 = vadd.f32 %v7493, %v8510
    %v8512 = vpop.f32.mrf.mxu0
    %v8513 = vpop.f32.mrf.mxu0
    %8514 = vdwg.mxu0
    %8515 = vmatprep.subr.bf16.mxu0 %v8029
    %8516 = vmatpush1.bf16.msra.mxu0 %v8028
    %8517 = vmatprep.subr.bf16.mxu0 %v8013
    %8518 = vmatpush1.bf16.msra.mxu0 %v8012
    %8519 = vmatprep.subr.bf16.mxu0 %v7997
    %8520 = vmatpush1.bf16.msra.mxu0 %v7996
    %8521 = vmatprep.subr.bf16.mxu0 %v7981
    %8522 = vmatpush1.bf16.msra.mxu0 %v7980
    %8523 = vmatprep.subr.bf16.mxu0 %v7965
    %8524 = vmatpush1.bf16.msra.mxu0 %v7964
    %8525 = vmatprep.subr.bf16.mxu0 %v7949
    %8526 = vmatpush1.bf16.msra.mxu0 %v7948
    %8527 = vmatprep.subr.bf16.mxu0 %v7933
    %8528 = vmatpush1.bf16.msra.mxu0 %v7932
    %8529 = vmatprep.subr.bf16.mxu0 %v7917
    %8530 = vmatpush1.bf16.msra.mxu0 %v7916
    %8531 = vmatprep.subr.bf16.mxu0 0
    %8532 = vmatpush2.bf16.msra.mxu0 0
    %8533 = vmatprep.subr.bf16.mxu0 0
    %8534 = vmatpush2.bf16.msra.mxu0 0
    %8535 = vmatprep.subr.bf16.mxu0 0
    %8536 = vmatpush2.bf16.msra.mxu0 0
    %8537 = vmatprep.subr.bf16.mxu0 0
    %8538 = vmatpush2.bf16.msra.mxu0 0
    %8539 = vmatprep.subr.bf16.mxu0 0
    %8540 = vmatpush2.bf16.msra.mxu0 0
    %8541 = vmatprep.subr.bf16.mxu0 0
    %8542 = vmatpush2.bf16.msra.mxu0 0
    %8543 = vmatprep.subr.bf16.mxu0 0
    %8544 = vmatpush2.bf16.msra.mxu0 0
    %8545 = vmatprep.subr.bf16.mxu0 0
    %8546 = vmatpush2.bf16.msra.mxu0 0
    %8547 = vmatprep.mubr.bf16.mxu0 0
    %8548 = vmatmul.mubr.bf16.gmra.mxu0 %v7434
    %v8549 = vpop.f32.mrf.mxu0
    %v8550 = vadd.f32 %v7497, %v8549
    %v8551 = vpop.f32.mrf.mxu0
    %v8552 = vadd.f32 %v7501, %v8551
    %v8553 = vpop.f32.mrf.mxu0
    %v8554 = vadd.f32 %v7497, %v8553
    %v8555 = vpop.f32.mrf.mxu0
    %v8556 = vadd.f32 %v7501, %v8555
    %8557 = vmatprep.mubr.bf16.mxu0 0
    %8558 = vmatmul.mubr.bf16.gmra.mxu0 %v7435
    %v8559 = vpop.f32.mrf.mxu0
    %v8560 = vadd.f32 %v7497, %v8559
    %v8561 = vpop.f32.mrf.mxu0
    %v8562 = vadd.f32 %v7501, %v8561
    %v8563 = vpop.f32.mrf.mxu0
    %v8564 = vpop.f32.mrf.mxu0
    %8565 = vdwg.mxu0
    %v8566 = vmax.f32 %v8193, 0.0
    %v8567 = vmax.f32 %v8195, 0.0
    %v8568 = vmax.f32 %v8244, 0.0
    %v8569 = vmax.f32 %v8246, 0.0
    %v8570 = vmax.f32 %v8295, 0.0
    %v8571 = vmax.f32 %v8297, 0.0
    %v8572 = vmax.f32 %v8346, 0.0
    %v8573 = vmax.f32 %v8348, 0.0
    %v8574 = vmax.f32 %v8397, 0.0
    %v8575 = vmax.f32 %v8399, 0.0
    %v8576 = vmax.f32 %v8448, 0.0
    %v8577 = vmax.f32 %v8450, 0.0
    %v8578 = vmax.f32 %v8499, 0.0
    %v8579 = vmax.f32 %v8501, 0.0
    %v8580 = vmax.f32 %v8550, 0.0
    %v8581 = vmax.f32 %v8552, 0.0
    %v8582 = vmax.f32 %v8197, 0.0
    %v8583 = vmax.f32 %v8199, 0.0
    %v8584 = vmax.f32 %v8248, 0.0
    %v8585 = vmax.f32 %v8250, 0.0
    %v8586 = vmax.f32 %v8299, 0.0
    %v8587 = vmax.f32 %v8301, 0.0
    %v8588 = vmax.f32 %v8350, 0.0
    %v8589 = vmax.f32 %v8352, 0.0
    %v8590 = vmax.f32 %v8401, 0.0
    %v8591 = vmax.f32 %v8403, 0.0
    %v8592 = vmax.f32 %v8452, 0.0
    %v8593 = vmax.f32 %v8454, 0.0
    %v8594 = vmax.f32 %v8503, 0.0
    %v8595 = vmax.f32 %v8505, 0.0
    %v8596 = vmax.f32 %v8554, 0.0
    %v8597 = vmax.f32 %v8556, 0.0
    %v8598 = vmax.f32 %v8203, 0.0
    %v8599 = vmax.f32 %v8205, 0.0
    %v8600 = vmax.f32 %v8254, 0.0
    %v8601 = vmax.f32 %v8256, 0.0
    %v8602 = vmax.f32 %v8305, 0.0
    %v8603 = vmax.f32 %v8307, 0.0
    %v8604 = vmax.f32 %v8356, 0.0
    %v8605 = vmax.f32 %v8358, 0.0
    %v8606 = vmax.f32 %v8407, 0.0
    %v8607 = vmax.f32 %v8409, 0.0
    %v8608 = vmax.f32 %v8458, 0.0
    %v8609 = vmax.f32 %v8460, 0.0
    %v8610 = vmax.f32 %v8509, 0.0
    %v8611 = vmax.f32 %v8511, 0.0
    %v8612 = vmax.f32 %v8560, 0.0
    %v8613 = vmax.f32 %v8562, 0.0
    %v8614 = vpack.c.bf16 %v8582, %v8566
    %v8615 = vpack.c.bf16 %v8583, %v8567
    %v8616 = vpack.c.bf16 %v8584, %v8568
    %v8617 = vpack.c.bf16 %v8585, %v8569
    %v8618 = vpack.c.bf16 %v8586, %v8570
    %v8619 = vpack.c.bf16 %v8587, %v8571
    %v8620 = vpack.c.bf16 %v8588, %v8572
    %v8621 = vpack.c.bf16 %v8589, %v8573
    %v8622 = vpack.c.bf16 %v8590, %v8574
    %v8623 = vpack.c.bf16 %v8591, %v8575
    %v8624 = vpack.c.bf16 %v8592, %v8576
    %v8625 = vpack.c.bf16 %v8593, %v8577
    %v8626 = vpack.c.bf16 %v8594, %v8578
    %v8627 = vpack.c.bf16 %v8595, %v8579
    %v8628 = vpack.c.bf16 %v8596, %v8580
    %v8629 = vpack.c.bf16 %v8597, %v8581
    %v8630 = vpack.c.bf16 %v8598, %v8598
    %v8631 = vpack.c.bf16 %v8599, %v8599
    %v8632 = vpack.c.bf16 %v8600, %v8600
    %v8633 = vpack.c.bf16 %v8601, %v8601
    %v8634 = vpack.c.bf16 %v8602, %v8602
    %v8635 = vpack.c.bf16 %v8603, %v8603
    %v8636 = vpack.c.bf16 %v8604, %v8604
    %v8637 = vpack.c.bf16 %v8605, %v8605
    %v8638 = vpack.c.bf16 %v8606, %v8606
    %v8639 = vpack.c.bf16 %v8607, %v8607
    %v8640 = vpack.c.bf16 %v8608, %v8608
    %v8641 = vpack.c.bf16 %v8609, %v8609
    %v8642 = vpack.c.bf16 %v8610, %v8610
    %v8643 = vpack.c.bf16 %v8611, %v8611
    %v8644 = vpack.c.bf16 %v8612, %v8612
    %v8645 = vpack.c.bf16 %v8613, %v8613
    %v8647 = vlaneseq
    %v8648 = vshrl.u32 %v8647, 7
    %v8649 = vsub.s32 0, %v8648
    %v8650 = vrot.slane %v5580, %v8649
    %v8908 = vunpack.c.l.b16 %v5324
    %v8909 = vunpack.c.l.b16 %v5325
    %v8910 = vunpack.c.l.b16 %v5326
    %v8911 = vunpack.c.l.b16 %v5327
    %v8912 = vunpack.c.l.b16 %v5328
    %v8913 = vunpack.c.l.b16 %v5329
    %v8914 = vunpack.c.l.b16 %v5330
    %v8915 = vunpack.c.l.b16 %v5331
    %v8916 = vunpack.c.l.b16 %v5332
    %v8917 = vunpack.c.l.b16 %v5333
    %v8918 = vunpack.c.l.b16 %v5334
    %v8919 = vunpack.c.l.b16 %v5335
    %v8920 = vunpack.c.l.b16 %v5336
    %v8921 = vunpack.c.l.b16 %v5337
    %v8922 = vunpack.c.l.b16 %v5338
    %v8923 = vunpack.c.l.b16 %v5339
    %v8924 = vunpack.c.l.b16 %v5340
    %v8925 = vunpack.c.l.b16 %v5341
    %v8926 = vunpack.c.l.b16 %v5342
    %v8927 = vunpack.c.l.b16 %v5343
    %v8928 = vunpack.c.l.b16 %v5344
    %v8929 = vunpack.c.l.b16 %v5345
    %v8930 = vunpack.c.l.b16 %v5346
    %v8931 = vunpack.c.l.b16 %v5347
    %v8932 = vunpack.c.l.b16 %v5348
    %v8933 = vunpack.c.l.b16 %v5349
    %v8934 = vunpack.c.l.b16 %v5350
    %v8935 = vunpack.c.l.b16 %v5351
    %v8936 = vunpack.c.l.b16 %v5352
    %v8937 = vunpack.c.l.b16 %v5353
    %v8938 = vunpack.c.l.b16 %v5354
    %v8939 = vunpack.c.l.b16 %v5355
    %v8940 = vunpack.c.l.b16 %v5356
    %v8941 = vunpack.c.l.b16 %v5357
    %v8942 = vunpack.c.l.b16 %v5358
    %v8943 = vunpack.c.l.b16 %v5359
    %v8944 = vunpack.c.l.b16 %v5360
    %v8945 = vunpack.c.l.b16 %v5361
    %v8946 = vunpack.c.l.b16 %v5362
    %v8947 = vunpack.c.l.b16 %v5363
    %v8948 = vunpack.c.l.b16 %v5364
    %v8949 = vunpack.c.l.b16 %v5365
    %v8950 = vunpack.c.l.b16 %v5366
    %v8951 = vunpack.c.l.b16 %v5367
    %v8952 = vunpack.c.l.b16 %v5368
    %v8953 = vunpack.c.l.b16 %v5369
    %v8954 = vunpack.c.l.b16 %v5370
    %v8955 = vunpack.c.l.b16 %v5371
    %v8956 = vunpack.c.l.b16 %v5372
    %v8957 = vunpack.c.l.b16 %v5373
    %v8958 = vunpack.c.l.b16 %v5374
    %v8959 = vunpack.c.l.b16 %v5375
    %v8960 = vunpack.c.l.b16 %v5376
    %v8961 = vunpack.c.l.b16 %v5377
    %v8962 = vunpack.c.l.b16 %v5378
    %v8963 = vunpack.c.l.b16 %v5379
    %v8964 = vunpack.c.l.b16 %v5380
    %v8965 = vunpack.c.l.b16 %v5381
    %v8966 = vunpack.c.l.b16 %v5382
    %v8967 = vunpack.c.l.b16 %v5383
    %v8968 = vunpack.c.l.b16 %v5384
    %v8969 = vunpack.c.l.b16 %v5385
    %v8970 = vunpack.c.l.b16 %v5386
    %v8971 = vunpack.c.l.b16 %v5387
    %v8972 = vunpack.c.l.b16 %v5388
    %v8973 = vunpack.c.l.b16 %v5389
    %v8974 = vunpack.c.l.b16 %v5390
    %v8975 = vunpack.c.l.b16 %v5391
    %v8976 = vunpack.c.l.b16 %v5392
    %v8977 = vunpack.c.l.b16 %v5393
    %v8978 = vunpack.c.l.b16 %v5394
    %v8979 = vunpack.c.l.b16 %v5395
    %v8980 = vunpack.c.l.b16 %v5396
    %v8981 = vunpack.c.l.b16 %v5397
    %v8982 = vunpack.c.l.b16 %v5398
    %v8983 = vunpack.c.l.b16 %v5399
    %v8984 = vunpack.c.l.b16 %v5400
    %v8985 = vunpack.c.l.b16 %v5401
    %v8986 = vunpack.c.l.b16 %v5402
    %v8987 = vunpack.c.l.b16 %v5403
    %v8988 = vunpack.c.l.b16 %v5404
    %v8989 = vunpack.c.l.b16 %v5405
    %v8990 = vunpack.c.l.b16 %v5406
    %v8991 = vunpack.c.l.b16 %v5407
    %v8992 = vunpack.c.l.b16 %v5408
    %v8993 = vunpack.c.l.b16 %v5409
    %v8994 = vunpack.c.l.b16 %v5410
    %v8995 = vunpack.c.l.b16 %v5411
    %v8996 = vunpack.c.l.b16 %v5412
    %v8997 = vunpack.c.l.b16 %v5413
    %v8998 = vunpack.c.l.b16 %v5414
    %v8999 = vunpack.c.l.b16 %v5415
    %v9000 = vunpack.c.l.b16 %v5416
    %v9001 = vunpack.c.l.b16 %v5417
    %v9002 = vunpack.c.l.b16 %v5418
    %v9003 = vunpack.c.l.b16 %v5419
    %v9004 = vunpack.c.l.b16 %v5420
    %v9005 = vunpack.c.l.b16 %v5421
    %v9006 = vunpack.c.l.b16 %v5422
    %v9007 = vunpack.c.l.b16 %v5423
    %v9008 = vunpack.c.l.b16 %v5424
    %v9009 = vunpack.c.l.b16 %v5425
    %v9010 = vunpack.c.l.b16 %v5426
    %v9011 = vunpack.c.l.b16 %v5427
    %v9012 = vunpack.c.l.b16 %v5428
    %v9013 = vunpack.c.l.b16 %v5429
    %v9014 = vunpack.c.l.b16 %v5430
    %v9015 = vunpack.c.l.b16 %v5431
    %v9016 = vunpack.c.l.b16 %v5432
    %v9017 = vunpack.c.l.b16 %v5433
    %v9018 = vunpack.c.l.b16 %v5434
    %v9019 = vunpack.c.l.b16 %v5435
    %v9020 = vunpack.c.l.b16 %v5436
    %v9021 = vunpack.c.l.b16 %v5437
    %v9022 = vunpack.c.l.b16 %v5438
    %v9023 = vunpack.c.l.b16 %v5439
    %v9024 = vunpack.c.l.b16 %v5440
    %v9025 = vunpack.c.l.b16 %v5441
    %v9026 = vunpack.c.l.b16 %v5442
    %v9027 = vunpack.c.l.b16 %v5443
    %v9028 = vunpack.c.l.b16 %v5444
    %v9029 = vunpack.c.l.b16 %v5445
    %v9030 = vunpack.c.l.b16 %v5446
    %v9031 = vunpack.c.l.b16 %v5447
    %v9032 = vunpack.c.l.b16 %v5448
    %v9033 = vunpack.c.l.b16 %v5449
    %v9034 = vunpack.c.l.b16 %v5450
    %v9035 = vunpack.c.l.b16 %v5451
    %v9036 = vunpack.c.l.b16 %v5452
    %v9037 = vunpack.c.l.b16 %v5453
    %v9038 = vunpack.c.l.b16 %v5454
    %v9039 = vunpack.c.l.b16 %v5455
    %v9040 = vunpack.c.l.b16 %v5456
    %v9041 = vunpack.c.l.b16 %v5457
    %v9042 = vunpack.c.l.b16 %v5458
    %v9043 = vunpack.c.l.b16 %v5459
    %v9044 = vunpack.c.l.b16 %v5460
    %v9045 = vunpack.c.l.b16 %v5461
    %v9046 = vunpack.c.l.b16 %v5462
    %v9047 = vunpack.c.l.b16 %v5463
    %v9048 = vunpack.c.l.b16 %v5464
    %v9049 = vunpack.c.l.b16 %v5465
    %v9050 = vunpack.c.l.b16 %v5466
    %v9051 = vunpack.c.l.b16 %v5467
    %v9052 = vunpack.c.l.b16 %v5468
    %v9053 = vunpack.c.l.b16 %v5469
    %v9054 = vunpack.c.l.b16 %v5470
    %v9055 = vunpack.c.l.b16 %v5471
    %v9056 = vunpack.c.l.b16 %v5472
    %v9057 = vunpack.c.l.b16 %v5473
    %v9058 = vunpack.c.l.b16 %v5474
    %v9059 = vunpack.c.l.b16 %v5475
    %v9060 = vunpack.c.l.b16 %v5476
    %v9061 = vunpack.c.l.b16 %v5477
    %v9062 = vunpack.c.l.b16 %v5478
    %v9063 = vunpack.c.l.b16 %v5479
    %v9064 = vunpack.c.l.b16 %v5480
    %v9065 = vunpack.c.l.b16 %v5481
    %v9066 = vunpack.c.l.b16 %v5482
    %v9067 = vunpack.c.l.b16 %v5483
    %v9068 = vunpack.c.l.b16 %v5484
    %v9069 = vunpack.c.l.b16 %v5485
    %v9070 = vunpack.c.l.b16 %v5486
    %v9071 = vunpack.c.l.b16 %v5487
    %v9072 = vunpack.c.l.b16 %v5488
    %v9073 = vunpack.c.l.b16 %v5489
    %v9074 = vunpack.c.l.b16 %v5490
    %v9075 = vunpack.c.l.b16 %v5491
    %v9076 = vunpack.c.l.b16 %v5492
    %v9077 = vunpack.c.l.b16 %v5493
    %v9078 = vunpack.c.l.b16 %v5494
    %v9079 = vunpack.c.l.b16 %v5495
    %v9080 = vunpack.c.l.b16 %v5496
    %v9081 = vunpack.c.l.b16 %v5497
    %v9082 = vunpack.c.l.b16 %v5498
    %v9083 = vunpack.c.l.b16 %v5499
    %v9084 = vunpack.c.l.b16 %v5500
    %v9085 = vunpack.c.l.b16 %v5501
    %v9086 = vunpack.c.l.b16 %v5502
    %v9087 = vunpack.c.l.b16 %v5503
    %v9088 = vunpack.c.l.b16 %v5504
    %v9089 = vunpack.c.l.b16 %v5505
    %v9090 = vunpack.c.l.b16 %v5506
    %v9091 = vunpack.c.l.b16 %v5507
    %v9092 = vunpack.c.l.b16 %v5508
    %v9093 = vunpack.c.l.b16 %v5509
    %v9094 = vunpack.c.l.b16 %v5510
    %v9095 = vunpack.c.l.b16 %v5511
    %v9096 = vunpack.c.l.b16 %v5512
    %v9097 = vunpack.c.l.b16 %v5513
    %v9098 = vunpack.c.l.b16 %v5514
    %v9099 = vunpack.c.l.b16 %v5515
    %v9100 = vunpack.c.l.b16 %v5516
    %v9101 = vunpack.c.l.b16 %v5517
    %v9102 = vunpack.c.l.b16 %v5518
    %v9103 = vunpack.c.l.b16 %v5519
    %v9104 = vunpack.c.l.b16 %v5520
    %v9105 = vunpack.c.l.b16 %v5521
    %v9106 = vunpack.c.l.b16 %v5522
    %v9107 = vunpack.c.l.b16 %v5523
    %v9108 = vunpack.c.l.b16 %v5524
    %v9109 = vunpack.c.l.b16 %v5525
    %v9110 = vunpack.c.l.b16 %v5526
    %v9111 = vunpack.c.l.b16 %v5527
    %v9112 = vunpack.c.l.b16 %v5528
    %v9113 = vunpack.c.l.b16 %v5529
    %v9114 = vunpack.c.l.b16 %v5530
    %v9115 = vunpack.c.l.b16 %v5531
    %v9116 = vunpack.c.l.b16 %v5532
    %v9117 = vunpack.c.l.b16 %v5533
    %v9118 = vunpack.c.l.b16 %v5534
    %v9119 = vunpack.c.l.b16 %v5535
    %v9120 = vunpack.c.l.b16 %v5536
    %v9121 = vunpack.c.l.b16 %v5537
    %v9122 = vunpack.c.l.b16 %v5538
    %v9123 = vunpack.c.l.b16 %v5539
    %v9124 = vunpack.c.l.b16 %v5540
    %v9125 = vunpack.c.l.b16 %v5541
    %v9126 = vunpack.c.l.b16 %v5542
    %v9127 = vunpack.c.l.b16 %v5543
    %v9128 = vunpack.c.l.b16 %v5544
    %v9129 = vunpack.c.l.b16 %v5545
    %v9130 = vunpack.c.l.b16 %v5546
    %v9131 = vunpack.c.l.b16 %v5547
    %v9132 = vunpack.c.l.b16 %v5548
    %v9133 = vunpack.c.l.b16 %v5549
    %v9134 = vunpack.c.l.b16 %v5550
    %v9135 = vunpack.c.l.b16 %v5551
    %v9136 = vunpack.c.l.b16 %v5552
    %v9137 = vunpack.c.l.b16 %v5553
    %v9138 = vunpack.c.l.b16 %v5554
    %v9139 = vunpack.c.l.b16 %v5555
    %v9140 = vunpack.c.l.b16 %v5556
    %v9141 = vunpack.c.l.b16 %v5557
    %v9142 = vunpack.c.l.b16 %v5558
    %v9143 = vunpack.c.l.b16 %v5559
    %v9144 = vunpack.c.l.b16 %v5560
    %v9145 = vunpack.c.l.b16 %v5561
    %v9146 = vunpack.c.l.b16 %v5562
    %v9147 = vunpack.c.l.b16 %v5563
    %v9148 = vunpack.c.l.b16 %v5564
    %v9149 = vunpack.c.l.b16 %v5565
    %v9150 = vunpack.c.l.b16 %v5566
    %v9151 = vunpack.c.l.b16 %v5567
    %v9152 = vunpack.c.l.b16 %v5568
    %v9153 = vunpack.c.l.b16 %v5569
    %v9154 = vunpack.c.l.b16 %v5570
    %v9155 = vunpack.c.l.b16 %v5571
    %v9156 = vunpack.c.l.b16 %v5572
    %v9157 = vunpack.c.l.b16 %v5573
    %v9158 = vunpack.c.l.b16 %v5574
    %v9159 = vunpack.c.l.b16 %v5575
    %v9160 = vunpack.c.l.b16 %v5576
    %v9161 = vunpack.c.l.b16 %v5577
    %v9162 = vunpack.c.l.b16 %v5578
    %v9163 = vunpack.c.l.b16 %v5579
    %v9164 = vpack.c.b16 %v8909, %v8908
    %v9165 = vpack.c.b16 %v8911, %v8910
    %v9166 = vpack.c.b16 %v8913, %v8912
    %v9167 = vpack.c.b16 %v8915, %v8914
    %v9168 = vpack.c.b16 %v8917, %v8916
    %v9169 = vpack.c.b16 %v8919, %v8918
    %v9170 = vpack.c.b16 %v8921, %v8920
    %v9171 = vpack.c.b16 %v8923, %v8922
    %v9172 = vpack.c.b16 %v8925, %v8924
    %v9173 = vpack.c.b16 %v8927, %v8926
    %v9174 = vpack.c.b16 %v8929, %v8928
    %v9175 = vpack.c.b16 %v8931, %v8930
    %v9176 = vpack.c.b16 %v8933, %v8932
    %v9177 = vpack.c.b16 %v8935, %v8934
    %v9178 = vpack.c.b16 %v8937, %v8936
    %v9179 = vpack.c.b16 %v8939, %v8938
    %v9180 = vpack.c.b16 %v8941, %v8940
    %v9181 = vpack.c.b16 %v8943, %v8942
    %v9182 = vpack.c.b16 %v8945, %v8944
    %v9183 = vpack.c.b16 %v8947, %v8946
    %v9184 = vpack.c.b16 %v8949, %v8948
    %v9185 = vpack.c.b16 %v8951, %v8950
    %v9186 = vpack.c.b16 %v8953, %v8952
    %v9187 = vpack.c.b16 %v8955, %v8954
    %v9188 = vpack.c.b16 %v8957, %v8956
    %v9189 = vpack.c.b16 %v8959, %v8958
    %v9190 = vpack.c.b16 %v8961, %v8960
    %v9191 = vpack.c.b16 %v8963, %v8962
    %v9192 = vpack.c.b16 %v8965, %v8964
    %v9193 = vpack.c.b16 %v8967, %v8966
    %v9194 = vpack.c.b16 %v8969, %v8968
    %v9195 = vpack.c.b16 %v8971, %v8970
    %v9196 = vpack.c.b16 %v8973, %v8972
    %v9197 = vpack.c.b16 %v8975, %v8974
    %v9198 = vpack.c.b16 %v8977, %v8976
    %v9199 = vpack.c.b16 %v8979, %v8978
    %v9200 = vpack.c.b16 %v8981, %v8980
    %v9201 = vpack.c.b16 %v8983, %v8982
    %v9202 = vpack.c.b16 %v8985, %v8984
    %v9203 = vpack.c.b16 %v8987, %v8986
    %v9204 = vpack.c.b16 %v8989, %v8988
    %v9205 = vpack.c.b16 %v8991, %v8990
    %v9206 = vpack.c.b16 %v8993, %v8992
    %v9207 = vpack.c.b16 %v8995, %v8994
    %v9208 = vpack.c.b16 %v8997, %v8996
    %v9209 = vpack.c.b16 %v8999, %v8998
    %v9210 = vpack.c.b16 %v9001, %v9000
    %v9211 = vpack.c.b16 %v9003, %v9002
    %v9212 = vpack.c.b16 %v9005, %v9004
    %v9213 = vpack.c.b16 %v9007, %v9006
    %v9214 = vpack.c.b16 %v9009, %v9008
    %v9215 = vpack.c.b16 %v9011, %v9010
    %v9216 = vpack.c.b16 %v9013, %v9012
    %v9217 = vpack.c.b16 %v9015, %v9014
    %v9218 = vpack.c.b16 %v9017, %v9016
    %v9219 = vpack.c.b16 %v9019, %v9018
    %v9220 = vpack.c.b16 %v9021, %v9020
    %v9221 = vpack.c.b16 %v9023, %v9022
    %v9222 = vpack.c.b16 %v9025, %v9024
    %v9223 = vpack.c.b16 %v9027, %v9026
    %v9224 = vpack.c.b16 %v9029, %v9028
    %v9225 = vpack.c.b16 %v9031, %v9030
    %v9226 = vpack.c.b16 %v9033, %v9032
    %v9227 = vpack.c.b16 %v9035, %v9034
    %v9228 = vpack.c.b16 %v9037, %v9036
    %v9229 = vpack.c.b16 %v9039, %v9038
    %v9230 = vpack.c.b16 %v9041, %v9040
    %v9231 = vpack.c.b16 %v9043, %v9042
    %v9232 = vpack.c.b16 %v9045, %v9044
    %v9233 = vpack.c.b16 %v9047, %v9046
    %v9234 = vpack.c.b16 %v9049, %v9048
    %v9235 = vpack.c.b16 %v9051, %v9050
    %v9236 = vpack.c.b16 %v9053, %v9052
    %v9237 = vpack.c.b16 %v9055, %v9054
    %v9238 = vpack.c.b16 %v9057, %v9056
    %v9239 = vpack.c.b16 %v9059, %v9058
    %v9240 = vpack.c.b16 %v9061, %v9060
    %v9241 = vpack.c.b16 %v9063, %v9062
    %v9242 = vpack.c.b16 %v9065, %v9064
    %v9243 = vpack.c.b16 %v9067, %v9066
    %v9244 = vpack.c.b16 %v9069, %v9068
    %v9245 = vpack.c.b16 %v9071, %v9070
    %v9246 = vpack.c.b16 %v9073, %v9072
    %v9247 = vpack.c.b16 %v9075, %v9074
    %v9248 = vpack.c.b16 %v9077, %v9076
    %v9249 = vpack.c.b16 %v9079, %v9078
    %v9250 = vpack.c.b16 %v9081, %v9080
    %v9251 = vpack.c.b16 %v9083, %v9082
    %v9252 = vpack.c.b16 %v9085, %v9084
    %v9253 = vpack.c.b16 %v9087, %v9086
    %v9254 = vpack.c.b16 %v9089, %v9088
    %v9255 = vpack.c.b16 %v9091, %v9090
    %v9256 = vpack.c.b16 %v9093, %v9092
    %v9257 = vpack.c.b16 %v9095, %v9094
    %v9258 = vpack.c.b16 %v9097, %v9096
    %v9259 = vpack.c.b16 %v9099, %v9098
    %v9260 = vpack.c.b16 %v9101, %v9100
    %v9261 = vpack.c.b16 %v9103, %v9102
    %v9262 = vpack.c.b16 %v9105, %v9104
    %v9263 = vpack.c.b16 %v9107, %v9106
    %v9264 = vpack.c.b16 %v9109, %v9108
    %v9265 = vpack.c.b16 %v9111, %v9110
    %v9266 = vpack.c.b16 %v9113, %v9112
    %v9267 = vpack.c.b16 %v9115, %v9114
    %v9268 = vpack.c.b16 %v9117, %v9116
    %v9269 = vpack.c.b16 %v9119, %v9118
    %v9270 = vpack.c.b16 %v9121, %v9120
    %v9271 = vpack.c.b16 %v9123, %v9122
    %v9272 = vpack.c.b16 %v9125, %v9124
    %v9273 = vpack.c.b16 %v9127, %v9126
    %v9274 = vpack.c.b16 %v9129, %v9128
    %v9275 = vpack.c.b16 %v9131, %v9130
    %v9276 = vpack.c.b16 %v9133, %v9132
    %v9277 = vpack.c.b16 %v9135, %v9134
    %v9278 = vpack.c.b16 %v9137, %v9136
    %v9279 = vpack.c.b16 %v9139, %v9138
    %v9280 = vpack.c.b16 %v9141, %v9140
    %v9281 = vpack.c.b16 %v9143, %v9142
    %v9282 = vpack.c.b16 %v9145, %v9144
    %v9283 = vpack.c.b16 %v9147, %v9146
    %v9284 = vpack.c.b16 %v9149, %v9148
    %v9285 = vpack.c.b16 %v9151, %v9150
    %v9286 = vpack.c.b16 %v9153, %v9152
    %v9287 = vpack.c.b16 %v9155, %v9154
    %v9288 = vpack.c.b16 %v9157, %v9156
    %v9289 = vpack.c.b16 %v9159, %v9158
    %v9290 = vpack.c.b16 %v9161, %v9160
    %v9291 = vpack.c.b16 %v9163, %v9162
    %9420 = vmatprep.subr.bf16.mxu0 0
    %9421 = vmatpush1.bf16.msra.mxu0 %v9171
    %9422 = vmatprep.subr.bf16.mxu0 0
    %9423 = vmatpush1.bf16.msra.mxu0 %v9170
    %9424 = vmatprep.subr.bf16.mxu0 0
    %9425 = vmatpush1.bf16.msra.mxu0 %v9169
    %9426 = vmatprep.subr.bf16.mxu0 0
    %9427 = vmatpush1.bf16.msra.mxu0 %v9168
    %9428 = vmatprep.subr.bf16.mxu0 0
    %9429 = vmatpush1.bf16.msra.mxu0 %v9167
    %9430 = vmatprep.subr.bf16.mxu0 0
    %9431 = vmatpush1.bf16.msra.mxu0 %v9166
    %9432 = vmatprep.subr.bf16.mxu0 0
    %9433 = vmatpush1.bf16.msra.mxu0 %v9165
    %9434 = vmatprep.subr.bf16.mxu0 0
    %9435 = vmatpush1.bf16.msra.mxu0 %v9164
    %9436 = vmatprep.subr.bf16.mxu0 0
    %9437 = vmatpush2.bf16.msra.mxu0 %v9179
    %9438 = vmatprep.subr.bf16.mxu0 0
    %9439 = vmatpush2.bf16.msra.mxu0 %v9178
    %9440 = vmatprep.subr.bf16.mxu0 0
    %9441 = vmatpush2.bf16.msra.mxu0 %v9177
    %9442 = vmatprep.subr.bf16.mxu0 0
    %9443 = vmatpush2.bf16.msra.mxu0 %v9176
    %9444 = vmatprep.subr.bf16.mxu0 0
    %9445 = vmatpush2.bf16.msra.mxu0 %v9175
    %9446 = vmatprep.subr.bf16.mxu0 0
    %9447 = vmatpush2.bf16.msra.mxu0 %v9174
    %9448 = vmatprep.subr.bf16.mxu0 0
    %9449 = vmatpush2.bf16.msra.mxu0 %v9173
    %9450 = vmatprep.subr.bf16.mxu0 0
    %9451 = vmatpush2.bf16.msra.mxu0 %v9172
    %9452 = vmatprep.mubr.bf16.mxu0 %v8615
    %9453 = vmatmul.mubr.bf16.gmra.mxu0 %v8614
    %v9454 = vpop.f32.mrf.mxu0
    %v9455 = vadd.f32 %v8650, %v9454
    %v9456 = vpop.f32.mrf.mxu0
    %v9457 = vpop.f32.mrf.mxu0
    %v9458 = vadd.f32 %v8650, %v9457
    %v9459 = vpop.f32.mrf.mxu0
    %9460 = vmatprep.mubr.bf16.mxu0 %v8631
    %9461 = vmatmul.mubr.bf16.gmra.mxu0 %v8630
    %v9462 = vpop.f32.mrf.mxu0
    %v9463 = vadd.f32 %v8650, %v9462
    %v9464 = vpop.f32.mrf.mxu0
    %v9465 = vpop.f32.mrf.mxu0
    %v9466 = vpop.f32.mrf.mxu0
    %9467 = vdwg.mxu0
    %9468 = vmatprep.subr.bf16.mxu0 0
    %9469 = vmatpush1.bf16.msra.mxu0 %v9187
    %9470 = vmatprep.subr.bf16.mxu0 0
    %9471 = vmatpush1.bf16.msra.mxu0 %v9186
    %9472 = vmatprep.subr.bf16.mxu0 0
    %9473 = vmatpush1.bf16.msra.mxu0 %v9185
    %9474 = vmatprep.subr.bf16.mxu0 0
    %9475 = vmatpush1.bf16.msra.mxu0 %v9184
    %9476 = vmatprep.subr.bf16.mxu0 0
    %9477 = vmatpush1.bf16.msra.mxu0 %v9183
    %9478 = vmatprep.subr.bf16.mxu0 0
    %9479 = vmatpush1.bf16.msra.mxu0 %v9182
    %9480 = vmatprep.subr.bf16.mxu0 0
    %9481 = vmatpush1.bf16.msra.mxu0 %v9181
    %9482 = vmatprep.subr.bf16.mxu0 0
    %9483 = vmatpush1.bf16.msra.mxu0 %v9180
    %9484 = vmatprep.subr.bf16.mxu0 0
    %9485 = vmatpush2.bf16.msra.mxu0 %v9195
    %9486 = vmatprep.subr.bf16.mxu0 0
    %9487 = vmatpush2.bf16.msra.mxu0 %v9194
    %9488 = vmatprep.subr.bf16.mxu0 0
    %9489 = vmatpush2.bf16.msra.mxu0 %v9193
    %9490 = vmatprep.subr.bf16.mxu0 0
    %9491 = vmatpush2.bf16.msra.mxu0 %v9192
    %9492 = vmatprep.subr.bf16.mxu0 0
    %9493 = vmatpush2.bf16.msra.mxu0 %v9191
    %9494 = vmatprep.subr.bf16.mxu0 0
    %9495 = vmatpush2.bf16.msra.mxu0 %v9190
    %9496 = vmatprep.subr.bf16.mxu0 0
    %9497 = vmatpush2.bf16.msra.mxu0 %v9189
    %9498 = vmatprep.subr.bf16.mxu0 0
    %9499 = vmatpush2.bf16.msra.mxu0 %v9188
    %9500 = vmatprep.mubr.bf16.mxu0 %v8617
    %9501 = vmatmul.mubr.bf16.gmra.mxu0 %v8616
    %v9502 = vpop.f32.mrf.mxu0
    %v9503 = vadd.f32 %v9455, %v9502
    %v9504 = vpop.f32.mrf.mxu0
    %v9505 = vpop.f32.mrf.mxu0
    %v9506 = vadd.f32 %v9458, %v9505
    %v9507 = vpop.f32.mrf.mxu0
    %9508 = vmatprep.mubr.bf16.mxu0 %v8633
    %9509 = vmatmul.mubr.bf16.gmra.mxu0 %v8632
    %v9510 = vpop.f32.mrf.mxu0
    %v9511 = vadd.f32 %v9463, %v9510
    %v9512 = vpop.f32.mrf.mxu0
    %v9513 = vpop.f32.mrf.mxu0
    %v9514 = vpop.f32.mrf.mxu0
    %9515 = vdwg.mxu0
    %9516 = vmatprep.subr.bf16.mxu0 0
    %9517 = vmatpush1.bf16.msra.mxu0 %v9203
    %9518 = vmatprep.subr.bf16.mxu0 0
    %9519 = vmatpush1.bf16.msra.mxu0 %v9202
    %9520 = vmatprep.subr.bf16.mxu0 0
    %9521 = vmatpush1.bf16.msra.mxu0 %v9201
    %9522 = vmatprep.subr.bf16.mxu0 0
    %9523 = vmatpush1.bf16.msra.mxu0 %v9200
    %9524 = vmatprep.subr.bf16.mxu0 0
    %9525 = vmatpush1.bf16.msra.mxu0 %v9199
    %9526 = vmatprep.subr.bf16.mxu0 0
    %9527 = vmatpush1.bf16.msra.mxu0 %v9198
    %9528 = vmatprep.subr.bf16.mxu0 0
    %9529 = vmatpush1.bf16.msra.mxu0 %v9197
    %9530 = vmatprep.subr.bf16.mxu0 0
    %9531 = vmatpush1.bf16.msra.mxu0 %v9196
    %9532 = vmatprep.subr.bf16.mxu0 0
    %9533 = vmatpush2.bf16.msra.mxu0 %v9211
    %9534 = vmatprep.subr.bf16.mxu0 0
    %9535 = vmatpush2.bf16.msra.mxu0 %v9210
    %9536 = vmatprep.subr.bf16.mxu0 0
    %9537 = vmatpush2.bf16.msra.mxu0 %v9209
    %9538 = vmatprep.subr.bf16.mxu0 0
    %9539 = vmatpush2.bf16.msra.mxu0 %v9208
    %9540 = vmatprep.subr.bf16.mxu0 0
    %9541 = vmatpush2.bf16.msra.mxu0 %v9207
    %9542 = vmatprep.subr.bf16.mxu0 0
    %9543 = vmatpush2.bf16.msra.mxu0 %v9206
    %9544 = vmatprep.subr.bf16.mxu0 0
    %9545 = vmatpush2.bf16.msra.mxu0 %v9205
    %9546 = vmatprep.subr.bf16.mxu0 0
    %9547 = vmatpush2.bf16.msra.mxu0 %v9204
    %9548 = vmatprep.mubr.bf16.mxu0 %v8619
    %9549 = vmatmul.mubr.bf16.gmra.mxu0 %v8618
    %v9550 = vpop.f32.mrf.mxu0
    %v9551 = vadd.f32 %v9503, %v9550
    %v9552 = vpop.f32.mrf.mxu0
    %v9553 = vpop.f32.mrf.mxu0
    %v9554 = vadd.f32 %v9506, %v9553
    %v9555 = vpop.f32.mrf.mxu0
    %9556 = vmatprep.mubr.bf16.mxu0 %v8635
    %9557 = vmatmul.mubr.bf16.gmra.mxu0 %v8634
    %v9558 = vpop.f32.mrf.mxu0
    %v9559 = vadd.f32 %v9511, %v9558
    %v9560 = vpop.f32.mrf.mxu0
    %v9561 = vpop.f32.mrf.mxu0
    %v9562 = vpop.f32.mrf.mxu0
    %9563 = vdwg.mxu0
    %9564 = vmatprep.subr.bf16.mxu0 0
    %9565 = vmatpush1.bf16.msra.mxu0 %v9219
    %9566 = vmatprep.subr.bf16.mxu0 0
    %9567 = vmatpush1.bf16.msra.mxu0 %v9218
    %9568 = vmatprep.subr.bf16.mxu0 0
    %9569 = vmatpush1.bf16.msra.mxu0 %v9217
    %9570 = vmatprep.subr.bf16.mxu0 0
    %9571 = vmatpush1.bf16.msra.mxu0 %v9216
    %9572 = vmatprep.subr.bf16.mxu0 0
    %9573 = vmatpush1.bf16.msra.mxu0 %v9215
    %9574 = vmatprep.subr.bf16.mxu0 0
    %9575 = vmatpush1.bf16.msra.mxu0 %v9214
    %9576 = vmatprep.subr.bf16.mxu0 0
    %9577 = vmatpush1.bf16.msra.mxu0 %v9213
    %9578 = vmatprep.subr.bf16.mxu0 0
    %9579 = vmatpush1.bf16.msra.mxu0 %v9212
    %9580 = vmatprep.subr.bf16.mxu0 0
    %9581 = vmatpush2.bf16.msra.mxu0 %v9227
    %9582 = vmatprep.subr.bf16.mxu0 0
    %9583 = vmatpush2.bf16.msra.mxu0 %v9226
    %9584 = vmatprep.subr.bf16.mxu0 0
    %9585 = vmatpush2.bf16.msra.mxu0 %v9225
    %9586 = vmatprep.subr.bf16.mxu0 0
    %9587 = vmatpush2.bf16.msra.mxu0 %v9224
    %9588 = vmatprep.subr.bf16.mxu0 0
    %9589 = vmatpush2.bf16.msra.mxu0 %v9223
    %9590 = vmatprep.subr.bf16.mxu0 0
    %9591 = vmatpush2.bf16.msra.mxu0 %v9222
    %9592 = vmatprep.subr.bf16.mxu0 0
    %9593 = vmatpush2.bf16.msra.mxu0 %v9221
    %9594 = vmatprep.subr.bf16.mxu0 0
    %9595 = vmatpush2.bf16.msra.mxu0 %v9220
    %9596 = vmatprep.mubr.bf16.mxu0 %v8621
    %9597 = vmatmul.mubr.bf16.gmra.mxu0 %v8620
    %v9598 = vpop.f32.mrf.mxu0
    %v9599 = vadd.f32 %v9551, %v9598
    %v9600 = vpop.f32.mrf.mxu0
    %v9601 = vpop.f32.mrf.mxu0
    %v9602 = vadd.f32 %v9554, %v9601
    %v9603 = vpop.f32.mrf.mxu0
    %9604 = vmatprep.mubr.bf16.mxu0 %v8637
    %9605 = vmatmul.mubr.bf16.gmra.mxu0 %v8636
    %v9606 = vpop.f32.mrf.mxu0
    %v9607 = vadd.f32 %v9559, %v9606
    %v9608 = vpop.f32.mrf.mxu0
    %v9609 = vpop.f32.mrf.mxu0
    %v9610 = vpop.f32.mrf.mxu0
    %9611 = vdwg.mxu0
    %9612 = vmatprep.subr.bf16.mxu0 0
    %9613 = vmatpush1.bf16.msra.mxu0 %v9235
    %9614 = vmatprep.subr.bf16.mxu0 0
    %9615 = vmatpush1.bf16.msra.mxu0 %v9234
    %9616 = vmatprep.subr.bf16.mxu0 0
    %9617 = vmatpush1.bf16.msra.mxu0 %v9233
    %9618 = vmatprep.subr.bf16.mxu0 0
    %9619 = vmatpush1.bf16.msra.mxu0 %v9232
    %9620 = vmatprep.subr.bf16.mxu0 0
    %9621 = vmatpush1.bf16.msra.mxu0 %v9231
    %9622 = vmatprep.subr.bf16.mxu0 0
    %9623 = vmatpush1.bf16.msra.mxu0 %v9230
    %9624 = vmatprep.subr.bf16.mxu0 0
    %9625 = vmatpush1.bf16.msra.mxu0 %v9229
    %9626 = vmatprep.subr.bf16.mxu0 0
    %9627 = vmatpush1.bf16.msra.mxu0 %v9228
    %9628 = vmatprep.subr.bf16.mxu0 0
    %9629 = vmatpush2.bf16.msra.mxu0 %v9243
    %9630 = vmatprep.subr.bf16.mxu0 0
    %9631 = vmatpush2.bf16.msra.mxu0 %v9242
    %9632 = vmatprep.subr.bf16.mxu0 0
    %9633 = vmatpush2.bf16.msra.mxu0 %v9241
    %9634 = vmatprep.subr.bf16.mxu0 0
    %9635 = vmatpush2.bf16.msra.mxu0 %v9240
    %9636 = vmatprep.subr.bf16.mxu0 0
    %9637 = vmatpush2.bf16.msra.mxu0 %v9239
    %9638 = vmatprep.subr.bf16.mxu0 0
    %9639 = vmatpush2.bf16.msra.mxu0 %v9238
    %9640 = vmatprep.subr.bf16.mxu0 0
    %9641 = vmatpush2.bf16.msra.mxu0 %v9237
    %9642 = vmatprep.subr.bf16.mxu0 0
    %9643 = vmatpush2.bf16.msra.mxu0 %v9236
    %9644 = vmatprep.mubr.bf16.mxu0 %v8623
    %9645 = vmatmul.mubr.bf16.gmra.mxu0 %v8622
    %v9646 = vpop.f32.mrf.mxu0
    %v9647 = vadd.f32 %v9599, %v9646
    %v9648 = vpop.f32.mrf.mxu0
    %v9649 = vpop.f32.mrf.mxu0
    %v9650 = vadd.f32 %v9602, %v9649
    %v9651 = vpop.f32.mrf.mxu0
    %9652 = vmatprep.mubr.bf16.mxu0 %v8639
    %9653 = vmatmul.mubr.bf16.gmra.mxu0 %v8638
    %v9654 = vpop.f32.mrf.mxu0
    %v9655 = vadd.f32 %v9607, %v9654
    %v9656 = vpop.f32.mrf.mxu0
    %v9657 = vpop.f32.mrf.mxu0
    %v9658 = vpop.f32.mrf.mxu0
    %9659 = vdwg.mxu0
    %9660 = vmatprep.subr.bf16.mxu0 0
    %9661 = vmatpush1.bf16.msra.mxu0 %v9251
    %9662 = vmatprep.subr.bf16.mxu0 0
    %9663 = vmatpush1.bf16.msra.mxu0 %v9250
    %9664 = vmatprep.subr.bf16.mxu0 0
    %9665 = vmatpush1.bf16.msra.mxu0 %v9249
    %9666 = vmatprep.subr.bf16.mxu0 0
    %9667 = vmatpush1.bf16.msra.mxu0 %v9248
    %9668 = vmatprep.subr.bf16.mxu0 0
    %9669 = vmatpush1.bf16.msra.mxu0 %v9247
    %9670 = vmatprep.subr.bf16.mxu0 0
    %9671 = vmatpush1.bf16.msra.mxu0 %v9246
    %9672 = vmatprep.subr.bf16.mxu0 0
    %9673 = vmatpush1.bf16.msra.mxu0 %v9245
    %9674 = vmatprep.subr.bf16.mxu0 0
    %9675 = vmatpush1.bf16.msra.mxu0 %v9244
    %9676 = vmatprep.subr.bf16.mxu0 0
    %9677 = vmatpush2.bf16.msra.mxu0 %v9259
    %9678 = vmatprep.subr.bf16.mxu0 0
    %9679 = vmatpush2.bf16.msra.mxu0 %v9258
    %9680 = vmatprep.subr.bf16.mxu0 0
    %9681 = vmatpush2.bf16.msra.mxu0 %v9257
    %9682 = vmatprep.subr.bf16.mxu0 0
    %9683 = vmatpush2.bf16.msra.mxu0 %v9256
    %9684 = vmatprep.subr.bf16.mxu0 0
    %9685 = vmatpush2.bf16.msra.mxu0 %v9255
    %9686 = vmatprep.subr.bf16.mxu0 0
    %9687 = vmatpush2.bf16.msra.mxu0 %v9254
    %9688 = vmatprep.subr.bf16.mxu0 0
    %9689 = vmatpush2.bf16.msra.mxu0 %v9253
    %9690 = vmatprep.subr.bf16.mxu0 0
    %9691 = vmatpush2.bf16.msra.mxu0 %v9252
    %9692 = vmatprep.mubr.bf16.mxu0 %v8625
    %9693 = vmatmul.mubr.bf16.gmra.mxu0 %v8624
    %v9694 = vpop.f32.mrf.mxu0
    %v9695 = vadd.f32 %v9647, %v9694
    %v9696 = vpop.f32.mrf.mxu0
    %v9697 = vpop.f32.mrf.mxu0
    %v9698 = vadd.f32 %v9650, %v9697
    %v9699 = vpop.f32.mrf.mxu0
    %9700 = vmatprep.mubr.bf16.mxu0 %v8641
    %9701 = vmatmul.mubr.bf16.gmra.mxu0 %v8640
    %v9702 = vpop.f32.mrf.mxu0
    %v9703 = vadd.f32 %v9655, %v9702
    %v9704 = vpop.f32.mrf.mxu0
    %v9705 = vpop.f32.mrf.mxu0
    %v9706 = vpop.f32.mrf.mxu0
    %9707 = vdwg.mxu0
    %9708 = vmatprep.subr.bf16.mxu0 0
    %9709 = vmatpush1.bf16.msra.mxu0 %v9267
    %9710 = vmatprep.subr.bf16.mxu0 0
    %9711 = vmatpush1.bf16.msra.mxu0 %v9266
    %9712 = vmatprep.subr.bf16.mxu0 0
    %9713 = vmatpush1.bf16.msra.mxu0 %v9265
    %9714 = vmatprep.subr.bf16.mxu0 0
    %9715 = vmatpush1.bf16.msra.mxu0 %v9264
    %9716 = vmatprep.subr.bf16.mxu0 0
    %9717 = vmatpush1.bf16.msra.mxu0 %v9263
    %9718 = vmatprep.subr.bf16.mxu0 0
    %9719 = vmatpush1.bf16.msra.mxu0 %v9262
    %9720 = vmatprep.subr.bf16.mxu0 0
    %9721 = vmatpush1.bf16.msra.mxu0 %v9261
    %9722 = vmatprep.subr.bf16.mxu0 0
    %9723 = vmatpush1.bf16.msra.mxu0 %v9260
    %9724 = vmatprep.subr.bf16.mxu0 0
    %9725 = vmatpush2.bf16.msra.mxu0 %v9275
    %9726 = vmatprep.subr.bf16.mxu0 0
    %9727 = vmatpush2.bf16.msra.mxu0 %v9274
    %9728 = vmatprep.subr.bf16.mxu0 0
    %9729 = vmatpush2.bf16.msra.mxu0 %v9273
    %9730 = vmatprep.subr.bf16.mxu0 0
    %9731 = vmatpush2.bf16.msra.mxu0 %v9272
    %9732 = vmatprep.subr.bf16.mxu0 0
    %9733 = vmatpush2.bf16.msra.mxu0 %v9271
    %9734 = vmatprep.subr.bf16.mxu0 0
    %9735 = vmatpush2.bf16.msra.mxu0 %v9270
    %9736 = vmatprep.subr.bf16.mxu0 0
    %9737 = vmatpush2.bf16.msra.mxu0 %v9269
    %9738 = vmatprep.subr.bf16.mxu0 0
    %9739 = vmatpush2.bf16.msra.mxu0 %v9268
    %9740 = vmatprep.mubr.bf16.mxu0 %v8627
    %9741 = vmatmul.mubr.bf16.gmra.mxu0 %v8626
    %v9742 = vpop.f32.mrf.mxu0
    %v9743 = vadd.f32 %v9695, %v9742
    %v9744 = vpop.f32.mrf.mxu0
    %v9745 = vpop.f32.mrf.mxu0
    %v9746 = vadd.f32 %v9698, %v9745
    %v9747 = vpop.f32.mrf.mxu0
    %9748 = vmatprep.mubr.bf16.mxu0 %v8643
    %9749 = vmatmul.mubr.bf16.gmra.mxu0 %v8642
    %v9750 = vpop.f32.mrf.mxu0
    %v9751 = vadd.f32 %v9703, %v9750
    %v9752 = vpop.f32.mrf.mxu0
    %v9753 = vpop.f32.mrf.mxu0
    %v9754 = vpop.f32.mrf.mxu0
    %9755 = vdwg.mxu0
    %9756 = vmatprep.subr.bf16.mxu0 0
    %9757 = vmatpush1.bf16.msra.mxu0 %v9283
    %9758 = vmatprep.subr.bf16.mxu0 0
    %9759 = vmatpush1.bf16.msra.mxu0 %v9282
    %9760 = vmatprep.subr.bf16.mxu0 0
    %9761 = vmatpush1.bf16.msra.mxu0 %v9281
    %9762 = vmatprep.subr.bf16.mxu0 0
    %9763 = vmatpush1.bf16.msra.mxu0 %v9280
    %9764 = vmatprep.subr.bf16.mxu0 0
    %9765 = vmatpush1.bf16.msra.mxu0 %v9279
    %9766 = vmatprep.subr.bf16.mxu0 0
    %9767 = vmatpush1.bf16.msra.mxu0 %v9278
    %9768 = vmatprep.subr.bf16.mxu0 0
    %9769 = vmatpush1.bf16.msra.mxu0 %v9277
    %9770 = vmatprep.subr.bf16.mxu0 0
    %9771 = vmatpush1.bf16.msra.mxu0 %v9276
    %9772 = vmatprep.subr.bf16.mxu0 0
    %9773 = vmatpush2.bf16.msra.mxu0 %v9291
    %9774 = vmatprep.subr.bf16.mxu0 0
    %9775 = vmatpush2.bf16.msra.mxu0 %v9290
    %9776 = vmatprep.subr.bf16.mxu0 0
    %9777 = vmatpush2.bf16.msra.mxu0 %v9289
    %9778 = vmatprep.subr.bf16.mxu0 0
    %9779 = vmatpush2.bf16.msra.mxu0 %v9288
    %9780 = vmatprep.subr.bf16.mxu0 0
    %9781 = vmatpush2.bf16.msra.mxu0 %v9287
    %9782 = vmatprep.subr.bf16.mxu0 0
    %9783 = vmatpush2.bf16.msra.mxu0 %v9286
    %9784 = vmatprep.subr.bf16.mxu0 0
    %9785 = vmatpush2.bf16.msra.mxu0 %v9285
    %9786 = vmatprep.subr.bf16.mxu0 0
    %9787 = vmatpush2.bf16.msra.mxu0 %v9284
    %9788 = vmatprep.mubr.bf16.mxu0 %v8629
    %9789 = vmatmul.mubr.bf16.gmra.mxu0 %v8628
    %v9790 = vpop.f32.mrf.mxu0
    %v9791 = vadd.f32 %v9743, %v9790
    %v9792 = vpop.f32.mrf.mxu0
    %v9793 = vpop.f32.mrf.mxu0
    %v9794 = vadd.f32 %v9746, %v9793
    %v9795 = vpop.f32.mrf.mxu0
    %9796 = vmatprep.mubr.bf16.mxu0 %v8645
    %9797 = vmatmul.mubr.bf16.gmra.mxu0 %v8644
    %v9798 = vpop.f32.mrf.mxu0
    %v9799 = vadd.f32 %v9751, %v9798
    %v9800 = vpop.f32.mrf.mxu0
    %v9801 = vpop.f32.mrf.mxu0
    %v9802 = vpop.f32.mrf.mxu0
    %9803 = vdwg.mxu0
    %v9804 = vadd.f32 %v7431, %v9791
    %v9805 = vadd.f32 %v7432, %v9794
    %v9806 = vadd.f32 %v7433, %v9799
    %9807 = vadd.xlane.f32.xlu0 %v9804
    %v9808 = vpop.xlane.xlu0 %9807
    %9809 = vadd.xlane.f32.xlu0 %v9805
    %v9810 = vpop.xlane.xlu0 %9809
    %v9811 = vsel %vm2663, %v9806, 0.0
    %9812 = vadd.xlane.f32.xlu0 %v9811
    %v9813 = vpop.xlane.xlu0 %9812
    %v9814 = vmul.f32 %v9808, %v2667
    %v9815 = vmul.f32 %v9810, %v2667
    %v9816 = vmul.f32 %v9813, %v2667
    %v9817 = vsub.f32 %v9804, %v9814
    %v9818 = vsub.f32 %v9805, %v9815
    %v9819 = vsub.f32 %v9806, %v9816
    %v9820 = vmul.f32 %v9817, %v9817
    %v9821 = vmul.f32 %v9818, %v9818
    %v9822 = vmul.f32 %v9819, %v9819
    %9823 = vadd.xlane.f32.xlu0 %v9820
    %v9824 = vpop.xlane.xlu0 %9823
    %9825 = vadd.xlane.f32.xlu0 %v9821
    %v9826 = vpop.xlane.xlu0 %9825
    %v9827 = vsel %vm2663, %v9822, 0.0
    %9828 = vadd.xlane.f32.xlu0 %v9827
    %v9829 = vpop.xlane.xlu0 %9828
    %v9830 = vmul.f32 %v9824, %v2667
    %v9831 = vmul.f32 %v9826, %v2667
    %v9832 = vmul.f32 %v9829, %v2667
    %v9833 = vadd.f32 %v9830, 1e-05
    %v9834 = vadd.f32 %v9831, 1e-05
    %v9835 = vadd.f32 %v9832, 1e-05
    %v9836 = vrsqrt.pop %v9833
    %v9837 = vrsqrt.pop %v9834
    %v9838 = vrsqrt.pop %v9835
    %v9839 = vmul.f32 %v9817, %v9836
    %v9840 = vmul.f32 %v9818, %v9837
    %v9841 = vmul.f32 %v9819, %v9838
    %v9843 = vlaneseq
    %v9844 = vshrl.u32 %v9843, 7
    %v9845 = vsub.s32 0, %v9844
    %v9846 = vrot.slane %v5192, %v9845
    %v9848 = vmul.f32 %v9839, %v9846
    %v9849 = vmul.f32 %v9840, %v9846
    %v9850 = vmul.f32 %v9841, %v9846
    %v9852 = vlaneseq
    %v9853 = vshrl.u32 %v9852, 7
    %v9854 = vsub.s32 0, %v9853
    %v9855 = vrot.slane %v5193, %v9854
    %v9857 = vadd.f32 %v9848, %v9855
    %v9858 = vadd.f32 %v9849, %v9855
    %v9859 = vadd.f32 %v9850, %v9855
    %v9860 = vld [vmem:[%s51] sm:$0x1]
    %v9861 = vld [vmem:[%s53] sm:$0x1]
    %v9862 = vld [vmem:[#allocation37] sm:$0xff]
    %v9863 = vld [vmem:[#allocation37 + $0x8] sm:$0xff]
    %v9864 = vld [vmem:[#allocation37 + $0x10] sm:$0xff]
    %v9865 = vld [vmem:[#allocation37 + $0x18] sm:$0xff]
    %v9866 = vld [vmem:[#allocation37 + $0x20] sm:$0xff]
    %v9867 = vld [vmem:[#allocation37 + $0x28] sm:$0xff]
    %v9868 = vld [vmem:[#allocation37 + $0x30] sm:$0xff]
    %v9869 = vld [vmem:[#allocation37 + $0x38] sm:$0xff]
    %v9870 = vld [vmem:[#allocation37 + $0x40] sm:$0xff]
    %v9871 = vld [vmem:[#allocation37 + $0x48] sm:$0xff]
    %v9872 = vld [vmem:[#allocation37 + $0x50] sm:$0xff]
    %v9873 = vld [vmem:[#allocation37 + $0x58] sm:$0xff]
    %v9874 = vld [vmem:[#allocation37 + $0x60] sm:$0xff]
    %v9875 = vld [vmem:[#allocation37 + $0x68] sm:$0xff]
    %v9876 = vld [vmem:[#allocation37 + $0x70] sm:$0xff]
    %v9877 = vld [vmem:[#allocation37 + $0x78] sm:$0xff]
    %v9878 = vld [vmem:[#allocation37 + $0x80] sm:$0xff]
    %v9879 = vld [vmem:[#allocation37 + $0x88] sm:$0xff]
    %v9880 = vld [vmem:[#allocation37 + $0x90] sm:$0xff]
    %v9881 = vld [vmem:[#allocation37 + $0x98] sm:$0xff]
    %v9882 = vld [vmem:[#allocation37 + $0xa0] sm:$0xff]
    %v9883 = vld [vmem:[#allocation37 + $0xa8] sm:$0xff]
    %v9884 = vld [vmem:[#allocation37 + $0xb0] sm:$0xff]
    %v9885 = vld [vmem:[#allocation37 + $0xb8] sm:$0xff]
    %v9886 = vld [vmem:[#allocation37 + $0xc0] sm:$0xff]
    %v9887 = vld [vmem:[#allocation37 + $0xc8] sm:$0xff]
    %v9888 = vld [vmem:[#allocation37 + $0xd0] sm:$0xff]
    %v9889 = vld [vmem:[#allocation37 + $0xd8] sm:$0xff]
    %v9890 = vld [vmem:[#allocation37 + $0xe0] sm:$0xff]
    %v9891 = vld [vmem:[#allocation37 + $0xe8] sm:$0xff]
    %v9892 = vld [vmem:[#allocation37 + $0xf0] sm:$0xff]
    %v9893 = vld [vmem:[#allocation37 + $0xf8] sm:$0xff]
    %v9894 = vld [vmem:[#allocation37 + $0x100] sm:$0xff]
    %v9895 = vld [vmem:[#allocation37 + $0x108] sm:$0xff]
    %v9896 = vld [vmem:[#allocation37 + $0x110] sm:$0xff]
    %v9897 = vld [vmem:[#allocation37 + $0x118] sm:$0xff]
    %v9898 = vld [vmem:[#allocation37 + $0x120] sm:$0xff]
    %v9899 = vld [vmem:[#allocation37 + $0x128] sm:$0xff]
    %v9900 = vld [vmem:[#allocation37 + $0x130] sm:$0xff]
    %v9901 = vld [vmem:[#allocation37 + $0x138] sm:$0xff]
    %v9902 = vld [vmem:[#allocation37 + $0x140] sm:$0xff]
    %v9903 = vld [vmem:[#allocation37 + $0x148] sm:$0xff]
    %v9904 = vld [vmem:[#allocation37 + $0x150] sm:$0xff]
    %v9905 = vld [vmem:[#allocation37 + $0x158] sm:$0xff]
    %v9906 = vld [vmem:[#allocation37 + $0x160] sm:$0xff]
    %v9907 = vld [vmem:[#allocation37 + $0x168] sm:$0xff]
    %v9908 = vld [vmem:[#allocation37 + $0x170] sm:$0xff]
    %v9909 = vld [vmem:[#allocation37 + $0x178] sm:$0xff]
    %v9910 = vld [vmem:[#allocation37 + $0x180] sm:$0xff]
    %v9911 = vld [vmem:[#allocation37 + $0x188] sm:$0xff]
    %v9912 = vld [vmem:[#allocation37 + $0x190] sm:$0xff]
    %v9913 = vld [vmem:[#allocation37 + $0x198] sm:$0xff]
    %v9914 = vld [vmem:[#allocation37 + $0x1a0] sm:$0xff]
    %v9915 = vld [vmem:[#allocation37 + $0x1a8] sm:$0xff]
    %v9916 = vld [vmem:[#allocation37 + $0x1b0] sm:$0xff]
    %v9917 = vld [vmem:[#allocation37 + $0x1b8] sm:$0xff]
    %v9918 = vld [vmem:[#allocation37 + $0x1c0] sm:$0xff]
    %v9919 = vld [vmem:[#allocation37 + $0x1c8] sm:$0xff]
    %v9920 = vld [vmem:[#allocation37 + $0x1d0] sm:$0xff]
    %v9921 = vld [vmem:[#allocation37 + $0x1d8] sm:$0xff]
    %v9922 = vld [vmem:[#allocation37 + $0x1e0] sm:$0xff]
    %v9923 = vld [vmem:[#allocation37 + $0x1e8] sm:$0xff]
    %v9924 = vld [vmem:[#allocation37 + $0x1f0] sm:$0xff]
    %v9925 = vld [vmem:[#allocation37 + $0x1f8] sm:$0xff]
    %v9926 = vld [vmem:[%s57] sm:$0xff]
    %9927 = vadd.xlane.f32.xlu0 %v9857
    %v9928 = vpop.xlane.xlu0 %9927
    %9929 = vadd.xlane.f32.xlu0 %v9858
    %v9930 = vpop.xlane.xlu0 %9929
    %v9931 = vsel %vm2663, %v9859, 0.0
    %9932 = vadd.xlane.f32.xlu0 %v9931
    %v9933 = vpop.xlane.xlu0 %9932
    %v9934 = vmul.f32 %v9928, %v2667
    %v9935 = vmul.f32 %v9930, %v2667
    %v9936 = vmul.f32 %v9933, %v2667
    %v9937 = vsub.f32 %v9857, %v9934
    %v9938 = vsub.f32 %v9858, %v9935
    %v9939 = vsub.f32 %v9859, %v9936
    %v9940 = vmul.f32 %v9937, %v9937
    %v9941 = vmul.f32 %v9938, %v9938
    %v9942 = vmul.f32 %v9939, %v9939
    %9943 = vadd.xlane.f32.xlu0 %v9940
    %v9944 = vpop.xlane.xlu0 %9943
    %9945 = vadd.xlane.f32.xlu0 %v9941
    %v9946 = vpop.xlane.xlu0 %9945
    %v9947 = vsel %vm2663, %v9942, 0.0
    %9948 = vadd.xlane.f32.xlu0 %v9947
    %v9949 = vpop.xlane.xlu0 %9948
    %v9950 = vmul.f32 %v9944, %v2667
    %v9951 = vmul.f32 %v9946, %v2667
    %v9952 = vmul.f32 %v9949, %v2667
    %v9953 = vadd.f32 %v9950, 1e-05
    %v9954 = vadd.f32 %v9951, 1e-05
    %v9955 = vadd.f32 %v9952, 1e-05
    %v9956 = vrsqrt.pop %v9953
    %v9957 = vrsqrt.pop %v9954
    %v9958 = vrsqrt.pop %v9955
    %v9959 = vmul.f32 %v9937, %v9956
    %v9960 = vmul.f32 %v9938, %v9957
    %v9961 = vmul.f32 %v9939, %v9958
    %v9963 = vlaneseq
    %v9964 = vshrl.u32 %v9963, 7
    %v9965 = vsub.s32 0, %v9964
    %v9966 = vrot.slane %v9860, %v9965
    %v9968 = vmul.f32 %v9959, %v9966
    %v9969 = vmul.f32 %v9960, %v9966
    %v9970 = vmul.f32 %v9961, %v9966
    %v9972 = vlaneseq
    %v9973 = vshrl.u32 %v9972, 7
    %v9974 = vsub.s32 0, %v9973
    %v9975 = vrot.slane %v9861, %v9974
    %v9977 = vadd.f32 %v9968, %v9975
    %v9978 = vadd.f32 %v9969, %v9975
    %v9979 = vadd.f32 %v9970, %v9975
    %v9980 = vpack.c.bf16 %v9978, %v9977
    %v9981 = vpack.c.bf16 %v9979, %v9979
    %v9983 = vlaneseq
    %v9984 = vshrl.u32 %v9983, 7
    %v9985 = vsub.s32 0, %v9984
    %v9986 = vrot.slane %v9926, %v9985
    %v9987 = vlaneseq
    %v9988 = vshrl.u32 %v9987, 7
    %v9989 = vsub.s32 1, %v9988
    %v9990 = vrot.slane %v9926, %v9989
    %v9991 = vlaneseq
    %v9992 = vshrl.u32 %v9991, 7
    %v9993 = vsub.s32 2, %v9992
    %v9994 = vrot.slane %v9926, %v9993
    %v9995 = vlaneseq
    %v9996 = vshrl.u32 %v9995, 7
    %v9997 = vsub.s32 3, %v9996
    %v9998 = vrot.slane %v9926, %v9997
    %v9999 = vlaneseq
    %v10000 = vshrl.u32 %v9999, 7
    %v10001 = vsub.s32 4, %v10000
    %v10002 = vrot.slane %v9926, %v10001
    %v10003 = vlaneseq
    %v10004 = vshrl.u32 %v10003, 7
    %v10005 = vsub.s32 5, %v10004
    %v10006 = vrot.slane %v9926, %v10005
    %v10007 = vlaneseq
    %v10008 = vshrl.u32 %v10007, 7
    %v10009 = vsub.s32 6, %v10008
    %v10010 = vrot.slane %v9926, %v10009
    %v10011 = vlaneseq
    %v10012 = vshrl.u32 %v10011, 7
    %v10013 = vsub.s32 7, %v10012
    %v10014 = vrot.slane %v9926, %v10013
    %v10087 = vunpack.c.l.b16 %v9862
    %v10088 = vunpack.c.h.b16 %v9862
    %v10089 = vunpack.c.l.b16 %v9863
    %v10090 = vunpack.c.h.b16 %v9863
    %v10091 = vunpack.c.l.b16 %v9864
    %v10092 = vunpack.c.h.b16 %v9864
    %v10093 = vunpack.c.l.b16 %v9865
    %v10094 = vunpack.c.h.b16 %v9865
    %v10095 = vunpack.c.l.b16 %v9866
    %v10096 = vunpack.c.h.b16 %v9866
    %v10097 = vunpack.c.l.b16 %v9867
    %v10098 = vunpack.c.h.b16 %v9867
    %v10099 = vunpack.c.l.b16 %v9868
    %v10100 = vunpack.c.h.b16 %v9868
    %v10101 = vunpack.c.l.b16 %v9869
    %v10102 = vunpack.c.h.b16 %v9869
    %v10103 = vunpack.c.l.b16 %v9870
    %v10104 = vunpack.c.h.b16 %v9870
    %v10105 = vunpack.c.l.b16 %v9871
    %v10106 = vunpack.c.h.b16 %v9871
    %v10107 = vunpack.c.l.b16 %v9872
    %v10108 = vunpack.c.h.b16 %v9872
    %v10109 = vunpack.c.l.b16 %v9873
    %v10110 = vunpack.c.h.b16 %v9873
    %v10111 = vunpack.c.l.b16 %v9874
    %v10112 = vunpack.c.h.b16 %v9874
    %v10113 = vunpack.c.l.b16 %v9875
    %v10114 = vunpack.c.h.b16 %v9875
    %v10115 = vunpack.c.l.b16 %v9876
    %v10116 = vunpack.c.h.b16 %v9876
    %v10117 = vunpack.c.l.b16 %v9877
    %v10118 = vunpack.c.h.b16 %v9877
    %v10119 = vunpack.c.l.b16 %v9878
    %v10120 = vunpack.c.h.b16 %v9878
    %v10121 = vunpack.c.l.b16 %v9879
    %v10122 = vunpack.c.h.b16 %v9879
    %v10123 = vunpack.c.l.b16 %v9880
    %v10124 = vunpack.c.h.b16 %v9880
    %v10125 = vunpack.c.l.b16 %v9881
    %v10126 = vunpack.c.h.b16 %v9881
    %v10127 = vunpack.c.l.b16 %v9882
    %v10128 = vunpack.c.h.b16 %v9882
    %v10129 = vunpack.c.l.b16 %v9883
    %v10130 = vunpack.c.h.b16 %v9883
    %v10131 = vunpack.c.l.b16 %v9884
    %v10132 = vunpack.c.h.b16 %v9884
    %v10133 = vunpack.c.l.b16 %v9885
    %v10134 = vunpack.c.h.b16 %v9885
    %v10135 = vunpack.c.l.b16 %v9886
    %v10136 = vunpack.c.h.b16 %v9886
    %v10137 = vunpack.c.l.b16 %v9887
    %v10138 = vunpack.c.h.b16 %v9887
    %v10139 = vunpack.c.l.b16 %v9888
    %v10140 = vunpack.c.h.b16 %v9888
    %v10141 = vunpack.c.l.b16 %v9889
    %v10142 = vunpack.c.h.b16 %v9889
    %v10143 = vunpack.c.l.b16 %v9890
    %v10144 = vunpack.c.h.b16 %v9890
    %v10145 = vunpack.c.l.b16 %v9891
    %v10146 = vunpack.c.h.b16 %v9891
    %v10147 = vunpack.c.l.b16 %v9892
    %v10148 = vunpack.c.h.b16 %v9892
    %v10149 = vunpack.c.l.b16 %v9893
    %v10150 = vunpack.c.h.b16 %v9893
    %v10151 = vunpack.c.l.b16 %v9894
    %v10152 = vunpack.c.h.b16 %v9894
    %v10153 = vunpack.c.l.b16 %v9895
    %v10154 = vunpack.c.h.b16 %v9895
    %v10155 = vunpack.c.l.b16 %v9896
    %v10156 = vunpack.c.h.b16 %v9896
    %v10157 = vunpack.c.l.b16 %v9897
    %v10158 = vunpack.c.h.b16 %v9897
    %v10159 = vunpack.c.l.b16 %v9898
    %v10160 = vunpack.c.h.b16 %v9898
    %v10161 = vunpack.c.l.b16 %v9899
    %v10162 = vunpack.c.h.b16 %v9899
    %v10163 = vunpack.c.l.b16 %v9900
    %v10164 = vunpack.c.h.b16 %v9900
    %v10165 = vunpack.c.l.b16 %v9901
    %v10166 = vunpack.c.h.b16 %v9901
    %v10167 = vunpack.c.l.b16 %v9902
    %v10168 = vunpack.c.h.b16 %v9902
    %v10169 = vunpack.c.l.b16 %v9903
    %v10170 = vunpack.c.h.b16 %v9903
    %v10171 = vunpack.c.l.b16 %v9904
    %v10172 = vunpack.c.h.b16 %v9904
    %v10173 = vunpack.c.l.b16 %v9905
    %v10174 = vunpack.c.h.b16 %v9905
    %v10175 = vunpack.c.l.b16 %v9906
    %v10176 = vunpack.c.h.b16 %v9906
    %v10177 = vunpack.c.l.b16 %v9907
    %v10178 = vunpack.c.h.b16 %v9907
    %v10179 = vunpack.c.l.b16 %v9908
    %v10180 = vunpack.c.h.b16 %v9908
    %v10181 = vunpack.c.l.b16 %v9909
    %v10182 = vunpack.c.h.b16 %v9909
    %v10183 = vunpack.c.l.b16 %v9910
    %v10184 = vunpack.c.h.b16 %v9910
    %v10185 = vunpack.c.l.b16 %v9911
    %v10186 = vunpack.c.h.b16 %v9911
    %v10187 = vunpack.c.l.b16 %v9912
    %v10188 = vunpack.c.h.b16 %v9912
    %v10189 = vunpack.c.l.b16 %v9913
    %v10190 = vunpack.c.h.b16 %v9913
    %v10191 = vunpack.c.l.b16 %v9914
    %v10192 = vunpack.c.h.b16 %v9914
    %v10193 = vunpack.c.l.b16 %v9915
    %v10194 = vunpack.c.h.b16 %v9915
    %v10195 = vunpack.c.l.b16 %v9916
    %v10196 = vunpack.c.h.b16 %v9916
    %v10197 = vunpack.c.l.b16 %v9917
    %v10198 = vunpack.c.h.b16 %v9917
    %v10199 = vunpack.c.l.b16 %v9918
    %v10200 = vunpack.c.h.b16 %v9918
    %v10201 = vunpack.c.l.b16 %v9919
    %v10202 = vunpack.c.h.b16 %v9919
    %v10203 = vunpack.c.l.b16 %v9920
    %v10204 = vunpack.c.h.b16 %v9920
    %v10205 = vunpack.c.l.b16 %v9921
    %v10206 = vunpack.c.h.b16 %v9921
    %v10207 = vunpack.c.l.b16 %v9922
    %v10208 = vunpack.c.h.b16 %v9922
    %v10209 = vunpack.c.l.b16 %v9923
    %v10210 = vunpack.c.h.b16 %v9923
    %v10211 = vunpack.c.l.b16 %v9924
    %v10212 = vunpack.c.h.b16 %v9924
    %v10213 = vunpack.c.l.b16 %v9925
    %v10214 = vunpack.c.h.b16 %v9925
    %v10215 = vpack.c.b16 %v10095, %v10087
    %v10216 = vpack.c.b16 %v10096, %v10088
    %v10217 = vpack.c.b16 %v10097, %v10089
    %v10218 = vpack.c.b16 %v10098, %v10090
    %v10219 = vpack.c.b16 %v10099, %v10091
    %v10220 = vpack.c.b16 %v10100, %v10092
    %v10221 = vpack.c.b16 %v10101, %v10093
    %v10222 = vpack.c.b16 %v10102, %v10094
    %v10223 = vpack.c.b16 %v10111, %v10103
    %v10224 = vpack.c.b16 %v10112, %v10104
    %v10225 = vpack.c.b16 %v10113, %v10105
    %v10226 = vpack.c.b16 %v10114, %v10106
    %v10227 = vpack.c.b16 %v10115, %v10107
    %v10228 = vpack.c.b16 %v10116, %v10108
    %v10229 = vpack.c.b16 %v10117, %v10109
    %v10230 = vpack.c.b16 %v10118, %v10110
    %v10231 = vpack.c.b16 %v10127, %v10119
    %v10232 = vpack.c.b16 %v10128, %v10120
    %v10233 = vpack.c.b16 %v10129, %v10121
    %v10234 = vpack.c.b16 %v10130, %v10122
    %v10235 = vpack.c.b16 %v10131, %v10123
    %v10236 = vpack.c.b16 %v10132, %v10124
    %v10237 = vpack.c.b16 %v10133, %v10125
    %v10238 = vpack.c.b16 %v10134, %v10126
    %v10239 = vpack.c.b16 %v10143, %v10135
    %v10240 = vpack.c.b16 %v10144, %v10136
    %v10241 = vpack.c.b16 %v10145, %v10137
    %v10242 = vpack.c.b16 %v10146, %v10138
    %v10243 = vpack.c.b16 %v10147, %v10139
    %v10244 = vpack.c.b16 %v10148, %v10140
    %v10245 = vpack.c.b16 %v10149, %v10141
    %v10246 = vpack.c.b16 %v10150, %v10142
    %v10247 = vpack.c.b16 %v10159, %v10151
    %v10248 = vpack.c.b16 %v10160, %v10152
    %v10249 = vpack.c.b16 %v10161, %v10153
    %v10250 = vpack.c.b16 %v10162, %v10154
    %v10251 = vpack.c.b16 %v10163, %v10155
    %v10252 = vpack.c.b16 %v10164, %v10156
    %v10253 = vpack.c.b16 %v10165, %v10157
    %v10254 = vpack.c.b16 %v10166, %v10158
    %v10255 = vpack.c.b16 %v10175, %v10167
    %v10256 = vpack.c.b16 %v10176, %v10168
    %v10257 = vpack.c.b16 %v10177, %v10169
    %v10258 = vpack.c.b16 %v10178, %v10170
    %v10259 = vpack.c.b16 %v10179, %v10171
    %v10260 = vpack.c.b16 %v10180, %v10172
    %v10261 = vpack.c.b16 %v10181, %v10173
    %v10262 = vpack.c.b16 %v10182, %v10174
    %v10263 = vpack.c.b16 %v10191, %v10183
    %v10264 = vpack.c.b16 %v10192, %v10184
    %v10265 = vpack.c.b16 %v10193, %v10185
    %v10266 = vpack.c.b16 %v10194, %v10186
    %v10267 = vpack.c.b16 %v10195, %v10187
    %v10268 = vpack.c.b16 %v10196, %v10188
    %v10269 = vpack.c.b16 %v10197, %v10189
    %v10270 = vpack.c.b16 %v10198, %v10190
    %v10271 = vpack.c.b16 %v10207, %v10199
    %v10272 = vpack.c.b16 %v10208, %v10200
    %v10273 = vpack.c.b16 %v10209, %v10201
    %v10274 = vpack.c.b16 %v10210, %v10202
    %v10275 = vpack.c.b16 %v10211, %v10203
    %v10276 = vpack.c.b16 %v10212, %v10204
    %v10277 = vpack.c.b16 %v10213, %v10205
    %v10278 = vpack.c.b16 %v10214, %v10206
    %10343 = vmatprep.subr.bf16.mxu0 %v10272
    %10344 = vmatpush1.bf16.msra.mxu0 %v10271
    %10345 = vmatprep.subr.bf16.mxu0 %v10264
    %10346 = vmatpush1.bf16.msra.mxu0 %v10263
    %10347 = vmatprep.subr.bf16.mxu0 %v10256
    %10348 = vmatpush1.bf16.msra.mxu0 %v10255
    %10349 = vmatprep.subr.bf16.mxu0 %v10248
    %10350 = vmatpush1.bf16.msra.mxu0 %v10247
    %10351 = vmatprep.subr.bf16.mxu0 %v10240
    %10352 = vmatpush1.bf16.msra.mxu0 %v10239
    %10353 = vmatprep.subr.bf16.mxu0 %v10232
    %10354 = vmatpush1.bf16.msra.mxu0 %v10231
    %10355 = vmatprep.subr.bf16.mxu0 %v10224
    %10356 = vmatpush1.bf16.msra.mxu0 %v10223
    %10357 = vmatprep.subr.bf16.mxu0 %v10216
    %10358 = vmatpush1.bf16.msra.mxu0 %v10215
    %10359 = vmatprep.subr.bf16.mxu0 0
    %10360 = vmatpush2.bf16.msra.mxu0 0
    %10361 = vmatprep.subr.bf16.mxu0 0
    %10362 = vmatpush2.bf16.msra.mxu0 0
    %10363 = vmatprep.subr.bf16.mxu0 0
    %10364 = vmatpush2.bf16.msra.mxu0 0
    %10365 = vmatprep.subr.bf16.mxu0 0
    %10366 = vmatpush2.bf16.msra.mxu0 0
    %10367 = vmatprep.subr.bf16.mxu0 0
    %10368 = vmatpush2.bf16.msra.mxu0 0
    %10369 = vmatprep.subr.bf16.mxu0 0
    %10370 = vmatpush2.bf16.msra.mxu0 0
    %10371 = vmatprep.subr.bf16.mxu0 0
    %10372 = vmatpush2.bf16.msra.mxu0 0
    %10373 = vmatprep.subr.bf16.mxu0 0
    %10374 = vmatpush2.bf16.msra.mxu0 0
    %10375 = vmatprep.mubr.bf16.mxu0 0
    %10376 = vmatmul.mubr.bf16.gmra.mxu0 %v9980
    %v10377 = vpop.f32.mrf.mxu0
    %v10378 = vadd.f32 %v9986, %v10377
    %v10379 = vpop.f32.mrf.mxu0
    %v10380 = vadd.f32 %v9990, %v10379
    %v10381 = vpop.f32.mrf.mxu0
    %v10382 = vadd.f32 %v9986, %v10381
    %v10383 = vpop.f32.mrf.mxu0
    %v10384 = vadd.f32 %v9990, %v10383
    %10385 = vmatprep.mubr.bf16.mxu0 0
    %10386 = vmatmul.mubr.bf16.gmra.mxu0 %v9981
    %v10387 = vpop.f32.mrf.mxu0
    %v10388 = vadd.f32 %v9986, %v10387
    %v10389 = vpop.f32.mrf.mxu0
    %v10390 = vadd.f32 %v9990, %v10389
    %v10391 = vpop.f32.mrf.mxu0
    %v10392 = vpop.f32.mrf.mxu0
    %10393 = vdwg.mxu0
    %10394 = vmatprep.subr.bf16.mxu0 %v10274
    %10395 = vmatpush1.bf16.msra.mxu0 %v10273
    %10396 = vmatprep.subr.bf16.mxu0 %v10266
    %10397 = vmatpush1.bf16.msra.mxu0 %v10265
    %10398 = vmatprep.subr.bf16.mxu0 %v10258
    %10399 = vmatpush1.bf16.msra.mxu0 %v10257
    %10400 = vmatprep.subr.bf16.mxu0 %v10250
    %10401 = vmatpush1.bf16.msra.mxu0 %v10249
    %10402 = vmatprep.subr.bf16.mxu0 %v10242
    %10403 = vmatpush1.bf16.msra.mxu0 %v10241
    %10404 = vmatprep.subr.bf16.mxu0 %v10234
    %10405 = vmatpush1.bf16.msra.mxu0 %v10233
    %10406 = vmatprep.subr.bf16.mxu0 %v10226
    %10407 = vmatpush1.bf16.msra.mxu0 %v10225
    %10408 = vmatprep.subr.bf16.mxu0 %v10218
    %10409 = vmatpush1.bf16.msra.mxu0 %v10217
    %10410 = vmatprep.subr.bf16.mxu0 0
    %10411 = vmatpush2.bf16.msra.mxu0 0
    %10412 = vmatprep.subr.bf16.mxu0 0
    %10413 = vmatpush2.bf16.msra.mxu0 0
    %10414 = vmatprep.subr.bf16.mxu0 0
    %10415 = vmatpush2.bf16.msra.mxu0 0
    %10416 = vmatprep.subr.bf16.mxu0 0
    %10417 = vmatpush2.bf16.msra.mxu0 0
    %10418 = vmatprep.subr.bf16.mxu0 0
    %10419 = vmatpush2.bf16.msra.mxu0 0
    %10420 = vmatprep.subr.bf16.mxu0 0
    %10421 = vmatpush2.bf16.msra.mxu0 0
    %10422 = vmatprep.subr.bf16.mxu0 0
    %10423 = vmatpush2.bf16.msra.mxu0 0
    %10424 = vmatprep.subr.bf16.mxu0 0
    %10425 = vmatpush2.bf16.msra.mxu0 0
    %10426 = vmatprep.mubr.bf16.mxu0 0
    %10427 = vmatmul.mubr.bf16.gmra.mxu0 %v9980
    %v10428 = vpop.f32.mrf.mxu0
    %v10429 = vadd.f32 %v9994, %v10428
    %v10430 = vpop.f32.mrf.mxu0
    %v10431 = vadd.f32 %v9998, %v10430
    %v10432 = vpop.f32.mrf.mxu0
    %v10433 = vadd.f32 %v9994, %v10432
    %v10434 = vpop.f32.mrf.mxu0
    %v10435 = vadd.f32 %v9998, %v10434
    %10436 = vmatprep.mubr.bf16.mxu0 0
    %10437 = vmatmul.mubr.bf16.gmra.mxu0 %v9981
    %v10438 = vpop.f32.mrf.mxu0
    %v10439 = vadd.f32 %v9994, %v10438
    %v10440 = vpop.f32.mrf.mxu0
    %v10441 = vadd.f32 %v9998, %v10440
    %v10442 = vpop.f32.mrf.mxu0
    %v10443 = vpop.f32.mrf.mxu0
    %10444 = vdwg.mxu0
    %10445 = vmatprep.subr.bf16.mxu0 %v10276
    %10446 = vmatpush1.bf16.msra.mxu0 %v10275
    %10447 = vmatprep.subr.bf16.mxu0 %v10268
    %10448 = vmatpush1.bf16.msra.mxu0 %v10267
    %10449 = vmatprep.subr.bf16.mxu0 %v10260
    %10450 = vmatpush1.bf16.msra.mxu0 %v10259
    %10451 = vmatprep.subr.bf16.mxu0 %v10252
    %10452 = vmatpush1.bf16.msra.mxu0 %v10251
    %10453 = vmatprep.subr.bf16.mxu0 %v10244
    %10454 = vmatpush1.bf16.msra.mxu0 %v10243
    %10455 = vmatprep.subr.bf16.mxu0 %v10236
    %10456 = vmatpush1.bf16.msra.mxu0 %v10235
    %10457 = vmatprep.subr.bf16.mxu0 %v10228
    %10458 = vmatpush1.bf16.msra.mxu0 %v10227
    %10459 = vmatprep.subr.bf16.mxu0 %v10220
    %10460 = vmatpush1.bf16.msra.mxu0 %v10219
    %10461 = vmatprep.subr.bf16.mxu0 0
    %10462 = vmatpush2.bf16.msra.mxu0 0
    %10463 = vmatprep.subr.bf16.mxu0 0
    %10464 = vmatpush2.bf16.msra.mxu0 0
    %10465 = vmatprep.subr.bf16.mxu0 0
    %10466 = vmatpush2.bf16.msra.mxu0 0
    %10467 = vmatprep.subr.bf16.mxu0 0
    %10468 = vmatpush2.bf16.msra.mxu0 0
    %10469 = vmatprep.subr.bf16.mxu0 0
    %10470 = vmatpush2.bf16.msra.mxu0 0
    %10471 = vmatprep.subr.bf16.mxu0 0
    %10472 = vmatpush2.bf16.msra.mxu0 0
    %10473 = vmatprep.subr.bf16.mxu0 0
    %10474 = vmatpush2.bf16.msra.mxu0 0
    %10475 = vmatprep.subr.bf16.mxu0 0
    %10476 = vmatpush2.bf16.msra.mxu0 0
    %10477 = vmatprep.mubr.bf16.mxu0 0
    %10478 = vmatmul.mubr.bf16.gmra.mxu0 %v9980
    %v10479 = vpop.f32.mrf.mxu0
    %v10480 = vadd.f32 %v10002, %v10479
    %v10481 = vpop.f32.mrf.mxu0
    %v10482 = vadd.f32 %v10006, %v10481
    %v10483 = vpop.f32.mrf.mxu0
    %v10484 = vadd.f32 %v10002, %v10483
    %v10485 = vpop.f32.mrf.mxu0
    %v10486 = vadd.f32 %v10006, %v10485
    %10487 = vmatprep.mubr.bf16.mxu0 0
    %10488 = vmatmul.mubr.bf16.gmra.mxu0 %v9981
    %v10489 = vpop.f32.mrf.mxu0
    %v10490 = vadd.f32 %v10002, %v10489
    %v10491 = vpop.f32.mrf.mxu0
    %v10492 = vadd.f32 %v10006, %v10491
    %v10493 = vpop.f32.mrf.mxu0
    %v10494 = vpop.f32.mrf.mxu0
    %10495 = vdwg.mxu0
    %10496 = vmatprep.subr.bf16.mxu0 %v10278
    %10497 = vmatpush1.bf16.msra.mxu0 %v10277
    %10498 = vmatprep.subr.bf16.mxu0 %v10270
    %10499 = vmatpush1.bf16.msra.mxu0 %v10269
    %10500 = vmatprep.subr.bf16.mxu0 %v10262
    %10501 = vmatpush1.bf16.msra.mxu0 %v10261
    %10502 = vmatprep.subr.bf16.mxu0 %v10254
    %10503 = vmatpush1.bf16.msra.mxu0 %v10253
    %10504 = vmatprep.subr.bf16.mxu0 %v10246
    %10505 = vmatpush1.bf16.msra.mxu0 %v10245
    %10506 = vmatprep.subr.bf16.mxu0 %v10238
    %10507 = vmatpush1.bf16.msra.mxu0 %v10237
    %10508 = vmatprep.subr.bf16.mxu0 %v10230
    %10509 = vmatpush1.bf16.msra.mxu0 %v10229
    %10510 = vmatprep.subr.bf16.mxu0 %v10222
    %10511 = vmatpush1.bf16.msra.mxu0 %v10221
    %10512 = vmatprep.subr.bf16.mxu0 0
    %10513 = vmatpush2.bf16.msra.mxu0 0
    %10514 = vmatprep.subr.bf16.mxu0 0
    %10515 = vmatpush2.bf16.msra.mxu0 0
    %10516 = vmatprep.subr.bf16.mxu0 0
    %10517 = vmatpush2.bf16.msra.mxu0 0
    %10518 = vmatprep.subr.bf16.mxu0 0
    %10519 = vmatpush2.bf16.msra.mxu0 0
    %10520 = vmatprep.subr.bf16.mxu0 0
    %10521 = vmatpush2.bf16.msra.mxu0 0
    %10522 = vmatprep.subr.bf16.mxu0 0
    %10523 = vmatpush2.bf16.msra.mxu0 0
    %10524 = vmatprep.subr.bf16.mxu0 0
    %10525 = vmatpush2.bf16.msra.mxu0 0
    %10526 = vmatprep.subr.bf16.mxu0 0
    %10527 = vmatpush2.bf16.msra.mxu0 0
    %10528 = vmatprep.mubr.bf16.mxu0 0
    %10529 = vmatmul.mubr.bf16.gmra.mxu0 %v9980
    %v10530 = vpop.f32.mrf.mxu0
    %v10531 = vadd.f32 %v10010, %v10530
    %v10532 = vpop.f32.mrf.mxu0
    %v10533 = vadd.f32 %v10014, %v10532
    %v10534 = vpop.f32.mrf.mxu0
    %v10535 = vadd.f32 %v10010, %v10534
    %v10536 = vpop.f32.mrf.mxu0
    %v10537 = vadd.f32 %v10014, %v10536
    %10538 = vmatprep.mubr.bf16.mxu0 0
    %10539 = vmatmul.mubr.bf16.gmra.mxu0 %v9981
    %v10540 = vpop.f32.mrf.mxu0
    %v10541 = vadd.f32 %v10010, %v10540
    %v10542 = vpop.f32.mrf.mxu0
    %v10543 = vadd.f32 %v10014, %v10542
    %v10544 = vpop.f32.mrf.mxu0
    %v10545 = vpop.f32.mrf.mxu0
    %10546 = vdwg.mxu0
    %10547 = vst [vmem:[#allocation38] sm:$0xff] %v10378
    %10548 = vst [vmem:[#allocation38 + $0x8] sm:$0xff] %v10380
    %10549 = vst [vmem:[#allocation38 + $0x10] sm:$0xff] %v10429
    %10550 = vst [vmem:[#allocation38 + $0x18] sm:$0xff] %v10431
    %10551 = vst [vmem:[#allocation38 + $0x20] sm:$0xff] %v10480
    %10552 = vst [vmem:[#allocation38 + $0x28] sm:$0xff] %v10482
    %10553 = vst [vmem:[#allocation38 + $0x30] sm:$0xff] %v10531
    %10554 = vst [vmem:[#allocation38 + $0x38] sm:$0xff] %v10533
    %10555 = vst [vmem:[#allocation38 + $0x40] sm:$0xff] %v10382
    %10556 = vst [vmem:[#allocation38 + $0x48] sm:$0xff] %v10384
    %10557 = vst [vmem:[#allocation38 + $0x50] sm:$0xff] %v10433
    %10558 = vst [vmem:[#allocation38 + $0x58] sm:$0xff] %v10435
    %10559 = vst [vmem:[#allocation38 + $0x60] sm:$0xff] %v10484
    %10560 = vst [vmem:[#allocation38 + $0x68] sm:$0xff] %v10486
    %10561 = vst [vmem:[#allocation38 + $0x70] sm:$0xff] %v10535
    %10562 = vst [vmem:[#allocation38 + $0x78] sm:$0xff] %v10537
    %10563 = vst [vmem:[#allocation38 + $0x80] sm:$0xf] %v10388
    %10564 = vst [vmem:[#allocation38 + $0x88] sm:$0xf] %v10390
    %10565 = vst [vmem:[#allocation38 + $0x90] sm:$0xf] %v10439
    %10566 = vst [vmem:[#allocation38 + $0x98] sm:$0xf] %v10441
    %10567 = vst [vmem:[#allocation38 + $0xa0] sm:$0xf] %v10490
    %10568 = vst [vmem:[#allocation38 + $0xa8] sm:$0xf] %v10492
    %10569 = vst [vmem:[#allocation38 + $0xb0] sm:$0xf] %v10541
    %10570 = vst [vmem:[#allocation38 + $0xb8] sm:$0xf] %v10543
    // Predicated region
    $region210: #{tpu_custom_call.1} parent=1 // pred_check
      _
    $region211: #{tpu_custom_call.1} parent=1 // pred_check_branch
      %10572 = sbr.rel (0) target = $region213
    $region212: #{tpu_custom_call.1} parent=1 // pred_region
      %s10574 = ssub.s32 3072, 3072
      %10575 = vsyncadd [#allocation4], %s10574
      %s10576 = sshll.u32 [#allocation38], 4
      %s10577 = int_to_ptr.vmem [resolvable:$true] %s10576
      %10582 = dma.vmem_to_hbm [thread:$0]  %s10577, 3072, %s59, [#allocation4], 1024, 1024, 64
    $region213: #{tpu_custom_call.1} parent=1 // pred_fallthru
      _
    // Predicated region
    $region214: #{tpu_custom_call.1} parent=1 // pred_check
      _
    $region215: #{tpu_custom_call.1} parent=1 // pred_check_branch
      %10584 = sbr.rel (0) target = $region217
    $region216: #{tpu_custom_call.1} parent=1 // pred_region
      %10585 = dma.done [#allocation4], 3072
    $region217: #{tpu_custom_call.1} parent=1 // pred_fallthru
      _
    %10586 = vsyncpa [#allocation3], 1
    %10587 = vsyncpa [#allocation6], 1
    %10588 = vsyncpa [#allocation9], 1
    %10589 = vsyncpa [#allocation12], 1
    %10590 = vsyncpa [#allocation15], 1
    %10591 = vsyncpa [#allocation18], 1
    %10592 = vsyncpa [#allocation21], 1
    %10593 = vsyncpa [#allocation24], 1
    %10594 = vsyncpa [#allocation27], 1
    %10595 = vsyncpa [#allocation30], 1
    %10596 = vsyncpa [#allocation33], 1
    %10597 = vsyncpa [#allocation36], 1
    %10598 = vsyncpa [#allocation4], 1

</llo_original>
